<compile_context>
chip_gen: v7x
topology: tpu7x:2x2x1
jax: 0.10.0
libtpu: 0.0.40
codegen_flags: <defaults>
</compile_context>

<pallas_src>
import math
import functools

import jax
import jax.numpy as jnp
from jax.experimental import pallas as pl
from jax.experimental.pallas import tpu as pltpu


# ---------------------------------------------------------------------------
# In-kernel building blocks (operate on VMEM refs / values, single batch elem)
# ---------------------------------------------------------------------------

def _mab_block(KVx, Qx, p, num_heads):
    """MAB.forward(K, V, Q) for one batch element, ln=False path.

    KVx : (Nk, dK) value used for both K and V (always the case in SetTransformer).
    Qx  : (Nq, dQ) value.
    p   : dict of VMEM refs: wq (dQ,dV), bq (1,dV), wkv (dK,2dV), bkv (1,2dV),
          wo (dV,dV), bo (1,dV).  wkv/bkv pack [wk * 1/sqrt(dV) | wv].
    """
    dV = p["wo"].shape[0]
    ds = dV // num_heads

    # Wide input projections (MXU matmuls, K/V fused into one 2*dV-lane matmul).
    Q = jnp.dot(Qx, p["wq"][...], preferred_element_type=jnp.float32) + p["bq"][...]
    KV = jnp.dot(KVx, p["wkv"][...], preferred_element_type=jnp.float32) + p["bkv"][...]
    K = KV[:, :dV]          # already scaled by 1/sqrt(dim_V) (folded into wkv/bkv)
    V = KV[:, dV:]

    # Head-batched attention: leading head dim, batched dot_generals.
    Qh = jnp.stack([Q[:, h * ds:(h + 1) * ds] for h in range(num_heads)], axis=0)
    Kh = jnp.stack([K[:, h * ds:(h + 1) * ds] for h in range(num_heads)], axis=0)
    Vh = jnp.stack([V[:, h * ds:(h + 1) * ds] for h in range(num_heads)], axis=0)

    S = jnp.einsum("hqd,hkd->hqk", Qh, Kh,
                   preferred_element_type=jnp.float32)            # (H, Nq, Nk)
    S = S - jnp.max(S, axis=-1, keepdims=True)
    P = jnp.exp(S)
    A = P * pl.reciprocal(jnp.sum(P, axis=-1, keepdims=True), approx=True)
    Oh = Qh + jnp.einsum("hqk,hkd->hqd", A, Vh,
                         preferred_element_type=jnp.float32)      # (H, Nq, ds)

    O = jnp.concatenate([Oh[h] for h in range(num_heads)], axis=-1)   # (Nq, dV)
    Hf = jnp.dot(O, p["wo"][...], preferred_element_type=jnp.float32) + p["bo"][...]
    return O + jnp.maximum(Hf, 0.0)                                   # O + relu(fc_o(O))


def _forward_one(x, pr, num_heads):
    """Whole SetTransformer forward for one batch element; all values in VMEM."""
    # encoder: ISAB0, ISAB1
    for name in ("isab0", "isab1"):
        blk = pr[name]
        H = _mab_block(x, blk["I"][...], blk["mab0"], num_heads)   # mab0(X, X, I)
        x = _mab_block(H, x, blk["mab1"], num_heads)               # mab1(H, H, X)
    # decoder: PMA, SAB, SAB, Linear (final Linear fused here too)
    x = _mab_block(x, pr["pma"]["S"][...], pr["pma"]["mab"], num_heads)
    x = _mab_block(x, x, pr["sab0"]["mab"], num_heads)
    x = _mab_block(x, x, pr["sab1"]["mab"], num_heads)
    return jnp.dot(x, pr["fc_w"][...], preferred_element_type=jnp.float32) + pr["fc_b"][...]


# ---------------------------------------------------------------------------
# Parameter preparation (offline weight packing / scale folding, pure JAX)
# ---------------------------------------------------------------------------

def _prepare_mab(raw, dim_V):
    scale = 1.0 / math.sqrt(dim_V)    # PyTorch scales by sqrt(dim_V), not head_dim
    return {
        "wq": raw["wq"], "bq": raw["bq"],
        "wkv": jnp.concatenate([raw["wk"] * scale, raw["wv"]], axis=1),
        "bkv": jnp.concatenate([raw["bk"] * scale, raw["bv"]], axis=1),
        "wo": raw["wo"], "bo": raw["bo"],
    }


def prepare_params(raw):
    dH = raw["isab0"]["mab0"]["wq"].shape[1]
    return {
        "isab0": {"I": raw["isab0"]["I"][0],
                  "mab0": _prepare_mab(raw["isab0"]["mab0"], dH),
                  "mab1": _prepare_mab(raw["isab0"]["mab1"], dH)},
        "isab1": {"I": raw["isab1"]["I"][0],
                  "mab0": _prepare_mab(raw["isab1"]["mab0"], dH),
                  "mab1": _prepare_mab(raw["isab1"]["mab1"], dH)},
        "pma": {"S": raw["pma"]["S"][0],
                "mab": _prepare_mab(raw["pma"]["mab"], dH)},
        "sab0": {"mab": _prepare_mab(raw["sab0"]["mab"], dH)},
        "sab1": {"mab": _prepare_mab(raw["sab1"]["mab"], dH)},
        "fc_w": raw["fc_w"], "fc_b": raw["fc_b"],
    }


# ---------------------------------------------------------------------------
# Fused pallas_call wrapper
# ---------------------------------------------------------------------------

def set_transformer_forward(X, raw_params, num_heads):
    prep = prepare_params(raw_params)
    flat, treedef = jax.tree_util.tree_flatten(prep)
    n_params = len(flat)

    B, N, d_in = X.shape
    num_outputs = prep["pma"]["S"].shape[0]
    dim_output = prep["fc_w"].shape[1]

    def kernel(x_ref, *rest):
        pr = jax.tree_util.tree_unflatten(treedef, list(rest[:n_params]))
        o_ref = rest[n_params]
        o_ref[...] = _forward_one(x_ref[...], pr, num_heads)

    # Params: full-array blocks, constant index map (stay VMEM-resident across grid).
    param_specs = [pl.BlockSpec(tuple(p.shape), lambda b, nd=p.ndim: (0,) * nd)
                   for p in flat]

    grid_spec = pltpu.PrefetchScalarGridSpec(
        num_scalar_prefetch=0,
        grid=(B,),                                           # one batch element / step
        in_specs=[pl.BlockSpec((None, N, d_in), lambda b: (b, 0, 0))] + param_specs,
        out_specs=pl.BlockSpec((None, num_outputs, dim_output), lambda b: (b, 0, 0)),
    )

    return pl.pallas_call(
        kernel,
        out_shape=jax.ShapeDtypeStruct((B, num_outputs, dim_output), jnp.float32),
        grid_spec=grid_spec,
        compiler_params=pltpu.CompilerParams(dimension_semantics=("parallel",)),
    )(X, *flat)


# ---------------------------------------------------------------------------
# Deterministic parameter init (shapes match the nn.Module __init__)
# ---------------------------------------------------------------------------

def _init_dense(key, din, dout):
    k1, k2 = jax.random.split(key)
    bound = 1.0 / math.sqrt(din)
    w = jax.random.uniform(k1, (din, dout), jnp.float32, -bound, bound)
    b = jax.random.uniform(k2, (1, dout), jnp.float32, -bound, bound)
    return w, b


def _init_mab(key, dQ, dK, dV):
    kq, kk, kv, ko = jax.random.split(key, 4)
    wq, bq = _init_dense(kq, dQ, dV)
    wk, bk = _init_dense(kk, dK, dV)
    wv, bv = _init_dense(kv, dK, dV)
    wo, bo = _init_dense(ko, dV, dV)
    return dict(wq=wq, bq=bq, wk=wk, bk=bk, wv=wv, bv=bv, wo=wo, bo=bo)


def _xavier_3d(key, shape):
    fan_in = shape[1] * shape[2]
    fan_out = shape[0] * shape[2]
    bound = math.sqrt(6.0 / (fan_in + fan_out))
    return jax.random.uniform(key, shape, jnp.float32, -bound, bound)


def init_set_transformer(key, dim_input, num_outputs, dim_output,
                         num_inds, dim_hidden, num_heads):
    keys = jax.random.split(key, 12)
    params = {
        "isab0": {
            "I": _xavier_3d(keys[0], (1, num_inds, dim_hidden)),
            "mab0": _init_mab(keys[1], dim_hidden, dim_input, dim_hidden),
            "mab1": _init_mab(keys[2], dim_input, dim_hidden, dim_hidden),
        },
        "isab1": {
            "I": _xavier_3d(keys[3], (1, num_inds, dim_hidden)),
            "mab0": _init_mab(keys[4], dim_hidden, dim_hidden, dim_hidden),
            "mab1": _init_mab(keys[5], dim_hidden, dim_hidden, dim_hidden),
        },
        "pma": {
            "S": _xavier_3d(keys[6], (1, num_outputs, dim_hidden)),
            "mab": _init_mab(keys[7], dim_hidden, dim_hidden, dim_hidden),
        },
        "sab0": {"mab": _init_mab(keys[8], dim_hidden, dim_hidden, dim_hidden)},
        "sab1": {"mab": _init_mab(keys[9], dim_hidden, dim_hidden, dim_hidden)},
    }
    fc_w, fc_b = _init_dense(keys[10], dim_hidden, dim_output)
    params["fc_w"], params["fc_b"] = fc_w, fc_b
    return params


# ---------------------------------------------------------------------------
# Pure-JAX reference (mirrors the PyTorch MAB math) for a correctness check
# ---------------------------------------------------------------------------

def _mab_ref(Kx, Vx, Qx, p, H):
    Q = jnp.einsum("bnd,de->bne", Qx, p["wq"]) + p["bq"]
    K = jnp.einsum("bnd,de->bne", Kx, p["wk"]) + p["bk"]
    V = jnp.einsum("bnd,de->bne", Vx, p["wv"]) + p["bv"]
    dV = p["wq"].shape[1]
    ds = dV // H
    Qh = Q.reshape(Q.shape[0], Q.shape[1], H, ds)
    Kh = K.reshape(K.shape[0], K.shape[1], H, ds)
    Vh = V.reshape(V.shape[0], V.shape[1], H, ds)
    A = jax.nn.softmax(jnp.einsum("bqhd,bkhd->bhqk", Qh, Kh) / math.sqrt(dV), axis=-1)
    O = Qh + jnp.einsum("bhqk,bkhd->bqhd", A, Vh)
    O = O.reshape(O.shape[0], O.shape[1], dV)
    return O + jax.nn.relu(jnp.einsum("bnd,de->bne", O, p["wo"]) + p["bo"])


def set_transformer_ref(X, p, H):
    def isab(x, q):
        I = jnp.broadcast_to(q["I"], (x.shape[0],) + q["I"].shape[1:])
        h = _mab_ref(x, x, I, q["mab0"], H)
        return _mab_ref(h, h, x, q["mab1"], H)
    X = isab(X, p["isab0"])
    X = isab(X, p["isab1"])
    S = jnp.broadcast_to(p["pma"]["S"], (X.shape[0],) + p["pma"]["S"].shape[1:])
    X = _mab_ref(X, X, S, p["pma"]["mab"], H)
    X = _mab_ref(X, X, X, p["sab0"]["mab"], H)
    X = _mab_ref(X, X, X, p["sab1"]["mab"], H)
    return jnp.einsum("bnd,de->bne", X, p["fc_w"]) + p["fc_b"]


# ---------------------------------------------------------------------------

if __name__ == "__main__":
    B, N = 2, 8                 # batch of sets, set size
    dim_input = 4
    dim_hidden = 32
    num_heads = 4
    num_inds = 8
    num_outputs = 4             # PMA seeds
    dim_output = 16

    key = jax.random.PRNGKey(0)
    kx, kp = jax.random.split(key)
    X = jax.random.normal(kx, (B, N, dim_input), jnp.float32)

    params = init_set_transformer(kp, dim_input, num_outputs, dim_output,
                                  num_inds, dim_hidden, num_heads)

    fwd = jax.jit(set_transformer_forward, static_argnums=(2,))
    out = jax.block_until_ready(fwd(X, params, num_heads))

    assert out.shape == (B, num_outputs, dim_output), out.shape
    assert bool(jnp.all(jnp.isfinite(out)))

    ref = set_transformer_ref(X, params, num_heads)
    max_err = float(jnp.max(jnp.abs(out - ref)))
    assert max_err < 5e-2, f"kernel/reference mismatch: {max_err}"

    print("KERNEL_OK")
</pallas_src>

<mosaic_0001>
module attributes {stable_mosaic.version = 11 : i64} {
  func.func @kernel(%arg0: i32, %arg1: memref<1x8x4xf32, #tpu.memory_space<vmem>>, %arg2: memref<1x16xf32, #tpu.memory_space<vmem>>, %arg3: memref<32x16xf32, #tpu.memory_space<vmem>>, %arg4: memref<8x32xf32, #tpu.memory_space<vmem>>, %arg5: memref<1x64xf32, #tpu.memory_space<vmem>>, %arg6: memref<1x32xf32, #tpu.memory_space<vmem>>, %arg7: memref<1x32xf32, #tpu.memory_space<vmem>>, %arg8: memref<4x64xf32, #tpu.memory_space<vmem>>, %arg9: memref<32x32xf32, #tpu.memory_space<vmem>>, %arg10: memref<32x32xf32, #tpu.memory_space<vmem>>, %arg11: memref<1x64xf32, #tpu.memory_space<vmem>>, %arg12: memref<1x32xf32, #tpu.memory_space<vmem>>, %arg13: memref<1x32xf32, #tpu.memory_space<vmem>>, %arg14: memref<32x64xf32, #tpu.memory_space<vmem>>, %arg15: memref<32x32xf32, #tpu.memory_space<vmem>>, %arg16: memref<4x32xf32, #tpu.memory_space<vmem>>, %arg17: memref<8x32xf32, #tpu.memory_space<vmem>>, %arg18: memref<1x64xf32, #tpu.memory_space<vmem>>, %arg19: memref<1x32xf32, #tpu.memory_space<vmem>>, %arg20: memref<1x32xf32, #tpu.memory_space<vmem>>, %arg21: memref<32x64xf32, #tpu.memory_space<vmem>>, %arg22: memref<32x32xf32, #tpu.memory_space<vmem>>, %arg23: memref<32x32xf32, #tpu.memory_space<vmem>>, %arg24: memref<1x64xf32, #tpu.memory_space<vmem>>, %arg25: memref<1x32xf32, #tpu.memory_space<vmem>>, %arg26: memref<1x32xf32, #tpu.memory_space<vmem>>, %arg27: memref<32x64xf32, #tpu.memory_space<vmem>>, %arg28: memref<32x32xf32, #tpu.memory_space<vmem>>, %arg29: memref<32x32xf32, #tpu.memory_space<vmem>>, %arg30: memref<4x32xf32, #tpu.memory_space<vmem>>, %arg31: memref<1x64xf32, #tpu.memory_space<vmem>>, %arg32: memref<1x32xf32, #tpu.memory_space<vmem>>, %arg33: memref<1x32xf32, #tpu.memory_space<vmem>>, %arg34: memref<32x64xf32, #tpu.memory_space<vmem>>, %arg35: memref<32x32xf32, #tpu.memory_space<vmem>>, %arg36: memref<32x32xf32, #tpu.memory_space<vmem>>, %arg37: memref<1x64xf32, #tpu.memory_space<vmem>>, %arg38: memref<1x32xf32, #tpu.memory_space<vmem>>, %arg39: memref<1x32xf32, #tpu.memory_space<vmem>>, %arg40: memref<32x64xf32, #tpu.memory_space<vmem>>, %arg41: memref<32x32xf32, #tpu.memory_space<vmem>>, %arg42: memref<32x32xf32, #tpu.memory_space<vmem>>, %arg43: memref<1x64xf32, #tpu.memory_space<vmem>>, %arg44: memref<1x32xf32, #tpu.memory_space<vmem>>, %arg45: memref<1x32xf32, #tpu.memory_space<vmem>>, %arg46: memref<32x64xf32, #tpu.memory_space<vmem>>, %arg47: memref<32x32xf32, #tpu.memory_space<vmem>>, %arg48: memref<32x32xf32, #tpu.memory_space<vmem>>, %arg49: memref<1x4x16xf32, #tpu.memory_space<vmem>>) attributes {dimension_semantics = [#tpu.dimension_semantics<parallel>], iteration_bounds = array<i64: 2>, scalar_prefetch = 0 : i64, scratch_operands = 0 : i64, tpu.core_type = #tpu.core_type<tc>, window_params = [{transform_indices = @transform_0, window_bounds = array<i64: 1, 8, 4>}, {pipeline_mode = #tpu.pipeline_mode<synchronous>, transform_indices = @transform_1, window_bounds = array<i64: 1, 16>}, {pipeline_mode = #tpu.pipeline_mode<synchronous>, transform_indices = @transform_2, window_bounds = array<i64: 32, 16>}, {pipeline_mode = #tpu.pipeline_mode<synchronous>, transform_indices = @transform_3, window_bounds = array<i64: 8, 32>}, {pipeline_mode = #tpu.pipeline_mode<synchronous>, transform_indices = @transform_4, window_bounds = array<i64: 1, 64>}, {pipeline_mode = #tpu.pipeline_mode<synchronous>, transform_indices = @transform_5, window_bounds = array<i64: 1, 32>}, {pipeline_mode = #tpu.pipeline_mode<synchronous>, transform_indices = @transform_6, window_bounds = array<i64: 1, 32>}, {pipeline_mode = #tpu.pipeline_mode<synchronous>, transform_indices = @transform_7, window_bounds = array<i64: 4, 64>}, {pipeline_mode = #tpu.pipeline_mode<synchronous>, transform_indices = @transform_8, window_bounds = array<i64: 32, 32>}, {pipeline_mode = #tpu.pipeline_mode<synchronous>, transform_indices = @transform_9, window_bounds = array<i64: 32, 32>}, {pipeline_mode = #tpu.pipeline_mode<synchronous>, transform_indices = @transform_10, window_bounds = array<i64: 1, 64>}, {pipeline_mode = #tpu.pipeline_mode<synchronous>, transform_indices = @transform_11, window_bounds = array<i64: 1, 32>}, {pipeline_mode = #tpu.pipeline_mode<synchronous>, transform_indices = @transform_12, window_bounds = array<i64: 1, 32>}, {pipeline_mode = #tpu.pipeline_mode<synchronous>, transform_indices = @transform_13, window_bounds = array<i64: 32, 64>}, {pipeline_mode = #tpu.pipeline_mode<synchronous>, transform_indices = @transform_14, window_bounds = array<i64: 32, 32>}, {pipeline_mode = #tpu.pipeline_mode<synchronous>, transform_indices = @transform_15, window_bounds = array<i64: 4, 32>}, {pipeline_mode = #tpu.pipeline_mode<synchronous>, transform_indices = @transform_16, window_bounds = array<i64: 8, 32>}, {pipeline_mode = #tpu.pipeline_mode<synchronous>, transform_indices = @transform_17, window_bounds = array<i64: 1, 64>}, {pipeline_mode = #tpu.pipeline_mode<synchronous>, transform_indices = @transform_18, window_bounds = array<i64: 1, 32>}, {pipeline_mode = #tpu.pipeline_mode<synchronous>, transform_indices = @transform_19, window_bounds = array<i64: 1, 32>}, {pipeline_mode = #tpu.pipeline_mode<synchronous>, transform_indices = @transform_20, window_bounds = array<i64: 32, 64>}, {pipeline_mode = #tpu.pipeline_mode<synchronous>, transform_indices = @transform_21, window_bounds = array<i64: 32, 32>}, {pipeline_mode = #tpu.pipeline_mode<synchronous>, transform_indices = @transform_22, window_bounds = array<i64: 32, 32>}, {pipeline_mode = #tpu.pipeline_mode<synchronous>, transform_indices = @transform_23, window_bounds = array<i64: 1, 64>}, {pipeline_mode = #tpu.pipeline_mode<synchronous>, transform_indices = @transform_24, window_bounds = array<i64: 1, 32>}, {pipeline_mode = #tpu.pipeline_mode<synchronous>, transform_indices = @transform_25, window_bounds = array<i64: 1, 32>}, {pipeline_mode = #tpu.pipeline_mode<synchronous>, transform_indices = @transform_26, window_bounds = array<i64: 32, 64>}, {pipeline_mode = #tpu.pipeline_mode<synchronous>, transform_indices = @transform_27, window_bounds = array<i64: 32, 32>}, {pipeline_mode = #tpu.pipeline_mode<synchronous>, transform_indices = @transform_28, window_bounds = array<i64: 32, 32>}, {pipeline_mode = #tpu.pipeline_mode<synchronous>, transform_indices = @transform_29, window_bounds = array<i64: 4, 32>}, {pipeline_mode = #tpu.pipeline_mode<synchronous>, transform_indices = @transform_30, window_bounds = array<i64: 1, 64>}, {pipeline_mode = #tpu.pipeline_mode<synchronous>, transform_indices = @transform_31, window_bounds = array<i64: 1, 32>}, {pipeline_mode = #tpu.pipeline_mode<synchronous>, transform_indices = @transform_32, window_bounds = array<i64: 1, 32>}, {pipeline_mode = #tpu.pipeline_mode<synchronous>, transform_indices = @transform_33, window_bounds = array<i64: 32, 64>}, {pipeline_mode = #tpu.pipeline_mode<synchronous>, transform_indices = @transform_34, window_bounds = array<i64: 32, 32>}, {pipeline_mode = #tpu.pipeline_mode<synchronous>, transform_indices = @transform_35, window_bounds = array<i64: 32, 32>}, {pipeline_mode = #tpu.pipeline_mode<synchronous>, transform_indices = @transform_36, window_bounds = array<i64: 1, 64>}, {pipeline_mode = #tpu.pipeline_mode<synchronous>, transform_indices = @transform_37, window_bounds = array<i64: 1, 32>}, {pipeline_mode = #tpu.pipeline_mode<synchronous>, transform_indices = @transform_38, window_bounds = array<i64: 1, 32>}, {pipeline_mode = #tpu.pipeline_mode<synchronous>, transform_indices = @transform_39, window_bounds = array<i64: 32, 64>}, {pipeline_mode = #tpu.pipeline_mode<synchronous>, transform_indices = @transform_40, window_bounds = array<i64: 32, 32>}, {pipeline_mode = #tpu.pipeline_mode<synchronous>, transform_indices = @transform_41, window_bounds = array<i64: 32, 32>}, {pipeline_mode = #tpu.pipeline_mode<synchronous>, transform_indices = @transform_42, window_bounds = array<i64: 1, 64>}, {pipeline_mode = #tpu.pipeline_mode<synchronous>, transform_indices = @transform_43, window_bounds = array<i64: 1, 32>}, {pipeline_mode = #tpu.pipeline_mode<synchronous>, transform_indices = @transform_44, window_bounds = array<i64: 1, 32>}, {pipeline_mode = #tpu.pipeline_mode<synchronous>, transform_indices = @transform_45, window_bounds = array<i64: 32, 64>}, {pipeline_mode = #tpu.pipeline_mode<synchronous>, transform_indices = @transform_46, window_bounds = array<i64: 32, 32>}, {pipeline_mode = #tpu.pipeline_mode<synchronous>, transform_indices = @transform_47, window_bounds = array<i64: 32, 32>}, {transform_indices = @transform_48, window_bounds = array<i64: 1, 4, 16>}]} {
    %c0 = arith.constant 0 : index
    %c0_0 = arith.constant 0 : index
    %c0_1 = arith.constant 0 : index
    %0 = vector.load %arg1[%c0, %c0_0, %c0_1] : memref<1x8x4xf32, #tpu.memory_space<vmem>>, vector<1x8x4xf32>
    %1 = vector.shape_cast %0 : vector<1x8x4xf32> to vector<8x4xf32>
    %c0_2 = arith.constant 0 : index
    %c0_3 = arith.constant 0 : index
    %2 = vector.load %arg4[%c0_2, %c0_3] : memref<8x32xf32, #tpu.memory_space<vmem>>, vector<8x32xf32>
    %c0_4 = arith.constant 0 : index
    %c0_5 = arith.constant 0 : index
    %3 = vector.load %arg10[%c0_4, %c0_5] : memref<32x32xf32, #tpu.memory_space<vmem>>, vector<32x32xf32>
    %cst = arith.constant dense<0.000000e+00> : vector<8x32xf32>
    %4 = tpu.matmul %2, %3, %cst {dimension_numbers = #tpu.dot_dimension_numbers<[1], [0], [0], [1], [0, 0, 1, 1], [], []>} : vector<8x32xf32>, vector<32x32xf32>, vector<8x32xf32> -> vector<8x32xf32>
    %c0_6 = arith.constant 0 : index
    %c0_7 = arith.constant 0 : index
    %5 = vector.load %arg7[%c0_6, %c0_7] : memref<1x32xf32, #tpu.memory_space<vmem>>, vector<1x32xf32>
    %6 = vector.broadcast %5 : vector<1x32xf32> to vector<8x32xf32>
    %7 = arith.addf %4, %6 : vector<8x32xf32>
    %c0_8 = arith.constant 0 : index
    %c0_9 = arith.constant 0 : index
    %8 = vector.load %arg8[%c0_8, %c0_9] : memref<4x64xf32, #tpu.memory_space<vmem>>, vector<4x64xf32>
    %cst_10 = arith.constant dense<0.000000e+00> : vector<8x64xf32>
    %9 = tpu.matmul %1, %8, %cst_10 {dimension_numbers = #tpu.dot_dimension_numbers<[1], [0], [0], [1], [0, 0, 1, 1], [], []>} : vector<8x4xf32>, vector<4x64xf32>, vector<8x64xf32> -> vector<8x64xf32>
    %c0_11 = arith.constant 0 : index
    %c0_12 = arith.constant 0 : index
    %10 = vector.load %arg5[%c0_11, %c0_12] : memref<1x64xf32, #tpu.memory_space<vmem>>, vector<1x64xf32>
    %11 = vector.broadcast %10 : vector<1x64xf32> to vector<8x64xf32>
    %12 = arith.addf %9, %11 : vector<8x64xf32>
    %13 = vector.extract_strided_slice %12 {offsets = [0, 0], sizes = [8, 32], strides = [1, 1]} : vector<8x64xf32> to vector<8x32xf32>
    %14 = vector.extract_strided_slice %12 {offsets = [0, 32], sizes = [8, 32], strides = [1, 1]} : vector<8x64xf32> to vector<8x32xf32>
    %15 = vector.extract_strided_slice %7 {offsets = [0, 0], sizes = [8, 8], strides = [1, 1]} : vector<8x32xf32> to vector<8x8xf32>
    %16 = vector.extract_strided_slice %7 {offsets = [0, 8], sizes = [8, 8], strides = [1, 1]} : vector<8x32xf32> to vector<8x8xf32>
    %17 = vector.extract_strided_slice %7 {offsets = [0, 16], sizes = [8, 8], strides = [1, 1]} : vector<8x32xf32> to vector<8x8xf32>
    %18 = vector.extract_strided_slice %7 {offsets = [0, 24], sizes = [8, 8], strides = [1, 1]} : vector<8x32xf32> to vector<8x8xf32>
    %19 = vector.shape_cast %15 : vector<8x8xf32> to vector<1x8x8xf32>
    %20 = vector.shape_cast %16 : vector<8x8xf32> to vector<1x8x8xf32>
    %21 = vector.shape_cast %17 : vector<8x8xf32> to vector<1x8x8xf32>
    %22 = vector.shape_cast %18 : vector<8x8xf32> to vector<1x8x8xf32>
    %23 = tpu.concatenate %19, %20, %21, %22 in 0 : vector<1x8x8xf32>, vector<1x8x8xf32>, vector<1x8x8xf32>, vector<1x8x8xf32> -> vector<4x8x8xf32>
    %24 = vector.extract_strided_slice %13 {offsets = [0, 0], sizes = [8, 8], strides = [1, 1]} : vector<8x32xf32> to vector<8x8xf32>
    %25 = vector.extract_strided_slice %13 {offsets = [0, 8], sizes = [8, 8], strides = [1, 1]} : vector<8x32xf32> to vector<8x8xf32>
    %26 = vector.extract_strided_slice %13 {offsets = [0, 16], sizes = [8, 8], strides = [1, 1]} : vector<8x32xf32> to vector<8x8xf32>
    %27 = vector.extract_strided_slice %13 {offsets = [0, 24], sizes = [8, 8], strides = [1, 1]} : vector<8x32xf32> to vector<8x8xf32>
    %28 = vector.shape_cast %24 : vector<8x8xf32> to vector<1x8x8xf32>
    %29 = vector.shape_cast %25 : vector<8x8xf32> to vector<1x8x8xf32>
    %30 = vector.shape_cast %26 : vector<8x8xf32> to vector<1x8x8xf32>
    %31 = vector.shape_cast %27 : vector<8x8xf32> to vector<1x8x8xf32>
    %32 = tpu.concatenate %28, %29, %30, %31 in 0 : vector<1x8x8xf32>, vector<1x8x8xf32>, vector<1x8x8xf32>, vector<1x8x8xf32> -> vector<4x8x8xf32>
    %33 = vector.extract_strided_slice %14 {offsets = [0, 0], sizes = [8, 8], strides = [1, 1]} : vector<8x32xf32> to vector<8x8xf32>
    %34 = vector.extract_strided_slice %14 {offsets = [0, 8], sizes = [8, 8], strides = [1, 1]} : vector<8x32xf32> to vector<8x8xf32>
    %35 = vector.extract_strided_slice %14 {offsets = [0, 16], sizes = [8, 8], strides = [1, 1]} : vector<8x32xf32> to vector<8x8xf32>
    %36 = vector.extract_strided_slice %14 {offsets = [0, 24], sizes = [8, 8], strides = [1, 1]} : vector<8x32xf32> to vector<8x8xf32>
    %37 = vector.shape_cast %33 : vector<8x8xf32> to vector<1x8x8xf32>
    %38 = vector.shape_cast %34 : vector<8x8xf32> to vector<1x8x8xf32>
    %39 = vector.shape_cast %35 : vector<8x8xf32> to vector<1x8x8xf32>
    %40 = vector.shape_cast %36 : vector<8x8xf32> to vector<1x8x8xf32>
    %41 = tpu.concatenate %37, %38, %39, %40 in 0 : vector<1x8x8xf32>, vector<1x8x8xf32>, vector<1x8x8xf32>, vector<1x8x8xf32> -> vector<4x8x8xf32>
    "tpu.trace_start"() <{level = 10 : i32, message = "hqd,hkd->hqk"}> : () -> ()
    %cst_13 = arith.constant dense<0.000000e+00> : vector<4x8x8xf32>
    %42 = tpu.matmul %23, %32, %cst_13 {dimension_numbers = #tpu.dot_dimension_numbers<[2], [2], [1], [1], [0, 0, 0, 1, 1, 1], [0], [0]>} : vector<4x8x8xf32>, vector<4x8x8xf32>, vector<4x8x8xf32> -> vector<4x8x8xf32>
    "tpu.trace_stop"() : () -> ()
    %cst_14 = arith.constant dense<0xFF800000> : vector<4x8xf32>
    %43 = vector.multi_reduction <maximumf>, %42, %cst_14 [2] : vector<4x8x8xf32> to vector<4x8xf32>
    %44 = vector.shape_cast %43 : vector<4x8xf32> to vector<4x8x1xf32>
    %45 = vector.broadcast %44 : vector<4x8x1xf32> to vector<4x8x8xf32>
    %46 = arith.subf %42, %45 : vector<4x8x8xf32>
    %47 = math.exp %46 : vector<4x8x8xf32>
    %cst_15 = arith.constant dense<0.000000e+00> : vector<4x8xf32>
    %48 = vector.multi_reduction <add>, %47, %cst_15 [2] : vector<4x8x8xf32> to vector<4x8xf32>
    %49 = vector.shape_cast %48 : vector<4x8xf32> to vector<4x8x1xf32>
    %50 = tpu.reciprocal %49 {approx = true} : vector<4x8x1xf32> -> vector<4x8x1xf32>
    %51 = vector.broadcast %50 : vector<4x8x1xf32> to vector<4x8x8xf32>
    %52 = arith.mulf %47, %51 : vector<4x8x8xf32>
    "tpu.trace_start"() <{level = 10 : i32, message = "hqk,hkd->hqd"}> : () -> ()
    %cst_16 = arith.constant dense<0.000000e+00> : vector<4x8x8xf32>
    %53 = tpu.matmul %52, %41, %cst_16 {dimension_numbers = #tpu.dot_dimension_numbers<[2], [1], [1], [2], [0, 0, 0, 1, 1, 2], [0], [0]>} : vector<4x8x8xf32>, vector<4x8x8xf32>, vector<4x8x8xf32> -> vector<4x8x8xf32>
    "tpu.trace_stop"() : () -> ()
    %54 = arith.addf %23, %53 : vector<4x8x8xf32>
    %55 = vector.extract_strided_slice %54 {offsets = [0, 0, 0], sizes = [1, 8, 8], strides = [1, 1, 1]} : vector<4x8x8xf32> to vector<1x8x8xf32>
    %56 = vector.shape_cast %55 : vector<1x8x8xf32> to vector<8x8xf32>
    %57 = vector.extract_strided_slice %54 {offsets = [1, 0, 0], sizes = [1, 8, 8], strides = [1, 1, 1]} : vector<4x8x8xf32> to vector<1x8x8xf32>
    %58 = vector.shape_cast %57 : vector<1x8x8xf32> to vector<8x8xf32>
    %59 = vector.extract_strided_slice %54 {offsets = [2, 0, 0], sizes = [1, 8, 8], strides = [1, 1, 1]} : vector<4x8x8xf32> to vector<1x8x8xf32>
    %60 = vector.shape_cast %59 : vector<1x8x8xf32> to vector<8x8xf32>
    %61 = vector.extract_strided_slice %54 {offsets = [3, 0, 0], sizes = [1, 8, 8], strides = [1, 1, 1]} : vector<4x8x8xf32> to vector<1x8x8xf32>
    %62 = vector.shape_cast %61 : vector<1x8x8xf32> to vector<8x8xf32>
    %63 = tpu.concatenate %56, %58, %60, %62 in 1 : vector<8x8xf32>, vector<8x8xf32>, vector<8x8xf32>, vector<8x8xf32> -> vector<8x32xf32>
    %c0_17 = arith.constant 0 : index
    %c0_18 = arith.constant 0 : index
    %64 = vector.load %arg9[%c0_17, %c0_18] : memref<32x32xf32, #tpu.memory_space<vmem>>, vector<32x32xf32>
    %cst_19 = arith.constant dense<0.000000e+00> : vector<8x32xf32>
    %65 = tpu.matmul %63, %64, %cst_19 {dimension_numbers = #tpu.dot_dimension_numbers<[1], [0], [0], [1], [0, 0, 1, 1], [], []>} : vector<8x32xf32>, vector<32x32xf32>, vector<8x32xf32> -> vector<8x32xf32>
    %c0_20 = arith.constant 0 : index
    %c0_21 = arith.constant 0 : index
    %66 = vector.load %arg6[%c0_20, %c0_21] : memref<1x32xf32, #tpu.memory_space<vmem>>, vector<1x32xf32>
    %67 = vector.broadcast %66 : vector<1x32xf32> to vector<8x32xf32>
    %68 = arith.addf %65, %67 : vector<8x32xf32>
    %cst_22 = arith.constant 0.000000e+00 : f32
    %69 = vector.broadcast %cst_22 : f32 to vector<8x32xf32>
    %70 = arith.maximumf %68, %69 : vector<8x32xf32>
    %71 = arith.addf %63, %70 : vector<8x32xf32>
    %c0_23 = arith.constant 0 : index
    %c0_24 = arith.constant 0 : index
    %72 = vector.load %arg16[%c0_23, %c0_24] : memref<4x32xf32, #tpu.memory_space<vmem>>, vector<4x32xf32>
    %cst_25 = arith.constant dense<0.000000e+00> : vector<8x32xf32>
    %73 = tpu.matmul %1, %72, %cst_25 {dimension_numbers = #tpu.dot_dimension_numbers<[1], [0], [0], [1], [0, 0, 1, 1], [], []>} : vector<8x4xf32>, vector<4x32xf32>, vector<8x32xf32> -> vector<8x32xf32>
    %c0_26 = arith.constant 0 : index
    %c0_27 = arith.constant 0 : index
    %74 = vector.load %arg13[%c0_26, %c0_27] : memref<1x32xf32, #tpu.memory_space<vmem>>, vector<1x32xf32>
    %75 = vector.broadcast %74 : vector<1x32xf32> to vector<8x32xf32>
    %76 = arith.addf %73, %75 : vector<8x32xf32>
    %c0_28 = arith.constant 0 : index
    %c0_29 = arith.constant 0 : index
    %77 = vector.load %arg14[%c0_28, %c0_29] : memref<32x64xf32, #tpu.memory_space<vmem>>, vector<32x64xf32>
    %cst_30 = arith.constant dense<0.000000e+00> : vector<8x64xf32>
    %78 = tpu.matmul %71, %77, %cst_30 {dimension_numbers = #tpu.dot_dimension_numbers<[1], [0], [0], [1], [0, 0, 1, 1], [], []>} : vector<8x32xf32>, vector<32x64xf32>, vector<8x64xf32> -> vector<8x64xf32>
    %c0_31 = arith.constant 0 : index
    %c0_32 = arith.constant 0 : index
    %79 = vector.load %arg11[%c0_31, %c0_32] : memref<1x64xf32, #tpu.memory_space<vmem>>, vector<1x64xf32>
    %80 = vector.broadcast %79 : vector<1x64xf32> to vector<8x64xf32>
    %81 = arith.addf %78, %80 : vector<8x64xf32>
    %82 = vector.extract_strided_slice %81 {offsets = [0, 0], sizes = [8, 32], strides = [1, 1]} : vector<8x64xf32> to vector<8x32xf32>
    %83 = vector.extract_strided_slice %81 {offsets = [0, 32], sizes = [8, 32], strides = [1, 1]} : vector<8x64xf32> to vector<8x32xf32>
    %84 = vector.extract_strided_slice %76 {offsets = [0, 0], sizes = [8, 8], strides = [1, 1]} : vector<8x32xf32> to vector<8x8xf32>
    %85 = vector.extract_strided_slice %76 {offsets = [0, 8], sizes = [8, 8], strides = [1, 1]} : vector<8x32xf32> to vector<8x8xf32>
    %86 = vector.extract_strided_slice %76 {offsets = [0, 16], sizes = [8, 8], strides = [1, 1]} : vector<8x32xf32> to vector<8x8xf32>
    %87 = vector.extract_strided_slice %76 {offsets = [0, 24], sizes = [8, 8], strides = [1, 1]} : vector<8x32xf32> to vector<8x8xf32>
    %88 = vector.shape_cast %84 : vector<8x8xf32> to vector<1x8x8xf32>
    %89 = vector.shape_cast %85 : vector<8x8xf32> to vector<1x8x8xf32>
    %90 = vector.shape_cast %86 : vector<8x8xf32> to vector<1x8x8xf32>
    %91 = vector.shape_cast %87 : vector<8x8xf32> to vector<1x8x8xf32>
    %92 = tpu.concatenate %88, %89, %90, %91 in 0 : vector<1x8x8xf32>, vector<1x8x8xf32>, vector<1x8x8xf32>, vector<1x8x8xf32> -> vector<4x8x8xf32>
    %93 = vector.extract_strided_slice %82 {offsets = [0, 0], sizes = [8, 8], strides = [1, 1]} : vector<8x32xf32> to vector<8x8xf32>
    %94 = vector.extract_strided_slice %82 {offsets = [0, 8], sizes = [8, 8], strides = [1, 1]} : vector<8x32xf32> to vector<8x8xf32>
    %95 = vector.extract_strided_slice %82 {offsets = [0, 16], sizes = [8, 8], strides = [1, 1]} : vector<8x32xf32> to vector<8x8xf32>
    %96 = vector.extract_strided_slice %82 {offsets = [0, 24], sizes = [8, 8], strides = [1, 1]} : vector<8x32xf32> to vector<8x8xf32>
    %97 = vector.shape_cast %93 : vector<8x8xf32> to vector<1x8x8xf32>
    %98 = vector.shape_cast %94 : vector<8x8xf32> to vector<1x8x8xf32>
    %99 = vector.shape_cast %95 : vector<8x8xf32> to vector<1x8x8xf32>
    %100 = vector.shape_cast %96 : vector<8x8xf32> to vector<1x8x8xf32>
    %101 = tpu.concatenate %97, %98, %99, %100 in 0 : vector<1x8x8xf32>, vector<1x8x8xf32>, vector<1x8x8xf32>, vector<1x8x8xf32> -> vector<4x8x8xf32>
    %102 = vector.extract_strided_slice %83 {offsets = [0, 0], sizes = [8, 8], strides = [1, 1]} : vector<8x32xf32> to vector<8x8xf32>
    %103 = vector.extract_strided_slice %83 {offsets = [0, 8], sizes = [8, 8], strides = [1, 1]} : vector<8x32xf32> to vector<8x8xf32>
    %104 = vector.extract_strided_slice %83 {offsets = [0, 16], sizes = [8, 8], strides = [1, 1]} : vector<8x32xf32> to vector<8x8xf32>
    %105 = vector.extract_strided_slice %83 {offsets = [0, 24], sizes = [8, 8], strides = [1, 1]} : vector<8x32xf32> to vector<8x8xf32>
    %106 = vector.shape_cast %102 : vector<8x8xf32> to vector<1x8x8xf32>
    %107 = vector.shape_cast %103 : vector<8x8xf32> to vector<1x8x8xf32>
    %108 = vector.shape_cast %104 : vector<8x8xf32> to vector<1x8x8xf32>
    %109 = vector.shape_cast %105 : vector<8x8xf32> to vector<1x8x8xf32>
    %110 = tpu.concatenate %106, %107, %108, %109 in 0 : vector<1x8x8xf32>, vector<1x8x8xf32>, vector<1x8x8xf32>, vector<1x8x8xf32> -> vector<4x8x8xf32>
    "tpu.trace_start"() <{level = 10 : i32, message = "hqd,hkd->hqk"}> : () -> ()
    %cst_33 = arith.constant dense<0.000000e+00> : vector<4x8x8xf32>
    %111 = tpu.matmul %92, %101, %cst_33 {dimension_numbers = #tpu.dot_dimension_numbers<[2], [2], [1], [1], [0, 0, 0, 1, 1, 1], [0], [0]>} : vector<4x8x8xf32>, vector<4x8x8xf32>, vector<4x8x8xf32> -> vector<4x8x8xf32>
    "tpu.trace_stop"() : () -> ()
    %cst_34 = arith.constant dense<0xFF800000> : vector<4x8xf32>
    %112 = vector.multi_reduction <maximumf>, %111, %cst_34 [2] : vector<4x8x8xf32> to vector<4x8xf32>
    %113 = vector.shape_cast %112 : vector<4x8xf32> to vector<4x8x1xf32>
    %114 = vector.broadcast %113 : vector<4x8x1xf32> to vector<4x8x8xf32>
    %115 = arith.subf %111, %114 : vector<4x8x8xf32>
    %116 = math.exp %115 : vector<4x8x8xf32>
    %cst_35 = arith.constant dense<0.000000e+00> : vector<4x8xf32>
    %117 = vector.multi_reduction <add>, %116, %cst_35 [2] : vector<4x8x8xf32> to vector<4x8xf32>
    %118 = vector.shape_cast %117 : vector<4x8xf32> to vector<4x8x1xf32>
    %119 = tpu.reciprocal %118 {approx = true} : vector<4x8x1xf32> -> vector<4x8x1xf32>
    %120 = vector.broadcast %119 : vector<4x8x1xf32> to vector<4x8x8xf32>
    %121 = arith.mulf %116, %120 : vector<4x8x8xf32>
    "tpu.trace_start"() <{level = 10 : i32, message = "hqk,hkd->hqd"}> : () -> ()
    %cst_36 = arith.constant dense<0.000000e+00> : vector<4x8x8xf32>
    %122 = tpu.matmul %121, %110, %cst_36 {dimension_numbers = #tpu.dot_dimension_numbers<[2], [1], [1], [2], [0, 0, 0, 1, 1, 2], [0], [0]>} : vector<4x8x8xf32>, vector<4x8x8xf32>, vector<4x8x8xf32> -> vector<4x8x8xf32>
    "tpu.trace_stop"() : () -> ()
    %123 = arith.addf %92, %122 : vector<4x8x8xf32>
    %124 = vector.extract_strided_slice %123 {offsets = [0, 0, 0], sizes = [1, 8, 8], strides = [1, 1, 1]} : vector<4x8x8xf32> to vector<1x8x8xf32>
    %125 = vector.shape_cast %124 : vector<1x8x8xf32> to vector<8x8xf32>
    %126 = vector.extract_strided_slice %123 {offsets = [1, 0, 0], sizes = [1, 8, 8], strides = [1, 1, 1]} : vector<4x8x8xf32> to vector<1x8x8xf32>
    %127 = vector.shape_cast %126 : vector<1x8x8xf32> to vector<8x8xf32>
    %128 = vector.extract_strided_slice %123 {offsets = [2, 0, 0], sizes = [1, 8, 8], strides = [1, 1, 1]} : vector<4x8x8xf32> to vector<1x8x8xf32>
    %129 = vector.shape_cast %128 : vector<1x8x8xf32> to vector<8x8xf32>
    %130 = vector.extract_strided_slice %123 {offsets = [3, 0, 0], sizes = [1, 8, 8], strides = [1, 1, 1]} : vector<4x8x8xf32> to vector<1x8x8xf32>
    %131 = vector.shape_cast %130 : vector<1x8x8xf32> to vector<8x8xf32>
    %132 = tpu.concatenate %125, %127, %129, %131 in 1 : vector<8x8xf32>, vector<8x8xf32>, vector<8x8xf32>, vector<8x8xf32> -> vector<8x32xf32>
    %c0_37 = arith.constant 0 : index
    %c0_38 = arith.constant 0 : index
    %133 = vector.load %arg15[%c0_37, %c0_38] : memref<32x32xf32, #tpu.memory_space<vmem>>, vector<32x32xf32>
    %cst_39 = arith.constant dense<0.000000e+00> : vector<8x32xf32>
    %134 = tpu.matmul %132, %133, %cst_39 {dimension_numbers = #tpu.dot_dimension_numbers<[1], [0], [0], [1], [0, 0, 1, 1], [], []>} : vector<8x32xf32>, vector<32x32xf32>, vector<8x32xf32> -> vector<8x32xf32>
    %c0_40 = arith.constant 0 : index
    %c0_41 = arith.constant 0 : index
    %135 = vector.load %arg12[%c0_40, %c0_41] : memref<1x32xf32, #tpu.memory_space<vmem>>, vector<1x32xf32>
    %136 = vector.broadcast %135 : vector<1x32xf32> to vector<8x32xf32>
    %137 = arith.addf %134, %136 : vector<8x32xf32>
    %cst_42 = arith.constant 0.000000e+00 : f32
    %138 = vector.broadcast %cst_42 : f32 to vector<8x32xf32>
    %139 = arith.maximumf %137, %138 : vector<8x32xf32>
    %140 = arith.addf %132, %139 : vector<8x32xf32>
    %c0_43 = arith.constant 0 : index
    %c0_44 = arith.constant 0 : index
    %141 = vector.load %arg17[%c0_43, %c0_44] : memref<8x32xf32, #tpu.memory_space<vmem>>, vector<8x32xf32>
    %c0_45 = arith.constant 0 : index
    %c0_46 = arith.constant 0 : index
    %142 = vector.load %arg23[%c0_45, %c0_46] : memref<32x32xf32, #tpu.memory_space<vmem>>, vector<32x32xf32>
    %cst_47 = arith.constant dense<0.000000e+00> : vector<8x32xf32>
    %143 = tpu.matmul %141, %142, %cst_47 {dimension_numbers = #tpu.dot_dimension_numbers<[1], [0], [0], [1], [0, 0, 1, 1], [], []>} : vector<8x32xf32>, vector<32x32xf32>, vector<8x32xf32> -> vector<8x32xf32>
    %c0_48 = arith.constant 0 : index
    %c0_49 = arith.constant 0 : index
    %144 = vector.load %arg20[%c0_48, %c0_49] : memref<1x32xf32, #tpu.memory_space<vmem>>, vector<1x32xf32>
    %145 = vector.broadcast %144 : vector<1x32xf32> to vector<8x32xf32>
    %146 = arith.addf %143, %145 : vector<8x32xf32>
    %c0_50 = arith.constant 0 : index
    %c0_51 = arith.constant 0 : index
    %147 = vector.load %arg21[%c0_50, %c0_51] : memref<32x64xf32, #tpu.memory_space<vmem>>, vector<32x64xf32>
    %cst_52 = arith.constant dense<0.000000e+00> : vector<8x64xf32>
    %148 = tpu.matmul %140, %147, %cst_52 {dimension_numbers = #tpu.dot_dimension_numbers<[1], [0], [0], [1], [0, 0, 1, 1], [], []>} : vector<8x32xf32>, vector<32x64xf32>, vector<8x64xf32> -> vector<8x64xf32>
    %c0_53 = arith.constant 0 : index
    %c0_54 = arith.constant 0 : index
    %149 = vector.load %arg18[%c0_53, %c0_54] : memref<1x64xf32, #tpu.memory_space<vmem>>, vector<1x64xf32>
    %150 = vector.broadcast %149 : vector<1x64xf32> to vector<8x64xf32>
    %151 = arith.addf %148, %150 : vector<8x64xf32>
    %152 = vector.extract_strided_slice %151 {offsets = [0, 0], sizes = [8, 32], strides = [1, 1]} : vector<8x64xf32> to vector<8x32xf32>
    %153 = vector.extract_strided_slice %151 {offsets = [0, 32], sizes = [8, 32], strides = [1, 1]} : vector<8x64xf32> to vector<8x32xf32>
    %154 = vector.extract_strided_slice %146 {offsets = [0, 0], sizes = [8, 8], strides = [1, 1]} : vector<8x32xf32> to vector<8x8xf32>
    %155 = vector.extract_strided_slice %146 {offsets = [0, 8], sizes = [8, 8], strides = [1, 1]} : vector<8x32xf32> to vector<8x8xf32>
    %156 = vector.extract_strided_slice %146 {offsets = [0, 16], sizes = [8, 8], strides = [1, 1]} : vector<8x32xf32> to vector<8x8xf32>
    %157 = vector.extract_strided_slice %146 {offsets = [0, 24], sizes = [8, 8], strides = [1, 1]} : vector<8x32xf32> to vector<8x8xf32>
    %158 = vector.shape_cast %154 : vector<8x8xf32> to vector<1x8x8xf32>
    %159 = vector.shape_cast %155 : vector<8x8xf32> to vector<1x8x8xf32>
    %160 = vector.shape_cast %156 : vector<8x8xf32> to vector<1x8x8xf32>
    %161 = vector.shape_cast %157 : vector<8x8xf32> to vector<1x8x8xf32>
    %162 = tpu.concatenate %158, %159, %160, %161 in 0 : vector<1x8x8xf32>, vector<1x8x8xf32>, vector<1x8x8xf32>, vector<1x8x8xf32> -> vector<4x8x8xf32>
    %163 = vector.extract_strided_slice %152 {offsets = [0, 0], sizes = [8, 8], strides = [1, 1]} : vector<8x32xf32> to vector<8x8xf32>
    %164 = vector.extract_strided_slice %152 {offsets = [0, 8], sizes = [8, 8], strides = [1, 1]} : vector<8x32xf32> to vector<8x8xf32>
    %165 = vector.extract_strided_slice %152 {offsets = [0, 16], sizes = [8, 8], strides = [1, 1]} : vector<8x32xf32> to vector<8x8xf32>
    %166 = vector.extract_strided_slice %152 {offsets = [0, 24], sizes = [8, 8], strides = [1, 1]} : vector<8x32xf32> to vector<8x8xf32>
    %167 = vector.shape_cast %163 : vector<8x8xf32> to vector<1x8x8xf32>
    %168 = vector.shape_cast %164 : vector<8x8xf32> to vector<1x8x8xf32>
    %169 = vector.shape_cast %165 : vector<8x8xf32> to vector<1x8x8xf32>
    %170 = vector.shape_cast %166 : vector<8x8xf32> to vector<1x8x8xf32>
    %171 = tpu.concatenate %167, %168, %169, %170 in 0 : vector<1x8x8xf32>, vector<1x8x8xf32>, vector<1x8x8xf32>, vector<1x8x8xf32> -> vector<4x8x8xf32>
    %172 = vector.extract_strided_slice %153 {offsets = [0, 0], sizes = [8, 8], strides = [1, 1]} : vector<8x32xf32> to vector<8x8xf32>
    %173 = vector.extract_strided_slice %153 {offsets = [0, 8], sizes = [8, 8], strides = [1, 1]} : vector<8x32xf32> to vector<8x8xf32>
    %174 = vector.extract_strided_slice %153 {offsets = [0, 16], sizes = [8, 8], strides = [1, 1]} : vector<8x32xf32> to vector<8x8xf32>
    %175 = vector.extract_strided_slice %153 {offsets = [0, 24], sizes = [8, 8], strides = [1, 1]} : vector<8x32xf32> to vector<8x8xf32>
    %176 = vector.shape_cast %172 : vector<8x8xf32> to vector<1x8x8xf32>
    %177 = vector.shape_cast %173 : vector<8x8xf32> to vector<1x8x8xf32>
    %178 = vector.shape_cast %174 : vector<8x8xf32> to vector<1x8x8xf32>
    %179 = vector.shape_cast %175 : vector<8x8xf32> to vector<1x8x8xf32>
    %180 = tpu.concatenate %176, %177, %178, %179 in 0 : vector<1x8x8xf32>, vector<1x8x8xf32>, vector<1x8x8xf32>, vector<1x8x8xf32> -> vector<4x8x8xf32>
    "tpu.trace_start"() <{level = 10 : i32, message = "hqd,hkd->hqk"}> : () -> ()
    %cst_55 = arith.constant dense<0.000000e+00> : vector<4x8x8xf32>
    %181 = tpu.matmul %162, %171, %cst_55 {dimension_numbers = #tpu.dot_dimension_numbers<[2], [2], [1], [1], [0, 0, 0, 1, 1, 1], [0], [0]>} : vector<4x8x8xf32>, vector<4x8x8xf32>, vector<4x8x8xf32> -> vector<4x8x8xf32>
    "tpu.trace_stop"() : () -> ()
    %cst_56 = arith.constant dense<0xFF800000> : vector<4x8xf32>
    %182 = vector.multi_reduction <maximumf>, %181, %cst_56 [2] : vector<4x8x8xf32> to vector<4x8xf32>
    %183 = vector.shape_cast %182 : vector<4x8xf32> to vector<4x8x1xf32>
    %184 = vector.broadcast %183 : vector<4x8x1xf32> to vector<4x8x8xf32>
    %185 = arith.subf %181, %184 : vector<4x8x8xf32>
    %186 = math.exp %185 : vector<4x8x8xf32>
    %cst_57 = arith.constant dense<0.000000e+00> : vector<4x8xf32>
    %187 = vector.multi_reduction <add>, %186, %cst_57 [2] : vector<4x8x8xf32> to vector<4x8xf32>
    %188 = vector.shape_cast %187 : vector<4x8xf32> to vector<4x8x1xf32>
    %189 = tpu.reciprocal %188 {approx = true} : vector<4x8x1xf32> -> vector<4x8x1xf32>
    %190 = vector.broadcast %189 : vector<4x8x1xf32> to vector<4x8x8xf32>
    %191 = arith.mulf %186, %190 : vector<4x8x8xf32>
    "tpu.trace_start"() <{level = 10 : i32, message = "hqk,hkd->hqd"}> : () -> ()
    %cst_58 = arith.constant dense<0.000000e+00> : vector<4x8x8xf32>
    %192 = tpu.matmul %191, %180, %cst_58 {dimension_numbers = #tpu.dot_dimension_numbers<[2], [1], [1], [2], [0, 0, 0, 1, 1, 2], [0], [0]>} : vector<4x8x8xf32>, vector<4x8x8xf32>, vector<4x8x8xf32> -> vector<4x8x8xf32>
    "tpu.trace_stop"() : () -> ()
    %193 = arith.addf %162, %192 : vector<4x8x8xf32>
    %194 = vector.extract_strided_slice %193 {offsets = [0, 0, 0], sizes = [1, 8, 8], strides = [1, 1, 1]} : vector<4x8x8xf32> to vector<1x8x8xf32>
    %195 = vector.shape_cast %194 : vector<1x8x8xf32> to vector<8x8xf32>
    %196 = vector.extract_strided_slice %193 {offsets = [1, 0, 0], sizes = [1, 8, 8], strides = [1, 1, 1]} : vector<4x8x8xf32> to vector<1x8x8xf32>
    %197 = vector.shape_cast %196 : vector<1x8x8xf32> to vector<8x8xf32>
    %198 = vector.extract_strided_slice %193 {offsets = [2, 0, 0], sizes = [1, 8, 8], strides = [1, 1, 1]} : vector<4x8x8xf32> to vector<1x8x8xf32>
    %199 = vector.shape_cast %198 : vector<1x8x8xf32> to vector<8x8xf32>
    %200 = vector.extract_strided_slice %193 {offsets = [3, 0, 0], sizes = [1, 8, 8], strides = [1, 1, 1]} : vector<4x8x8xf32> to vector<1x8x8xf32>
    %201 = vector.shape_cast %200 : vector<1x8x8xf32> to vector<8x8xf32>
    %202 = tpu.concatenate %195, %197, %199, %201 in 1 : vector<8x8xf32>, vector<8x8xf32>, vector<8x8xf32>, vector<8x8xf32> -> vector<8x32xf32>
    %c0_59 = arith.constant 0 : index
    %c0_60 = arith.constant 0 : index
    %203 = vector.load %arg22[%c0_59, %c0_60] : memref<32x32xf32, #tpu.memory_space<vmem>>, vector<32x32xf32>
    %cst_61 = arith.constant dense<0.000000e+00> : vector<8x32xf32>
    %204 = tpu.matmul %202, %203, %cst_61 {dimension_numbers = #tpu.dot_dimension_numbers<[1], [0], [0], [1], [0, 0, 1, 1], [], []>} : vector<8x32xf32>, vector<32x32xf32>, vector<8x32xf32> -> vector<8x32xf32>
    %c0_62 = arith.constant 0 : index
    %c0_63 = arith.constant 0 : index
    %205 = vector.load %arg19[%c0_62, %c0_63] : memref<1x32xf32, #tpu.memory_space<vmem>>, vector<1x32xf32>
    %206 = vector.broadcast %205 : vector<1x32xf32> to vector<8x32xf32>
    %207 = arith.addf %204, %206 : vector<8x32xf32>
    %cst_64 = arith.constant 0.000000e+00 : f32
    %208 = vector.broadcast %cst_64 : f32 to vector<8x32xf32>
    %209 = arith.maximumf %207, %208 : vector<8x32xf32>
    %210 = arith.addf %202, %209 : vector<8x32xf32>
    %c0_65 = arith.constant 0 : index
    %c0_66 = arith.constant 0 : index
    %211 = vector.load %arg29[%c0_65, %c0_66] : memref<32x32xf32, #tpu.memory_space<vmem>>, vector<32x32xf32>
    %cst_67 = arith.constant dense<0.000000e+00> : vector<8x32xf32>
    %212 = tpu.matmul %140, %211, %cst_67 {dimension_numbers = #tpu.dot_dimension_numbers<[1], [0], [0], [1], [0, 0, 1, 1], [], []>} : vector<8x32xf32>, vector<32x32xf32>, vector<8x32xf32> -> vector<8x32xf32>
    %c0_68 = arith.constant 0 : index
    %c0_69 = arith.constant 0 : index
    %213 = vector.load %arg26[%c0_68, %c0_69] : memref<1x32xf32, #tpu.memory_space<vmem>>, vector<1x32xf32>
    %214 = vector.broadcast %213 : vector<1x32xf32> to vector<8x32xf32>
    %215 = arith.addf %212, %214 : vector<8x32xf32>
    %c0_70 = arith.constant 0 : index
    %c0_71 = arith.constant 0 : index
    %216 = vector.load %arg27[%c0_70, %c0_71] : memref<32x64xf32, #tpu.memory_space<vmem>>, vector<32x64xf32>
    %cst_72 = arith.constant dense<0.000000e+00> : vector<8x64xf32>
    %217 = tpu.matmul %210, %216, %cst_72 {dimension_numbers = #tpu.dot_dimension_numbers<[1], [0], [0], [1], [0, 0, 1, 1], [], []>} : vector<8x32xf32>, vector<32x64xf32>, vector<8x64xf32> -> vector<8x64xf32>
    %c0_73 = arith.constant 0 : index
    %c0_74 = arith.constant 0 : index
    %218 = vector.load %arg24[%c0_73, %c0_74] : memref<1x64xf32, #tpu.memory_space<vmem>>, vector<1x64xf32>
    %219 = vector.broadcast %218 : vector<1x64xf32> to vector<8x64xf32>
    %220 = arith.addf %217, %219 : vector<8x64xf32>
    %221 = vector.extract_strided_slice %220 {offsets = [0, 0], sizes = [8, 32], strides = [1, 1]} : vector<8x64xf32> to vector<8x32xf32>
    %222 = vector.extract_strided_slice %220 {offsets = [0, 32], sizes = [8, 32], strides = [1, 1]} : vector<8x64xf32> to vector<8x32xf32>
    %223 = vector.extract_strided_slice %215 {offsets = [0, 0], sizes = [8, 8], strides = [1, 1]} : vector<8x32xf32> to vector<8x8xf32>
    %224 = vector.extract_strided_slice %215 {offsets = [0, 8], sizes = [8, 8], strides = [1, 1]} : vector<8x32xf32> to vector<8x8xf32>
    %225 = vector.extract_strided_slice %215 {offsets = [0, 16], sizes = [8, 8], strides = [1, 1]} : vector<8x32xf32> to vector<8x8xf32>
    %226 = vector.extract_strided_slice %215 {offsets = [0, 24], sizes = [8, 8], strides = [1, 1]} : vector<8x32xf32> to vector<8x8xf32>
    %227 = vector.shape_cast %223 : vector<8x8xf32> to vector<1x8x8xf32>
    %228 = vector.shape_cast %224 : vector<8x8xf32> to vector<1x8x8xf32>
    %229 = vector.shape_cast %225 : vector<8x8xf32> to vector<1x8x8xf32>
    %230 = vector.shape_cast %226 : vector<8x8xf32> to vector<1x8x8xf32>
    %231 = tpu.concatenate %227, %228, %229, %230 in 0 : vector<1x8x8xf32>, vector<1x8x8xf32>, vector<1x8x8xf32>, vector<1x8x8xf32> -> vector<4x8x8xf32>
    %232 = vector.extract_strided_slice %221 {offsets = [0, 0], sizes = [8, 8], strides = [1, 1]} : vector<8x32xf32> to vector<8x8xf32>
    %233 = vector.extract_strided_slice %221 {offsets = [0, 8], sizes = [8, 8], strides = [1, 1]} : vector<8x32xf32> to vector<8x8xf32>
    %234 = vector.extract_strided_slice %221 {offsets = [0, 16], sizes = [8, 8], strides = [1, 1]} : vector<8x32xf32> to vector<8x8xf32>
    %235 = vector.extract_strided_slice %221 {offsets = [0, 24], sizes = [8, 8], strides = [1, 1]} : vector<8x32xf32> to vector<8x8xf32>
    %236 = vector.shape_cast %232 : vector<8x8xf32> to vector<1x8x8xf32>
    %237 = vector.shape_cast %233 : vector<8x8xf32> to vector<1x8x8xf32>
    %238 = vector.shape_cast %234 : vector<8x8xf32> to vector<1x8x8xf32>
    %239 = vector.shape_cast %235 : vector<8x8xf32> to vector<1x8x8xf32>
    %240 = tpu.concatenate %236, %237, %238, %239 in 0 : vector<1x8x8xf32>, vector<1x8x8xf32>, vector<1x8x8xf32>, vector<1x8x8xf32> -> vector<4x8x8xf32>
    %241 = vector.extract_strided_slice %222 {offsets = [0, 0], sizes = [8, 8], strides = [1, 1]} : vector<8x32xf32> to vector<8x8xf32>
    %242 = vector.extract_strided_slice %222 {offsets = [0, 8], sizes = [8, 8], strides = [1, 1]} : vector<8x32xf32> to vector<8x8xf32>
    %243 = vector.extract_strided_slice %222 {offsets = [0, 16], sizes = [8, 8], strides = [1, 1]} : vector<8x32xf32> to vector<8x8xf32>
    %244 = vector.extract_strided_slice %222 {offsets = [0, 24], sizes = [8, 8], strides = [1, 1]} : vector<8x32xf32> to vector<8x8xf32>
    %245 = vector.shape_cast %241 : vector<8x8xf32> to vector<1x8x8xf32>
    %246 = vector.shape_cast %242 : vector<8x8xf32> to vector<1x8x8xf32>
    %247 = vector.shape_cast %243 : vector<8x8xf32> to vector<1x8x8xf32>
    %248 = vector.shape_cast %244 : vector<8x8xf32> to vector<1x8x8xf32>
    %249 = tpu.concatenate %245, %246, %247, %248 in 0 : vector<1x8x8xf32>, vector<1x8x8xf32>, vector<1x8x8xf32>, vector<1x8x8xf32> -> vector<4x8x8xf32>
    "tpu.trace_start"() <{level = 10 : i32, message = "hqd,hkd->hqk"}> : () -> ()
    %cst_75 = arith.constant dense<0.000000e+00> : vector<4x8x8xf32>
    %250 = tpu.matmul %231, %240, %cst_75 {dimension_numbers = #tpu.dot_dimension_numbers<[2], [2], [1], [1], [0, 0, 0, 1, 1, 1], [0], [0]>} : vector<4x8x8xf32>, vector<4x8x8xf32>, vector<4x8x8xf32> -> vector<4x8x8xf32>
    "tpu.trace_stop"() : () -> ()
    %cst_76 = arith.constant dense<0xFF800000> : vector<4x8xf32>
    %251 = vector.multi_reduction <maximumf>, %250, %cst_76 [2] : vector<4x8x8xf32> to vector<4x8xf32>
    %252 = vector.shape_cast %251 : vector<4x8xf32> to vector<4x8x1xf32>
    %253 = vector.broadcast %252 : vector<4x8x1xf32> to vector<4x8x8xf32>
    %254 = arith.subf %250, %253 : vector<4x8x8xf32>
    %255 = math.exp %254 : vector<4x8x8xf32>
    %cst_77 = arith.constant dense<0.000000e+00> : vector<4x8xf32>
    %256 = vector.multi_reduction <add>, %255, %cst_77 [2] : vector<4x8x8xf32> to vector<4x8xf32>
    %257 = vector.shape_cast %256 : vector<4x8xf32> to vector<4x8x1xf32>
    %258 = tpu.reciprocal %257 {approx = true} : vector<4x8x1xf32> -> vector<4x8x1xf32>
    %259 = vector.broadcast %258 : vector<4x8x1xf32> to vector<4x8x8xf32>
    %260 = arith.mulf %255, %259 : vector<4x8x8xf32>
    "tpu.trace_start"() <{level = 10 : i32, message = "hqk,hkd->hqd"}> : () -> ()
    %cst_78 = arith.constant dense<0.000000e+00> : vector<4x8x8xf32>
    %261 = tpu.matmul %260, %249, %cst_78 {dimension_numbers = #tpu.dot_dimension_numbers<[2], [1], [1], [2], [0, 0, 0, 1, 1, 2], [0], [0]>} : vector<4x8x8xf32>, vector<4x8x8xf32>, vector<4x8x8xf32> -> vector<4x8x8xf32>
    "tpu.trace_stop"() : () -> ()
    %262 = arith.addf %231, %261 : vector<4x8x8xf32>
    %263 = vector.extract_strided_slice %262 {offsets = [0, 0, 0], sizes = [1, 8, 8], strides = [1, 1, 1]} : vector<4x8x8xf32> to vector<1x8x8xf32>
    %264 = vector.shape_cast %263 : vector<1x8x8xf32> to vector<8x8xf32>
    %265 = vector.extract_strided_slice %262 {offsets = [1, 0, 0], sizes = [1, 8, 8], strides = [1, 1, 1]} : vector<4x8x8xf32> to vector<1x8x8xf32>
    %266 = vector.shape_cast %265 : vector<1x8x8xf32> to vector<8x8xf32>
    %267 = vector.extract_strided_slice %262 {offsets = [2, 0, 0], sizes = [1, 8, 8], strides = [1, 1, 1]} : vector<4x8x8xf32> to vector<1x8x8xf32>
    %268 = vector.shape_cast %267 : vector<1x8x8xf32> to vector<8x8xf32>
    %269 = vector.extract_strided_slice %262 {offsets = [3, 0, 0], sizes = [1, 8, 8], strides = [1, 1, 1]} : vector<4x8x8xf32> to vector<1x8x8xf32>
    %270 = vector.shape_cast %269 : vector<1x8x8xf32> to vector<8x8xf32>
    %271 = tpu.concatenate %264, %266, %268, %270 in 1 : vector<8x8xf32>, vector<8x8xf32>, vector<8x8xf32>, vector<8x8xf32> -> vector<8x32xf32>
    %c0_79 = arith.constant 0 : index
    %c0_80 = arith.constant 0 : index
    %272 = vector.load %arg28[%c0_79, %c0_80] : memref<32x32xf32, #tpu.memory_space<vmem>>, vector<32x32xf32>
    %cst_81 = arith.constant dense<0.000000e+00> : vector<8x32xf32>
    %273 = tpu.matmul %271, %272, %cst_81 {dimension_numbers = #tpu.dot_dimension_numbers<[1], [0], [0], [1], [0, 0, 1, 1], [], []>} : vector<8x32xf32>, vector<32x32xf32>, vector<8x32xf32> -> vector<8x32xf32>
    %c0_82 = arith.constant 0 : index
    %c0_83 = arith.constant 0 : index
    %274 = vector.load %arg25[%c0_82, %c0_83] : memref<1x32xf32, #tpu.memory_space<vmem>>, vector<1x32xf32>
    %275 = vector.broadcast %274 : vector<1x32xf32> to vector<8x32xf32>
    %276 = arith.addf %273, %275 : vector<8x32xf32>
    %cst_84 = arith.constant 0.000000e+00 : f32
    %277 = vector.broadcast %cst_84 : f32 to vector<8x32xf32>
    %278 = arith.maximumf %276, %277 : vector<8x32xf32>
    %279 = arith.addf %271, %278 : vector<8x32xf32>
    %c0_85 = arith.constant 0 : index
    %c0_86 = arith.constant 0 : index
    %280 = vector.load %arg30[%c0_85, %c0_86] : memref<4x32xf32, #tpu.memory_space<vmem>>, vector<4x32xf32>
    %c0_87 = arith.constant 0 : index
    %c0_88 = arith.constant 0 : index
    %281 = vector.load %arg36[%c0_87, %c0_88] : memref<32x32xf32, #tpu.memory_space<vmem>>, vector<32x32xf32>
    %cst_89 = arith.constant dense<0.000000e+00> : vector<4x32xf32>
    %282 = tpu.matmul %280, %281, %cst_89 {dimension_numbers = #tpu.dot_dimension_numbers<[1], [0], [0], [1], [0, 0, 1, 1], [], []>} : vector<4x32xf32>, vector<32x32xf32>, vector<4x32xf32> -> vector<4x32xf32>
    %c0_90 = arith.constant 0 : index
    %c0_91 = arith.constant 0 : index
    %283 = vector.load %arg33[%c0_90, %c0_91] : memref<1x32xf32, #tpu.memory_space<vmem>>, vector<1x32xf32>
    %284 = vector.broadcast %283 : vector<1x32xf32> to vector<4x32xf32>
    %285 = arith.addf %282, %284 : vector<4x32xf32>
    %c0_92 = arith.constant 0 : index
    %c0_93 = arith.constant 0 : index
    %286 = vector.load %arg34[%c0_92, %c0_93] : memref<32x64xf32, #tpu.memory_space<vmem>>, vector<32x64xf32>
    %cst_94 = arith.constant dense<0.000000e+00> : vector<8x64xf32>
    %287 = tpu.matmul %279, %286, %cst_94 {dimension_numbers = #tpu.dot_dimension_numbers<[1], [0], [0], [1], [0, 0, 1, 1], [], []>} : vector<8x32xf32>, vector<32x64xf32>, vector<8x64xf32> -> vector<8x64xf32>
    %c0_95 = arith.constant 0 : index
    %c0_96 = arith.constant 0 : index
    %288 = vector.load %arg31[%c0_95, %c0_96] : memref<1x64xf32, #tpu.memory_space<vmem>>, vector<1x64xf32>
    %289 = vector.broadcast %288 : vector<1x64xf32> to vector<8x64xf32>
    %290 = arith.addf %287, %289 : vector<8x64xf32>
    %291 = vector.extract_strided_slice %290 {offsets = [0, 0], sizes = [8, 32], strides = [1, 1]} : vector<8x64xf32> to vector<8x32xf32>
    %292 = vector.extract_strided_slice %290 {offsets = [0, 32], sizes = [8, 32], strides = [1, 1]} : vector<8x64xf32> to vector<8x32xf32>
    %293 = vector.extract_strided_slice %285 {offsets = [0, 0], sizes = [4, 8], strides = [1, 1]} : vector<4x32xf32> to vector<4x8xf32>
    %294 = vector.extract_strided_slice %285 {offsets = [0, 8], sizes = [4, 8], strides = [1, 1]} : vector<4x32xf32> to vector<4x8xf32>
    %295 = vector.extract_strided_slice %285 {offsets = [0, 16], sizes = [4, 8], strides = [1, 1]} : vector<4x32xf32> to vector<4x8xf32>
    %296 = vector.extract_strided_slice %285 {offsets = [0, 24], sizes = [4, 8], strides = [1, 1]} : vector<4x32xf32> to vector<4x8xf32>
    %297 = vector.shape_cast %293 : vector<4x8xf32> to vector<1x4x8xf32>
    %298 = vector.shape_cast %294 : vector<4x8xf32> to vector<1x4x8xf32>
    %299 = vector.shape_cast %295 : vector<4x8xf32> to vector<1x4x8xf32>
    %300 = vector.shape_cast %296 : vector<4x8xf32> to vector<1x4x8xf32>
    %301 = tpu.concatenate %297, %298, %299, %300 in 0 : vector<1x4x8xf32>, vector<1x4x8xf32>, vector<1x4x8xf32>, vector<1x4x8xf32> -> vector<4x4x8xf32>
    %302 = vector.extract_strided_slice %291 {offsets = [0, 0], sizes = [8, 8], strides = [1, 1]} : vector<8x32xf32> to vector<8x8xf32>
    %303 = vector.extract_strided_slice %291 {offsets = [0, 8], sizes = [8, 8], strides = [1, 1]} : vector<8x32xf32> to vector<8x8xf32>
    %304 = vector.extract_strided_slice %291 {offsets = [0, 16], sizes = [8, 8], strides = [1, 1]} : vector<8x32xf32> to vector<8x8xf32>
    %305 = vector.extract_strided_slice %291 {offsets = [0, 24], sizes = [8, 8], strides = [1, 1]} : vector<8x32xf32> to vector<8x8xf32>
    %306 = vector.shape_cast %302 : vector<8x8xf32> to vector<1x8x8xf32>
    %307 = vector.shape_cast %303 : vector<8x8xf32> to vector<1x8x8xf32>
    %308 = vector.shape_cast %304 : vector<8x8xf32> to vector<1x8x8xf32>
    %309 = vector.shape_cast %305 : vector<8x8xf32> to vector<1x8x8xf32>
    %310 = tpu.concatenate %306, %307, %308, %309 in 0 : vector<1x8x8xf32>, vector<1x8x8xf32>, vector<1x8x8xf32>, vector<1x8x8xf32> -> vector<4x8x8xf32>
    %311 = vector.extract_strided_slice %292 {offsets = [0, 0], sizes = [8, 8], strides = [1, 1]} : vector<8x32xf32> to vector<8x8xf32>
    %312 = vector.extract_strided_slice %292 {offsets = [0, 8], sizes = [8, 8], strides = [1, 1]} : vector<8x32xf32> to vector<8x8xf32>
    %313 = vector.extract_strided_slice %292 {offsets = [0, 16], sizes = [8, 8], strides = [1, 1]} : vector<8x32xf32> to vector<8x8xf32>
    %314 = vector.extract_strided_slice %292 {offsets = [0, 24], sizes = [8, 8], strides = [1, 1]} : vector<8x32xf32> to vector<8x8xf32>
    %315 = vector.shape_cast %311 : vector<8x8xf32> to vector<1x8x8xf32>
    %316 = vector.shape_cast %312 : vector<8x8xf32> to vector<1x8x8xf32>
    %317 = vector.shape_cast %313 : vector<8x8xf32> to vector<1x8x8xf32>
    %318 = vector.shape_cast %314 : vector<8x8xf32> to vector<1x8x8xf32>
    %319 = tpu.concatenate %315, %316, %317, %318 in 0 : vector<1x8x8xf32>, vector<1x8x8xf32>, vector<1x8x8xf32>, vector<1x8x8xf32> -> vector<4x8x8xf32>
    "tpu.trace_start"() <{level = 10 : i32, message = "hqd,hkd->hqk"}> : () -> ()
    %cst_97 = arith.constant dense<0.000000e+00> : vector<4x4x8xf32>
    %320 = tpu.matmul %301, %310, %cst_97 {dimension_numbers = #tpu.dot_dimension_numbers<[2], [2], [1], [1], [0, 0, 0, 1, 1, 1], [0], [0]>} : vector<4x4x8xf32>, vector<4x8x8xf32>, vector<4x4x8xf32> -> vector<4x4x8xf32>
    "tpu.trace_stop"() : () -> ()
    %cst_98 = arith.constant dense<0xFF800000> : vector<4x4xf32>
    %321 = vector.multi_reduction <maximumf>, %320, %cst_98 [2] : vector<4x4x8xf32> to vector<4x4xf32>
    %322 = vector.shape_cast %321 : vector<4x4xf32> to vector<4x4x1xf32>
    %323 = vector.broadcast %322 : vector<4x4x1xf32> to vector<4x4x8xf32>
    %324 = arith.subf %320, %323 : vector<4x4x8xf32>
    %325 = math.exp %324 : vector<4x4x8xf32>
    %cst_99 = arith.constant dense<0.000000e+00> : vector<4x4xf32>
    %326 = vector.multi_reduction <add>, %325, %cst_99 [2] : vector<4x4x8xf32> to vector<4x4xf32>
    %327 = vector.shape_cast %326 : vector<4x4xf32> to vector<4x4x1xf32>
    %328 = tpu.reciprocal %327 {approx = true} : vector<4x4x1xf32> -> vector<4x4x1xf32>
    %329 = vector.broadcast %328 : vector<4x4x1xf32> to vector<4x4x8xf32>
    %330 = arith.mulf %325, %329 : vector<4x4x8xf32>
    "tpu.trace_start"() <{level = 10 : i32, message = "hqk,hkd->hqd"}> : () -> ()
    %cst_100 = arith.constant dense<0.000000e+00> : vector<4x4x8xf32>
    %331 = tpu.matmul %330, %319, %cst_100 {dimension_numbers = #tpu.dot_dimension_numbers<[2], [1], [1], [2], [0, 0, 0, 1, 1, 2], [0], [0]>} : vector<4x4x8xf32>, vector<4x8x8xf32>, vector<4x4x8xf32> -> vector<4x4x8xf32>
    "tpu.trace_stop"() : () -> ()
    %332 = arith.addf %301, %331 : vector<4x4x8xf32>
    %333 = vector.extract_strided_slice %332 {offsets = [0, 0, 0], sizes = [1, 4, 8], strides = [1, 1, 1]} : vector<4x4x8xf32> to vector<1x4x8xf32>
    %334 = vector.shape_cast %333 : vector<1x4x8xf32> to vector<4x8xf32>
    %335 = vector.extract_strided_slice %332 {offsets = [1, 0, 0], sizes = [1, 4, 8], strides = [1, 1, 1]} : vector<4x4x8xf32> to vector<1x4x8xf32>
    %336 = vector.shape_cast %335 : vector<1x4x8xf32> to vector<4x8xf32>
    %337 = vector.extract_strided_slice %332 {offsets = [2, 0, 0], sizes = [1, 4, 8], strides = [1, 1, 1]} : vector<4x4x8xf32> to vector<1x4x8xf32>
    %338 = vector.shape_cast %337 : vector<1x4x8xf32> to vector<4x8xf32>
    %339 = vector.extract_strided_slice %332 {offsets = [3, 0, 0], sizes = [1, 4, 8], strides = [1, 1, 1]} : vector<4x4x8xf32> to vector<1x4x8xf32>
    %340 = vector.shape_cast %339 : vector<1x4x8xf32> to vector<4x8xf32>
    %341 = tpu.concatenate %334, %336, %338, %340 in 1 : vector<4x8xf32>, vector<4x8xf32>, vector<4x8xf32>, vector<4x8xf32> -> vector<4x32xf32>
    %c0_101 = arith.constant 0 : index
    %c0_102 = arith.constant 0 : index
    %342 = vector.load %arg35[%c0_101, %c0_102] : memref<32x32xf32, #tpu.memory_space<vmem>>, vector<32x32xf32>
    %cst_103 = arith.constant dense<0.000000e+00> : vector<4x32xf32>
    %343 = tpu.matmul %341, %342, %cst_103 {dimension_numbers = #tpu.dot_dimension_numbers<[1], [0], [0], [1], [0, 0, 1, 1], [], []>} : vector<4x32xf32>, vector<32x32xf32>, vector<4x32xf32> -> vector<4x32xf32>
    %c0_104 = arith.constant 0 : index
    %c0_105 = arith.constant 0 : index
    %344 = vector.load %arg32[%c0_104, %c0_105] : memref<1x32xf32, #tpu.memory_space<vmem>>, vector<1x32xf32>
    %345 = vector.broadcast %344 : vector<1x32xf32> to vector<4x32xf32>
    %346 = arith.addf %343, %345 : vector<4x32xf32>
    %cst_106 = arith.constant 0.000000e+00 : f32
    %347 = vector.broadcast %cst_106 : f32 to vector<4x32xf32>
    %348 = arith.maximumf %346, %347 : vector<4x32xf32>
    %349 = arith.addf %341, %348 : vector<4x32xf32>
    %c0_107 = arith.constant 0 : index
    %c0_108 = arith.constant 0 : index
    %350 = vector.load %arg42[%c0_107, %c0_108] : memref<32x32xf32, #tpu.memory_space<vmem>>, vector<32x32xf32>
    %cst_109 = arith.constant dense<0.000000e+00> : vector<4x32xf32>
    %351 = tpu.matmul %349, %350, %cst_109 {dimension_numbers = #tpu.dot_dimension_numbers<[1], [0], [0], [1], [0, 0, 1, 1], [], []>} : vector<4x32xf32>, vector<32x32xf32>, vector<4x32xf32> -> vector<4x32xf32>
    %c0_110 = arith.constant 0 : index
    %c0_111 = arith.constant 0 : index
    %352 = vector.load %arg39[%c0_110, %c0_111] : memref<1x32xf32, #tpu.memory_space<vmem>>, vector<1x32xf32>
    %353 = vector.broadcast %352 : vector<1x32xf32> to vector<4x32xf32>
    %354 = arith.addf %351, %353 : vector<4x32xf32>
    %c0_112 = arith.constant 0 : index
    %c0_113 = arith.constant 0 : index
    %355 = vector.load %arg40[%c0_112, %c0_113] : memref<32x64xf32, #tpu.memory_space<vmem>>, vector<32x64xf32>
    %cst_114 = arith.constant dense<0.000000e+00> : vector<4x64xf32>
    %356 = tpu.matmul %349, %355, %cst_114 {dimension_numbers = #tpu.dot_dimension_numbers<[1], [0], [0], [1], [0, 0, 1, 1], [], []>} : vector<4x32xf32>, vector<32x64xf32>, vector<4x64xf32> -> vector<4x64xf32>
    %c0_115 = arith.constant 0 : index
    %c0_116 = arith.constant 0 : index
    %357 = vector.load %arg37[%c0_115, %c0_116] : memref<1x64xf32, #tpu.memory_space<vmem>>, vector<1x64xf32>
    %358 = vector.broadcast %357 : vector<1x64xf32> to vector<4x64xf32>
    %359 = arith.addf %356, %358 : vector<4x64xf32>
    %360 = vector.extract_strided_slice %359 {offsets = [0, 0], sizes = [4, 32], strides = [1, 1]} : vector<4x64xf32> to vector<4x32xf32>
    %361 = vector.extract_strided_slice %359 {offsets = [0, 32], sizes = [4, 32], strides = [1, 1]} : vector<4x64xf32> to vector<4x32xf32>
    %362 = vector.extract_strided_slice %354 {offsets = [0, 0], sizes = [4, 8], strides = [1, 1]} : vector<4x32xf32> to vector<4x8xf32>
    %363 = vector.extract_strided_slice %354 {offsets = [0, 8], sizes = [4, 8], strides = [1, 1]} : vector<4x32xf32> to vector<4x8xf32>
    %364 = vector.extract_strided_slice %354 {offsets = [0, 16], sizes = [4, 8], strides = [1, 1]} : vector<4x32xf32> to vector<4x8xf32>
    %365 = vector.extract_strided_slice %354 {offsets = [0, 24], sizes = [4, 8], strides = [1, 1]} : vector<4x32xf32> to vector<4x8xf32>
    %366 = vector.shape_cast %362 : vector<4x8xf32> to vector<1x4x8xf32>
    %367 = vector.shape_cast %363 : vector<4x8xf32> to vector<1x4x8xf32>
    %368 = vector.shape_cast %364 : vector<4x8xf32> to vector<1x4x8xf32>
    %369 = vector.shape_cast %365 : vector<4x8xf32> to vector<1x4x8xf32>
    %370 = tpu.concatenate %366, %367, %368, %369 in 0 : vector<1x4x8xf32>, vector<1x4x8xf32>, vector<1x4x8xf32>, vector<1x4x8xf32> -> vector<4x4x8xf32>
    %371 = vector.extract_strided_slice %360 {offsets = [0, 0], sizes = [4, 8], strides = [1, 1]} : vector<4x32xf32> to vector<4x8xf32>
    %372 = vector.extract_strided_slice %360 {offsets = [0, 8], sizes = [4, 8], strides = [1, 1]} : vector<4x32xf32> to vector<4x8xf32>
    %373 = vector.extract_strided_slice %360 {offsets = [0, 16], sizes = [4, 8], strides = [1, 1]} : vector<4x32xf32> to vector<4x8xf32>
    %374 = vector.extract_strided_slice %360 {offsets = [0, 24], sizes = [4, 8], strides = [1, 1]} : vector<4x32xf32> to vector<4x8xf32>
    %375 = vector.shape_cast %371 : vector<4x8xf32> to vector<1x4x8xf32>
    %376 = vector.shape_cast %372 : vector<4x8xf32> to vector<1x4x8xf32>
    %377 = vector.shape_cast %373 : vector<4x8xf32> to vector<1x4x8xf32>
    %378 = vector.shape_cast %374 : vector<4x8xf32> to vector<1x4x8xf32>
    %379 = tpu.concatenate %375, %376, %377, %378 in 0 : vector<1x4x8xf32>, vector<1x4x8xf32>, vector<1x4x8xf32>, vector<1x4x8xf32> -> vector<4x4x8xf32>
    %380 = vector.extract_strided_slice %361 {offsets = [0, 0], sizes = [4, 8], strides = [1, 1]} : vector<4x32xf32> to vector<4x8xf32>
    %381 = vector.extract_strided_slice %361 {offsets = [0, 8], sizes = [4, 8], strides = [1, 1]} : vector<4x32xf32> to vector<4x8xf32>
    %382 = vector.extract_strided_slice %361 {offsets = [0, 16], sizes = [4, 8], strides = [1, 1]} : vector<4x32xf32> to vector<4x8xf32>
    %383 = vector.extract_strided_slice %361 {offsets = [0, 24], sizes = [4, 8], strides = [1, 1]} : vector<4x32xf32> to vector<4x8xf32>
    %384 = vector.shape_cast %380 : vector<4x8xf32> to vector<1x4x8xf32>
    %385 = vector.shape_cast %381 : vector<4x8xf32> to vector<1x4x8xf32>
    %386 = vector.shape_cast %382 : vector<4x8xf32> to vector<1x4x8xf32>
    %387 = vector.shape_cast %383 : vector<4x8xf32> to vector<1x4x8xf32>
    %388 = tpu.concatenate %384, %385, %386, %387 in 0 : vector<1x4x8xf32>, vector<1x4x8xf32>, vector<1x4x8xf32>, vector<1x4x8xf32> -> vector<4x4x8xf32>
    "tpu.trace_start"() <{level = 10 : i32, message = "hqd,hkd->hqk"}> : () -> ()
    %cst_117 = arith.constant dense<0.000000e+00> : vector<4x4x4xf32>
    %389 = tpu.matmul %370, %379, %cst_117 {dimension_numbers = #tpu.dot_dimension_numbers<[2], [2], [1], [1], [0, 0, 0, 1, 1, 1], [0], [0]>} : vector<4x4x8xf32>, vector<4x4x8xf32>, vector<4x4x4xf32> -> vector<4x4x4xf32>
    "tpu.trace_stop"() : () -> ()
    %cst_118 = arith.constant dense<0xFF800000> : vector<4x4xf32>
    %390 = vector.multi_reduction <maximumf>, %389, %cst_118 [2] : vector<4x4x4xf32> to vector<4x4xf32>
    %391 = vector.shape_cast %390 : vector<4x4xf32> to vector<4x4x1xf32>
    %392 = vector.broadcast %391 : vector<4x4x1xf32> to vector<4x4x4xf32>
    %393 = arith.subf %389, %392 : vector<4x4x4xf32>
    %394 = math.exp %393 : vector<4x4x4xf32>
    %cst_119 = arith.constant dense<0.000000e+00> : vector<4x4xf32>
    %395 = vector.multi_reduction <add>, %394, %cst_119 [2] : vector<4x4x4xf32> to vector<4x4xf32>
    %396 = vector.shape_cast %395 : vector<4x4xf32> to vector<4x4x1xf32>
    %397 = tpu.reciprocal %396 {approx = true} : vector<4x4x1xf32> -> vector<4x4x1xf32>
    %398 = vector.broadcast %397 : vector<4x4x1xf32> to vector<4x4x4xf32>
    %399 = arith.mulf %394, %398 : vector<4x4x4xf32>
    "tpu.trace_start"() <{level = 10 : i32, message = "hqk,hkd->hqd"}> : () -> ()
    %cst_120 = arith.constant dense<0.000000e+00> : vector<4x4x8xf32>
    %400 = tpu.matmul %399, %388, %cst_120 {dimension_numbers = #tpu.dot_dimension_numbers<[2], [1], [1], [2], [0, 0, 0, 1, 1, 2], [0], [0]>} : vector<4x4x4xf32>, vector<4x4x8xf32>, vector<4x4x8xf32> -> vector<4x4x8xf32>
    "tpu.trace_stop"() : () -> ()
    %401 = arith.addf %370, %400 : vector<4x4x8xf32>
    %402 = vector.extract_strided_slice %401 {offsets = [0, 0, 0], sizes = [1, 4, 8], strides = [1, 1, 1]} : vector<4x4x8xf32> to vector<1x4x8xf32>
    %403 = vector.shape_cast %402 : vector<1x4x8xf32> to vector<4x8xf32>
    %404 = vector.extract_strided_slice %401 {offsets = [1, 0, 0], sizes = [1, 4, 8], strides = [1, 1, 1]} : vector<4x4x8xf32> to vector<1x4x8xf32>
    %405 = vector.shape_cast %404 : vector<1x4x8xf32> to vector<4x8xf32>
    %406 = vector.extract_strided_slice %401 {offsets = [2, 0, 0], sizes = [1, 4, 8], strides = [1, 1, 1]} : vector<4x4x8xf32> to vector<1x4x8xf32>
    %407 = vector.shape_cast %406 : vector<1x4x8xf32> to vector<4x8xf32>
    %408 = vector.extract_strided_slice %401 {offsets = [3, 0, 0], sizes = [1, 4, 8], strides = [1, 1, 1]} : vector<4x4x8xf32> to vector<1x4x8xf32>
    %409 = vector.shape_cast %408 : vector<1x4x8xf32> to vector<4x8xf32>
    %410 = tpu.concatenate %403, %405, %407, %409 in 1 : vector<4x8xf32>, vector<4x8xf32>, vector<4x8xf32>, vector<4x8xf32> -> vector<4x32xf32>
    %c0_121 = arith.constant 0 : index
    %c0_122 = arith.constant 0 : index
    %411 = vector.load %arg41[%c0_121, %c0_122] : memref<32x32xf32, #tpu.memory_space<vmem>>, vector<32x32xf32>
    %cst_123 = arith.constant dense<0.000000e+00> : vector<4x32xf32>
    %412 = tpu.matmul %410, %411, %cst_123 {dimension_numbers = #tpu.dot_dimension_numbers<[1], [0], [0], [1], [0, 0, 1, 1], [], []>} : vector<4x32xf32>, vector<32x32xf32>, vector<4x32xf32> -> vector<4x32xf32>
    %c0_124 = arith.constant 0 : index
    %c0_125 = arith.constant 0 : index
    %413 = vector.load %arg38[%c0_124, %c0_125] : memref<1x32xf32, #tpu.memory_space<vmem>>, vector<1x32xf32>
    %414 = vector.broadcast %413 : vector<1x32xf32> to vector<4x32xf32>
    %415 = arith.addf %412, %414 : vector<4x32xf32>
    %cst_126 = arith.constant 0.000000e+00 : f32
    %416 = vector.broadcast %cst_126 : f32 to vector<4x32xf32>
    %417 = arith.maximumf %415, %416 : vector<4x32xf32>
    %418 = arith.addf %410, %417 : vector<4x32xf32>
    %c0_127 = arith.constant 0 : index
    %c0_128 = arith.constant 0 : index
    %419 = vector.load %arg48[%c0_127, %c0_128] : memref<32x32xf32, #tpu.memory_space<vmem>>, vector<32x32xf32>
    %cst_129 = arith.constant dense<0.000000e+00> : vector<4x32xf32>
    %420 = tpu.matmul %418, %419, %cst_129 {dimension_numbers = #tpu.dot_dimension_numbers<[1], [0], [0], [1], [0, 0, 1, 1], [], []>} : vector<4x32xf32>, vector<32x32xf32>, vector<4x32xf32> -> vector<4x32xf32>
    %c0_130 = arith.constant 0 : index
    %c0_131 = arith.constant 0 : index
    %421 = vector.load %arg45[%c0_130, %c0_131] : memref<1x32xf32, #tpu.memory_space<vmem>>, vector<1x32xf32>
    %422 = vector.broadcast %421 : vector<1x32xf32> to vector<4x32xf32>
    %423 = arith.addf %420, %422 : vector<4x32xf32>
    %c0_132 = arith.constant 0 : index
    %c0_133 = arith.constant 0 : index
    %424 = vector.load %arg46[%c0_132, %c0_133] : memref<32x64xf32, #tpu.memory_space<vmem>>, vector<32x64xf32>
    %cst_134 = arith.constant dense<0.000000e+00> : vector<4x64xf32>
    %425 = tpu.matmul %418, %424, %cst_134 {dimension_numbers = #tpu.dot_dimension_numbers<[1], [0], [0], [1], [0, 0, 1, 1], [], []>} : vector<4x32xf32>, vector<32x64xf32>, vector<4x64xf32> -> vector<4x64xf32>
    %c0_135 = arith.constant 0 : index
    %c0_136 = arith.constant 0 : index
    %426 = vector.load %arg43[%c0_135, %c0_136] : memref<1x64xf32, #tpu.memory_space<vmem>>, vector<1x64xf32>
    %427 = vector.broadcast %426 : vector<1x64xf32> to vector<4x64xf32>
    %428 = arith.addf %425, %427 : vector<4x64xf32>
    %429 = vector.extract_strided_slice %428 {offsets = [0, 0], sizes = [4, 32], strides = [1, 1]} : vector<4x64xf32> to vector<4x32xf32>
    %430 = vector.extract_strided_slice %428 {offsets = [0, 32], sizes = [4, 32], strides = [1, 1]} : vector<4x64xf32> to vector<4x32xf32>
    %431 = vector.extract_strided_slice %423 {offsets = [0, 0], sizes = [4, 8], strides = [1, 1]} : vector<4x32xf32> to vector<4x8xf32>
    %432 = vector.extract_strided_slice %423 {offsets = [0, 8], sizes = [4, 8], strides = [1, 1]} : vector<4x32xf32> to vector<4x8xf32>
    %433 = vector.extract_strided_slice %423 {offsets = [0, 16], sizes = [4, 8], strides = [1, 1]} : vector<4x32xf32> to vector<4x8xf32>
    %434 = vector.extract_strided_slice %423 {offsets = [0, 24], sizes = [4, 8], strides = [1, 1]} : vector<4x32xf32> to vector<4x8xf32>
    %435 = vector.shape_cast %431 : vector<4x8xf32> to vector<1x4x8xf32>
    %436 = vector.shape_cast %432 : vector<4x8xf32> to vector<1x4x8xf32>
    %437 = vector.shape_cast %433 : vector<4x8xf32> to vector<1x4x8xf32>
    %438 = vector.shape_cast %434 : vector<4x8xf32> to vector<1x4x8xf32>
    %439 = tpu.concatenate %435, %436, %437, %438 in 0 : vector<1x4x8xf32>, vector<1x4x8xf32>, vector<1x4x8xf32>, vector<1x4x8xf32> -> vector<4x4x8xf32>
    %440 = vector.extract_strided_slice %429 {offsets = [0, 0], sizes = [4, 8], strides = [1, 1]} : vector<4x32xf32> to vector<4x8xf32>
    %441 = vector.extract_strided_slice %429 {offsets = [0, 8], sizes = [4, 8], strides = [1, 1]} : vector<4x32xf32> to vector<4x8xf32>
    %442 = vector.extract_strided_slice %429 {offsets = [0, 16], sizes = [4, 8], strides = [1, 1]} : vector<4x32xf32> to vector<4x8xf32>
    %443 = vector.extract_strided_slice %429 {offsets = [0, 24], sizes = [4, 8], strides = [1, 1]} : vector<4x32xf32> to vector<4x8xf32>
    %444 = vector.shape_cast %440 : vector<4x8xf32> to vector<1x4x8xf32>
    %445 = vector.shape_cast %441 : vector<4x8xf32> to vector<1x4x8xf32>
    %446 = vector.shape_cast %442 : vector<4x8xf32> to vector<1x4x8xf32>
    %447 = vector.shape_cast %443 : vector<4x8xf32> to vector<1x4x8xf32>
    %448 = tpu.concatenate %444, %445, %446, %447 in 0 : vector<1x4x8xf32>, vector<1x4x8xf32>, vector<1x4x8xf32>, vector<1x4x8xf32> -> vector<4x4x8xf32>
    %449 = vector.extract_strided_slice %430 {offsets = [0, 0], sizes = [4, 8], strides = [1, 1]} : vector<4x32xf32> to vector<4x8xf32>
    %450 = vector.extract_strided_slice %430 {offsets = [0, 8], sizes = [4, 8], strides = [1, 1]} : vector<4x32xf32> to vector<4x8xf32>
    %451 = vector.extract_strided_slice %430 {offsets = [0, 16], sizes = [4, 8], strides = [1, 1]} : vector<4x32xf32> to vector<4x8xf32>
    %452 = vector.extract_strided_slice %430 {offsets = [0, 24], sizes = [4, 8], strides = [1, 1]} : vector<4x32xf32> to vector<4x8xf32>
    %453 = vector.shape_cast %449 : vector<4x8xf32> to vector<1x4x8xf32>
    %454 = vector.shape_cast %450 : vector<4x8xf32> to vector<1x4x8xf32>
    %455 = vector.shape_cast %451 : vector<4x8xf32> to vector<1x4x8xf32>
    %456 = vector.shape_cast %452 : vector<4x8xf32> to vector<1x4x8xf32>
    %457 = tpu.concatenate %453, %454, %455, %456 in 0 : vector<1x4x8xf32>, vector<1x4x8xf32>, vector<1x4x8xf32>, vector<1x4x8xf32> -> vector<4x4x8xf32>
    "tpu.trace_start"() <{level = 10 : i32, message = "hqd,hkd->hqk"}> : () -> ()
    %cst_137 = arith.constant dense<0.000000e+00> : vector<4x4x4xf32>
    %458 = tpu.matmul %439, %448, %cst_137 {dimension_numbers = #tpu.dot_dimension_numbers<[2], [2], [1], [1], [0, 0, 0, 1, 1, 1], [0], [0]>} : vector<4x4x8xf32>, vector<4x4x8xf32>, vector<4x4x4xf32> -> vector<4x4x4xf32>
    "tpu.trace_stop"() : () -> ()
    %cst_138 = arith.constant dense<0xFF800000> : vector<4x4xf32>
    %459 = vector.multi_reduction <maximumf>, %458, %cst_138 [2] : vector<4x4x4xf32> to vector<4x4xf32>
    %460 = vector.shape_cast %459 : vector<4x4xf32> to vector<4x4x1xf32>
    %461 = vector.broadcast %460 : vector<4x4x1xf32> to vector<4x4x4xf32>
    %462 = arith.subf %458, %461 : vector<4x4x4xf32>
    %463 = math.exp %462 : vector<4x4x4xf32>
    %cst_139 = arith.constant dense<0.000000e+00> : vector<4x4xf32>
    %464 = vector.multi_reduction <add>, %463, %cst_139 [2] : vector<4x4x4xf32> to vector<4x4xf32>
    %465 = vector.shape_cast %464 : vector<4x4xf32> to vector<4x4x1xf32>
    %466 = tpu.reciprocal %465 {approx = true} : vector<4x4x1xf32> -> vector<4x4x1xf32>
    %467 = vector.broadcast %466 : vector<4x4x1xf32> to vector<4x4x4xf32>
    %468 = arith.mulf %463, %467 : vector<4x4x4xf32>
    "tpu.trace_start"() <{level = 10 : i32, message = "hqk,hkd->hqd"}> : () -> ()
    %cst_140 = arith.constant dense<0.000000e+00> : vector<4x4x8xf32>
    %469 = tpu.matmul %468, %457, %cst_140 {dimension_numbers = #tpu.dot_dimension_numbers<[2], [1], [1], [2], [0, 0, 0, 1, 1, 2], [0], [0]>} : vector<4x4x4xf32>, vector<4x4x8xf32>, vector<4x4x8xf32> -> vector<4x4x8xf32>
    "tpu.trace_stop"() : () -> ()
    %470 = arith.addf %439, %469 : vector<4x4x8xf32>
    %471 = vector.extract_strided_slice %470 {offsets = [0, 0, 0], sizes = [1, 4, 8], strides = [1, 1, 1]} : vector<4x4x8xf32> to vector<1x4x8xf32>
    %472 = vector.shape_cast %471 : vector<1x4x8xf32> to vector<4x8xf32>
    %473 = vector.extract_strided_slice %470 {offsets = [1, 0, 0], sizes = [1, 4, 8], strides = [1, 1, 1]} : vector<4x4x8xf32> to vector<1x4x8xf32>
    %474 = vector.shape_cast %473 : vector<1x4x8xf32> to vector<4x8xf32>
    %475 = vector.extract_strided_slice %470 {offsets = [2, 0, 0], sizes = [1, 4, 8], strides = [1, 1, 1]} : vector<4x4x8xf32> to vector<1x4x8xf32>
    %476 = vector.shape_cast %475 : vector<1x4x8xf32> to vector<4x8xf32>
    %477 = vector.extract_strided_slice %470 {offsets = [3, 0, 0], sizes = [1, 4, 8], strides = [1, 1, 1]} : vector<4x4x8xf32> to vector<1x4x8xf32>
    %478 = vector.shape_cast %477 : vector<1x4x8xf32> to vector<4x8xf32>
    %479 = tpu.concatenate %472, %474, %476, %478 in 1 : vector<4x8xf32>, vector<4x8xf32>, vector<4x8xf32>, vector<4x8xf32> -> vector<4x32xf32>
    %c0_141 = arith.constant 0 : index
    %c0_142 = arith.constant 0 : index
    %480 = vector.load %arg47[%c0_141, %c0_142] : memref<32x32xf32, #tpu.memory_space<vmem>>, vector<32x32xf32>
    %cst_143 = arith.constant dense<0.000000e+00> : vector<4x32xf32>
    %481 = tpu.matmul %479, %480, %cst_143 {dimension_numbers = #tpu.dot_dimension_numbers<[1], [0], [0], [1], [0, 0, 1, 1], [], []>} : vector<4x32xf32>, vector<32x32xf32>, vector<4x32xf32> -> vector<4x32xf32>
    %c0_144 = arith.constant 0 : index
    %c0_145 = arith.constant 0 : index
    %482 = vector.load %arg44[%c0_144, %c0_145] : memref<1x32xf32, #tpu.memory_space<vmem>>, vector<1x32xf32>
    %483 = vector.broadcast %482 : vector<1x32xf32> to vector<4x32xf32>
    %484 = arith.addf %481, %483 : vector<4x32xf32>
    %cst_146 = arith.constant 0.000000e+00 : f32
    %485 = vector.broadcast %cst_146 : f32 to vector<4x32xf32>
    %486 = arith.maximumf %484, %485 : vector<4x32xf32>
    %487 = arith.addf %479, %486 : vector<4x32xf32>
    %c0_147 = arith.constant 0 : index
    %c0_148 = arith.constant 0 : index
    %488 = vector.load %arg3[%c0_147, %c0_148] : memref<32x16xf32, #tpu.memory_space<vmem>>, vector<32x16xf32>
    %cst_149 = arith.constant dense<0.000000e+00> : vector<4x16xf32>
    %489 = tpu.matmul %487, %488, %cst_149 {dimension_numbers = #tpu.dot_dimension_numbers<[1], [0], [0], [1], [0, 0, 1, 1], [], []>} : vector<4x32xf32>, vector<32x16xf32>, vector<4x16xf32> -> vector<4x16xf32>
    %c0_150 = arith.constant 0 : index
    %c0_151 = arith.constant 0 : index
    %490 = vector.load %arg2[%c0_150, %c0_151] : memref<1x16xf32, #tpu.memory_space<vmem>>, vector<1x16xf32>
    %491 = vector.broadcast %490 : vector<1x16xf32> to vector<4x16xf32>
    %492 = arith.addf %489, %491 : vector<4x16xf32>
    %c0_152 = arith.constant 0 : index
    %c0_153 = arith.constant 0 : index
    %c0_154 = arith.constant 0 : index
    %493 = vector.load %arg49[%c0_152, %c0_153, %c0_154] : memref<1x4x16xf32, #tpu.memory_space<vmem>>, vector<1x4x16xf32>
    %494 = vector.shape_cast %493 : vector<1x4x16xf32> to vector<4x16xf32>
    %495 = vector.shape_cast %492 : vector<4x16xf32> to vector<1x4x16xf32>
    tpu.vector_store %arg49[%c0_152, %c0_153, %c0_154], %495 {strides = array<i32>} : memref<1x4x16xf32, #tpu.memory_space<vmem>>, vector<1x4x16xf32>,
    return
  }
  func.func @transform_0(%arg0: i32) -> (i32, i32, i32) {
    %c0_i32 = arith.constant 0 : i32
    %c0_i32_0 = arith.constant 0 : i32
    %c0_i32_1 = arith.constant 0 : i32
    return %arg0, %c0_i32, %c0_i32_0 : i32, i32, i32
  }
  func.func @transform_1(%arg0: i32) -> (i32, i32) {
    %c0_i32 = arith.constant 0 : i32
    %c0_i32_0 = arith.constant 0 : i32
    %c0_i32_1 = arith.constant 0 : i32
    return %c0_i32, %c0_i32_0 : i32, i32
  }
  func.func @transform_2(%arg0: i32) -> (i32, i32) {
    %c0_i32 = arith.constant 0 : i32
    %c0_i32_0 = arith.constant 0 : i32
    %c0_i32_1 = arith.constant 0 : i32
    return %c0_i32, %c0_i32_0 : i32, i32
  }
  func.func @transform_3(%arg0: i32) -> (i32, i32) {
    %c0_i32 = arith.constant 0 : i32
    %c0_i32_0 = arith.constant 0 : i32
    %c0_i32_1 = arith.constant 0 : i32
    return %c0_i32, %c0_i32_0 : i32, i32
  }
  func.func @transform_4(%arg0: i32) -> (i32, i32) {
    %c0_i32 = arith.constant 0 : i32
    %c0_i32_0 = arith.constant 0 : i32
    %c0_i32_1 = arith.constant 0 : i32
    return %c0_i32, %c0_i32_0 : i32, i32
  }
  func.func @transform_5(%arg0: i32) -> (i32, i32) {
    %c0_i32 = arith.constant 0 : i32
    %c0_i32_0 = arith.constant 0 : i32
    %c0_i32_1 = arith.constant 0 : i32
    return %c0_i32, %c0_i32_0 : i32, i32
  }
  func.func @transform_6(%arg0: i32) -> (i32, i32) {
    %c0_i32 = arith.constant 0 : i32
    %c0_i32_0 = arith.constant 0 : i32
    %c0_i32_1 = arith.constant 0 : i32
    return %c0_i32, %c0_i32_0 : i32, i32
  }
  func.func @transform_7(%arg0: i32) -> (i32, i32) {
    %c0_i32 = arith.constant 0 : i32
    %c0_i32_0 = arith.constant 0 : i32
    %c0_i32_1 = arith.constant 0 : i32
    return %c0_i32, %c0_i32_0 : i32, i32
  }
  func.func @transform_8(%arg0: i32) -> (i32, i32) {
    %c0_i32 = arith.constant 0 : i32
    %c0_i32_0 = arith.constant 0 : i32
    %c0_i32_1 = arith.constant 0 : i32
    return %c0_i32, %c0_i32_0 : i32, i32
  }
  func.func @transform_9(%arg0: i32) -> (i32, i32) {
    %c0_i32 = arith.constant 0 : i32
    %c0_i32_0 = arith.constant 0 : i32
    %c0_i32_1 = arith.constant 0 : i32
    return %c0_i32, %c0_i32_0 : i32, i32
  }
  func.func @transform_10(%arg0: i32) -> (i32, i32) {
    %c0_i32 = arith.constant 0 : i32
    %c0_i32_0 = arith.constant 0 : i32
    %c0_i32_1 = arith.constant 0 : i32
    return %c0_i32, %c0_i32_0 : i32, i32
  }
  func.func @transform_11(%arg0: i32) -> (i32, i32) {
    %c0_i32 = arith.constant 0 : i32
    %c0_i32_0 = arith.constant 0 : i32
    %c0_i32_1 = arith.constant 0 : i32
    return %c0_i32, %c0_i32_0 : i32, i32
  }
  func.func @transform_12(%arg0: i32) -> (i32, i32) {
    %c0_i32 = arith.constant 0 : i32
    %c0_i32_0 = arith.constant 0 : i32
    %c0_i32_1 = arith.constant 0 : i32
    return %c0_i32, %c0_i32_0 : i32, i32
  }
  func.func @transform_13(%arg0: i32) -> (i32, i32) {
    %c0_i32 = arith.constant 0 : i32
    %c0_i32_0 = arith.constant 0 : i32
    %c0_i32_1 = arith.constant 0 : i32
    return %c0_i32, %c0_i32_0 : i32, i32
  }
  func.func @transform_14(%arg0: i32) -> (i32, i32) {
    %c0_i32 = arith.constant 0 : i32
    %c0_i32_0 = arith.constant 0 : i32
    %c0_i32_1 = arith.constant 0 : i32
    return %c0_i32, %c0_i32_0 : i32, i32
  }
  func.func @transform_15(%arg0: i32) -> (i32, i32) {
    %c0_i32 = arith.constant 0 : i32
    %c0_i32_0 = arith.constant 0 : i32
    %c0_i32_1 = arith.constant 0 : i32
    return %c0_i32, %c0_i32_0 : i32, i32
  }
  func.func @transform_16(%arg0: i32) -> (i32, i32) {
    %c0_i32 = arith.constant 0 : i32
    %c0_i32_0 = arith.constant 0 : i32
    %c0_i32_1 = arith.constant 0 : i32
    return %c0_i32, %c0_i32_0 : i32, i32
  }
  func.func @transform_17(%arg0: i32) -> (i32, i32) {
    %c0_i32 = arith.constant 0 : i32
    %c0_i32_0 = arith.constant 0 : i32
    %c0_i32_1 = arith.constant 0 : i32
    return %c0_i32, %c0_i32_0 : i32, i32
  }
  func.func @transform_18(%arg0: i32) -> (i32, i32) {
    %c0_i32 = arith.constant 0 : i32
    %c0_i32_0 = arith.constant 0 : i32
    %c0_i32_1 = arith.constant 0 : i32
    return %c0_i32, %c0_i32_0 : i32, i32
  }
  func.func @transform_19(%arg0: i32) -> (i32, i32) {
    %c0_i32 = arith.constant 0 : i32
    %c0_i32_0 = arith.constant 0 : i32
    %c0_i32_1 = arith.constant 0 : i32
    return %c0_i32, %c0_i32_0 : i32, i32
  }
  func.func @transform_20(%arg0: i32) -> (i32, i32) {
    %c0_i32 = arith.constant 0 : i32
    %c0_i32_0 = arith.constant 0 : i32
    %c0_i32_1 = arith.constant 0 : i32
    return %c0_i32, %c0_i32_0 : i32, i32
  }
  func.func @transform_21(%arg0: i32) -> (i32, i32) {
    %c0_i32 = arith.constant 0 : i32
    %c0_i32_0 = arith.constant 0 : i32
    %c0_i32_1 = arith.constant 0 : i32
    return %c0_i32, %c0_i32_0 : i32, i32
  }
  func.func @transform_22(%arg0: i32) -> (i32, i32) {
    %c0_i32 = arith.constant 0 : i32
    %c0_i32_0 = arith.constant 0 : i32
    %c0_i32_1 = arith.constant 0 : i32
    return %c0_i32, %c0_i32_0 : i32, i32
  }
  func.func @transform_23(%arg0: i32) -> (i32, i32) {
    %c0_i32 = arith.constant 0 : i32
    %c0_i32_0 = arith.constant 0 : i32
    %c0_i32_1 = arith.constant 0 : i32
    return %c0_i32, %c0_i32_0 : i32, i32
  }
  func.func @transform_24(%arg0: i32) -> (i32, i32) {
    %c0_i32 = arith.constant 0 : i32
    %c0_i32_0 = arith.constant 0 : i32
    %c0_i32_1 = arith.constant 0 : i32
    return %c0_i32, %c0_i32_0 : i32, i32
  }
  func.func @transform_25(%arg0: i32) -> (i32, i32) {
    %c0_i32 = arith.constant 0 : i32
    %c0_i32_0 = arith.constant 0 : i32
    %c0_i32_1 = arith.constant 0 : i32
    return %c0_i32, %c0_i32_0 : i32, i32
  }
  func.func @transform_26(%arg0: i32) -> (i32, i32) {
    %c0_i32 = arith.constant 0 : i32
    %c0_i32_0 = arith.constant 0 : i32
    %c0_i32_1 = arith.constant 0 : i32
    return %c0_i32, %c0_i32_0 : i32, i32
  }
  func.func @transform_27(%arg0: i32) -> (i32, i32) {
    %c0_i32 = arith.constant 0 : i32
    %c0_i32_0 = arith.constant 0 : i32
    %c0_i32_1 = arith.constant 0 : i32
    return %c0_i32, %c0_i32_0 : i32, i32
  }
  func.func @transform_28(%arg0: i32) -> (i32, i32) {
    %c0_i32 = arith.constant 0 : i32
    %c0_i32_0 = arith.constant 0 : i32
    %c0_i32_1 = arith.constant 0 : i32
    return %c0_i32, %c0_i32_0 : i32, i32
  }
  func.func @transform_29(%arg0: i32) -> (i32, i32) {
    %c0_i32 = arith.constant 0 : i32
    %c0_i32_0 = arith.constant 0 : i32
    %c0_i32_1 = arith.constant 0 : i32
    return %c0_i32, %c0_i32_0 : i32, i32
  }
  func.func @transform_30(%arg0: i32) -> (i32, i32) {
    %c0_i32 = arith.constant 0 : i32
    %c0_i32_0 = arith.constant 0 : i32
    %c0_i32_1 = arith.constant 0 : i32
    return %c0_i32, %c0_i32_0 : i32, i32
  }
  func.func @transform_31(%arg0: i32) -> (i32, i32) {
    %c0_i32 = arith.constant 0 : i32
    %c0_i32_0 = arith.constant 0 : i32
    %c0_i32_1 = arith.constant 0 : i32
    return %c0_i32, %c0_i32_0 : i32, i32
  }
  func.func @transform_32(%arg0: i32) -> (i32, i32) {
    %c0_i32 = arith.constant 0 : i32
    %c0_i32_0 = arith.constant 0 : i32
    %c0_i32_1 = arith.constant 0 : i32
    return %c0_i32, %c0_i32_0 : i32, i32
  }
  func.func @transform_33(%arg0: i32) -> (i32, i32) {
    %c0_i32 = arith.constant 0 : i32
    %c0_i32_0 = arith.constant 0 : i32
    %c0_i32_1 = arith.constant 0 : i32
    return %c0_i32, %c0_i32_0 : i32, i32
  }
  func.func @transform_34(%arg0: i32) -> (i32, i32) {
    %c0_i32 = arith.constant 0 : i32
    %c0_i32_0 = arith.constant 0 : i32
    %c0_i32_1 = arith.constant 0 : i32
    return %c0_i32, %c0_i32_0 : i32, i32
  }
  func.func @transform_35(%arg0: i32) -> (i32, i32) {
    %c0_i32 = arith.constant 0 : i32
    %c0_i32_0 = arith.constant 0 : i32
    %c0_i32_1 = arith.constant 0 : i32
    return %c0_i32, %c0_i32_0 : i32, i32
  }
  func.func @transform_36(%arg0: i32) -> (i32, i32) {
    %c0_i32 = arith.constant 0 : i32
    %c0_i32_0 = arith.constant 0 : i32
    %c0_i32_1 = arith.constant 0 : i32
    return %c0_i32, %c0_i32_0 : i32, i32
  }
  func.func @transform_37(%arg0: i32) -> (i32, i32) {
    %c0_i32 = arith.constant 0 : i32
    %c0_i32_0 = arith.constant 0 : i32
    %c0_i32_1 = arith.constant 0 : i32
    return %c0_i32, %c0_i32_0 : i32, i32
  }
  func.func @transform_38(%arg0: i32) -> (i32, i32) {
    %c0_i32 = arith.constant 0 : i32
    %c0_i32_0 = arith.constant 0 : i32
    %c0_i32_1 = arith.constant 0 : i32
    return %c0_i32, %c0_i32_0 : i32, i32
  }
  func.func @transform_39(%arg0: i32) -> (i32, i32) {
    %c0_i32 = arith.constant 0 : i32
    %c0_i32_0 = arith.constant 0 : i32
    %c0_i32_1 = arith.constant 0 : i32
    return %c0_i32, %c0_i32_0 : i32, i32
  }
  func.func @transform_40(%arg0: i32) -> (i32, i32) {
    %c0_i32 = arith.constant 0 : i32
    %c0_i32_0 = arith.constant 0 : i32
    %c0_i32_1 = arith.constant 0 : i32
    return %c0_i32, %c0_i32_0 : i32, i32
  }
  func.func @transform_41(%arg0: i32) -> (i32, i32) {
    %c0_i32 = arith.constant 0 : i32
    %c0_i32_0 = arith.constant 0 : i32
    %c0_i32_1 = arith.constant 0 : i32
    return %c0_i32, %c0_i32_0 : i32, i32
  }
  func.func @transform_42(%arg0: i32) -> (i32, i32) {
    %c0_i32 = arith.constant 0 : i32
    %c0_i32_0 = arith.constant 0 : i32
    %c0_i32_1 = arith.constant 0 : i32
    return %c0_i32, %c0_i32_0 : i32, i32
  }
  func.func @transform_43(%arg0: i32) -> (i32, i32) {
    %c0_i32 = arith.constant 0 : i32
    %c0_i32_0 = arith.constant 0 : i32
    %c0_i32_1 = arith.constant 0 : i32
    return %c0_i32, %c0_i32_0 : i32, i32
  }
  func.func @transform_44(%arg0: i32) -> (i32, i32) {
    %c0_i32 = arith.constant 0 : i32
    %c0_i32_0 = arith.constant 0 : i32
    %c0_i32_1 = arith.constant 0 : i32
    return %c0_i32, %c0_i32_0 : i32, i32
  }
  func.func @transform_45(%arg0: i32) -> (i32, i32) {
    %c0_i32 = arith.constant 0 : i32
    %c0_i32_0 = arith.constant 0 : i32
    %c0_i32_1 = arith.constant 0 : i32
    return %c0_i32, %c0_i32_0 : i32, i32
  }
  func.func @transform_46(%arg0: i32) -> (i32, i32) {
    %c0_i32 = arith.constant 0 : i32
    %c0_i32_0 = arith.constant 0 : i32
    %c0_i32_1 = arith.constant 0 : i32
    return %c0_i32, %c0_i32_0 : i32, i32
  }
  func.func @transform_47(%arg0: i32) -> (i32, i32) {
    %c0_i32 = arith.constant 0 : i32
    %c0_i32_0 = arith.constant 0 : i32
    %c0_i32_1 = arith.constant 0 : i32
    return %c0_i32, %c0_i32_0 : i32, i32
  }
  func.func @transform_48(%arg0: i32) -> (i32, i32, i32) {
    %c0_i32 = arith.constant 0 : i32
    %c0_i32_0 = arith.constant 0 : i32
    %c0_i32_1 = arith.constant 0 : i32
    return %arg0, %c0_i32, %c0_i32_0 : i32, i32, i32
  }
}

</mosaic_0001>

<llo_original>
// kernel: set_transformer_forward.1
$region0: #{set_transformer_forward.1}
  #allocation0 [shape = 'u32[]', space=smem, size = 0x4, offset = 0x4, fixed_abs, tag = 'smem constant byte address 0x4 - core index']
  #allocation1 [shape = 'u32[144,128]{1,0:T(1,128)}', space=vmem, size = 0x12000, scoped, tag = 'internal scratch']
  %s0 = inlined_call_operand.smem [shape: u32[49], index: -1, kind: input, shape index: {}]
  %s1 = sld [smem:[%s0]]
  %s2 = scalar_lea.smem %s0, 1
  %s3 = sld [smem:[%s2]]
  %s4 = scalar_lea.smem %s0, 2
  %s5 = sld [smem:[%s4]]
  %s6 = scalar_lea.smem %s0, 3
  %s7 = sld [smem:[%s6]]
  %s8 = scalar_lea.smem %s0, 4
  %s9 = sld [smem:[%s8]]
  %s10 = scalar_lea.smem %s0, 5
  %s11 = sld [smem:[%s10]]
  %s12 = scalar_lea.smem %s0, 6
  %s13 = sld [smem:[%s12]]
  %s14 = scalar_lea.smem %s0, 7
  %s15 = sld [smem:[%s14]]
  %s16 = scalar_lea.smem %s0, 8
  %s17 = sld [smem:[%s16]]
  %s18 = scalar_lea.smem %s0, 9
  %s19 = sld [smem:[%s18]]
  %s20 = scalar_lea.smem %s0, 10
  %s21 = sld [smem:[%s20]]
  %s22 = scalar_lea.smem %s0, 11
  %s23 = sld [smem:[%s22]]
  %s24 = scalar_lea.smem %s0, 12
  %s25 = sld [smem:[%s24]]
  %s26 = scalar_lea.smem %s0, 13
  %s27 = sld [smem:[%s26]]
  %s28 = scalar_lea.smem %s0, 14
  %s29 = sld [smem:[%s28]]
  %s30 = scalar_lea.smem %s0, 15
  %s31 = sld [smem:[%s30]]
  %s32 = scalar_lea.smem %s0, 16
  %s33 = sld [smem:[%s32]]
  %s34 = scalar_lea.smem %s0, 17
  %s35 = sld [smem:[%s34]]
  %s36 = scalar_lea.smem %s0, 18
  %s37 = sld [smem:[%s36]]
  %s38 = scalar_lea.smem %s0, 19
  %s39 = sld [smem:[%s38]]
  %s40 = scalar_lea.smem %s0, 20
  %s41 = sld [smem:[%s40]]
  %s42 = scalar_lea.smem %s0, 21
  %s43 = sld [smem:[%s42]]
  %s44 = scalar_lea.smem %s0, 22
  %s45 = sld [smem:[%s44]]
  %s46 = scalar_lea.smem %s0, 23
  %s47 = sld [smem:[%s46]]
  %s48 = scalar_lea.smem %s0, 24
  %s49 = sld [smem:[%s48]]
  %s50 = scalar_lea.smem %s0, 25
  %s51 = sld [smem:[%s50]]
  %s52 = scalar_lea.smem %s0, 26
  %s53 = sld [smem:[%s52]]
  %s54 = scalar_lea.smem %s0, 27
  %s55 = sld [smem:[%s54]]
  %s56 = scalar_lea.smem %s0, 28
  %s57 = sld [smem:[%s56]]
  %s58 = scalar_lea.smem %s0, 29
  %s59 = sld [smem:[%s58]]
  %s60 = scalar_lea.smem %s0, 30
  %s61 = sld [smem:[%s60]]
  %s62 = scalar_lea.smem %s0, 31
  %s63 = sld [smem:[%s62]]
  %s64 = scalar_lea.smem %s0, 32
  %s65 = sld [smem:[%s64]]
  %s66 = scalar_lea.smem %s0, 33
  %s67 = sld [smem:[%s66]]
  %s68 = scalar_lea.smem %s0, 34
  %s69 = sld [smem:[%s68]]
  %s70 = scalar_lea.smem %s0, 35
  %s71 = sld [smem:[%s70]]
  %s72 = scalar_lea.smem %s0, 36
  %s73 = sld [smem:[%s72]]
  %s74 = scalar_lea.smem %s0, 37
  %s75 = sld [smem:[%s74]]
  %s76 = scalar_lea.smem %s0, 38
  %s77 = sld [smem:[%s76]]
  %s78 = scalar_lea.smem %s0, 39
  %s79 = sld [smem:[%s78]]
  %s80 = scalar_lea.smem %s0, 40
  %s81 = sld [smem:[%s80]]
  %s82 = scalar_lea.smem %s0, 41
  %s83 = sld [smem:[%s82]]
  %s84 = scalar_lea.smem %s0, 42
  %s85 = sld [smem:[%s84]]
  %s86 = scalar_lea.smem %s0, 43
  %s87 = sld [smem:[%s86]]
  %s88 = scalar_lea.smem %s0, 44
  %s89 = sld [smem:[%s88]]
  %s90 = scalar_lea.smem %s0, 45
  %s91 = sld [smem:[%s90]]
  %s92 = scalar_lea.smem %s0, 46
  %s93 = sld [smem:[%s92]]
  %s94 = scalar_lea.smem %s0, 47
  %s95 = sld [smem:[%s94]]
  %s96 = scalar_lea.smem %s0, 48
  %s97 = sld [smem:[%s96]]
  %s98 = sld [smem:[#allocation0]]
  $region237: #{set_transformer_forward.1} parent=0
    _
  %s100 = ssub.s32 1, %s98
  %s101 = scalar_select 0, %s100, %s98
  $region1: #{set_transformer_forward.1} parent=0
    #allocation2 [shape = 'u8[512]{0}', space=vmem, size = 0x400, scoped, tag = 'input window, operand 38, single buffered']
    #allocation3 [shape = 's32[2]{0}', space=sflag, size = 0x8, scoped, tag = 'scoped memory for set_transformer_forward.1']
    #allocation4 [shape = 's32[2]{0}', space=sflag, size = 0x8, scoped, tag = 'scoped memory for set_transformer_forward.1']
    #allocation5 [shape = 'u8[512]{0}', space=vmem, size = 0x400, scoped, tag = 'input window, operand 43, single buffered']
    #allocation6 [shape = 's32[1]{0}', space=sflag, size = 0x4, scoped, tag = 'scoped memory for set_transformer_forward.1']
    #allocation7 [shape = 'u8[512]{0}', space=vmem, size = 0x400, scoped, tag = 'input window, operand 44, single buffered']
    #allocation8 [shape = 'u8[4096]{0}', space=vmem, size = 0x1000, scoped, tag = 'output window, operand 0']
    %102 = vsyncpa [#allocation3], 0
    %103 = vsyncpa [#allocation6], 0
    %104 = vsyncpa [#allocation4], 0
    %s105 = scalar_lea.sflag [#allocation4], 1
    %106 = vsyncpa %s105, 0
    loop: start=0, step=1, limit=4
    $region2: #{set_transformer_forward.1} parent=1 // loop_pre_header
      _
    $region3: #{set_transformer_forward.1} parent=1 // loop_header
      %s108 = sphi 0, %s112
      %p109 = scmp.ge.s32.totalorder %s108, 4
      %s118 = sphi 0, %s120
      %s121 = sphi 0, %s118
      %s122 = sphi 0, %s121
      %s138 = sphi 0, %s122
      %s142 = sphi 0, %s142
      %s144 = sphi 0, %s142
      %s145 = sphi 0, %s144
      %s159 = sphi 0, %s145
      %s163 = sphi 0, %s163
      %s165 = sphi 0, %s163
      %s166 = sphi 0, %s165
      %s180 = sphi 0, %s166
      %s184 = sphi 0, %s184
      %s186 = sphi 0, %s184
      %s187 = sphi 0, %s186
      %s201 = sphi 0, %s187
      %s205 = sphi 0, %s205
      %s207 = sphi 0, %s205
      %s208 = sphi 0, %s207
      %s222 = sphi 0, %s208
      %s226 = sphi 0, %s226
      %s228 = sphi 0, %s226
      %s229 = sphi 0, %s228
      %s243 = sphi 0, %s229
      %s247 = sphi 0, %s247
      %s249 = sphi 0, %s247
      %s250 = sphi 0, %s249
      %s264 = sphi 0, %s250
      %s268 = sphi 0, %s268
      %s270 = sphi 0, %s268
      %s271 = sphi 0, %s270
      %s285 = sphi 0, %s271
      %s289 = sphi 0, %s289
      %s291 = sphi 0, %s289
      %s292 = sphi 0, %s291
      %s306 = sphi 0, %s292
      %s310 = sphi 0, %s310
      %s312 = sphi 0, %s310
      %s313 = sphi 0, %s312
      %s327 = sphi 0, %s313
      %s331 = sphi 0, %s331
      %s333 = sphi 0, %s331
      %s334 = sphi 0, %s333
      %s348 = sphi 0, %s334
      %s352 = sphi 0, %s352
      %s354 = sphi 0, %s352
      %s355 = sphi 0, %s354
      %s369 = sphi 0, %s355
      %s373 = sphi 0, %s373
      %s375 = sphi 0, %s373
      %s376 = sphi 0, %s375
      %s390 = sphi 0, %s376
      %s394 = sphi 0, %s394
      %s396 = sphi 0, %s394
      %s397 = sphi 0, %s396
      %s411 = sphi 0, %s397
      %s415 = sphi 0, %s415
      %s417 = sphi 0, %s415
      %s418 = sphi 0, %s417
      %s432 = sphi 0, %s418
      %s436 = sphi 0, %s436
      %s438 = sphi 0, %s436
      %s439 = sphi 0, %s438
      %s453 = sphi 0, %s439
      %s457 = sphi 0, %s457
      %s459 = sphi 0, %s457
      %s460 = sphi 0, %s459
      %s474 = sphi 0, %s460
      %s478 = sphi 0, %s478
      %s480 = sphi 0, %s478
      %s481 = sphi 0, %s480
      %s495 = sphi 0, %s481
      %s499 = sphi 0, %s499
      %s501 = sphi 0, %s499
      %s502 = sphi 0, %s501
      %s516 = sphi 0, %s502
      %s520 = sphi 0, %s520
      %s522 = sphi 0, %s520
      %s523 = sphi 0, %s522
      %s537 = sphi 0, %s523
      %s541 = sphi 0, %s541
      %s543 = sphi 0, %s541
      %s544 = sphi 0, %s543
      %s558 = sphi 0, %s544
      %s562 = sphi 0, %s562
      %s564 = sphi 0, %s562
      %s565 = sphi 0, %s564
      %s579 = sphi 0, %s565
      %s583 = sphi 0, %s583
      %s585 = sphi 0, %s583
      %s586 = sphi 0, %s585
      %s600 = sphi 0, %s586
      %s604 = sphi 0, %s604
      %s606 = sphi 0, %s604
      %s607 = sphi 0, %s606
      %s621 = sphi 0, %s607
      %s625 = sphi 0, %s625
      %s627 = sphi 0, %s625
      %s628 = sphi 0, %s627
      %s642 = sphi 0, %s628
      %s646 = sphi 0, %s646
      %s648 = sphi 0, %s646
      %s649 = sphi 0, %s648
      %s663 = sphi 0, %s649
      %s667 = sphi 0, %s667
      %s669 = sphi 0, %s667
      %s670 = sphi 0, %s669
      %s684 = sphi 0, %s670
      %s688 = sphi 0, %s688
      %s690 = sphi 0, %s688
      %s691 = sphi 0, %s690
      %s705 = sphi 0, %s691
      %s709 = sphi 0, %s709
      %s711 = sphi 0, %s709
      %s712 = sphi 0, %s711
      %s726 = sphi 0, %s712
      %s730 = sphi 0, %s730
      %s732 = sphi 0, %s730
      %s733 = sphi 0, %s732
      %s747 = sphi 0, %s733
      %s751 = sphi 0, %s751
      %s753 = sphi 0, %s751
      %s754 = sphi 0, %s753
      %s768 = sphi 0, %s754
      %s772 = sphi 0, %s772
      %s774 = sphi 0, %s772
      %s775 = sphi 0, %s774
      %s789 = sphi 0, %s775
      %s793 = sphi 0, %s793
      %s795 = sphi 0, %s793
      %s796 = sphi 0, %s795
      %s810 = sphi 0, %s796
      %s814 = sphi 0, %s814
      %s816 = sphi 0, %s814
      %s817 = sphi 0, %s816
      %s831 = sphi 0, %s817
      %s835 = sphi 0, %s835
      %s837 = sphi 0, %s835
      %s838 = sphi 0, %s837
      %s852 = sphi 0, %s838
      %s856 = sphi 0, %s856
      %s858 = sphi 0, %s856
      %s859 = sphi 0, %s858
      %s873 = sphi 0, %s859
      %s877 = sphi 0, %s877
      %s879 = sphi 0, %s877
      %s880 = sphi 0, %s879
      %s894 = sphi 0, %s880
      %s898 = sphi 0, %s898
      %s900 = sphi 0, %s898
      %s901 = sphi 0, %s900
      %s915 = sphi 0, %s901
      %s919 = sphi 0, %s919
      %s921 = sphi 0, %s919
      %s922 = sphi 0, %s921
      %s936 = sphi 0, %s922
      %s940 = sphi 0, %s940
      %s942 = sphi 0, %s940
      %s943 = sphi 0, %s942
      %s957 = sphi 0, %s943
      %s961 = sphi 0, %s961
      %s963 = sphi 0, %s961
      %s964 = sphi 0, %s963
      %s978 = sphi 0, %s964
      %s982 = sphi 0, %s982
      %s984 = sphi 0, %s982
      %s985 = sphi 0, %s984
      %s999 = sphi 0, %s985
      %s1003 = sphi 0, %s1003
      %s1005 = sphi 0, %s1003
      %s1006 = sphi 0, %s1005
      %s1020 = sphi 0, %s1006
      %s1024 = sphi 0, %s1024
      %s1026 = sphi 0, %s1024
      %s1027 = sphi 0, %s1026
      %s1041 = sphi 0, %s1027
      %s1045 = sphi 0, %s1045
      %s1047 = sphi 0, %s1045
      %s1048 = sphi 0, %s1047
      %s1062 = sphi 0, %s1048
      %s1066 = sphi 0, %s1066
      %s1068 = sphi 0, %s1066
      %s1069 = sphi 0, %s1068
      %s1083 = sphi 0, %s1069
      %s1087 = sphi 0, %s1087
      %s1089 = sphi 0, %s1087
      %s1090 = sphi 0, %s1089
      %s1104 = sphi 0, %s1090
      %s1108 = sphi 0, %s1108
      %s1110 = sphi 0, %s1108
      %s1111 = sphi 0, %s1110
      %s1125 = sphi 0, %s1111
      %s1131 = sphi 0, %s1133
      %s1134 = sphi 0, %s1131
      %s1135 = sphi 0, %s1134
      %s1151 = sphi 0, %s1135
    $region4: #{set_transformer_forward.1} parent=1 // loop_header_branch
      %111 = sbr.rel (%p109) target = $region8
    $region5: #{set_transformer_forward.1} parent=1 // loop_body
      %s113 = ssub.s32 %s108, 1
      %s114 = ssub.s32 %s108, 2
      %s115 = sadd.s32 %s108, 1
      %s116 = ssub.s32 %s108, %s115
      %p117 = scmp.eq.s32.totalorder %s116, 0
      %s119 = sadd.s32 %s118, 1
      %s120 = scalar_select %p117, %s118, %s119
      %p123 = pneg %p117
      %p124 = scmp.eq.s32.totalorder %s108, 1
      %p125 = por %p123, %p124
      %p126 = scmp.ne.s32.totalorder %s118, %s121
      %p127 = scmp.eq.s32.totalorder %s108, 0
      %p128 = por %p126, %p127
      %p129 = scmp.ne.s32.totalorder %s118, %s121
      %p130 = scmp.eq.s32.totalorder %s113, 1
      %p131 = por %p129, %p130
      %p132 = scmp.ne.s32.totalorder %s121, %s122
      %p133 = scmp.eq.s32.totalorder %s113, 0
      %p134 = por %p132, %p133
      %p135 = scmp.ne.s32.totalorder %s121, %s122
      %p136 = scmp.eq.s32.totalorder %s114, 1
      %p137 = por %p135, %p136
      %p139 = scmp.ne.s32.totalorder %s122, %s138
      %p140 = scmp.eq.s32.totalorder %s114, 0
      %p141 = por %p139, %p140
      %s143 = sadd.s32 %s142, 1
      %p146 = scmp.eq.s32.totalorder %s108, 1
      %p147 = scmp.ne.s32.totalorder %s142, %s144
      %p148 = scmp.eq.s32.totalorder %s108, 0
      %p149 = por %p147, %p148
      %p150 = scmp.ne.s32.totalorder %s142, %s144
      %p151 = scmp.eq.s32.totalorder %s113, 1
      %p152 = por %p150, %p151
      %p153 = scmp.ne.s32.totalorder %s144, %s145
      %p154 = scmp.eq.s32.totalorder %s113, 0
      %p155 = por %p153, %p154
      %p156 = scmp.ne.s32.totalorder %s144, %s145
      %p157 = scmp.eq.s32.totalorder %s114, 1
      %p158 = por %p156, %p157
      %p160 = scmp.ne.s32.totalorder %s145, %s159
      %p161 = scmp.eq.s32.totalorder %s114, 0
      %p162 = por %p160, %p161
      %s164 = sadd.s32 %s163, 1
      %p167 = scmp.eq.s32.totalorder %s108, 1
      %p168 = scmp.ne.s32.totalorder %s163, %s165
      %p169 = scmp.eq.s32.totalorder %s108, 0
      %p170 = por %p168, %p169
      %p171 = scmp.ne.s32.totalorder %s163, %s165
      %p172 = scmp.eq.s32.totalorder %s113, 1
      %p173 = por %p171, %p172
      %p174 = scmp.ne.s32.totalorder %s165, %s166
      %p175 = scmp.eq.s32.totalorder %s113, 0
      %p176 = por %p174, %p175
      %p177 = scmp.ne.s32.totalorder %s165, %s166
      %p178 = scmp.eq.s32.totalorder %s114, 1
      %p179 = por %p177, %p178
      %p181 = scmp.ne.s32.totalorder %s166, %s180
      %p182 = scmp.eq.s32.totalorder %s114, 0
      %p183 = por %p181, %p182
      %s185 = sadd.s32 %s184, 1
      %p188 = scmp.eq.s32.totalorder %s108, 1
      %p189 = scmp.ne.s32.totalorder %s184, %s186
      %p190 = scmp.eq.s32.totalorder %s108, 0
      %p191 = por %p189, %p190
      %p192 = scmp.ne.s32.totalorder %s184, %s186
      %p193 = scmp.eq.s32.totalorder %s113, 1
      %p194 = por %p192, %p193
      %p195 = scmp.ne.s32.totalorder %s186, %s187
      %p196 = scmp.eq.s32.totalorder %s113, 0
      %p197 = por %p195, %p196
      %p198 = scmp.ne.s32.totalorder %s186, %s187
      %p199 = scmp.eq.s32.totalorder %s114, 1
      %p200 = por %p198, %p199
      %p202 = scmp.ne.s32.totalorder %s187, %s201
      %p203 = scmp.eq.s32.totalorder %s114, 0
      %p204 = por %p202, %p203
      %s206 = sadd.s32 %s205, 1
      %p209 = scmp.eq.s32.totalorder %s108, 1
      %p210 = scmp.ne.s32.totalorder %s205, %s207
      %p211 = scmp.eq.s32.totalorder %s108, 0
      %p212 = por %p210, %p211
      %p213 = scmp.ne.s32.totalorder %s205, %s207
      %p214 = scmp.eq.s32.totalorder %s113, 1
      %p215 = por %p213, %p214
      %p216 = scmp.ne.s32.totalorder %s207, %s208
      %p217 = scmp.eq.s32.totalorder %s113, 0
      %p218 = por %p216, %p217
      %p219 = scmp.ne.s32.totalorder %s207, %s208
      %p220 = scmp.eq.s32.totalorder %s114, 1
      %p221 = por %p219, %p220
      %p223 = scmp.ne.s32.totalorder %s208, %s222
      %p224 = scmp.eq.s32.totalorder %s114, 0
      %p225 = por %p223, %p224
      %s227 = sadd.s32 %s226, 1
      %p230 = scmp.eq.s32.totalorder %s108, 1
      %p231 = scmp.ne.s32.totalorder %s226, %s228
      %p232 = scmp.eq.s32.totalorder %s108, 0
      %p233 = por %p231, %p232
      %p234 = scmp.ne.s32.totalorder %s226, %s228
      %p235 = scmp.eq.s32.totalorder %s113, 1
      %p236 = por %p234, %p235
      %p237 = scmp.ne.s32.totalorder %s228, %s229
      %p238 = scmp.eq.s32.totalorder %s113, 0
      %p239 = por %p237, %p238
      %p240 = scmp.ne.s32.totalorder %s228, %s229
      %p241 = scmp.eq.s32.totalorder %s114, 1
      %p242 = por %p240, %p241
      %p244 = scmp.ne.s32.totalorder %s229, %s243
      %p245 = scmp.eq.s32.totalorder %s114, 0
      %p246 = por %p244, %p245
      %s248 = sadd.s32 %s247, 1
      %p251 = scmp.eq.s32.totalorder %s108, 1
      %p252 = scmp.ne.s32.totalorder %s247, %s249
      %p253 = scmp.eq.s32.totalorder %s108, 0
      %p254 = por %p252, %p253
      %p255 = scmp.ne.s32.totalorder %s247, %s249
      %p256 = scmp.eq.s32.totalorder %s113, 1
      %p257 = por %p255, %p256
      %p258 = scmp.ne.s32.totalorder %s249, %s250
      %p259 = scmp.eq.s32.totalorder %s113, 0
      %p260 = por %p258, %p259
      %p261 = scmp.ne.s32.totalorder %s249, %s250
      %p262 = scmp.eq.s32.totalorder %s114, 1
      %p263 = por %p261, %p262
      %p265 = scmp.ne.s32.totalorder %s250, %s264
      %p266 = scmp.eq.s32.totalorder %s114, 0
      %p267 = por %p265, %p266
      %s269 = sadd.s32 %s268, 1
      %p272 = scmp.eq.s32.totalorder %s108, 1
      %p273 = scmp.ne.s32.totalorder %s268, %s270
      %p274 = scmp.eq.s32.totalorder %s108, 0
      %p275 = por %p273, %p274
      %p276 = scmp.ne.s32.totalorder %s268, %s270
      %p277 = scmp.eq.s32.totalorder %s113, 1
      %p278 = por %p276, %p277
      %p279 = scmp.ne.s32.totalorder %s270, %s271
      %p280 = scmp.eq.s32.totalorder %s113, 0
      %p281 = por %p279, %p280
      %p282 = scmp.ne.s32.totalorder %s270, %s271
      %p283 = scmp.eq.s32.totalorder %s114, 1
      %p284 = por %p282, %p283
      %p286 = scmp.ne.s32.totalorder %s271, %s285
      %p287 = scmp.eq.s32.totalorder %s114, 0
      %p288 = por %p286, %p287
      %s290 = sadd.s32 %s289, 1
      %p293 = scmp.eq.s32.totalorder %s108, 1
      %p294 = scmp.ne.s32.totalorder %s289, %s291
      %p295 = scmp.eq.s32.totalorder %s108, 0
      %p296 = por %p294, %p295
      %p297 = scmp.ne.s32.totalorder %s289, %s291
      %p298 = scmp.eq.s32.totalorder %s113, 1
      %p299 = por %p297, %p298
      %p300 = scmp.ne.s32.totalorder %s291, %s292
      %p301 = scmp.eq.s32.totalorder %s113, 0
      %p302 = por %p300, %p301
      %p303 = scmp.ne.s32.totalorder %s291, %s292
      %p304 = scmp.eq.s32.totalorder %s114, 1
      %p305 = por %p303, %p304
      %p307 = scmp.ne.s32.totalorder %s292, %s306
      %p308 = scmp.eq.s32.totalorder %s114, 0
      %p309 = por %p307, %p308
      %s311 = sadd.s32 %s310, 1
      %p314 = scmp.eq.s32.totalorder %s108, 1
      %p315 = scmp.ne.s32.totalorder %s310, %s312
      %p316 = scmp.eq.s32.totalorder %s108, 0
      %p317 = por %p315, %p316
      %p318 = scmp.ne.s32.totalorder %s310, %s312
      %p319 = scmp.eq.s32.totalorder %s113, 1
      %p320 = por %p318, %p319
      %p321 = scmp.ne.s32.totalorder %s312, %s313
      %p322 = scmp.eq.s32.totalorder %s113, 0
      %p323 = por %p321, %p322
      %p324 = scmp.ne.s32.totalorder %s312, %s313
      %p325 = scmp.eq.s32.totalorder %s114, 1
      %p326 = por %p324, %p325
      %p328 = scmp.ne.s32.totalorder %s313, %s327
      %p329 = scmp.eq.s32.totalorder %s114, 0
      %p330 = por %p328, %p329
      %s332 = sadd.s32 %s331, 1
      %p335 = scmp.eq.s32.totalorder %s108, 1
      %p336 = scmp.ne.s32.totalorder %s331, %s333
      %p337 = scmp.eq.s32.totalorder %s108, 0
      %p338 = por %p336, %p337
      %p339 = scmp.ne.s32.totalorder %s331, %s333
      %p340 = scmp.eq.s32.totalorder %s113, 1
      %p341 = por %p339, %p340
      %p342 = scmp.ne.s32.totalorder %s333, %s334
      %p343 = scmp.eq.s32.totalorder %s113, 0
      %p344 = por %p342, %p343
      %p345 = scmp.ne.s32.totalorder %s333, %s334
      %p346 = scmp.eq.s32.totalorder %s114, 1
      %p347 = por %p345, %p346
      %p349 = scmp.ne.s32.totalorder %s334, %s348
      %p350 = scmp.eq.s32.totalorder %s114, 0
      %p351 = por %p349, %p350
      %s353 = sadd.s32 %s352, 1
      %p356 = scmp.eq.s32.totalorder %s108, 1
      %p357 = scmp.ne.s32.totalorder %s352, %s354
      %p358 = scmp.eq.s32.totalorder %s108, 0
      %p359 = por %p357, %p358
      %p360 = scmp.ne.s32.totalorder %s352, %s354
      %p361 = scmp.eq.s32.totalorder %s113, 1
      %p362 = por %p360, %p361
      %p363 = scmp.ne.s32.totalorder %s354, %s355
      %p364 = scmp.eq.s32.totalorder %s113, 0
      %p365 = por %p363, %p364
      %p366 = scmp.ne.s32.totalorder %s354, %s355
      %p367 = scmp.eq.s32.totalorder %s114, 1
      %p368 = por %p366, %p367
      %p370 = scmp.ne.s32.totalorder %s355, %s369
      %p371 = scmp.eq.s32.totalorder %s114, 0
      %p372 = por %p370, %p371
      %s374 = sadd.s32 %s373, 1
      %p377 = scmp.eq.s32.totalorder %s108, 1
      %p378 = scmp.ne.s32.totalorder %s373, %s375
      %p379 = scmp.eq.s32.totalorder %s108, 0
      %p380 = por %p378, %p379
      %p381 = scmp.ne.s32.totalorder %s373, %s375
      %p382 = scmp.eq.s32.totalorder %s113, 1
      %p383 = por %p381, %p382
      %p384 = scmp.ne.s32.totalorder %s375, %s376
      %p385 = scmp.eq.s32.totalorder %s113, 0
      %p386 = por %p384, %p385
      %p387 = scmp.ne.s32.totalorder %s375, %s376
      %p388 = scmp.eq.s32.totalorder %s114, 1
      %p389 = por %p387, %p388
      %p391 = scmp.ne.s32.totalorder %s376, %s390
      %p392 = scmp.eq.s32.totalorder %s114, 0
      %p393 = por %p391, %p392
      %s395 = sadd.s32 %s394, 1
      %p398 = scmp.eq.s32.totalorder %s108, 1
      %p399 = scmp.ne.s32.totalorder %s394, %s396
      %p400 = scmp.eq.s32.totalorder %s108, 0
      %p401 = por %p399, %p400
      %p402 = scmp.ne.s32.totalorder %s394, %s396
      %p403 = scmp.eq.s32.totalorder %s113, 1
      %p404 = por %p402, %p403
      %p405 = scmp.ne.s32.totalorder %s396, %s397
      %p406 = scmp.eq.s32.totalorder %s113, 0
      %p407 = por %p405, %p406
      %p408 = scmp.ne.s32.totalorder %s396, %s397
      %p409 = scmp.eq.s32.totalorder %s114, 1
      %p410 = por %p408, %p409
      %p412 = scmp.ne.s32.totalorder %s397, %s411
      %p413 = scmp.eq.s32.totalorder %s114, 0
      %p414 = por %p412, %p413
      %s416 = sadd.s32 %s415, 1
      %p419 = scmp.eq.s32.totalorder %s108, 1
      %p420 = scmp.ne.s32.totalorder %s415, %s417
      %p421 = scmp.eq.s32.totalorder %s108, 0
      %p422 = por %p420, %p421
      %p423 = scmp.ne.s32.totalorder %s415, %s417
      %p424 = scmp.eq.s32.totalorder %s113, 1
      %p425 = por %p423, %p424
      %p426 = scmp.ne.s32.totalorder %s417, %s418
      %p427 = scmp.eq.s32.totalorder %s113, 0
      %p428 = por %p426, %p427
      %p429 = scmp.ne.s32.totalorder %s417, %s418
      %p430 = scmp.eq.s32.totalorder %s114, 1
      %p431 = por %p429, %p430
      %p433 = scmp.ne.s32.totalorder %s418, %s432
      %p434 = scmp.eq.s32.totalorder %s114, 0
      %p435 = por %p433, %p434
      %s437 = sadd.s32 %s436, 1
      %p440 = scmp.eq.s32.totalorder %s108, 1
      %p441 = scmp.ne.s32.totalorder %s436, %s438
      %p442 = scmp.eq.s32.totalorder %s108, 0
      %p443 = por %p441, %p442
      %p444 = scmp.ne.s32.totalorder %s436, %s438
      %p445 = scmp.eq.s32.totalorder %s113, 1
      %p446 = por %p444, %p445
      %p447 = scmp.ne.s32.totalorder %s438, %s439
      %p448 = scmp.eq.s32.totalorder %s113, 0
      %p449 = por %p447, %p448
      %p450 = scmp.ne.s32.totalorder %s438, %s439
      %p451 = scmp.eq.s32.totalorder %s114, 1
      %p452 = por %p450, %p451
      %p454 = scmp.ne.s32.totalorder %s439, %s453
      %p455 = scmp.eq.s32.totalorder %s114, 0
      %p456 = por %p454, %p455
      %s458 = sadd.s32 %s457, 1
      %p461 = scmp.eq.s32.totalorder %s108, 1
      %p462 = scmp.ne.s32.totalorder %s457, %s459
      %p463 = scmp.eq.s32.totalorder %s108, 0
      %p464 = por %p462, %p463
      %p465 = scmp.ne.s32.totalorder %s457, %s459
      %p466 = scmp.eq.s32.totalorder %s113, 1
      %p467 = por %p465, %p466
      %p468 = scmp.ne.s32.totalorder %s459, %s460
      %p469 = scmp.eq.s32.totalorder %s113, 0
      %p470 = por %p468, %p469
      %p471 = scmp.ne.s32.totalorder %s459, %s460
      %p472 = scmp.eq.s32.totalorder %s114, 1
      %p473 = por %p471, %p472
      %p475 = scmp.ne.s32.totalorder %s460, %s474
      %p476 = scmp.eq.s32.totalorder %s114, 0
      %p477 = por %p475, %p476
      %s479 = sadd.s32 %s478, 1
      %p482 = scmp.eq.s32.totalorder %s108, 1
      %p483 = scmp.ne.s32.totalorder %s478, %s480
      %p484 = scmp.eq.s32.totalorder %s108, 0
      %p485 = por %p483, %p484
      %p486 = scmp.ne.s32.totalorder %s478, %s480
      %p487 = scmp.eq.s32.totalorder %s113, 1
      %p488 = por %p486, %p487
      %p489 = scmp.ne.s32.totalorder %s480, %s481
      %p490 = scmp.eq.s32.totalorder %s113, 0
      %p491 = por %p489, %p490
      %p492 = scmp.ne.s32.totalorder %s480, %s481
      %p493 = scmp.eq.s32.totalorder %s114, 1
      %p494 = por %p492, %p493
      %p496 = scmp.ne.s32.totalorder %s481, %s495
      %p497 = scmp.eq.s32.totalorder %s114, 0
      %p498 = por %p496, %p497
      %s500 = sadd.s32 %s499, 1
      %p503 = scmp.eq.s32.totalorder %s108, 1
      %p504 = scmp.ne.s32.totalorder %s499, %s501
      %p505 = scmp.eq.s32.totalorder %s108, 0
      %p506 = por %p504, %p505
      %p507 = scmp.ne.s32.totalorder %s499, %s501
      %p508 = scmp.eq.s32.totalorder %s113, 1
      %p509 = por %p507, %p508
      %p510 = scmp.ne.s32.totalorder %s501, %s502
      %p511 = scmp.eq.s32.totalorder %s113, 0
      %p512 = por %p510, %p511
      %p513 = scmp.ne.s32.totalorder %s501, %s502
      %p514 = scmp.eq.s32.totalorder %s114, 1
      %p515 = por %p513, %p514
      %p517 = scmp.ne.s32.totalorder %s502, %s516
      %p518 = scmp.eq.s32.totalorder %s114, 0
      %p519 = por %p517, %p518
      %s521 = sadd.s32 %s520, 1
      %p524 = scmp.eq.s32.totalorder %s108, 1
      %p525 = scmp.ne.s32.totalorder %s520, %s522
      %p526 = scmp.eq.s32.totalorder %s108, 0
      %p527 = por %p525, %p526
      %p528 = scmp.ne.s32.totalorder %s520, %s522
      %p529 = scmp.eq.s32.totalorder %s113, 1
      %p530 = por %p528, %p529
      %p531 = scmp.ne.s32.totalorder %s522, %s523
      %p532 = scmp.eq.s32.totalorder %s113, 0
      %p533 = por %p531, %p532
      %p534 = scmp.ne.s32.totalorder %s522, %s523
      %p535 = scmp.eq.s32.totalorder %s114, 1
      %p536 = por %p534, %p535
      %p538 = scmp.ne.s32.totalorder %s523, %s537
      %p539 = scmp.eq.s32.totalorder %s114, 0
      %p540 = por %p538, %p539
      %s542 = sadd.s32 %s541, 1
      %p545 = scmp.eq.s32.totalorder %s108, 1
      %p546 = scmp.ne.s32.totalorder %s541, %s543
      %p547 = scmp.eq.s32.totalorder %s108, 0
      %p548 = por %p546, %p547
      %p549 = scmp.ne.s32.totalorder %s541, %s543
      %p550 = scmp.eq.s32.totalorder %s113, 1
      %p551 = por %p549, %p550
      %p552 = scmp.ne.s32.totalorder %s543, %s544
      %p553 = scmp.eq.s32.totalorder %s113, 0
      %p554 = por %p552, %p553
      %p555 = scmp.ne.s32.totalorder %s543, %s544
      %p556 = scmp.eq.s32.totalorder %s114, 1
      %p557 = por %p555, %p556
      %p559 = scmp.ne.s32.totalorder %s544, %s558
      %p560 = scmp.eq.s32.totalorder %s114, 0
      %p561 = por %p559, %p560
      %s563 = sadd.s32 %s562, 1
      %p566 = scmp.eq.s32.totalorder %s108, 1
      %p567 = scmp.ne.s32.totalorder %s562, %s564
      %p568 = scmp.eq.s32.totalorder %s108, 0
      %p569 = por %p567, %p568
      %p570 = scmp.ne.s32.totalorder %s562, %s564
      %p571 = scmp.eq.s32.totalorder %s113, 1
      %p572 = por %p570, %p571
      %p573 = scmp.ne.s32.totalorder %s564, %s565
      %p574 = scmp.eq.s32.totalorder %s113, 0
      %p575 = por %p573, %p574
      %p576 = scmp.ne.s32.totalorder %s564, %s565
      %p577 = scmp.eq.s32.totalorder %s114, 1
      %p578 = por %p576, %p577
      %p580 = scmp.ne.s32.totalorder %s565, %s579
      %p581 = scmp.eq.s32.totalorder %s114, 0
      %p582 = por %p580, %p581
      %s584 = sadd.s32 %s583, 1
      %p587 = scmp.eq.s32.totalorder %s108, 1
      %p588 = scmp.ne.s32.totalorder %s583, %s585
      %p589 = scmp.eq.s32.totalorder %s108, 0
      %p590 = por %p588, %p589
      %p591 = scmp.ne.s32.totalorder %s583, %s585
      %p592 = scmp.eq.s32.totalorder %s113, 1
      %p593 = por %p591, %p592
      %p594 = scmp.ne.s32.totalorder %s585, %s586
      %p595 = scmp.eq.s32.totalorder %s113, 0
      %p596 = por %p594, %p595
      %p597 = scmp.ne.s32.totalorder %s585, %s586
      %p598 = scmp.eq.s32.totalorder %s114, 1
      %p599 = por %p597, %p598
      %p601 = scmp.ne.s32.totalorder %s586, %s600
      %p602 = scmp.eq.s32.totalorder %s114, 0
      %p603 = por %p601, %p602
      %s605 = sadd.s32 %s604, 1
      %p608 = scmp.eq.s32.totalorder %s108, 1
      %p609 = scmp.ne.s32.totalorder %s604, %s606
      %p610 = scmp.eq.s32.totalorder %s108, 0
      %p611 = por %p609, %p610
      %p612 = scmp.ne.s32.totalorder %s604, %s606
      %p613 = scmp.eq.s32.totalorder %s113, 1
      %p614 = por %p612, %p613
      %p615 = scmp.ne.s32.totalorder %s606, %s607
      %p616 = scmp.eq.s32.totalorder %s113, 0
      %p617 = por %p615, %p616
      %p618 = scmp.ne.s32.totalorder %s606, %s607
      %p619 = scmp.eq.s32.totalorder %s114, 1
      %p620 = por %p618, %p619
      %p622 = scmp.ne.s32.totalorder %s607, %s621
      %p623 = scmp.eq.s32.totalorder %s114, 0
      %p624 = por %p622, %p623
      %s626 = sadd.s32 %s625, 1
      %p629 = scmp.eq.s32.totalorder %s108, 1
      %p630 = scmp.ne.s32.totalorder %s625, %s627
      %p631 = scmp.eq.s32.totalorder %s108, 0
      %p632 = por %p630, %p631
      %p633 = scmp.ne.s32.totalorder %s625, %s627
      %p634 = scmp.eq.s32.totalorder %s113, 1
      %p635 = por %p633, %p634
      %p636 = scmp.ne.s32.totalorder %s627, %s628
      %p637 = scmp.eq.s32.totalorder %s113, 0
      %p638 = por %p636, %p637
      %p639 = scmp.ne.s32.totalorder %s627, %s628
      %p640 = scmp.eq.s32.totalorder %s114, 1
      %p641 = por %p639, %p640
      %p643 = scmp.ne.s32.totalorder %s628, %s642
      %p644 = scmp.eq.s32.totalorder %s114, 0
      %p645 = por %p643, %p644
      %s647 = sadd.s32 %s646, 1
      %p650 = scmp.eq.s32.totalorder %s108, 1
      %p651 = scmp.ne.s32.totalorder %s646, %s648
      %p652 = scmp.eq.s32.totalorder %s108, 0
      %p653 = por %p651, %p652
      %p654 = scmp.ne.s32.totalorder %s646, %s648
      %p655 = scmp.eq.s32.totalorder %s113, 1
      %p656 = por %p654, %p655
      %p657 = scmp.ne.s32.totalorder %s648, %s649
      %p658 = scmp.eq.s32.totalorder %s113, 0
      %p659 = por %p657, %p658
      %p660 = scmp.ne.s32.totalorder %s648, %s649
      %p661 = scmp.eq.s32.totalorder %s114, 1
      %p662 = por %p660, %p661
      %p664 = scmp.ne.s32.totalorder %s649, %s663
      %p665 = scmp.eq.s32.totalorder %s114, 0
      %p666 = por %p664, %p665
      %s668 = sadd.s32 %s667, 1
      %p671 = scmp.eq.s32.totalorder %s108, 1
      %p672 = scmp.ne.s32.totalorder %s667, %s669
      %p673 = scmp.eq.s32.totalorder %s108, 0
      %p674 = por %p672, %p673
      %p675 = scmp.ne.s32.totalorder %s667, %s669
      %p676 = scmp.eq.s32.totalorder %s113, 1
      %p677 = por %p675, %p676
      %p678 = scmp.ne.s32.totalorder %s669, %s670
      %p679 = scmp.eq.s32.totalorder %s113, 0
      %p680 = por %p678, %p679
      %p681 = scmp.ne.s32.totalorder %s669, %s670
      %p682 = scmp.eq.s32.totalorder %s114, 1
      %p683 = por %p681, %p682
      %p685 = scmp.ne.s32.totalorder %s670, %s684
      %p686 = scmp.eq.s32.totalorder %s114, 0
      %p687 = por %p685, %p686
      %s689 = sadd.s32 %s688, 1
      %p692 = scmp.eq.s32.totalorder %s108, 1
      %p693 = scmp.ne.s32.totalorder %s688, %s690
      %p694 = scmp.eq.s32.totalorder %s108, 0
      %p695 = por %p693, %p694
      %p696 = scmp.ne.s32.totalorder %s688, %s690
      %p697 = scmp.eq.s32.totalorder %s113, 1
      %p698 = por %p696, %p697
      %p699 = scmp.ne.s32.totalorder %s690, %s691
      %p700 = scmp.eq.s32.totalorder %s113, 0
      %p701 = por %p699, %p700
      %p702 = scmp.ne.s32.totalorder %s690, %s691
      %p703 = scmp.eq.s32.totalorder %s114, 1
      %p704 = por %p702, %p703
      %p706 = scmp.ne.s32.totalorder %s691, %s705
      %p707 = scmp.eq.s32.totalorder %s114, 0
      %p708 = por %p706, %p707
      %s710 = sadd.s32 %s709, 1
      %p713 = scmp.eq.s32.totalorder %s108, 1
      %p714 = scmp.ne.s32.totalorder %s709, %s711
      %p715 = scmp.eq.s32.totalorder %s108, 0
      %p716 = por %p714, %p715
      %p717 = scmp.ne.s32.totalorder %s709, %s711
      %p718 = scmp.eq.s32.totalorder %s113, 1
      %p719 = por %p717, %p718
      %p720 = scmp.ne.s32.totalorder %s711, %s712
      %p721 = scmp.eq.s32.totalorder %s113, 0
      %p722 = por %p720, %p721
      %p723 = scmp.ne.s32.totalorder %s711, %s712
      %p724 = scmp.eq.s32.totalorder %s114, 1
      %p725 = por %p723, %p724
      %p727 = scmp.ne.s32.totalorder %s712, %s726
      %p728 = scmp.eq.s32.totalorder %s114, 0
      %p729 = por %p727, %p728
      %s731 = sadd.s32 %s730, 1
      %p734 = scmp.eq.s32.totalorder %s108, 1
      %p735 = scmp.ne.s32.totalorder %s730, %s732
      %p736 = scmp.eq.s32.totalorder %s108, 0
      %p737 = por %p735, %p736
      %p738 = scmp.ne.s32.totalorder %s730, %s732
      %p739 = scmp.eq.s32.totalorder %s113, 1
      %p740 = por %p738, %p739
      %p741 = scmp.ne.s32.totalorder %s732, %s733
      %p742 = scmp.eq.s32.totalorder %s113, 0
      %p743 = por %p741, %p742
      %p744 = scmp.ne.s32.totalorder %s732, %s733
      %p745 = scmp.eq.s32.totalorder %s114, 1
      %p746 = por %p744, %p745
      %p748 = scmp.ne.s32.totalorder %s733, %s747
      %p749 = scmp.eq.s32.totalorder %s114, 0
      %p750 = por %p748, %p749
      %s752 = sadd.s32 %s751, 1
      %p755 = scmp.eq.s32.totalorder %s108, 1
      %p756 = scmp.ne.s32.totalorder %s751, %s753
      %p757 = scmp.eq.s32.totalorder %s108, 0
      %p758 = por %p756, %p757
      %p759 = scmp.ne.s32.totalorder %s751, %s753
      %p760 = scmp.eq.s32.totalorder %s113, 1
      %p761 = por %p759, %p760
      %p762 = scmp.ne.s32.totalorder %s753, %s754
      %p763 = scmp.eq.s32.totalorder %s113, 0
      %p764 = por %p762, %p763
      %p765 = scmp.ne.s32.totalorder %s753, %s754
      %p766 = scmp.eq.s32.totalorder %s114, 1
      %p767 = por %p765, %p766
      %p769 = scmp.ne.s32.totalorder %s754, %s768
      %p770 = scmp.eq.s32.totalorder %s114, 0
      %p771 = por %p769, %p770
      %s773 = sadd.s32 %s772, 1
      %p776 = scmp.eq.s32.totalorder %s108, 1
      %p777 = scmp.ne.s32.totalorder %s772, %s774
      %p778 = scmp.eq.s32.totalorder %s108, 0
      %p779 = por %p777, %p778
      %p780 = scmp.ne.s32.totalorder %s772, %s774
      %p781 = scmp.eq.s32.totalorder %s113, 1
      %p782 = por %p780, %p781
      %p783 = scmp.ne.s32.totalorder %s774, %s775
      %p784 = scmp.eq.s32.totalorder %s113, 0
      %p785 = por %p783, %p784
      %p786 = scmp.ne.s32.totalorder %s774, %s775
      %p787 = scmp.eq.s32.totalorder %s114, 1
      %p788 = por %p786, %p787
      %p790 = scmp.ne.s32.totalorder %s775, %s789
      %p791 = scmp.eq.s32.totalorder %s114, 0
      %p792 = por %p790, %p791
      %s794 = sadd.s32 %s793, 1
      %p797 = scmp.eq.s32.totalorder %s108, 1
      %p798 = scmp.ne.s32.totalorder %s793, %s795
      %p799 = scmp.eq.s32.totalorder %s108, 0
      %p800 = por %p798, %p799
      %p801 = scmp.ne.s32.totalorder %s793, %s795
      %p802 = scmp.eq.s32.totalorder %s113, 1
      %p803 = por %p801, %p802
      %p804 = scmp.ne.s32.totalorder %s795, %s796
      %p805 = scmp.eq.s32.totalorder %s113, 0
      %p806 = por %p804, %p805
      %p807 = scmp.ne.s32.totalorder %s795, %s796
      %p808 = scmp.eq.s32.totalorder %s114, 1
      %p809 = por %p807, %p808
      %p811 = scmp.ne.s32.totalorder %s796, %s810
      %p812 = scmp.eq.s32.totalorder %s114, 0
      %p813 = por %p811, %p812
      %s815 = sadd.s32 %s814, 1
      %p818 = scmp.eq.s32.totalorder %s108, 1
      %p819 = scmp.ne.s32.totalorder %s814, %s816
      %p820 = scmp.eq.s32.totalorder %s108, 0
      %p821 = por %p819, %p820
      %p822 = scmp.ne.s32.totalorder %s814, %s816
      %p823 = scmp.eq.s32.totalorder %s113, 1
      %p824 = por %p822, %p823
      %p825 = scmp.ne.s32.totalorder %s816, %s817
      %p826 = scmp.eq.s32.totalorder %s113, 0
      %p827 = por %p825, %p826
      %p828 = scmp.ne.s32.totalorder %s816, %s817
      %p829 = scmp.eq.s32.totalorder %s114, 1
      %p830 = por %p828, %p829
      %p832 = scmp.ne.s32.totalorder %s817, %s831
      %p833 = scmp.eq.s32.totalorder %s114, 0
      %p834 = por %p832, %p833
      %s836 = sadd.s32 %s835, 1
      %p839 = scmp.eq.s32.totalorder %s108, 1
      %p840 = scmp.ne.s32.totalorder %s835, %s837
      %p841 = scmp.eq.s32.totalorder %s108, 0
      %p842 = por %p840, %p841
      %p843 = scmp.ne.s32.totalorder %s835, %s837
      %p844 = scmp.eq.s32.totalorder %s113, 1
      %p845 = por %p843, %p844
      %p846 = scmp.ne.s32.totalorder %s837, %s838
      %p847 = scmp.eq.s32.totalorder %s113, 0
      %p848 = por %p846, %p847
      %p849 = scmp.ne.s32.totalorder %s837, %s838
      %p850 = scmp.eq.s32.totalorder %s114, 1
      %p851 = por %p849, %p850
      %p853 = scmp.ne.s32.totalorder %s838, %s852
      %p854 = scmp.eq.s32.totalorder %s114, 0
      %p855 = por %p853, %p854
      %s857 = sadd.s32 %s856, 1
      %p860 = scmp.eq.s32.totalorder %s108, 1
      %p861 = scmp.ne.s32.totalorder %s856, %s858
      %p862 = scmp.eq.s32.totalorder %s108, 0
      %p863 = por %p861, %p862
      %p864 = scmp.ne.s32.totalorder %s856, %s858
      %p865 = scmp.eq.s32.totalorder %s113, 1
      %p866 = por %p864, %p865
      %p867 = scmp.ne.s32.totalorder %s858, %s859
      %p868 = scmp.eq.s32.totalorder %s113, 0
      %p869 = por %p867, %p868
      %p870 = scmp.ne.s32.totalorder %s858, %s859
      %p871 = scmp.eq.s32.totalorder %s114, 1
      %p872 = por %p870, %p871
      %p874 = scmp.ne.s32.totalorder %s859, %s873
      %p875 = scmp.eq.s32.totalorder %s114, 0
      %p876 = por %p874, %p875
      %s878 = sadd.s32 %s877, 1
      %p881 = scmp.eq.s32.totalorder %s108, 1
      %p882 = scmp.ne.s32.totalorder %s877, %s879
      %p883 = scmp.eq.s32.totalorder %s108, 0
      %p884 = por %p882, %p883
      %p885 = scmp.ne.s32.totalorder %s877, %s879
      %p886 = scmp.eq.s32.totalorder %s113, 1
      %p887 = por %p885, %p886
      %p888 = scmp.ne.s32.totalorder %s879, %s880
      %p889 = scmp.eq.s32.totalorder %s113, 0
      %p890 = por %p888, %p889
      %p891 = scmp.ne.s32.totalorder %s879, %s880
      %p892 = scmp.eq.s32.totalorder %s114, 1
      %p893 = por %p891, %p892
      %p895 = scmp.ne.s32.totalorder %s880, %s894
      %p896 = scmp.eq.s32.totalorder %s114, 0
      %p897 = por %p895, %p896
      %s899 = sadd.s32 %s898, 1
      %p902 = scmp.eq.s32.totalorder %s108, 1
      %p903 = scmp.ne.s32.totalorder %s898, %s900
      %p904 = scmp.eq.s32.totalorder %s108, 0
      %p905 = por %p903, %p904
      %p906 = scmp.ne.s32.totalorder %s898, %s900
      %p907 = scmp.eq.s32.totalorder %s113, 1
      %p908 = por %p906, %p907
      %p909 = scmp.ne.s32.totalorder %s900, %s901
      %p910 = scmp.eq.s32.totalorder %s113, 0
      %p911 = por %p909, %p910
      %p912 = scmp.ne.s32.totalorder %s900, %s901
      %p913 = scmp.eq.s32.totalorder %s114, 1
      %p914 = por %p912, %p913
      %p916 = scmp.ne.s32.totalorder %s901, %s915
      %p917 = scmp.eq.s32.totalorder %s114, 0
      %p918 = por %p916, %p917
      %s920 = sadd.s32 %s919, 1
      %p923 = scmp.eq.s32.totalorder %s108, 1
      %p924 = scmp.ne.s32.totalorder %s919, %s921
      %p925 = scmp.eq.s32.totalorder %s108, 0
      %p926 = por %p924, %p925
      %p927 = scmp.ne.s32.totalorder %s919, %s921
      %p928 = scmp.eq.s32.totalorder %s113, 1
      %p929 = por %p927, %p928
      %p930 = scmp.ne.s32.totalorder %s921, %s922
      %p931 = scmp.eq.s32.totalorder %s113, 0
      %p932 = por %p930, %p931
      %p933 = scmp.ne.s32.totalorder %s921, %s922
      %p934 = scmp.eq.s32.totalorder %s114, 1
      %p935 = por %p933, %p934
      %p937 = scmp.ne.s32.totalorder %s922, %s936
      %p938 = scmp.eq.s32.totalorder %s114, 0
      %p939 = por %p937, %p938
      %s941 = sadd.s32 %s940, 1
      %p944 = scmp.eq.s32.totalorder %s108, 1
      %p945 = scmp.ne.s32.totalorder %s940, %s942
      %p946 = scmp.eq.s32.totalorder %s108, 0
      %p947 = por %p945, %p946
      %p948 = scmp.ne.s32.totalorder %s940, %s942
      %p949 = scmp.eq.s32.totalorder %s113, 1
      %p950 = por %p948, %p949
      %p951 = scmp.ne.s32.totalorder %s942, %s943
      %p952 = scmp.eq.s32.totalorder %s113, 0
      %p953 = por %p951, %p952
      %p954 = scmp.ne.s32.totalorder %s942, %s943
      %p955 = scmp.eq.s32.totalorder %s114, 1
      %p956 = por %p954, %p955
      %p958 = scmp.ne.s32.totalorder %s943, %s957
      %p959 = scmp.eq.s32.totalorder %s114, 0
      %p960 = por %p958, %p959
      %s962 = sadd.s32 %s961, 1
      %p965 = scmp.eq.s32.totalorder %s108, 1
      %p966 = scmp.ne.s32.totalorder %s961, %s963
      %p967 = scmp.eq.s32.totalorder %s108, 0
      %p968 = por %p966, %p967
      %p969 = scmp.ne.s32.totalorder %s961, %s963
      %p970 = scmp.eq.s32.totalorder %s113, 1
      %p971 = por %p969, %p970
      %p972 = scmp.ne.s32.totalorder %s963, %s964
      %p973 = scmp.eq.s32.totalorder %s113, 0
      %p974 = por %p972, %p973
      %p975 = scmp.ne.s32.totalorder %s963, %s964
      %p976 = scmp.eq.s32.totalorder %s114, 1
      %p977 = por %p975, %p976
      %p979 = scmp.ne.s32.totalorder %s964, %s978
      %p980 = scmp.eq.s32.totalorder %s114, 0
      %p981 = por %p979, %p980
      %s983 = sadd.s32 %s982, 1
      %p986 = scmp.eq.s32.totalorder %s108, 1
      %p987 = scmp.ne.s32.totalorder %s982, %s984
      %p988 = scmp.eq.s32.totalorder %s108, 0
      %p989 = por %p987, %p988
      %p990 = scmp.ne.s32.totalorder %s982, %s984
      %p991 = scmp.eq.s32.totalorder %s113, 1
      %p992 = por %p990, %p991
      %p993 = scmp.ne.s32.totalorder %s984, %s985
      %p994 = scmp.eq.s32.totalorder %s113, 0
      %p995 = por %p993, %p994
      %p996 = scmp.ne.s32.totalorder %s984, %s985
      %p997 = scmp.eq.s32.totalorder %s114, 1
      %p998 = por %p996, %p997
      %p1000 = scmp.ne.s32.totalorder %s985, %s999
      %p1001 = scmp.eq.s32.totalorder %s114, 0
      %p1002 = por %p1000, %p1001
      %s1004 = sadd.s32 %s1003, 1
      %p1007 = scmp.eq.s32.totalorder %s108, 1
      %p1008 = scmp.ne.s32.totalorder %s1003, %s1005
      %p1009 = scmp.eq.s32.totalorder %s108, 0
      %p1010 = por %p1008, %p1009
      %p1011 = scmp.ne.s32.totalorder %s1003, %s1005
      %p1012 = scmp.eq.s32.totalorder %s113, 1
      %p1013 = por %p1011, %p1012
      %p1014 = scmp.ne.s32.totalorder %s1005, %s1006
      %p1015 = scmp.eq.s32.totalorder %s113, 0
      %p1016 = por %p1014, %p1015
      %p1017 = scmp.ne.s32.totalorder %s1005, %s1006
      %p1018 = scmp.eq.s32.totalorder %s114, 1
      %p1019 = por %p1017, %p1018
      %p1021 = scmp.ne.s32.totalorder %s1006, %s1020
      %p1022 = scmp.eq.s32.totalorder %s114, 0
      %p1023 = por %p1021, %p1022
      %s1025 = sadd.s32 %s1024, 1
      %p1028 = scmp.eq.s32.totalorder %s108, 1
      %p1029 = scmp.ne.s32.totalorder %s1024, %s1026
      %p1030 = scmp.eq.s32.totalorder %s108, 0
      %p1031 = por %p1029, %p1030
      %p1032 = scmp.ne.s32.totalorder %s1024, %s1026
      %p1033 = scmp.eq.s32.totalorder %s113, 1
      %p1034 = por %p1032, %p1033
      %p1035 = scmp.ne.s32.totalorder %s1026, %s1027
      %p1036 = scmp.eq.s32.totalorder %s113, 0
      %p1037 = por %p1035, %p1036
      %p1038 = scmp.ne.s32.totalorder %s1026, %s1027
      %p1039 = scmp.eq.s32.totalorder %s114, 1
      %p1040 = por %p1038, %p1039
      %p1042 = scmp.ne.s32.totalorder %s1027, %s1041
      %p1043 = scmp.eq.s32.totalorder %s114, 0
      %p1044 = por %p1042, %p1043
      %s1046 = sadd.s32 %s1045, 1
      %p1049 = scmp.eq.s32.totalorder %s108, 1
      %p1050 = scmp.ne.s32.totalorder %s1045, %s1047
      %p1051 = scmp.eq.s32.totalorder %s108, 0
      %p1052 = por %p1050, %p1051
      %p1053 = scmp.ne.s32.totalorder %s1045, %s1047
      %p1054 = scmp.eq.s32.totalorder %s113, 1
      %p1055 = por %p1053, %p1054
      %p1056 = scmp.ne.s32.totalorder %s1047, %s1048
      %p1057 = scmp.eq.s32.totalorder %s113, 0
      %p1058 = por %p1056, %p1057
      %p1059 = scmp.ne.s32.totalorder %s1047, %s1048
      %p1060 = scmp.eq.s32.totalorder %s114, 1
      %p1061 = por %p1059, %p1060
      %p1063 = scmp.ne.s32.totalorder %s1048, %s1062
      %p1064 = scmp.eq.s32.totalorder %s114, 0
      %p1065 = por %p1063, %p1064
      %s1067 = sadd.s32 %s1066, 1
      %p1070 = scmp.eq.s32.totalorder %s108, 1
      %p1071 = scmp.ne.s32.totalorder %s1066, %s1068
      %p1072 = scmp.eq.s32.totalorder %s108, 0
      %p1073 = por %p1071, %p1072
      %p1074 = scmp.ne.s32.totalorder %s1066, %s1068
      %p1075 = scmp.eq.s32.totalorder %s113, 1
      %p1076 = por %p1074, %p1075
      %p1077 = scmp.ne.s32.totalorder %s1068, %s1069
      %p1078 = scmp.eq.s32.totalorder %s113, 0
      %p1079 = por %p1077, %p1078
      %p1080 = scmp.ne.s32.totalorder %s1068, %s1069
      %p1081 = scmp.eq.s32.totalorder %s114, 1
      %p1082 = por %p1080, %p1081
      %p1084 = scmp.ne.s32.totalorder %s1069, %s1083
      %p1085 = scmp.eq.s32.totalorder %s114, 0
      %p1086 = por %p1084, %p1085
      %s1088 = sadd.s32 %s1087, 1
      %p1091 = scmp.eq.s32.totalorder %s108, 1
      %p1092 = scmp.ne.s32.totalorder %s1087, %s1089
      %p1093 = scmp.eq.s32.totalorder %s108, 0
      %p1094 = por %p1092, %p1093
      %p1095 = scmp.ne.s32.totalorder %s1087, %s1089
      %p1096 = scmp.eq.s32.totalorder %s113, 1
      %p1097 = por %p1095, %p1096
      %p1098 = scmp.ne.s32.totalorder %s1089, %s1090
      %p1099 = scmp.eq.s32.totalorder %s113, 0
      %p1100 = por %p1098, %p1099
      %p1101 = scmp.ne.s32.totalorder %s1089, %s1090
      %p1102 = scmp.eq.s32.totalorder %s114, 1
      %p1103 = por %p1101, %p1102
      %p1105 = scmp.ne.s32.totalorder %s1090, %s1104
      %p1106 = scmp.eq.s32.totalorder %s114, 0
      %p1107 = por %p1105, %p1106
      %s1109 = sadd.s32 %s1108, 1
      %p1112 = scmp.eq.s32.totalorder %s108, 1
      %p1113 = scmp.ne.s32.totalorder %s1108, %s1110
      %p1114 = scmp.eq.s32.totalorder %s108, 0
      %p1115 = por %p1113, %p1114
      %p1116 = scmp.ne.s32.totalorder %s1108, %s1110
      %p1117 = scmp.eq.s32.totalorder %s113, 1
      %p1118 = por %p1116, %p1117
      %p1119 = scmp.ne.s32.totalorder %s1110, %s1111
      %p1120 = scmp.eq.s32.totalorder %s113, 0
      %p1121 = por %p1119, %p1120
      %p1122 = scmp.ne.s32.totalorder %s1110, %s1111
      %p1123 = scmp.eq.s32.totalorder %s114, 1
      %p1124 = por %p1122, %p1123
      %p1126 = scmp.ne.s32.totalorder %s1111, %s1125
      %p1127 = scmp.eq.s32.totalorder %s114, 0
      %p1128 = por %p1126, %p1127
      %s1129 = ssub.s32 %s108, %s115
      %p1130 = scmp.eq.s32.totalorder %s1129, 0
      %s1132 = sadd.s32 %s1131, 1
      %s1133 = scalar_select %p1130, %s1131, %s1132
      %p1136 = pneg %p1130
      %p1137 = scmp.eq.s32.totalorder %s108, 1
      %p1138 = por %p1136, %p1137
      %p1139 = scmp.ne.s32.totalorder %s1131, %s1134
      %p1140 = scmp.eq.s32.totalorder %s108, 0
      %p1141 = por %p1139, %p1140
      %p1142 = scmp.ne.s32.totalorder %s1131, %s1134
      %p1143 = scmp.eq.s32.totalorder %s113, 1
      %p1144 = por %p1142, %p1143
      %p1145 = scmp.ne.s32.totalorder %s1134, %s1135
      %p1146 = scmp.eq.s32.totalorder %s113, 0
      %p1147 = por %p1145, %p1146
      %p1148 = scmp.ne.s32.totalorder %s1134, %s1135
      %p1149 = scmp.eq.s32.totalorder %s114, 1
      %p1150 = por %p1148, %p1149
      %p1152 = scmp.ne.s32.totalorder %s1135, %s1151
      %p1153 = scmp.eq.s32.totalorder %s114, 0
      %p1154 = por %p1152, %p1153
      %p1155 = scmp.le.s32.totalorder 1, %s108
      %p1156 = scmp.lt.s32.totalorder %s108, 3
      %p1157 = pnand %p1155, %p1156
      %p1158 = pneg %p1157
      // Predicated region
      $region9: #{set_transformer_forward.1} parent=5 // pred_check
        _
      $region10: #{set_transformer_forward.1} parent=5 // pred_check_branch
        %1160 = sbr.rel (%p1157) target = $region12
      $region11: #{set_transformer_forward.1} parent=5 // pred_region
        %s1161 = ssub.s32 %s108, 1
        // Predicated region
        $region13: #{set_transformer_forward.1} parent=11 // pred_check
          %p1162 = pneg %p155
        $region14: #{set_transformer_forward.1} parent=11 // pred_check_branch
          %1164 = sbr.rel (%p1162) target = $region16
        $region15: #{set_transformer_forward.1} parent=11 // pred_region
          _
        $region16: #{set_transformer_forward.1} parent=11 // pred_fallthru
          _
        // Predicated region
        $region17: #{set_transformer_forward.1} parent=11 // pred_check
          %p1165 = pneg %p176
        $region18: #{set_transformer_forward.1} parent=11 // pred_check_branch
          %1167 = sbr.rel (%p1165) target = $region20
        $region19: #{set_transformer_forward.1} parent=11 // pred_region
          _
        $region20: #{set_transformer_forward.1} parent=11 // pred_fallthru
          _
        // Predicated region
        $region21: #{set_transformer_forward.1} parent=11 // pred_check
          %p1168 = pneg %p197
        $region22: #{set_transformer_forward.1} parent=11 // pred_check_branch
          %1170 = sbr.rel (%p1168) target = $region24
        $region23: #{set_transformer_forward.1} parent=11 // pred_region
          _
        $region24: #{set_transformer_forward.1} parent=11 // pred_fallthru
          _
        // Predicated region
        $region25: #{set_transformer_forward.1} parent=11 // pred_check
          %p1171 = pneg %p218
        $region26: #{set_transformer_forward.1} parent=11 // pred_check_branch
          %1173 = sbr.rel (%p1171) target = $region28
        $region27: #{set_transformer_forward.1} parent=11 // pred_region
          _
        $region28: #{set_transformer_forward.1} parent=11 // pred_fallthru
          _
        // Predicated region
        $region29: #{set_transformer_forward.1} parent=11 // pred_check
          %p1174 = pneg %p239
        $region30: #{set_transformer_forward.1} parent=11 // pred_check_branch
          %1176 = sbr.rel (%p1174) target = $region32
        $region31: #{set_transformer_forward.1} parent=11 // pred_region
          _
        $region32: #{set_transformer_forward.1} parent=11 // pred_fallthru
          _
        // Predicated region
        $region33: #{set_transformer_forward.1} parent=11 // pred_check
          %p1177 = pneg %p260
        $region34: #{set_transformer_forward.1} parent=11 // pred_check_branch
          %1179 = sbr.rel (%p1177) target = $region36
        $region35: #{set_transformer_forward.1} parent=11 // pred_region
          _
        $region36: #{set_transformer_forward.1} parent=11 // pred_fallthru
          _
        // Predicated region
        $region37: #{set_transformer_forward.1} parent=11 // pred_check
          %p1180 = pneg %p281
        $region38: #{set_transformer_forward.1} parent=11 // pred_check_branch
          %1182 = sbr.rel (%p1180) target = $region40
        $region39: #{set_transformer_forward.1} parent=11 // pred_region
          _
        $region40: #{set_transformer_forward.1} parent=11 // pred_fallthru
          _
        // Predicated region
        $region41: #{set_transformer_forward.1} parent=11 // pred_check
          %p1183 = pneg %p302
        $region42: #{set_transformer_forward.1} parent=11 // pred_check_branch
          %1185 = sbr.rel (%p1183) target = $region44
        $region43: #{set_transformer_forward.1} parent=11 // pred_region
          _
        $region44: #{set_transformer_forward.1} parent=11 // pred_fallthru
          _
        // Predicated region
        $region45: #{set_transformer_forward.1} parent=11 // pred_check
          %p1186 = pneg %p323
        $region46: #{set_transformer_forward.1} parent=11 // pred_check_branch
          %1188 = sbr.rel (%p1186) target = $region48
        $region47: #{set_transformer_forward.1} parent=11 // pred_region
          _
        $region48: #{set_transformer_forward.1} parent=11 // pred_fallthru
          _
        // Predicated region
        $region49: #{set_transformer_forward.1} parent=11 // pred_check
          %p1189 = pneg %p344
        $region50: #{set_transformer_forward.1} parent=11 // pred_check_branch
          %1191 = sbr.rel (%p1189) target = $region52
        $region51: #{set_transformer_forward.1} parent=11 // pred_region
          _
        $region52: #{set_transformer_forward.1} parent=11 // pred_fallthru
          _
        // Predicated region
        $region53: #{set_transformer_forward.1} parent=11 // pred_check
          %p1192 = pneg %p365
        $region54: #{set_transformer_forward.1} parent=11 // pred_check_branch
          %1194 = sbr.rel (%p1192) target = $region56
        $region55: #{set_transformer_forward.1} parent=11 // pred_region
          _
        $region56: #{set_transformer_forward.1} parent=11 // pred_fallthru
          _
        // Predicated region
        $region57: #{set_transformer_forward.1} parent=11 // pred_check
          %p1195 = pneg %p386
        $region58: #{set_transformer_forward.1} parent=11 // pred_check_branch
          %1197 = sbr.rel (%p1195) target = $region60
        $region59: #{set_transformer_forward.1} parent=11 // pred_region
          _
        $region60: #{set_transformer_forward.1} parent=11 // pred_fallthru
          _
        // Predicated region
        $region61: #{set_transformer_forward.1} parent=11 // pred_check
          %p1198 = pneg %p407
        $region62: #{set_transformer_forward.1} parent=11 // pred_check_branch
          %1200 = sbr.rel (%p1198) target = $region64
        $region63: #{set_transformer_forward.1} parent=11 // pred_region
          _
        $region64: #{set_transformer_forward.1} parent=11 // pred_fallthru
          _
        // Predicated region
        $region65: #{set_transformer_forward.1} parent=11 // pred_check
          %p1201 = pneg %p428
        $region66: #{set_transformer_forward.1} parent=11 // pred_check_branch
          %1203 = sbr.rel (%p1201) target = $region68
        $region67: #{set_transformer_forward.1} parent=11 // pred_region
          _
        $region68: #{set_transformer_forward.1} parent=11 // pred_fallthru
          _
        // Predicated region
        $region69: #{set_transformer_forward.1} parent=11 // pred_check
          %p1204 = pneg %p449
        $region70: #{set_transformer_forward.1} parent=11 // pred_check_branch
          %1206 = sbr.rel (%p1204) target = $region72
        $region71: #{set_transformer_forward.1} parent=11 // pred_region
          _
        $region72: #{set_transformer_forward.1} parent=11 // pred_fallthru
          _
        // Predicated region
        $region73: #{set_transformer_forward.1} parent=11 // pred_check
          %p1207 = pneg %p470
        $region74: #{set_transformer_forward.1} parent=11 // pred_check_branch
          %1209 = sbr.rel (%p1207) target = $region76
        $region75: #{set_transformer_forward.1} parent=11 // pred_region
          _
        $region76: #{set_transformer_forward.1} parent=11 // pred_fallthru
          _
        // Predicated region
        $region77: #{set_transformer_forward.1} parent=11 // pred_check
          %p1210 = pneg %p491
        $region78: #{set_transformer_forward.1} parent=11 // pred_check_branch
          %1212 = sbr.rel (%p1210) target = $region80
        $region79: #{set_transformer_forward.1} parent=11 // pred_region
          _
        $region80: #{set_transformer_forward.1} parent=11 // pred_fallthru
          _
        // Predicated region
        $region81: #{set_transformer_forward.1} parent=11 // pred_check
          %p1213 = pneg %p512
        $region82: #{set_transformer_forward.1} parent=11 // pred_check_branch
          %1215 = sbr.rel (%p1213) target = $region84
        $region83: #{set_transformer_forward.1} parent=11 // pred_region
          _
        $region84: #{set_transformer_forward.1} parent=11 // pred_fallthru
          _
        // Predicated region
        $region85: #{set_transformer_forward.1} parent=11 // pred_check
          %p1216 = pneg %p533
        $region86: #{set_transformer_forward.1} parent=11 // pred_check_branch
          %1218 = sbr.rel (%p1216) target = $region88
        $region87: #{set_transformer_forward.1} parent=11 // pred_region
          _
        $region88: #{set_transformer_forward.1} parent=11 // pred_fallthru
          _
        // Predicated region
        $region89: #{set_transformer_forward.1} parent=11 // pred_check
          %p1219 = pneg %p554
        $region90: #{set_transformer_forward.1} parent=11 // pred_check_branch
          %1221 = sbr.rel (%p1219) target = $region92
        $region91: #{set_transformer_forward.1} parent=11 // pred_region
          _
        $region92: #{set_transformer_forward.1} parent=11 // pred_fallthru
          _
        // Predicated region
        $region93: #{set_transformer_forward.1} parent=11 // pred_check
          %p1222 = pneg %p575
        $region94: #{set_transformer_forward.1} parent=11 // pred_check_branch
          %1224 = sbr.rel (%p1222) target = $region96
        $region95: #{set_transformer_forward.1} parent=11 // pred_region
          _
        $region96: #{set_transformer_forward.1} parent=11 // pred_fallthru
          _
        // Predicated region
        $region97: #{set_transformer_forward.1} parent=11 // pred_check
          %p1225 = pneg %p596
        $region98: #{set_transformer_forward.1} parent=11 // pred_check_branch
          %1227 = sbr.rel (%p1225) target = $region100
        $region99: #{set_transformer_forward.1} parent=11 // pred_region
          _
        $region100: #{set_transformer_forward.1} parent=11 // pred_fallthru
          _
        // Predicated region
        $region101: #{set_transformer_forward.1} parent=11 // pred_check
          %p1228 = pneg %p617
        $region102: #{set_transformer_forward.1} parent=11 // pred_check_branch
          %1230 = sbr.rel (%p1228) target = $region104
        $region103: #{set_transformer_forward.1} parent=11 // pred_region
          _
        $region104: #{set_transformer_forward.1} parent=11 // pred_fallthru
          _
        // Predicated region
        $region105: #{set_transformer_forward.1} parent=11 // pred_check
          %p1231 = pneg %p638
        $region106: #{set_transformer_forward.1} parent=11 // pred_check_branch
          %1233 = sbr.rel (%p1231) target = $region108
        $region107: #{set_transformer_forward.1} parent=11 // pred_region
          _
        $region108: #{set_transformer_forward.1} parent=11 // pred_fallthru
          _
        // Predicated region
        $region109: #{set_transformer_forward.1} parent=11 // pred_check
          %p1234 = pneg %p659
        $region110: #{set_transformer_forward.1} parent=11 // pred_check_branch
          %1236 = sbr.rel (%p1234) target = $region112
        $region111: #{set_transformer_forward.1} parent=11 // pred_region
          _
        $region112: #{set_transformer_forward.1} parent=11 // pred_fallthru
          _
        // Predicated region
        $region113: #{set_transformer_forward.1} parent=11 // pred_check
          %p1237 = pneg %p680
        $region114: #{set_transformer_forward.1} parent=11 // pred_check_branch
          %1239 = sbr.rel (%p1237) target = $region116
        $region115: #{set_transformer_forward.1} parent=11 // pred_region
          _
        $region116: #{set_transformer_forward.1} parent=11 // pred_fallthru
          _
        // Predicated region
        $region117: #{set_transformer_forward.1} parent=11 // pred_check
          %p1240 = pneg %p701
        $region118: #{set_transformer_forward.1} parent=11 // pred_check_branch
          %1242 = sbr.rel (%p1240) target = $region120
        $region119: #{set_transformer_forward.1} parent=11 // pred_region
          _
        $region120: #{set_transformer_forward.1} parent=11 // pred_fallthru
          _
        // Predicated region
        $region121: #{set_transformer_forward.1} parent=11 // pred_check
          %p1243 = pneg %p722
        $region122: #{set_transformer_forward.1} parent=11 // pred_check_branch
          %1245 = sbr.rel (%p1243) target = $region124
        $region123: #{set_transformer_forward.1} parent=11 // pred_region
          _
        $region124: #{set_transformer_forward.1} parent=11 // pred_fallthru
          _
        // Predicated region
        $region125: #{set_transformer_forward.1} parent=11 // pred_check
          %p1246 = pneg %p743
        $region126: #{set_transformer_forward.1} parent=11 // pred_check_branch
          %1248 = sbr.rel (%p1246) target = $region128
        $region127: #{set_transformer_forward.1} parent=11 // pred_region
          _
        $region128: #{set_transformer_forward.1} parent=11 // pred_fallthru
          _
        // Predicated region
        $region129: #{set_transformer_forward.1} parent=11 // pred_check
          %p1249 = pneg %p764
        $region130: #{set_transformer_forward.1} parent=11 // pred_check_branch
          %1251 = sbr.rel (%p1249) target = $region132
        $region131: #{set_transformer_forward.1} parent=11 // pred_region
          _
        $region132: #{set_transformer_forward.1} parent=11 // pred_fallthru
          _
        // Predicated region
        $region133: #{set_transformer_forward.1} parent=11 // pred_check
          %p1252 = pneg %p785
        $region134: #{set_transformer_forward.1} parent=11 // pred_check_branch
          %1254 = sbr.rel (%p1252) target = $region136
        $region135: #{set_transformer_forward.1} parent=11 // pred_region
          _
        $region136: #{set_transformer_forward.1} parent=11 // pred_fallthru
          _
        // Predicated region
        $region137: #{set_transformer_forward.1} parent=11 // pred_check
          %p1255 = pneg %p806
        $region138: #{set_transformer_forward.1} parent=11 // pred_check_branch
          %1257 = sbr.rel (%p1255) target = $region140
        $region139: #{set_transformer_forward.1} parent=11 // pred_region
          _
        $region140: #{set_transformer_forward.1} parent=11 // pred_fallthru
          _
        // Predicated region
        $region141: #{set_transformer_forward.1} parent=11 // pred_check
          %p1258 = pneg %p827
        $region142: #{set_transformer_forward.1} parent=11 // pred_check_branch
          %1260 = sbr.rel (%p1258) target = $region144
        $region143: #{set_transformer_forward.1} parent=11 // pred_region
          _
        $region144: #{set_transformer_forward.1} parent=11 // pred_fallthru
          _
        // Predicated region
        $region145: #{set_transformer_forward.1} parent=11 // pred_check
          %p1261 = pneg %p848
        $region146: #{set_transformer_forward.1} parent=11 // pred_check_branch
          %1263 = sbr.rel (%p1261) target = $region148
        $region147: #{set_transformer_forward.1} parent=11 // pred_region
          _
        $region148: #{set_transformer_forward.1} parent=11 // pred_fallthru
          _
        // Predicated region
        $region149: #{set_transformer_forward.1} parent=11 // pred_check
          %p1264 = pneg %p869
        $region150: #{set_transformer_forward.1} parent=11 // pred_check_branch
          %1266 = sbr.rel (%p1264) target = $region152
        $region151: #{set_transformer_forward.1} parent=11 // pred_region
          _
        $region152: #{set_transformer_forward.1} parent=11 // pred_fallthru
          _
        // Predicated region
        $region153: #{set_transformer_forward.1} parent=11 // pred_check
          %p1267 = pneg %p890
        $region154: #{set_transformer_forward.1} parent=11 // pred_check_branch
          %1269 = sbr.rel (%p1267) target = $region156
        $region155: #{set_transformer_forward.1} parent=11 // pred_region
          _
        $region156: #{set_transformer_forward.1} parent=11 // pred_fallthru
          _
        // Predicated region
        $region157: #{set_transformer_forward.1} parent=11 // pred_check
          %p1270 = pneg %p911
        $region158: #{set_transformer_forward.1} parent=11 // pred_check_branch
          %1272 = sbr.rel (%p1270) target = $region160
        $region159: #{set_transformer_forward.1} parent=11 // pred_region
          _
        $region160: #{set_transformer_forward.1} parent=11 // pred_fallthru
          _
        // Predicated region
        $region161: #{set_transformer_forward.1} parent=11 // pred_check
          %p1273 = pneg %p932
        $region162: #{set_transformer_forward.1} parent=11 // pred_check_branch
          %1275 = sbr.rel (%p1273) target = $region164
        $region163: #{set_transformer_forward.1} parent=11 // pred_region
          %s1277 = ssub.s32 16, 16
          %1278 = vsyncadd [#allocation3], %s1277
          %s1280 = sshll.u32 [#allocation2], 4
          %s1281 = int_to_ptr.vmem [resolvable:$true] %s1280
          %1283 = dma.hbm_to_vmem [thread:$0]  %s77, 16, %s1281, [#allocation3]
        $region164: #{set_transformer_forward.1} parent=11 // pred_fallthru
          _
        // Predicated region
        $region165: #{set_transformer_forward.1} parent=11 // pred_check
          %p1284 = pneg %p953
        $region166: #{set_transformer_forward.1} parent=11 // pred_check_branch
          %1286 = sbr.rel (%p1284) target = $region168
        $region167: #{set_transformer_forward.1} parent=11 // pred_region
          _
        $region168: #{set_transformer_forward.1} parent=11 // pred_fallthru
          _
        // Predicated region
        $region169: #{set_transformer_forward.1} parent=11 // pred_check
          %p1287 = pneg %p974
        $region170: #{set_transformer_forward.1} parent=11 // pred_check_branch
          %1289 = sbr.rel (%p1287) target = $region172
        $region171: #{set_transformer_forward.1} parent=11 // pred_region
          _
        $region172: #{set_transformer_forward.1} parent=11 // pred_fallthru
          _
        // Predicated region
        $region173: #{set_transformer_forward.1} parent=11 // pred_check
          %p1290 = pneg %p995
        $region174: #{set_transformer_forward.1} parent=11 // pred_check_branch
          %1292 = sbr.rel (%p1290) target = $region176
        $region175: #{set_transformer_forward.1} parent=11 // pred_region
          _
        $region176: #{set_transformer_forward.1} parent=11 // pred_fallthru
          _
        // Predicated region
        $region177: #{set_transformer_forward.1} parent=11 // pred_check
          %p1293 = pneg %p1016
        $region178: #{set_transformer_forward.1} parent=11 // pred_check_branch
          %1295 = sbr.rel (%p1293) target = $region180
        $region179: #{set_transformer_forward.1} parent=11 // pred_region
          _
        $region180: #{set_transformer_forward.1} parent=11 // pred_fallthru
          _
        // Predicated region
        $region181: #{set_transformer_forward.1} parent=11 // pred_check
          %p1296 = pneg %p1037
        $region182: #{set_transformer_forward.1} parent=11 // pred_check_branch
          %1298 = sbr.rel (%p1296) target = $region184
        $region183: #{set_transformer_forward.1} parent=11 // pred_region
          %s1300 = ssub.s32 16, 16
          %1301 = vsyncadd [#allocation6], %s1300
          %s1303 = sshll.u32 [#allocation5], 4
          %s1304 = int_to_ptr.vmem [resolvable:$true] %s1303
          %1306 = dma.hbm_to_vmem [thread:$0]  %s87, 16, %s1304, [#allocation6]
        $region184: #{set_transformer_forward.1} parent=11 // pred_fallthru
          _
        // Predicated region
        $region185: #{set_transformer_forward.1} parent=11 // pred_check
          %p1307 = pneg %p1058
        $region186: #{set_transformer_forward.1} parent=11 // pred_check_branch
          %1309 = sbr.rel (%p1307) target = $region188
        $region187: #{set_transformer_forward.1} parent=11 // pred_region
          %s1311 = ssub.s32 16, 16
          %1312 = vsyncadd [#allocation6], %s1311
          %s1314 = sshll.u32 [#allocation7], 4
          %s1315 = int_to_ptr.vmem [resolvable:$true] %s1314
          %1317 = dma.hbm_to_vmem [thread:$0]  %s89, 16, %s1315, [#allocation6]
        $region188: #{set_transformer_forward.1} parent=11 // pred_fallthru
          _
        // Predicated region
        $region189: #{set_transformer_forward.1} parent=11 // pred_check
          %p1318 = pneg %p1079
        $region190: #{set_transformer_forward.1} parent=11 // pred_check_branch
          %1320 = sbr.rel (%p1318) target = $region192
        $region191: #{set_transformer_forward.1} parent=11 // pred_region
          _
        $region192: #{set_transformer_forward.1} parent=11 // pred_fallthru
          _
        // Predicated region
        $region193: #{set_transformer_forward.1} parent=11 // pred_check
          %p1321 = pneg %p1100
        $region194: #{set_transformer_forward.1} parent=11 // pred_check_branch
          %1323 = sbr.rel (%p1321) target = $region196
        $region195: #{set_transformer_forward.1} parent=11 // pred_region
          _
        $region196: #{set_transformer_forward.1} parent=11 // pred_fallthru
          _
        // Predicated region
        $region197: #{set_transformer_forward.1} parent=11 // pred_check
          %p1324 = pneg %p1121
        $region198: #{set_transformer_forward.1} parent=11 // pred_check_branch
          %1326 = sbr.rel (%p1324) target = $region200
        $region199: #{set_transformer_forward.1} parent=11 // pred_region
          _
        $region200: #{set_transformer_forward.1} parent=11 // pred_fallthru
          _
      $region12: #{set_transformer_forward.1} parent=5 // pred_fallthru
        _
      %p1327 = scmp.lt.s32.totalorder %s108, 2
      // Predicated region
      $region201: #{set_transformer_forward.1} parent=5 // pred_check
        %p1328 = pneg %p1327
      $region202: #{set_transformer_forward.1} parent=5 // pred_check_branch
        %1330 = sbr.rel (%p1328) target = $region204
      $region203: #{set_transformer_forward.1} parent=5 // pred_region
        // Predicated region
        $region205: #{set_transformer_forward.1} parent=203 // pred_check
          %p1331 = pneg %p128
        $region206: #{set_transformer_forward.1} parent=203 // pred_check_branch
          %1333 = sbr.rel (%p1331) target = $region208
        $region207: #{set_transformer_forward.1} parent=203 // pred_region
          %p1334 = scmp.lt.s32.totalorder %s108, 1
          %s1335 = scalar_select %p1334, %s108, 1
          %s1336 = smul.addr %s1335, 8
          %s1337 = scalar_lea.vmem %s1, %s1336
        $region208: #{set_transformer_forward.1} parent=203 // pred_fallthru
          _
      $region204: #{set_transformer_forward.1} parent=5 // pred_fallthru
        _
      %p1338 = scmp.le.s32.totalorder 1, %s108
      %p1339 = scmp.lt.s32.totalorder %s108, 3
      %p1340 = pnand %p1338, %p1339
      %p1341 = pneg %p1340
      // Predicated region
      $region209: #{set_transformer_forward.1} parent=5 // pred_check
        _
      $region210: #{set_transformer_forward.1} parent=5 // pred_check_branch
        %1343 = sbr.rel (%p1340) target = $region212
      $region211: #{set_transformer_forward.1} parent=5 // pred_region
        %s1344 = ssub.s32 %s108, 1
        // Predicated region
        $region213: #{set_transformer_forward.1} parent=211 // pred_check
          %p1345 = pneg %p932
        $region214: #{set_transformer_forward.1} parent=211 // pred_check_branch
          %1347 = sbr.rel (%p1345) target = $region216
        $region215: #{set_transformer_forward.1} parent=211 // pred_region
          %1348 = dma.done [#allocation3], 16
        $region216: #{set_transformer_forward.1} parent=211 // pred_fallthru
          _
        // Predicated region
        $region217: #{set_transformer_forward.1} parent=211 // pred_check
          %p1349 = pneg %p1037
        $region218: #{set_transformer_forward.1} parent=211 // pred_check_branch
          %1351 = sbr.rel (%p1349) target = $region220
        $region219: #{set_transformer_forward.1} parent=211 // pred_region
          %1352 = dma.done [#allocation6], 16
        $region220: #{set_transformer_forward.1} parent=211 // pred_fallthru
          _
        // Predicated region
        $region221: #{set_transformer_forward.1} parent=211 // pred_check
          %p1353 = pneg %p1058
        $region222: #{set_transformer_forward.1} parent=211 // pred_check_branch
          %1355 = sbr.rel (%p1353) target = $region224
        $region223: #{set_transformer_forward.1} parent=211 // pred_region
          %1356 = dma.done [#allocation6], 16
        $region224: #{set_transformer_forward.1} parent=211 // pred_fallthru
          _
        %p1357 = scmp.lt.s32.totalorder %s113, 1
        %s1358 = scalar_select %p1357, %s113, 1
        %s1359 = smul.addr %s1358, 8
        %s1360 = scalar_lea.vmem %s1, %s1359
        %p1361 = pneg %p134
        %p1362 = pneg %p131
        %p1363 = pneg %p155
        %p1364 = pneg %p152
        %p1365 = pneg %p176
        %p1366 = pneg %p173
        %p1367 = pneg %p197
        %p1368 = pneg %p194
        %p1369 = pneg %p218
        %p1370 = pneg %p215
        %p1371 = pneg %p239
        %p1372 = pneg %p236
        %p1373 = pneg %p260
        %p1374 = pneg %p257
        %p1375 = pneg %p281
        %p1376 = pneg %p278
        %p1377 = pneg %p302
        %p1378 = pneg %p299
        %p1379 = pneg %p323
        %p1380 = pneg %p320
        %p1381 = pneg %p344
        %p1382 = pneg %p341
        %p1383 = pneg %p365
        %p1384 = pneg %p362
        %p1385 = pneg %p386
        %p1386 = pneg %p383
        %p1387 = pneg %p407
        %p1388 = pneg %p404
        %p1389 = pneg %p428
        %p1390 = pneg %p425
        %p1391 = pneg %p449
        %p1392 = pneg %p446
        %p1393 = pneg %p470
        %p1394 = pneg %p467
        %p1395 = pneg %p491
        %p1396 = pneg %p488
        %p1397 = pneg %p512
        %p1398 = pneg %p509
        %p1399 = pneg %p533
        %p1400 = pneg %p530
        %p1401 = pneg %p554
        %p1402 = pneg %p551
        %p1403 = pneg %p575
        %p1404 = pneg %p572
        %p1405 = pneg %p596
        %p1406 = pneg %p593
        %p1407 = pneg %p617
        %p1408 = pneg %p614
        %p1409 = pneg %p638
        %p1410 = pneg %p635
        %p1411 = pneg %p659
        %p1412 = pneg %p656
        %p1413 = pneg %p680
        %p1414 = pneg %p677
        %p1415 = pneg %p701
        %p1416 = pneg %p698
        %p1417 = pneg %p722
        %p1418 = pneg %p719
        %p1419 = pneg %p743
        %p1420 = pneg %p740
        %p1421 = pneg %p764
        %p1422 = pneg %p761
        %p1423 = pneg %p785
        %p1424 = pneg %p782
        %p1425 = pneg %p806
        %p1426 = pneg %p803
        %p1427 = pneg %p827
        %p1428 = pneg %p824
        %p1429 = pneg %p848
        %p1430 = pneg %p845
        %p1431 = pneg %p869
        %p1432 = pneg %p866
        %p1433 = pneg %p890
        %p1434 = pneg %p887
        %p1435 = pneg %p911
        %p1436 = pneg %p908
        %p1437 = pneg %p932
        %p1438 = pneg %p929
        %p1439 = pneg %p953
        %p1440 = pneg %p950
        %p1441 = pneg %p974
        %p1442 = pneg %p971
        %p1443 = pneg %p995
        %p1444 = pneg %p992
        %p1445 = pneg %p1016
        %p1446 = pneg %p1013
        %p1447 = pneg %p1037
        %p1448 = pneg %p1034
        %p1449 = pneg %p1058
        %p1450 = pneg %p1055
        %p1451 = pneg %p1079
        %p1452 = pneg %p1076
        %p1453 = pneg %p1100
        %p1454 = pneg %p1097
        %p1455 = pneg %p1121
        %p1456 = pneg %p1118
        %p1457 = pneg %p1147
        %p1458 = pneg %p1144
        %s1459 = sand.u32 %s1134, 1
        %s1460 = scalar_lea.sflag [#allocation4], %s1459
        %s1461 = sand.u32 %s1134, 1
        %s1462 = smul.addr %s1461, 4
        %s1463 = scalar_lea.vmem [#allocation8], %s1462
        %p1464 = scmp.lt.s32.totalorder %s113, 1
        %s1465 = scalar_select %p1464, %s113, 1
        %s1466 = smul.addr %s1465, 8
        %s1467 = scalar_lea.vmem %s1, %s1466
        %v1468 = vld [vmem:[%s1467] sm:$0xff]
        %v1469 = vld [vmem:[%s7] sm:$0xff]
        %v1470 = vld [vmem:[%s19] sm:$0xff]
        %v1471 = vld [vmem:[%s19 + $0x8] sm:$0xff]
        %v1472 = vld [vmem:[%s19 + $0x10] sm:$0xff]
        %v1473 = vld [vmem:[%s19 + $0x18] sm:$0xff]
        %v1474 = vld [vmem:[%s13] sm:$0x1]
        %v1476 = vlaneseq
        %v1477 = vshrl.u32 %v1476, 7
        %v1478 = vsub.s32 0, %v1477
        %v1479 = vrot.slane %v1474, %v1478
        %vm1481 = vcmask 261120
        %v1483 = vsel %vm1481, %v1469, 0
        %1485 = vmatprep.subr.mxu0 0.0
        %1486 = vmatpush1.msra.mxu0 %v1470
        %1487 = vmatprep.subr.mxu0 0.0
        %1488 = vmatpush1.msra.mxu0 %v1471
        %1489 = vmatprep.subr.mxu0 0.0
        %1490 = vmatpush1.msra.mxu0 %v1472
        %1491 = vmatprep.subr.mxu0 0.0
        %1492 = vmatpush1.msra.mxu0 %v1473
        %1493 = vmatprep.subr.mxu0 0.0
        %1494 = vmatpush1.msra.mxu0 0.0
        %1495 = vmatprep.subr.mxu0 0.0
        %1496 = vmatpush1.msra.mxu0 0.0
        %1497 = vmatprep.subr.mxu0 0.0
        %1498 = vmatpush1.msra.mxu0 0.0
        %1499 = vmatprep.subr.mxu0 0.0
        %1500 = vmatpush1.msra.mxu0 0.0
        %1501 = vmatprep.subr.mxu0 0.0
        %1502 = vmatpush1.msra.mxu0 0.0
        %1503 = vmatprep.subr.mxu0 0.0
        %1504 = vmatpush1.msra.mxu0 0.0
        %1505 = vmatprep.subr.mxu0 0.0
        %1506 = vmatpush1.msra.mxu0 0.0
        %1507 = vmatprep.subr.mxu0 0.0
        %1508 = vmatpush1.msra.mxu0 0.0
        %1509 = vmatprep.subr.mxu0 0.0
        %1510 = vmatpush1.msra.mxu0 0.0
        %1511 = vmatprep.subr.mxu0 0.0
        %1512 = vmatpush1.msra.mxu0 0.0
        %1513 = vmatprep.subr.mxu0 0.0
        %1514 = vmatpush1.msra.mxu0 0.0
        %1515 = vmatprep.subr.mxu0 0.0
        %1516 = vmatpush1.msra.mxu0 0.0
        %1517 = vmatprep.subr.mxu0 0.0
        %1518 = vmatpush1.msra.mxu0 0.0
        %1519 = vmatprep.subr.mxu0 0.0
        %1520 = vmatpush1.msra.mxu0 0.0
        %1521 = vmatprep.subr.mxu0 0.0
        %1522 = vmatpush1.msra.mxu0 0.0
        %1523 = vmatprep.subr.mxu0 0.0
        %1524 = vmatpush1.msra.mxu0 0.0
        %1525 = vmatprep.subr.mxu0 0.0
        %1526 = vmatpush1.msra.mxu0 0.0
        %1527 = vmatprep.subr.mxu0 0.0
        %1528 = vmatpush1.msra.mxu0 0.0
        %1529 = vmatprep.subr.mxu0 0.0
        %1530 = vmatpush1.msra.mxu0 0.0
        %1531 = vmatprep.subr.mxu0 0.0
        %1532 = vmatpush1.msra.mxu0 0.0
        %1533 = vmatprep.subr.mxu0 0.0
        %1534 = vmatpush1.msra.mxu0 0.0
        %1535 = vmatprep.subr.mxu0 0.0
        %1536 = vmatpush1.msra.mxu0 0.0
        %1537 = vmatprep.subr.mxu0 0.0
        %1538 = vmatpush1.msra.mxu0 0.0
        %1539 = vmatprep.subr.mxu0 0.0
        %1540 = vmatpush1.msra.mxu0 0.0
        %1541 = vmatprep.subr.mxu0 0.0
        %1542 = vmatpush1.msra.mxu0 0.0
        %1543 = vmatprep.subr.mxu0 0.0
        %1544 = vmatpush1.msra.mxu0 0.0
        %1545 = vmatprep.subr.mxu0 0.0
        %1546 = vmatpush1.msra.mxu0 0.0
        %1547 = vmatprep.subr.mxu0 0.0
        %1548 = vmatpush1.msra.mxu0 0.0
        %1549 = vmatprep.mubr.f32.mxu0 0.0
        %1550 = vmatmul.mubr.f32.gmra.mrb[0].mxu0 %v1483
        %v1551 = vpop.f32.mrb[0].mxu0
        %v1552 = vadd.f32 %v1479, %v1551
        %v1553 = vpop.f32.mrb[0].mxu0
        %1554 = vdwg.mxu0
        %v1555 = vld [vmem:[%s15] sm:$0xf]
        %v1556 = vld [vmem:[%s9] sm:$0x1]
        %v1558 = vlaneseq
        %v1559 = vshrl.u32 %v1558, 7
        %v1560 = vsub.s32 0, %v1559
        %v1561 = vrot.slane %v1556, %v1560
        %vm1563 = vcmask 31744
        %v1565 = vsel %vm1563, %v1468, 0
        %vm1567 = vcmask 1043456
        %v1569 = vsel %vm1567, %v1555, 0
        %1571 = vmatprep.subr.mxu0 0.0
        %1572 = vmatpush1.msra.mxu0 %v1569
        %1573 = vmatprep.subr.mxu0 0.0
        %1574 = vmatpush1.msra.mxu0 0.0
        %1575 = vmatprep.subr.mxu0 0.0
        %1576 = vmatpush1.msra.mxu0 0.0
        %1577 = vmatprep.subr.mxu0 0.0
        %1578 = vmatpush1.msra.mxu0 0.0
        %1579 = vmatprep.subr.mxu0 0.0
        %1580 = vmatpush1.msra.mxu0 0.0
        %1581 = vmatprep.subr.mxu0 0.0
        %1582 = vmatpush1.msra.mxu0 0.0
        %1583 = vmatprep.subr.mxu0 0.0
        %1584 = vmatpush1.msra.mxu0 0.0
        %1585 = vmatprep.subr.mxu0 0.0
        %1586 = vmatpush1.msra.mxu0 0.0
        %1587 = vmatprep.subr.mxu0 0.0
        %1588 = vmatpush1.msra.mxu0 0.0
        %1589 = vmatprep.subr.mxu0 0.0
        %1590 = vmatpush1.msra.mxu0 0.0
        %1591 = vmatprep.subr.mxu0 0.0
        %1592 = vmatpush1.msra.mxu0 0.0
        %1593 = vmatprep.subr.mxu0 0.0
        %1594 = vmatpush1.msra.mxu0 0.0
        %1595 = vmatprep.subr.mxu0 0.0
        %1596 = vmatpush1.msra.mxu0 0.0
        %1597 = vmatprep.subr.mxu0 0.0
        %1598 = vmatpush1.msra.mxu0 0.0
        %1599 = vmatprep.subr.mxu0 0.0
        %1600 = vmatpush1.msra.mxu0 0.0
        %1601 = vmatprep.subr.mxu0 0.0
        %1602 = vmatpush1.msra.mxu0 0.0
        %1603 = vmatprep.subr.mxu0 0.0
        %1604 = vmatpush1.msra.mxu0 0.0
        %1605 = vmatprep.subr.mxu0 0.0
        %1606 = vmatpush1.msra.mxu0 0.0
        %1607 = vmatprep.subr.mxu0 0.0
        %1608 = vmatpush1.msra.mxu0 0.0
        %1609 = vmatprep.subr.mxu0 0.0
        %1610 = vmatpush1.msra.mxu0 0.0
        %1611 = vmatprep.subr.mxu0 0.0
        %1612 = vmatpush1.msra.mxu0 0.0
        %1613 = vmatprep.subr.mxu0 0.0
        %1614 = vmatpush1.msra.mxu0 0.0
        %1615 = vmatprep.subr.mxu0 0.0
        %1616 = vmatpush1.msra.mxu0 0.0
        %1617 = vmatprep.subr.mxu0 0.0
        %1618 = vmatpush1.msra.mxu0 0.0
        %1619 = vmatprep.subr.mxu0 0.0
        %1620 = vmatpush1.msra.mxu0 0.0
        %1621 = vmatprep.subr.mxu0 0.0
        %1622 = vmatpush1.msra.mxu0 0.0
        %1623 = vmatprep.subr.mxu0 0.0
        %1624 = vmatpush1.msra.mxu0 0.0
        %1625 = vmatprep.subr.mxu0 0.0
        %1626 = vmatpush1.msra.mxu0 0.0
        %1627 = vmatprep.subr.mxu0 0.0
        %1628 = vmatpush1.msra.mxu0 0.0
        %1629 = vmatprep.subr.mxu0 0.0
        %1630 = vmatpush1.msra.mxu0 0.0
        %1631 = vmatprep.subr.mxu0 0.0
        %1632 = vmatpush1.msra.mxu0 0.0
        %1633 = vmatprep.subr.mxu0 0.0
        %1634 = vmatpush1.msra.mxu0 0.0
        %1635 = vmatprep.mubr.f32.mxu0 0.0
        %1636 = vmatmul.mubr.f32.gmra.mrb[0].mxu0 %v1565
        %v1637 = vpop.f32.mrb[0].mxu0
        %v1638 = vadd.f32 %v1561, %v1637
        %v1639 = vpop.f32.mrb[0].mxu0
        %1640 = vdwg.mxu0
        %1642 = vrot.lane.b32.xlu0 %v1552, 120
        %v1643 = vpop.permute.xlu0 %1642
        %1645 = vrot.lane.b32.xlu0 %v1552, 112
        %v1646 = vpop.permute.xlu0 %1645
        %1648 = vrot.lane.b32.xlu0 %v1552, 104
        %v1649 = vpop.permute.xlu0 %1648
        %1652 = vrot.lane.b32.xlu0 %v1638, 120
        %v1653 = vpop.permute.xlu0 %1652
        %1654 = vrot.lane.b32.xlu0 %v1638, 112
        %v1655 = vpop.permute.xlu0 %1654
        %1656 = vrot.lane.b32.xlu0 %v1638, 104
        %v1657 = vpop.permute.xlu0 %1656
        %vm1658 = vcmask 64512
        %v1659 = vsel %vm1658, %v1552, 0
        %v1661 = vsel %vm1658, %v1638, 0
        %1663 = vmatprep.subr.mxu0 0.0
        %1664 = vmatpush1.xpose.msra.mxu0 %v1661
        %1665 = vmatprep.subr.mxu0 0.0
        %1666 = vmatpush1.xpose.msra.mxu0 0.0
        %1667 = vmatprep.subr.mxu0 0.0
        %1668 = vmatpush1.xpose.msra.mxu0 0.0
        %1669 = vmatprep.subr.mxu0 0.0
        %1670 = vmatpush1.xpose.msra.mxu0 0.0
        %1671 = vmatprep.subr.mxu0 0.0
        %1672 = vmatpush1.xpose.msra.mxu0 0.0
        %1673 = vmatprep.subr.mxu0 0.0
        %1674 = vmatpush1.xpose.msra.mxu0 0.0
        %1675 = vmatprep.subr.mxu0 0.0
        %1676 = vmatpush1.xpose.msra.mxu0 0.0
        %1677 = vmatprep.subr.mxu0 0.0
        %1678 = vmatpush1.xpose.msra.mxu0 0.0
        %1679 = vmatprep.subr.mxu0 0.0
        %1680 = vmatpush1.xpose.msra.mxu0 0.0
        %1681 = vmatprep.subr.mxu0 0.0
        %1682 = vmatpush1.xpose.msra.mxu0 0.0
        %1683 = vmatprep.subr.mxu0 0.0
        %1684 = vmatpush1.xpose.msra.mxu0 0.0
        %1685 = vmatprep.subr.mxu0 0.0
        %1686 = vmatpush1.xpose.msra.mxu0 0.0
        %1687 = vmatprep.subr.mxu0 0.0
        %1688 = vmatpush1.xpose.msra.mxu0 0.0
        %1689 = vmatprep.subr.mxu0 0.0
        %1690 = vmatpush1.xpose.msra.mxu0 0.0
        %1691 = vmatprep.subr.mxu0 0.0
        %1692 = vmatpush1.xpose.msra.mxu0 0.0
        %1693 = vmatprep.subr.mxu0 0.0
        %1694 = vmatpush1.xpose.msra.mxu0 0.0
        %1695 = vmatprep.subr.mxu0 0.0
        %1696 = vmatpush1.xpose.msra.mxu0 0.0
        %1697 = vmatprep.subr.mxu0 0.0
        %1698 = vmatpush1.xpose.msra.mxu0 0.0
        %1699 = vmatprep.subr.mxu0 0.0
        %1700 = vmatpush1.xpose.msra.mxu0 0.0
        %1701 = vmatprep.subr.mxu0 0.0
        %1702 = vmatpush1.xpose.msra.mxu0 0.0
        %1703 = vmatprep.subr.mxu0 0.0
        %1704 = vmatpush1.xpose.msra.mxu0 0.0
        %1705 = vmatprep.subr.mxu0 0.0
        %1706 = vmatpush1.xpose.msra.mxu0 0.0
        %1707 = vmatprep.subr.mxu0 0.0
        %1708 = vmatpush1.xpose.msra.mxu0 0.0
        %1709 = vmatprep.subr.mxu0 0.0
        %1710 = vmatpush1.xpose.msra.mxu0 0.0
        %1711 = vmatprep.subr.mxu0 0.0
        %1712 = vmatpush1.xpose.msra.mxu0 0.0
        %1713 = vmatprep.subr.mxu0 0.0
        %1714 = vmatpush1.xpose.msra.mxu0 0.0
        %1715 = vmatprep.subr.mxu0 0.0
        %1716 = vmatpush1.xpose.msra.mxu0 0.0
        %1717 = vmatprep.subr.mxu0 0.0
        %1718 = vmatpush1.xpose.msra.mxu0 0.0
        %1719 = vmatprep.subr.mxu0 0.0
        %1720 = vmatpush1.xpose.msra.mxu0 0.0
        %1721 = vmatprep.subr.mxu0 0.0
        %1722 = vmatpush1.xpose.msra.mxu0 0.0
        %1723 = vmatprep.subr.mxu0 0.0
        %1724 = vmatpush1.xpose.msra.mxu0 0.0
        %1725 = vmatprep.subr.mxu0 0.0
        %1726 = vmatpush1.xpose.msra.mxu0 0.0
        %1727 = vmatprep.mubr.f32.mxu0 0.0
        %1728 = vmatmul.mubr.f32.gmra.mrb[0].mxu0 %v1659
        %v1729 = vpop.f32.mrb[0].mxu0
        %v1730 = vadd.f32 0.0, %v1729
        %v1731 = vpop.f32.mrb[0].mxu0
        %1732 = vdwg.mxu0
        %v1733 = vsel %vm1658, %v1643, 0
        %v1735 = vsel %vm1658, %v1653, 0
        %1737 = vmatprep.subr.mxu0 0.0
        %1738 = vmatpush1.xpose.msra.mxu0 %v1735
        %1739 = vmatprep.subr.mxu0 0.0
        %1740 = vmatpush1.xpose.msra.mxu0 0.0
        %1741 = vmatprep.subr.mxu0 0.0
        %1742 = vmatpush1.xpose.msra.mxu0 0.0
        %1743 = vmatprep.subr.mxu0 0.0
        %1744 = vmatpush1.xpose.msra.mxu0 0.0
        %1745 = vmatprep.subr.mxu0 0.0
        %1746 = vmatpush1.xpose.msra.mxu0 0.0
        %1747 = vmatprep.subr.mxu0 0.0
        %1748 = vmatpush1.xpose.msra.mxu0 0.0
        %1749 = vmatprep.subr.mxu0 0.0
        %1750 = vmatpush1.xpose.msra.mxu0 0.0
        %1751 = vmatprep.subr.mxu0 0.0
        %1752 = vmatpush1.xpose.msra.mxu0 0.0
        %1753 = vmatprep.subr.mxu0 0.0
        %1754 = vmatpush1.xpose.msra.mxu0 0.0
        %1755 = vmatprep.subr.mxu0 0.0
        %1756 = vmatpush1.xpose.msra.mxu0 0.0
        %1757 = vmatprep.subr.mxu0 0.0
        %1758 = vmatpush1.xpose.msra.mxu0 0.0
        %1759 = vmatprep.subr.mxu0 0.0
        %1760 = vmatpush1.xpose.msra.mxu0 0.0
        %1761 = vmatprep.subr.mxu0 0.0
        %1762 = vmatpush1.xpose.msra.mxu0 0.0
        %1763 = vmatprep.subr.mxu0 0.0
        %1764 = vmatpush1.xpose.msra.mxu0 0.0
        %1765 = vmatprep.subr.mxu0 0.0
        %1766 = vmatpush1.xpose.msra.mxu0 0.0
        %1767 = vmatprep.subr.mxu0 0.0
        %1768 = vmatpush1.xpose.msra.mxu0 0.0
        %1769 = vmatprep.subr.mxu0 0.0
        %1770 = vmatpush1.xpose.msra.mxu0 0.0
        %1771 = vmatprep.subr.mxu0 0.0
        %1772 = vmatpush1.xpose.msra.mxu0 0.0
        %1773 = vmatprep.subr.mxu0 0.0
        %1774 = vmatpush1.xpose.msra.mxu0 0.0
        %1775 = vmatprep.subr.mxu0 0.0
        %1776 = vmatpush1.xpose.msra.mxu0 0.0
        %1777 = vmatprep.subr.mxu0 0.0
        %1778 = vmatpush1.xpose.msra.mxu0 0.0
        %1779 = vmatprep.subr.mxu0 0.0
        %1780 = vmatpush1.xpose.msra.mxu0 0.0
        %1781 = vmatprep.subr.mxu0 0.0
        %1782 = vmatpush1.xpose.msra.mxu0 0.0
        %1783 = vmatprep.subr.mxu0 0.0
        %1784 = vmatpush1.xpose.msra.mxu0 0.0
        %1785 = vmatprep.subr.mxu0 0.0
        %1786 = vmatpush1.xpose.msra.mxu0 0.0
        %1787 = vmatprep.subr.mxu0 0.0
        %1788 = vmatpush1.xpose.msra.mxu0 0.0
        %1789 = vmatprep.subr.mxu0 0.0
        %1790 = vmatpush1.xpose.msra.mxu0 0.0
        %1791 = vmatprep.subr.mxu0 0.0
        %1792 = vmatpush1.xpose.msra.mxu0 0.0
        %1793 = vmatprep.subr.mxu0 0.0
        %1794 = vmatpush1.xpose.msra.mxu0 0.0
        %1795 = vmatprep.subr.mxu0 0.0
        %1796 = vmatpush1.xpose.msra.mxu0 0.0
        %1797 = vmatprep.subr.mxu0 0.0
        %1798 = vmatpush1.xpose.msra.mxu0 0.0
        %1799 = vmatprep.subr.mxu0 0.0
        %1800 = vmatpush1.xpose.msra.mxu0 0.0
        %1801 = vmatprep.mubr.f32.mxu0 0.0
        %1802 = vmatmul.mubr.f32.gmra.mrb[0].mxu0 %v1733
        %v1803 = vpop.f32.mrb[0].mxu0
        %v1804 = vadd.f32 0.0, %v1803
        %v1805 = vpop.f32.mrb[0].mxu0
        %1806 = vdwg.mxu0
        %v1807 = vsel %vm1658, %v1646, 0
        %v1809 = vsel %vm1658, %v1655, 0
        %1811 = vmatprep.subr.mxu0 0.0
        %1812 = vmatpush1.xpose.msra.mxu0 %v1809
        %1813 = vmatprep.subr.mxu0 0.0
        %1814 = vmatpush1.xpose.msra.mxu0 0.0
        %1815 = vmatprep.subr.mxu0 0.0
        %1816 = vmatpush1.xpose.msra.mxu0 0.0
        %1817 = vmatprep.subr.mxu0 0.0
        %1818 = vmatpush1.xpose.msra.mxu0 0.0
        %1819 = vmatprep.subr.mxu0 0.0
        %1820 = vmatpush1.xpose.msra.mxu0 0.0
        %1821 = vmatprep.subr.mxu0 0.0
        %1822 = vmatpush1.xpose.msra.mxu0 0.0
        %1823 = vmatprep.subr.mxu0 0.0
        %1824 = vmatpush1.xpose.msra.mxu0 0.0
        %1825 = vmatprep.subr.mxu0 0.0
        %1826 = vmatpush1.xpose.msra.mxu0 0.0
        %1827 = vmatprep.subr.mxu0 0.0
        %1828 = vmatpush1.xpose.msra.mxu0 0.0
        %1829 = vmatprep.subr.mxu0 0.0
        %1830 = vmatpush1.xpose.msra.mxu0 0.0
        %1831 = vmatprep.subr.mxu0 0.0
        %1832 = vmatpush1.xpose.msra.mxu0 0.0
        %1833 = vmatprep.subr.mxu0 0.0
        %1834 = vmatpush1.xpose.msra.mxu0 0.0
        %1835 = vmatprep.subr.mxu0 0.0
        %1836 = vmatpush1.xpose.msra.mxu0 0.0
        %1837 = vmatprep.subr.mxu0 0.0
        %1838 = vmatpush1.xpose.msra.mxu0 0.0
        %1839 = vmatprep.subr.mxu0 0.0
        %1840 = vmatpush1.xpose.msra.mxu0 0.0
        %1841 = vmatprep.subr.mxu0 0.0
        %1842 = vmatpush1.xpose.msra.mxu0 0.0
        %1843 = vmatprep.subr.mxu0 0.0
        %1844 = vmatpush1.xpose.msra.mxu0 0.0
        %1845 = vmatprep.subr.mxu0 0.0
        %1846 = vmatpush1.xpose.msra.mxu0 0.0
        %1847 = vmatprep.subr.mxu0 0.0
        %1848 = vmatpush1.xpose.msra.mxu0 0.0
        %1849 = vmatprep.subr.mxu0 0.0
        %1850 = vmatpush1.xpose.msra.mxu0 0.0
        %1851 = vmatprep.subr.mxu0 0.0
        %1852 = vmatpush1.xpose.msra.mxu0 0.0
        %1853 = vmatprep.subr.mxu0 0.0
        %1854 = vmatpush1.xpose.msra.mxu0 0.0
        %1855 = vmatprep.subr.mxu0 0.0
        %1856 = vmatpush1.xpose.msra.mxu0 0.0
        %1857 = vmatprep.subr.mxu0 0.0
        %1858 = vmatpush1.xpose.msra.mxu0 0.0
        %1859 = vmatprep.subr.mxu0 0.0
        %1860 = vmatpush1.xpose.msra.mxu0 0.0
        %1861 = vmatprep.subr.mxu0 0.0
        %1862 = vmatpush1.xpose.msra.mxu0 0.0
        %1863 = vmatprep.subr.mxu0 0.0
        %1864 = vmatpush1.xpose.msra.mxu0 0.0
        %1865 = vmatprep.subr.mxu0 0.0
        %1866 = vmatpush1.xpose.msra.mxu0 0.0
        %1867 = vmatprep.subr.mxu0 0.0
        %1868 = vmatpush1.xpose.msra.mxu0 0.0
        %1869 = vmatprep.subr.mxu0 0.0
        %1870 = vmatpush1.xpose.msra.mxu0 0.0
        %1871 = vmatprep.subr.mxu0 0.0
        %1872 = vmatpush1.xpose.msra.mxu0 0.0
        %1873 = vmatprep.subr.mxu0 0.0
        %1874 = vmatpush1.xpose.msra.mxu0 0.0
        %1875 = vmatprep.mubr.f32.mxu0 0.0
        %1876 = vmatmul.mubr.f32.gmra.mrb[0].mxu0 %v1807
        %v1877 = vpop.f32.mrb[0].mxu0
        %v1878 = vadd.f32 0.0, %v1877
        %v1879 = vpop.f32.mrb[0].mxu0
        %1880 = vdwg.mxu0
        %v1881 = vsel %vm1658, %v1649, 0
        %v1883 = vsel %vm1658, %v1657, 0
        %1885 = vmatprep.subr.mxu0 0.0
        %1886 = vmatpush1.xpose.msra.mxu0 %v1883
        %1887 = vmatprep.subr.mxu0 0.0
        %1888 = vmatpush1.xpose.msra.mxu0 0.0
        %1889 = vmatprep.subr.mxu0 0.0
        %1890 = vmatpush1.xpose.msra.mxu0 0.0
        %1891 = vmatprep.subr.mxu0 0.0
        %1892 = vmatpush1.xpose.msra.mxu0 0.0
        %1893 = vmatprep.subr.mxu0 0.0
        %1894 = vmatpush1.xpose.msra.mxu0 0.0
        %1895 = vmatprep.subr.mxu0 0.0
        %1896 = vmatpush1.xpose.msra.mxu0 0.0
        %1897 = vmatprep.subr.mxu0 0.0
        %1898 = vmatpush1.xpose.msra.mxu0 0.0
        %1899 = vmatprep.subr.mxu0 0.0
        %1900 = vmatpush1.xpose.msra.mxu0 0.0
        %1901 = vmatprep.subr.mxu0 0.0
        %1902 = vmatpush1.xpose.msra.mxu0 0.0
        %1903 = vmatprep.subr.mxu0 0.0
        %1904 = vmatpush1.xpose.msra.mxu0 0.0
        %1905 = vmatprep.subr.mxu0 0.0
        %1906 = vmatpush1.xpose.msra.mxu0 0.0
        %1907 = vmatprep.subr.mxu0 0.0
        %1908 = vmatpush1.xpose.msra.mxu0 0.0
        %1909 = vmatprep.subr.mxu0 0.0
        %1910 = vmatpush1.xpose.msra.mxu0 0.0
        %1911 = vmatprep.subr.mxu0 0.0
        %1912 = vmatpush1.xpose.msra.mxu0 0.0
        %1913 = vmatprep.subr.mxu0 0.0
        %1914 = vmatpush1.xpose.msra.mxu0 0.0
        %1915 = vmatprep.subr.mxu0 0.0
        %1916 = vmatpush1.xpose.msra.mxu0 0.0
        %1917 = vmatprep.subr.mxu0 0.0
        %1918 = vmatpush1.xpose.msra.mxu0 0.0
        %1919 = vmatprep.subr.mxu0 0.0
        %1920 = vmatpush1.xpose.msra.mxu0 0.0
        %1921 = vmatprep.subr.mxu0 0.0
        %1922 = vmatpush1.xpose.msra.mxu0 0.0
        %1923 = vmatprep.subr.mxu0 0.0
        %1924 = vmatpush1.xpose.msra.mxu0 0.0
        %1925 = vmatprep.subr.mxu0 0.0
        %1926 = vmatpush1.xpose.msra.mxu0 0.0
        %1927 = vmatprep.subr.mxu0 0.0
        %1928 = vmatpush1.xpose.msra.mxu0 0.0
        %1929 = vmatprep.subr.mxu0 0.0
        %1930 = vmatpush1.xpose.msra.mxu0 0.0
        %1931 = vmatprep.subr.mxu0 0.0
        %1932 = vmatpush1.xpose.msra.mxu0 0.0
        %1933 = vmatprep.subr.mxu0 0.0
        %1934 = vmatpush1.xpose.msra.mxu0 0.0
        %1935 = vmatprep.subr.mxu0 0.0
        %1936 = vmatpush1.xpose.msra.mxu0 0.0
        %1937 = vmatprep.subr.mxu0 0.0
        %1938 = vmatpush1.xpose.msra.mxu0 0.0
        %1939 = vmatprep.subr.mxu0 0.0
        %1940 = vmatpush1.xpose.msra.mxu0 0.0
        %1941 = vmatprep.subr.mxu0 0.0
        %1942 = vmatpush1.xpose.msra.mxu0 0.0
        %1943 = vmatprep.subr.mxu0 0.0
        %1944 = vmatpush1.xpose.msra.mxu0 0.0
        %1945 = vmatprep.subr.mxu0 0.0
        %1946 = vmatpush1.xpose.msra.mxu0 0.0
        %1947 = vmatprep.subr.mxu0 0.0
        %1948 = vmatpush1.xpose.msra.mxu0 0.0
        %1949 = vmatprep.mubr.f32.mxu0 0.0
        %1950 = vmatmul.mubr.f32.gmra.mrb[0].mxu0 %v1881
        %v1951 = vpop.f32.mrb[0].mxu0
        %v1952 = vadd.f32 0.0, %v1951
        %v1953 = vpop.f32.mrb[0].mxu0
        %1954 = vdwg.mxu0
        %v1955 = vsel %vm1658, %v1730, -inf
        %1956 = vmax.xlane.f32.xlu0 %v1955
        %v1957 = vpop.xlane.xlu0 %1956
        %v1958 = vsel %vm1658, %v1804, -inf
        %1959 = vmax.xlane.f32.xlu0 %v1958
        %v1960 = vpop.xlane.xlu0 %1959
        %v1961 = vsel %vm1658, %v1878, -inf
        %1962 = vmax.xlane.f32.xlu0 %v1961
        %v1963 = vpop.xlane.xlu0 %1962
        %v1964 = vsel %vm1658, %v1952, -inf
        %1965 = vmax.xlane.f32.xlu0 %v1964
        %v1966 = vpop.xlane.xlu0 %1965
        %v1967 = vsub.f32 %v1730, %v1957
        %v1968 = vsub.f32 %v1804, %v1960
        %v1969 = vsub.f32 %v1878, %v1963
        %v1970 = vsub.f32 %v1952, %v1966
        %v1971 = vmul.f32 %v1967, 1.442695
        %v1972 = vpow.pop %v1971
        %v1973 = vmul.f32 %v1968, 1.442695
        %v1974 = vpow.pop %v1973
        %v1975 = vmul.f32 %v1969, 1.442695
        %v1976 = vpow.pop %v1975
        %v1977 = vmul.f32 %v1970, 1.442695
        %v1978 = vpow.pop %v1977
        %v1979 = vsel %vm1658, %v1972, 0.0
        %1980 = vadd.xlane.f32.xlu0 %v1979
        %v1981 = vpop.xlane.xlu0 %1980
        %v1982 = vsel %vm1658, %v1974, 0.0
        %1983 = vadd.xlane.f32.xlu0 %v1982
        %v1984 = vpop.xlane.xlu0 %1983
        %v1985 = vsel %vm1658, %v1976, 0.0
        %1986 = vadd.xlane.f32.xlu0 %v1985
        %v1987 = vpop.xlane.xlu0 %1986
        %v1988 = vsel %vm1658, %v1978, 0.0
        %1989 = vadd.xlane.f32.xlu0 %v1988
        %v1990 = vpop.xlane.xlu0 %1989
        %v1991 = vrcp.pop %v1981
        %v1992 = vrcp.pop %v1984
        %v1993 = vrcp.pop %v1987
        %v1994 = vrcp.pop %v1990
        %v1995 = vmul.f32 %v1972, %v1991
        %v1996 = vmul.f32 %v1974, %v1992
        %v1997 = vmul.f32 %v1976, %v1993
        %v1998 = vmul.f32 %v1978, %v1994
        %1999 = vrot.lane.b32.xlu0 %v1638, 96
        %v2000 = vpop.permute.xlu0 %1999
        %v2003 = vsel %vm1658, %v1995, 0
        %2005 = vmatprep.subr.mxu0 0.0
        %2006 = vmatpush1.msra.mxu0 %v2000
        %2007 = vmatprep.subr.mxu0 0.0
        %2008 = vmatpush1.msra.mxu0 0.0
        %2009 = vmatprep.subr.mxu0 0.0
        %2010 = vmatpush1.msra.mxu0 0.0
        %2011 = vmatprep.subr.mxu0 0.0
        %2012 = vmatpush1.msra.mxu0 0.0
        %2013 = vmatprep.subr.mxu0 0.0
        %2014 = vmatpush1.msra.mxu0 0.0
        %2015 = vmatprep.subr.mxu0 0.0
        %2016 = vmatpush1.msra.mxu0 0.0
        %2017 = vmatprep.subr.mxu0 0.0
        %2018 = vmatpush1.msra.mxu0 0.0
        %2019 = vmatprep.subr.mxu0 0.0
        %2020 = vmatpush1.msra.mxu0 0.0
        %2021 = vmatprep.subr.mxu0 0.0
        %2022 = vmatpush1.msra.mxu0 0.0
        %2023 = vmatprep.subr.mxu0 0.0
        %2024 = vmatpush1.msra.mxu0 0.0
        %2025 = vmatprep.subr.mxu0 0.0
        %2026 = vmatpush1.msra.mxu0 0.0
        %2027 = vmatprep.subr.mxu0 0.0
        %2028 = vmatpush1.msra.mxu0 0.0
        %2029 = vmatprep.subr.mxu0 0.0
        %2030 = vmatpush1.msra.mxu0 0.0
        %2031 = vmatprep.subr.mxu0 0.0
        %2032 = vmatpush1.msra.mxu0 0.0
        %2033 = vmatprep.subr.mxu0 0.0
        %2034 = vmatpush1.msra.mxu0 0.0
        %2035 = vmatprep.subr.mxu0 0.0
        %2036 = vmatpush1.msra.mxu0 0.0
        %2037 = vmatprep.subr.mxu0 0.0
        %2038 = vmatpush1.msra.mxu0 0.0
        %2039 = vmatprep.subr.mxu0 0.0
        %2040 = vmatpush1.msra.mxu0 0.0
        %2041 = vmatprep.subr.mxu0 0.0
        %2042 = vmatpush1.msra.mxu0 0.0
        %2043 = vmatprep.subr.mxu0 0.0
        %2044 = vmatpush1.msra.mxu0 0.0
        %2045 = vmatprep.subr.mxu0 0.0
        %2046 = vmatpush1.msra.mxu0 0.0
        %2047 = vmatprep.subr.mxu0 0.0
        %2048 = vmatpush1.msra.mxu0 0.0
        %2049 = vmatprep.subr.mxu0 0.0
        %2050 = vmatpush1.msra.mxu0 0.0
        %2051 = vmatprep.subr.mxu0 0.0
        %2052 = vmatpush1.msra.mxu0 0.0
        %2053 = vmatprep.subr.mxu0 0.0
        %2054 = vmatpush1.msra.mxu0 0.0
        %2055 = vmatprep.subr.mxu0 0.0
        %2056 = vmatpush1.msra.mxu0 0.0
        %2057 = vmatprep.subr.mxu0 0.0
        %2058 = vmatpush1.msra.mxu0 0.0
        %2059 = vmatprep.subr.mxu0 0.0
        %2060 = vmatpush1.msra.mxu0 0.0
        %2061 = vmatprep.subr.mxu0 0.0
        %2062 = vmatpush1.msra.mxu0 0.0
        %2063 = vmatprep.subr.mxu0 0.0
        %2064 = vmatpush1.msra.mxu0 0.0
        %2065 = vmatprep.subr.mxu0 0.0
        %2066 = vmatpush1.msra.mxu0 0.0
        %2067 = vmatprep.subr.mxu0 0.0
        %2068 = vmatpush1.msra.mxu0 0.0
        %2069 = vmatprep.mubr.f32.mxu0 0.0
        %2070 = vmatmul.mubr.f32.gmra.mrb[0].mxu0 %v2003
        %v2071 = vpop.f32.mrb[0].mxu0
        %v2072 = vadd.f32 0.0, %v2071
        %v2073 = vpop.f32.mrb[0].mxu0
        %2074 = vdwg.mxu0
        %2075 = vrot.lane.b32.xlu0 %v1653, 96
        %v2076 = vpop.permute.xlu0 %2075
        %v2079 = vsel %vm1658, %v1996, 0
        %2081 = vmatprep.subr.mxu0 0.0
        %2082 = vmatpush1.msra.mxu0 %v2076
        %2083 = vmatprep.subr.mxu0 0.0
        %2084 = vmatpush1.msra.mxu0 0.0
        %2085 = vmatprep.subr.mxu0 0.0
        %2086 = vmatpush1.msra.mxu0 0.0
        %2087 = vmatprep.subr.mxu0 0.0
        %2088 = vmatpush1.msra.mxu0 0.0
        %2089 = vmatprep.subr.mxu0 0.0
        %2090 = vmatpush1.msra.mxu0 0.0
        %2091 = vmatprep.subr.mxu0 0.0
        %2092 = vmatpush1.msra.mxu0 0.0
        %2093 = vmatprep.subr.mxu0 0.0
        %2094 = vmatpush1.msra.mxu0 0.0
        %2095 = vmatprep.subr.mxu0 0.0
        %2096 = vmatpush1.msra.mxu0 0.0
        %2097 = vmatprep.subr.mxu0 0.0
        %2098 = vmatpush1.msra.mxu0 0.0
        %2099 = vmatprep.subr.mxu0 0.0
        %2100 = vmatpush1.msra.mxu0 0.0
        %2101 = vmatprep.subr.mxu0 0.0
        %2102 = vmatpush1.msra.mxu0 0.0
        %2103 = vmatprep.subr.mxu0 0.0
        %2104 = vmatpush1.msra.mxu0 0.0
        %2105 = vmatprep.subr.mxu0 0.0
        %2106 = vmatpush1.msra.mxu0 0.0
        %2107 = vmatprep.subr.mxu0 0.0
        %2108 = vmatpush1.msra.mxu0 0.0
        %2109 = vmatprep.subr.mxu0 0.0
        %2110 = vmatpush1.msra.mxu0 0.0
        %2111 = vmatprep.subr.mxu0 0.0
        %2112 = vmatpush1.msra.mxu0 0.0
        %2113 = vmatprep.subr.mxu0 0.0
        %2114 = vmatpush1.msra.mxu0 0.0
        %2115 = vmatprep.subr.mxu0 0.0
        %2116 = vmatpush1.msra.mxu0 0.0
        %2117 = vmatprep.subr.mxu0 0.0
        %2118 = vmatpush1.msra.mxu0 0.0
        %2119 = vmatprep.subr.mxu0 0.0
        %2120 = vmatpush1.msra.mxu0 0.0
        %2121 = vmatprep.subr.mxu0 0.0
        %2122 = vmatpush1.msra.mxu0 0.0
        %2123 = vmatprep.subr.mxu0 0.0
        %2124 = vmatpush1.msra.mxu0 0.0
        %2125 = vmatprep.subr.mxu0 0.0
        %2126 = vmatpush1.msra.mxu0 0.0
        %2127 = vmatprep.subr.mxu0 0.0
        %2128 = vmatpush1.msra.mxu0 0.0
        %2129 = vmatprep.subr.mxu0 0.0
        %2130 = vmatpush1.msra.mxu0 0.0
        %2131 = vmatprep.subr.mxu0 0.0
        %2132 = vmatpush1.msra.mxu0 0.0
        %2133 = vmatprep.subr.mxu0 0.0
        %2134 = vmatpush1.msra.mxu0 0.0
        %2135 = vmatprep.subr.mxu0 0.0
        %2136 = vmatpush1.msra.mxu0 0.0
        %2137 = vmatprep.subr.mxu0 0.0
        %2138 = vmatpush1.msra.mxu0 0.0
        %2139 = vmatprep.subr.mxu0 0.0
        %2140 = vmatpush1.msra.mxu0 0.0
        %2141 = vmatprep.subr.mxu0 0.0
        %2142 = vmatpush1.msra.mxu0 0.0
        %2143 = vmatprep.subr.mxu0 0.0
        %2144 = vmatpush1.msra.mxu0 0.0
        %2145 = vmatprep.mubr.f32.mxu0 0.0
        %2146 = vmatmul.mubr.f32.gmra.mrb[0].mxu0 %v2079
        %v2147 = vpop.f32.mrb[0].mxu0
        %v2148 = vadd.f32 0.0, %v2147
        %v2149 = vpop.f32.mrb[0].mxu0
        %2150 = vdwg.mxu0
        %2151 = vrot.lane.b32.xlu0 %v1655, 96
        %v2152 = vpop.permute.xlu0 %2151
        %v2155 = vsel %vm1658, %v1997, 0
        %2157 = vmatprep.subr.mxu0 0.0
        %2158 = vmatpush1.msra.mxu0 %v2152
        %2159 = vmatprep.subr.mxu0 0.0
        %2160 = vmatpush1.msra.mxu0 0.0
        %2161 = vmatprep.subr.mxu0 0.0
        %2162 = vmatpush1.msra.mxu0 0.0
        %2163 = vmatprep.subr.mxu0 0.0
        %2164 = vmatpush1.msra.mxu0 0.0
        %2165 = vmatprep.subr.mxu0 0.0
        %2166 = vmatpush1.msra.mxu0 0.0
        %2167 = vmatprep.subr.mxu0 0.0
        %2168 = vmatpush1.msra.mxu0 0.0
        %2169 = vmatprep.subr.mxu0 0.0
        %2170 = vmatpush1.msra.mxu0 0.0
        %2171 = vmatprep.subr.mxu0 0.0
        %2172 = vmatpush1.msra.mxu0 0.0
        %2173 = vmatprep.subr.mxu0 0.0
        %2174 = vmatpush1.msra.mxu0 0.0
        %2175 = vmatprep.subr.mxu0 0.0
        %2176 = vmatpush1.msra.mxu0 0.0
        %2177 = vmatprep.subr.mxu0 0.0
        %2178 = vmatpush1.msra.mxu0 0.0
        %2179 = vmatprep.subr.mxu0 0.0
        %2180 = vmatpush1.msra.mxu0 0.0
        %2181 = vmatprep.subr.mxu0 0.0
        %2182 = vmatpush1.msra.mxu0 0.0
        %2183 = vmatprep.subr.mxu0 0.0
        %2184 = vmatpush1.msra.mxu0 0.0
        %2185 = vmatprep.subr.mxu0 0.0
        %2186 = vmatpush1.msra.mxu0 0.0
        %2187 = vmatprep.subr.mxu0 0.0
        %2188 = vmatpush1.msra.mxu0 0.0
        %2189 = vmatprep.subr.mxu0 0.0
        %2190 = vmatpush1.msra.mxu0 0.0
        %2191 = vmatprep.subr.mxu0 0.0
        %2192 = vmatpush1.msra.mxu0 0.0
        %2193 = vmatprep.subr.mxu0 0.0
        %2194 = vmatpush1.msra.mxu0 0.0
        %2195 = vmatprep.subr.mxu0 0.0
        %2196 = vmatpush1.msra.mxu0 0.0
        %2197 = vmatprep.subr.mxu0 0.0
        %2198 = vmatpush1.msra.mxu0 0.0
        %2199 = vmatprep.subr.mxu0 0.0
        %2200 = vmatpush1.msra.mxu0 0.0
        %2201 = vmatprep.subr.mxu0 0.0
        %2202 = vmatpush1.msra.mxu0 0.0
        %2203 = vmatprep.subr.mxu0 0.0
        %2204 = vmatpush1.msra.mxu0 0.0
        %2205 = vmatprep.subr.mxu0 0.0
        %2206 = vmatpush1.msra.mxu0 0.0
        %2207 = vmatprep.subr.mxu0 0.0
        %2208 = vmatpush1.msra.mxu0 0.0
        %2209 = vmatprep.subr.mxu0 0.0
        %2210 = vmatpush1.msra.mxu0 0.0
        %2211 = vmatprep.subr.mxu0 0.0
        %2212 = vmatpush1.msra.mxu0 0.0
        %2213 = vmatprep.subr.mxu0 0.0
        %2214 = vmatpush1.msra.mxu0 0.0
        %2215 = vmatprep.subr.mxu0 0.0
        %2216 = vmatpush1.msra.mxu0 0.0
        %2217 = vmatprep.subr.mxu0 0.0
        %2218 = vmatpush1.msra.mxu0 0.0
        %2219 = vmatprep.subr.mxu0 0.0
        %2220 = vmatpush1.msra.mxu0 0.0
        %2221 = vmatprep.mubr.f32.mxu0 0.0
        %2222 = vmatmul.mubr.f32.gmra.mrb[0].mxu0 %v2155
        %v2223 = vpop.f32.mrb[0].mxu0
        %v2224 = vadd.f32 0.0, %v2223
        %v2225 = vpop.f32.mrb[0].mxu0
        %2226 = vdwg.mxu0
        %2227 = vrot.lane.b32.xlu0 %v1657, 96
        %v2228 = vpop.permute.xlu0 %2227
        %v2231 = vsel %vm1658, %v1998, 0
        %2233 = vmatprep.subr.mxu0 0.0
        %2234 = vmatpush1.msra.mxu0 %v2228
        %2235 = vmatprep.subr.mxu0 0.0
        %2236 = vmatpush1.msra.mxu0 0.0
        %2237 = vmatprep.subr.mxu0 0.0
        %2238 = vmatpush1.msra.mxu0 0.0
        %2239 = vmatprep.subr.mxu0 0.0
        %2240 = vmatpush1.msra.mxu0 0.0
        %2241 = vmatprep.subr.mxu0 0.0
        %2242 = vmatpush1.msra.mxu0 0.0
        %2243 = vmatprep.subr.mxu0 0.0
        %2244 = vmatpush1.msra.mxu0 0.0
        %2245 = vmatprep.subr.mxu0 0.0
        %2246 = vmatpush1.msra.mxu0 0.0
        %2247 = vmatprep.subr.mxu0 0.0
        %2248 = vmatpush1.msra.mxu0 0.0
        %2249 = vmatprep.subr.mxu0 0.0
        %2250 = vmatpush1.msra.mxu0 0.0
        %2251 = vmatprep.subr.mxu0 0.0
        %2252 = vmatpush1.msra.mxu0 0.0
        %2253 = vmatprep.subr.mxu0 0.0
        %2254 = vmatpush1.msra.mxu0 0.0
        %2255 = vmatprep.subr.mxu0 0.0
        %2256 = vmatpush1.msra.mxu0 0.0
        %2257 = vmatprep.subr.mxu0 0.0
        %2258 = vmatpush1.msra.mxu0 0.0
        %2259 = vmatprep.subr.mxu0 0.0
        %2260 = vmatpush1.msra.mxu0 0.0
        %2261 = vmatprep.subr.mxu0 0.0
        %2262 = vmatpush1.msra.mxu0 0.0
        %2263 = vmatprep.subr.mxu0 0.0
        %2264 = vmatpush1.msra.mxu0 0.0
        %2265 = vmatprep.subr.mxu0 0.0
        %2266 = vmatpush1.msra.mxu0 0.0
        %2267 = vmatprep.subr.mxu0 0.0
        %2268 = vmatpush1.msra.mxu0 0.0
        %2269 = vmatprep.subr.mxu0 0.0
        %2270 = vmatpush1.msra.mxu0 0.0
        %2271 = vmatprep.subr.mxu0 0.0
        %2272 = vmatpush1.msra.mxu0 0.0
        %2273 = vmatprep.subr.mxu0 0.0
        %2274 = vmatpush1.msra.mxu0 0.0
        %2275 = vmatprep.subr.mxu0 0.0
        %2276 = vmatpush1.msra.mxu0 0.0
        %2277 = vmatprep.subr.mxu0 0.0
        %2278 = vmatpush1.msra.mxu0 0.0
        %2279 = vmatprep.subr.mxu0 0.0
        %2280 = vmatpush1.msra.mxu0 0.0
        %2281 = vmatprep.subr.mxu0 0.0
        %2282 = vmatpush1.msra.mxu0 0.0
        %2283 = vmatprep.subr.mxu0 0.0
        %2284 = vmatpush1.msra.mxu0 0.0
        %2285 = vmatprep.subr.mxu0 0.0
        %2286 = vmatpush1.msra.mxu0 0.0
        %2287 = vmatprep.subr.mxu0 0.0
        %2288 = vmatpush1.msra.mxu0 0.0
        %2289 = vmatprep.subr.mxu0 0.0
        %2290 = vmatpush1.msra.mxu0 0.0
        %2291 = vmatprep.subr.mxu0 0.0
        %2292 = vmatpush1.msra.mxu0 0.0
        %2293 = vmatprep.subr.mxu0 0.0
        %2294 = vmatpush1.msra.mxu0 0.0
        %2295 = vmatprep.subr.mxu0 0.0
        %2296 = vmatpush1.msra.mxu0 0.0
        %2297 = vmatprep.mubr.f32.mxu0 0.0
        %2298 = vmatmul.mubr.f32.gmra.mrb[0].mxu0 %v2231
        %v2299 = vpop.f32.mrb[0].mxu0
        %v2300 = vadd.f32 0.0, %v2299
        %v2301 = vpop.f32.mrb[0].mxu0
        %2302 = vdwg.mxu0
        %v2303 = vadd.f32 %v1552, %v2072
        %v2304 = vadd.f32 %v1643, %v2148
        %v2305 = vadd.f32 %v1646, %v2224
        %v2306 = vadd.f32 %v1649, %v2300
        %2308 = vrot.lane.b32.xlu0 %v2304, 8
        %v2309 = vpop.permute.xlu0 %2308
        %2312 = vrot.lane.b32.xlu0 %v2305, 16
        %v2313 = vpop.permute.xlu0 %2312
        %2316 = vrot.lane.b32.xlu0 %v2306, 24
        %v2317 = vpop.permute.xlu0 %2316
        %v2319 = vsel %vm1658, %v2303, %v2309
        %vm2320 = vcmask 130048
        %v2321 = vsel %vm2320, %v2319, %v2313
        %vm2322 = vcmask 195584
        %v2323 = vsel %vm2322, %v2321, %v2317
        %v2324 = vld [vmem:[%s17] sm:$0xff]
        %v2325 = vld [vmem:[%s17 + $0x8] sm:$0xff]
        %v2326 = vld [vmem:[%s17 + $0x10] sm:$0xff]
        %v2327 = vld [vmem:[%s17 + $0x18] sm:$0xff]
        %v2328 = vld [vmem:[%s11] sm:$0x1]
        %v2330 = vlaneseq
        %v2331 = vshrl.u32 %v2330, 7
        %v2332 = vsub.s32 0, %v2331
        %v2333 = vrot.slane %v2328, %v2332
        %v2336 = vsel %vm1481, %v2323, 0
        %2338 = vmatprep.subr.mxu0 0.0
        %2339 = vmatpush1.msra.mxu0 %v2324
        %2340 = vmatprep.subr.mxu0 0.0
        %2341 = vmatpush1.msra.mxu0 %v2325
        %2342 = vmatprep.subr.mxu0 0.0
        %2343 = vmatpush1.msra.mxu0 %v2326
        %2344 = vmatprep.subr.mxu0 0.0
        %2345 = vmatpush1.msra.mxu0 %v2327
        %2346 = vmatprep.subr.mxu0 0.0
        %2347 = vmatpush1.msra.mxu0 0.0
        %2348 = vmatprep.subr.mxu0 0.0
        %2349 = vmatpush1.msra.mxu0 0.0
        %2350 = vmatprep.subr.mxu0 0.0
        %2351 = vmatpush1.msra.mxu0 0.0
        %2352 = vmatprep.subr.mxu0 0.0
        %2353 = vmatpush1.msra.mxu0 0.0
        %2354 = vmatprep.subr.mxu0 0.0
        %2355 = vmatpush1.msra.mxu0 0.0
        %2356 = vmatprep.subr.mxu0 0.0
        %2357 = vmatpush1.msra.mxu0 0.0
        %2358 = vmatprep.subr.mxu0 0.0
        %2359 = vmatpush1.msra.mxu0 0.0
        %2360 = vmatprep.subr.mxu0 0.0
        %2361 = vmatpush1.msra.mxu0 0.0
        %2362 = vmatprep.subr.mxu0 0.0
        %2363 = vmatpush1.msra.mxu0 0.0
        %2364 = vmatprep.subr.mxu0 0.0
        %2365 = vmatpush1.msra.mxu0 0.0
        %2366 = vmatprep.subr.mxu0 0.0
        %2367 = vmatpush1.msra.mxu0 0.0
        %2368 = vmatprep.subr.mxu0 0.0
        %2369 = vmatpush1.msra.mxu0 0.0
        %2370 = vmatprep.subr.mxu0 0.0
        %2371 = vmatpush1.msra.mxu0 0.0
        %2372 = vmatprep.subr.mxu0 0.0
        %2373 = vmatpush1.msra.mxu0 0.0
        %2374 = vmatprep.subr.mxu0 0.0
        %2375 = vmatpush1.msra.mxu0 0.0
        %2376 = vmatprep.subr.mxu0 0.0
        %2377 = vmatpush1.msra.mxu0 0.0
        %2378 = vmatprep.subr.mxu0 0.0
        %2379 = vmatpush1.msra.mxu0 0.0
        %2380 = vmatprep.subr.mxu0 0.0
        %2381 = vmatpush1.msra.mxu0 0.0
        %2382 = vmatprep.subr.mxu0 0.0
        %2383 = vmatpush1.msra.mxu0 0.0
        %2384 = vmatprep.subr.mxu0 0.0
        %2385 = vmatpush1.msra.mxu0 0.0
        %2386 = vmatprep.subr.mxu0 0.0
        %2387 = vmatpush1.msra.mxu0 0.0
        %2388 = vmatprep.subr.mxu0 0.0
        %2389 = vmatpush1.msra.mxu0 0.0
        %2390 = vmatprep.subr.mxu0 0.0
        %2391 = vmatpush1.msra.mxu0 0.0
        %2392 = vmatprep.subr.mxu0 0.0
        %2393 = vmatpush1.msra.mxu0 0.0
        %2394 = vmatprep.subr.mxu0 0.0
        %2395 = vmatpush1.msra.mxu0 0.0
        %2396 = vmatprep.subr.mxu0 0.0
        %2397 = vmatpush1.msra.mxu0 0.0
        %2398 = vmatprep.subr.mxu0 0.0
        %2399 = vmatpush1.msra.mxu0 0.0
        %2400 = vmatprep.subr.mxu0 0.0
        %2401 = vmatpush1.msra.mxu0 0.0
        %2402 = vmatprep.mubr.f32.mxu0 0.0
        %2403 = vmatmul.mubr.f32.gmra.mrb[0].mxu0 %v2336
        %v2404 = vpop.f32.mrb[0].mxu0
        %v2405 = vadd.f32 %v2333, %v2404
        %v2406 = vpop.f32.mrb[0].mxu0
        %2407 = vdwg.mxu0
        %v2408 = vmax.f32 %v2405, 0.0
        %v2409 = vadd.f32 %v2323, %v2408
        %v2410 = vld [vmem:[%s31] sm:$0xf]
        %v2411 = vld [vmem:[%s25] sm:$0x1]
        %v2413 = vlaneseq
        %v2414 = vshrl.u32 %v2413, 7
        %v2415 = vsub.s32 0, %v2414
        %v2416 = vrot.slane %v2411, %v2415
        %v2419 = vsel %vm1567, %v2410, 0
        %2421 = vmatprep.subr.mxu0 0.0
        %2422 = vmatpush1.msra.mxu0 %v2419
        %2423 = vmatprep.subr.mxu0 0.0
        %2424 = vmatpush1.msra.mxu0 0.0
        %2425 = vmatprep.subr.mxu0 0.0
        %2426 = vmatpush1.msra.mxu0 0.0
        %2427 = vmatprep.subr.mxu0 0.0
        %2428 = vmatpush1.msra.mxu0 0.0
        %2429 = vmatprep.subr.mxu0 0.0
        %2430 = vmatpush1.msra.mxu0 0.0
        %2431 = vmatprep.subr.mxu0 0.0
        %2432 = vmatpush1.msra.mxu0 0.0
        %2433 = vmatprep.subr.mxu0 0.0
        %2434 = vmatpush1.msra.mxu0 0.0
        %2435 = vmatprep.subr.mxu0 0.0
        %2436 = vmatpush1.msra.mxu0 0.0
        %2437 = vmatprep.subr.mxu0 0.0
        %2438 = vmatpush1.msra.mxu0 0.0
        %2439 = vmatprep.subr.mxu0 0.0
        %2440 = vmatpush1.msra.mxu0 0.0
        %2441 = vmatprep.subr.mxu0 0.0
        %2442 = vmatpush1.msra.mxu0 0.0
        %2443 = vmatprep.subr.mxu0 0.0
        %2444 = vmatpush1.msra.mxu0 0.0
        %2445 = vmatprep.subr.mxu0 0.0
        %2446 = vmatpush1.msra.mxu0 0.0
        %2447 = vmatprep.subr.mxu0 0.0
        %2448 = vmatpush1.msra.mxu0 0.0
        %2449 = vmatprep.subr.mxu0 0.0
        %2450 = vmatpush1.msra.mxu0 0.0
        %2451 = vmatprep.subr.mxu0 0.0
        %2452 = vmatpush1.msra.mxu0 0.0
        %2453 = vmatprep.subr.mxu0 0.0
        %2454 = vmatpush1.msra.mxu0 0.0
        %2455 = vmatprep.subr.mxu0 0.0
        %2456 = vmatpush1.msra.mxu0 0.0
        %2457 = vmatprep.subr.mxu0 0.0
        %2458 = vmatpush1.msra.mxu0 0.0
        %2459 = vmatprep.subr.mxu0 0.0
        %2460 = vmatpush1.msra.mxu0 0.0
        %2461 = vmatprep.subr.mxu0 0.0
        %2462 = vmatpush1.msra.mxu0 0.0
        %2463 = vmatprep.subr.mxu0 0.0
        %2464 = vmatpush1.msra.mxu0 0.0
        %2465 = vmatprep.subr.mxu0 0.0
        %2466 = vmatpush1.msra.mxu0 0.0
        %2467 = vmatprep.subr.mxu0 0.0
        %2468 = vmatpush1.msra.mxu0 0.0
        %2469 = vmatprep.subr.mxu0 0.0
        %2470 = vmatpush1.msra.mxu0 0.0
        %2471 = vmatprep.subr.mxu0 0.0
        %2472 = vmatpush1.msra.mxu0 0.0
        %2473 = vmatprep.subr.mxu0 0.0
        %2474 = vmatpush1.msra.mxu0 0.0
        %2475 = vmatprep.subr.mxu0 0.0
        %2476 = vmatpush1.msra.mxu0 0.0
        %2477 = vmatprep.subr.mxu0 0.0
        %2478 = vmatpush1.msra.mxu0 0.0
        %2479 = vmatprep.subr.mxu0 0.0
        %2480 = vmatpush1.msra.mxu0 0.0
        %2481 = vmatprep.subr.mxu0 0.0
        %2482 = vmatpush1.msra.mxu0 0.0
        %2483 = vmatprep.subr.mxu0 0.0
        %2484 = vmatpush1.msra.mxu0 0.0
        %2485 = vmatprep.mubr.f32.mxu0 0.0
        %2486 = vmatmul.mubr.f32.gmra.mrb[0].mxu0 %v1565
        %v2487 = vpop.f32.mrb[0].mxu0
        %v2488 = vadd.f32 %v2416, %v2487
        %v2489 = vpop.f32.mrb[0].mxu0
        %2490 = vdwg.mxu0
        %v2491 = vld [vmem:[%s27] sm:$0xff]
        %v2492 = vld [vmem:[%s27 + $0x8] sm:$0xff]
        %v2493 = vld [vmem:[%s27 + $0x10] sm:$0xff]
        %v2494 = vld [vmem:[%s27 + $0x18] sm:$0xff]
        %v2495 = vld [vmem:[%s21] sm:$0x1]
        %v2497 = vlaneseq
        %v2498 = vshrl.u32 %v2497, 7
        %v2499 = vsub.s32 0, %v2498
        %v2500 = vrot.slane %v2495, %v2499
        %v2503 = vsel %vm1481, %v2409, 0
        %2505 = vmatprep.subr.mxu0 0.0
        %2506 = vmatpush1.msra.mxu0 %v2491
        %2507 = vmatprep.subr.mxu0 0.0
        %2508 = vmatpush1.msra.mxu0 %v2492
        %2509 = vmatprep.subr.mxu0 0.0
        %2510 = vmatpush1.msra.mxu0 %v2493
        %2511 = vmatprep.subr.mxu0 0.0
        %2512 = vmatpush1.msra.mxu0 %v2494
        %2513 = vmatprep.subr.mxu0 0.0
        %2514 = vmatpush1.msra.mxu0 0.0
        %2515 = vmatprep.subr.mxu0 0.0
        %2516 = vmatpush1.msra.mxu0 0.0
        %2517 = vmatprep.subr.mxu0 0.0
        %2518 = vmatpush1.msra.mxu0 0.0
        %2519 = vmatprep.subr.mxu0 0.0
        %2520 = vmatpush1.msra.mxu0 0.0
        %2521 = vmatprep.subr.mxu0 0.0
        %2522 = vmatpush1.msra.mxu0 0.0
        %2523 = vmatprep.subr.mxu0 0.0
        %2524 = vmatpush1.msra.mxu0 0.0
        %2525 = vmatprep.subr.mxu0 0.0
        %2526 = vmatpush1.msra.mxu0 0.0
        %2527 = vmatprep.subr.mxu0 0.0
        %2528 = vmatpush1.msra.mxu0 0.0
        %2529 = vmatprep.subr.mxu0 0.0
        %2530 = vmatpush1.msra.mxu0 0.0
        %2531 = vmatprep.subr.mxu0 0.0
        %2532 = vmatpush1.msra.mxu0 0.0
        %2533 = vmatprep.subr.mxu0 0.0
        %2534 = vmatpush1.msra.mxu0 0.0
        %2535 = vmatprep.subr.mxu0 0.0
        %2536 = vmatpush1.msra.mxu0 0.0
        %2537 = vmatprep.subr.mxu0 0.0
        %2538 = vmatpush1.msra.mxu0 0.0
        %2539 = vmatprep.subr.mxu0 0.0
        %2540 = vmatpush1.msra.mxu0 0.0
        %2541 = vmatprep.subr.mxu0 0.0
        %2542 = vmatpush1.msra.mxu0 0.0
        %2543 = vmatprep.subr.mxu0 0.0
        %2544 = vmatpush1.msra.mxu0 0.0
        %2545 = vmatprep.subr.mxu0 0.0
        %2546 = vmatpush1.msra.mxu0 0.0
        %2547 = vmatprep.subr.mxu0 0.0
        %2548 = vmatpush1.msra.mxu0 0.0
        %2549 = vmatprep.subr.mxu0 0.0
        %2550 = vmatpush1.msra.mxu0 0.0
        %2551 = vmatprep.subr.mxu0 0.0
        %2552 = vmatpush1.msra.mxu0 0.0
        %2553 = vmatprep.subr.mxu0 0.0
        %2554 = vmatpush1.msra.mxu0 0.0
        %2555 = vmatprep.subr.mxu0 0.0
        %2556 = vmatpush1.msra.mxu0 0.0
        %2557 = vmatprep.subr.mxu0 0.0
        %2558 = vmatpush1.msra.mxu0 0.0
        %2559 = vmatprep.subr.mxu0 0.0
        %2560 = vmatpush1.msra.mxu0 0.0
        %2561 = vmatprep.subr.mxu0 0.0
        %2562 = vmatpush1.msra.mxu0 0.0
        %2563 = vmatprep.subr.mxu0 0.0
        %2564 = vmatpush1.msra.mxu0 0.0
        %2565 = vmatprep.subr.mxu0 0.0
        %2566 = vmatpush1.msra.mxu0 0.0
        %2567 = vmatprep.subr.mxu0 0.0
        %2568 = vmatpush1.msra.mxu0 0.0
        %2569 = vmatprep.mubr.f32.mxu0 0.0
        %2570 = vmatmul.mubr.f32.gmra.mrb[0].mxu0 %v2503
        %v2571 = vpop.f32.mrb[0].mxu0
        %v2572 = vadd.f32 %v2500, %v2571
        %v2573 = vpop.f32.mrb[0].mxu0
        %2574 = vdwg.mxu0
        %2576 = vrot.lane.b32.xlu0 %v2488, 120
        %v2577 = vpop.permute.xlu0 %2576
        %2579 = vrot.lane.b32.xlu0 %v2488, 112
        %v2580 = vpop.permute.xlu0 %2579
        %2582 = vrot.lane.b32.xlu0 %v2488, 104
        %v2583 = vpop.permute.xlu0 %2582
        %2586 = vrot.lane.b32.xlu0 %v2572, 120
        %v2587 = vpop.permute.xlu0 %2586
        %2588 = vrot.lane.b32.xlu0 %v2572, 112
        %v2589 = vpop.permute.xlu0 %2588
        %2590 = vrot.lane.b32.xlu0 %v2572, 104
        %v2591 = vpop.permute.xlu0 %2590
        %v2592 = vsel %vm1658, %v2488, 0
        %v2594 = vsel %vm1658, %v2572, 0
        %2596 = vmatprep.subr.mxu0 0.0
        %2597 = vmatpush1.xpose.msra.mxu0 %v2594
        %2598 = vmatprep.subr.mxu0 0.0
        %2599 = vmatpush1.xpose.msra.mxu0 0.0
        %2600 = vmatprep.subr.mxu0 0.0
        %2601 = vmatpush1.xpose.msra.mxu0 0.0
        %2602 = vmatprep.subr.mxu0 0.0
        %2603 = vmatpush1.xpose.msra.mxu0 0.0
        %2604 = vmatprep.subr.mxu0 0.0
        %2605 = vmatpush1.xpose.msra.mxu0 0.0
        %2606 = vmatprep.subr.mxu0 0.0
        %2607 = vmatpush1.xpose.msra.mxu0 0.0
        %2608 = vmatprep.subr.mxu0 0.0
        %2609 = vmatpush1.xpose.msra.mxu0 0.0
        %2610 = vmatprep.subr.mxu0 0.0
        %2611 = vmatpush1.xpose.msra.mxu0 0.0
        %2612 = vmatprep.subr.mxu0 0.0
        %2613 = vmatpush1.xpose.msra.mxu0 0.0
        %2614 = vmatprep.subr.mxu0 0.0
        %2615 = vmatpush1.xpose.msra.mxu0 0.0
        %2616 = vmatprep.subr.mxu0 0.0
        %2617 = vmatpush1.xpose.msra.mxu0 0.0
        %2618 = vmatprep.subr.mxu0 0.0
        %2619 = vmatpush1.xpose.msra.mxu0 0.0
        %2620 = vmatprep.subr.mxu0 0.0
        %2621 = vmatpush1.xpose.msra.mxu0 0.0
        %2622 = vmatprep.subr.mxu0 0.0
        %2623 = vmatpush1.xpose.msra.mxu0 0.0
        %2624 = vmatprep.subr.mxu0 0.0
        %2625 = vmatpush1.xpose.msra.mxu0 0.0
        %2626 = vmatprep.subr.mxu0 0.0
        %2627 = vmatpush1.xpose.msra.mxu0 0.0
        %2628 = vmatprep.subr.mxu0 0.0
        %2629 = vmatpush1.xpose.msra.mxu0 0.0
        %2630 = vmatprep.subr.mxu0 0.0
        %2631 = vmatpush1.xpose.msra.mxu0 0.0
        %2632 = vmatprep.subr.mxu0 0.0
        %2633 = vmatpush1.xpose.msra.mxu0 0.0
        %2634 = vmatprep.subr.mxu0 0.0
        %2635 = vmatpush1.xpose.msra.mxu0 0.0
        %2636 = vmatprep.subr.mxu0 0.0
        %2637 = vmatpush1.xpose.msra.mxu0 0.0
        %2638 = vmatprep.subr.mxu0 0.0
        %2639 = vmatpush1.xpose.msra.mxu0 0.0
        %2640 = vmatprep.subr.mxu0 0.0
        %2641 = vmatpush1.xpose.msra.mxu0 0.0
        %2642 = vmatprep.subr.mxu0 0.0
        %2643 = vmatpush1.xpose.msra.mxu0 0.0
        %2644 = vmatprep.subr.mxu0 0.0
        %2645 = vmatpush1.xpose.msra.mxu0 0.0
        %2646 = vmatprep.subr.mxu0 0.0
        %2647 = vmatpush1.xpose.msra.mxu0 0.0
        %2648 = vmatprep.subr.mxu0 0.0
        %2649 = vmatpush1.xpose.msra.mxu0 0.0
        %2650 = vmatprep.subr.mxu0 0.0
        %2651 = vmatpush1.xpose.msra.mxu0 0.0
        %2652 = vmatprep.subr.mxu0 0.0
        %2653 = vmatpush1.xpose.msra.mxu0 0.0
        %2654 = vmatprep.subr.mxu0 0.0
        %2655 = vmatpush1.xpose.msra.mxu0 0.0
        %2656 = vmatprep.subr.mxu0 0.0
        %2657 = vmatpush1.xpose.msra.mxu0 0.0
        %2658 = vmatprep.subr.mxu0 0.0
        %2659 = vmatpush1.xpose.msra.mxu0 0.0
        %2660 = vmatprep.mubr.f32.mxu0 0.0
        %2661 = vmatmul.mubr.f32.gmra.mrb[0].mxu0 %v2592
        %v2662 = vpop.f32.mrb[0].mxu0
        %v2663 = vadd.f32 0.0, %v2662
        %v2664 = vpop.f32.mrb[0].mxu0
        %2665 = vdwg.mxu0
        %v2666 = vsel %vm1658, %v2577, 0
        %v2668 = vsel %vm1658, %v2587, 0
        %2670 = vmatprep.subr.mxu0 0.0
        %2671 = vmatpush1.xpose.msra.mxu0 %v2668
        %2672 = vmatprep.subr.mxu0 0.0
        %2673 = vmatpush1.xpose.msra.mxu0 0.0
        %2674 = vmatprep.subr.mxu0 0.0
        %2675 = vmatpush1.xpose.msra.mxu0 0.0
        %2676 = vmatprep.subr.mxu0 0.0
        %2677 = vmatpush1.xpose.msra.mxu0 0.0
        %2678 = vmatprep.subr.mxu0 0.0
        %2679 = vmatpush1.xpose.msra.mxu0 0.0
        %2680 = vmatprep.subr.mxu0 0.0
        %2681 = vmatpush1.xpose.msra.mxu0 0.0
        %2682 = vmatprep.subr.mxu0 0.0
        %2683 = vmatpush1.xpose.msra.mxu0 0.0
        %2684 = vmatprep.subr.mxu0 0.0
        %2685 = vmatpush1.xpose.msra.mxu0 0.0
        %2686 = vmatprep.subr.mxu0 0.0
        %2687 = vmatpush1.xpose.msra.mxu0 0.0
        %2688 = vmatprep.subr.mxu0 0.0
        %2689 = vmatpush1.xpose.msra.mxu0 0.0
        %2690 = vmatprep.subr.mxu0 0.0
        %2691 = vmatpush1.xpose.msra.mxu0 0.0
        %2692 = vmatprep.subr.mxu0 0.0
        %2693 = vmatpush1.xpose.msra.mxu0 0.0
        %2694 = vmatprep.subr.mxu0 0.0
        %2695 = vmatpush1.xpose.msra.mxu0 0.0
        %2696 = vmatprep.subr.mxu0 0.0
        %2697 = vmatpush1.xpose.msra.mxu0 0.0
        %2698 = vmatprep.subr.mxu0 0.0
        %2699 = vmatpush1.xpose.msra.mxu0 0.0
        %2700 = vmatprep.subr.mxu0 0.0
        %2701 = vmatpush1.xpose.msra.mxu0 0.0
        %2702 = vmatprep.subr.mxu0 0.0
        %2703 = vmatpush1.xpose.msra.mxu0 0.0
        %2704 = vmatprep.subr.mxu0 0.0
        %2705 = vmatpush1.xpose.msra.mxu0 0.0
        %2706 = vmatprep.subr.mxu0 0.0
        %2707 = vmatpush1.xpose.msra.mxu0 0.0
        %2708 = vmatprep.subr.mxu0 0.0
        %2709 = vmatpush1.xpose.msra.mxu0 0.0
        %2710 = vmatprep.subr.mxu0 0.0
        %2711 = vmatpush1.xpose.msra.mxu0 0.0
        %2712 = vmatprep.subr.mxu0 0.0
        %2713 = vmatpush1.xpose.msra.mxu0 0.0
        %2714 = vmatprep.subr.mxu0 0.0
        %2715 = vmatpush1.xpose.msra.mxu0 0.0
        %2716 = vmatprep.subr.mxu0 0.0
        %2717 = vmatpush1.xpose.msra.mxu0 0.0
        %2718 = vmatprep.subr.mxu0 0.0
        %2719 = vmatpush1.xpose.msra.mxu0 0.0
        %2720 = vmatprep.subr.mxu0 0.0
        %2721 = vmatpush1.xpose.msra.mxu0 0.0
        %2722 = vmatprep.subr.mxu0 0.0
        %2723 = vmatpush1.xpose.msra.mxu0 0.0
        %2724 = vmatprep.subr.mxu0 0.0
        %2725 = vmatpush1.xpose.msra.mxu0 0.0
        %2726 = vmatprep.subr.mxu0 0.0
        %2727 = vmatpush1.xpose.msra.mxu0 0.0
        %2728 = vmatprep.subr.mxu0 0.0
        %2729 = vmatpush1.xpose.msra.mxu0 0.0
        %2730 = vmatprep.subr.mxu0 0.0
        %2731 = vmatpush1.xpose.msra.mxu0 0.0
        %2732 = vmatprep.subr.mxu0 0.0
        %2733 = vmatpush1.xpose.msra.mxu0 0.0
        %2734 = vmatprep.mubr.f32.mxu0 0.0
        %2735 = vmatmul.mubr.f32.gmra.mrb[0].mxu0 %v2666
        %v2736 = vpop.f32.mrb[0].mxu0
        %v2737 = vadd.f32 0.0, %v2736
        %v2738 = vpop.f32.mrb[0].mxu0
        %2739 = vdwg.mxu0
        %v2740 = vsel %vm1658, %v2580, 0
        %v2742 = vsel %vm1658, %v2589, 0
        %2744 = vmatprep.subr.mxu0 0.0
        %2745 = vmatpush1.xpose.msra.mxu0 %v2742
        %2746 = vmatprep.subr.mxu0 0.0
        %2747 = vmatpush1.xpose.msra.mxu0 0.0
        %2748 = vmatprep.subr.mxu0 0.0
        %2749 = vmatpush1.xpose.msra.mxu0 0.0
        %2750 = vmatprep.subr.mxu0 0.0
        %2751 = vmatpush1.xpose.msra.mxu0 0.0
        %2752 = vmatprep.subr.mxu0 0.0
        %2753 = vmatpush1.xpose.msra.mxu0 0.0
        %2754 = vmatprep.subr.mxu0 0.0
        %2755 = vmatpush1.xpose.msra.mxu0 0.0
        %2756 = vmatprep.subr.mxu0 0.0
        %2757 = vmatpush1.xpose.msra.mxu0 0.0
        %2758 = vmatprep.subr.mxu0 0.0
        %2759 = vmatpush1.xpose.msra.mxu0 0.0
        %2760 = vmatprep.subr.mxu0 0.0
        %2761 = vmatpush1.xpose.msra.mxu0 0.0
        %2762 = vmatprep.subr.mxu0 0.0
        %2763 = vmatpush1.xpose.msra.mxu0 0.0
        %2764 = vmatprep.subr.mxu0 0.0
        %2765 = vmatpush1.xpose.msra.mxu0 0.0
        %2766 = vmatprep.subr.mxu0 0.0
        %2767 = vmatpush1.xpose.msra.mxu0 0.0
        %2768 = vmatprep.subr.mxu0 0.0
        %2769 = vmatpush1.xpose.msra.mxu0 0.0
        %2770 = vmatprep.subr.mxu0 0.0
        %2771 = vmatpush1.xpose.msra.mxu0 0.0
        %2772 = vmatprep.subr.mxu0 0.0
        %2773 = vmatpush1.xpose.msra.mxu0 0.0
        %2774 = vmatprep.subr.mxu0 0.0
        %2775 = vmatpush1.xpose.msra.mxu0 0.0
        %2776 = vmatprep.subr.mxu0 0.0
        %2777 = vmatpush1.xpose.msra.mxu0 0.0
        %2778 = vmatprep.subr.mxu0 0.0
        %2779 = vmatpush1.xpose.msra.mxu0 0.0
        %2780 = vmatprep.subr.mxu0 0.0
        %2781 = vmatpush1.xpose.msra.mxu0 0.0
        %2782 = vmatprep.subr.mxu0 0.0
        %2783 = vmatpush1.xpose.msra.mxu0 0.0
        %2784 = vmatprep.subr.mxu0 0.0
        %2785 = vmatpush1.xpose.msra.mxu0 0.0
        %2786 = vmatprep.subr.mxu0 0.0
        %2787 = vmatpush1.xpose.msra.mxu0 0.0
        %2788 = vmatprep.subr.mxu0 0.0
        %2789 = vmatpush1.xpose.msra.mxu0 0.0
        %2790 = vmatprep.subr.mxu0 0.0
        %2791 = vmatpush1.xpose.msra.mxu0 0.0
        %2792 = vmatprep.subr.mxu0 0.0
        %2793 = vmatpush1.xpose.msra.mxu0 0.0
        %2794 = vmatprep.subr.mxu0 0.0
        %2795 = vmatpush1.xpose.msra.mxu0 0.0
        %2796 = vmatprep.subr.mxu0 0.0
        %2797 = vmatpush1.xpose.msra.mxu0 0.0
        %2798 = vmatprep.subr.mxu0 0.0
        %2799 = vmatpush1.xpose.msra.mxu0 0.0
        %2800 = vmatprep.subr.mxu0 0.0
        %2801 = vmatpush1.xpose.msra.mxu0 0.0
        %2802 = vmatprep.subr.mxu0 0.0
        %2803 = vmatpush1.xpose.msra.mxu0 0.0
        %2804 = vmatprep.subr.mxu0 0.0
        %2805 = vmatpush1.xpose.msra.mxu0 0.0
        %2806 = vmatprep.subr.mxu0 0.0
        %2807 = vmatpush1.xpose.msra.mxu0 0.0
        %2808 = vmatprep.mubr.f32.mxu0 0.0
        %2809 = vmatmul.mubr.f32.gmra.mrb[0].mxu0 %v2740
        %v2810 = vpop.f32.mrb[0].mxu0
        %v2811 = vadd.f32 0.0, %v2810
        %v2812 = vpop.f32.mrb[0].mxu0
        %2813 = vdwg.mxu0
        %v2814 = vsel %vm1658, %v2583, 0
        %v2816 = vsel %vm1658, %v2591, 0
        %2818 = vmatprep.subr.mxu0 0.0
        %2819 = vmatpush1.xpose.msra.mxu0 %v2816
        %2820 = vmatprep.subr.mxu0 0.0
        %2821 = vmatpush1.xpose.msra.mxu0 0.0
        %2822 = vmatprep.subr.mxu0 0.0
        %2823 = vmatpush1.xpose.msra.mxu0 0.0
        %2824 = vmatprep.subr.mxu0 0.0
        %2825 = vmatpush1.xpose.msra.mxu0 0.0
        %2826 = vmatprep.subr.mxu0 0.0
        %2827 = vmatpush1.xpose.msra.mxu0 0.0
        %2828 = vmatprep.subr.mxu0 0.0
        %2829 = vmatpush1.xpose.msra.mxu0 0.0
        %2830 = vmatprep.subr.mxu0 0.0
        %2831 = vmatpush1.xpose.msra.mxu0 0.0
        %2832 = vmatprep.subr.mxu0 0.0
        %2833 = vmatpush1.xpose.msra.mxu0 0.0
        %2834 = vmatprep.subr.mxu0 0.0
        %2835 = vmatpush1.xpose.msra.mxu0 0.0
        %2836 = vmatprep.subr.mxu0 0.0
        %2837 = vmatpush1.xpose.msra.mxu0 0.0
        %2838 = vmatprep.subr.mxu0 0.0
        %2839 = vmatpush1.xpose.msra.mxu0 0.0
        %2840 = vmatprep.subr.mxu0 0.0
        %2841 = vmatpush1.xpose.msra.mxu0 0.0
        %2842 = vmatprep.subr.mxu0 0.0
        %2843 = vmatpush1.xpose.msra.mxu0 0.0
        %2844 = vmatprep.subr.mxu0 0.0
        %2845 = vmatpush1.xpose.msra.mxu0 0.0
        %2846 = vmatprep.subr.mxu0 0.0
        %2847 = vmatpush1.xpose.msra.mxu0 0.0
        %2848 = vmatprep.subr.mxu0 0.0
        %2849 = vmatpush1.xpose.msra.mxu0 0.0
        %2850 = vmatprep.subr.mxu0 0.0
        %2851 = vmatpush1.xpose.msra.mxu0 0.0
        %2852 = vmatprep.subr.mxu0 0.0
        %2853 = vmatpush1.xpose.msra.mxu0 0.0
        %2854 = vmatprep.subr.mxu0 0.0
        %2855 = vmatpush1.xpose.msra.mxu0 0.0
        %2856 = vmatprep.subr.mxu0 0.0
        %2857 = vmatpush1.xpose.msra.mxu0 0.0
        %2858 = vmatprep.subr.mxu0 0.0
        %2859 = vmatpush1.xpose.msra.mxu0 0.0
        %2860 = vmatprep.subr.mxu0 0.0
        %2861 = vmatpush1.xpose.msra.mxu0 0.0
        %2862 = vmatprep.subr.mxu0 0.0
        %2863 = vmatpush1.xpose.msra.mxu0 0.0
        %2864 = vmatprep.subr.mxu0 0.0
        %2865 = vmatpush1.xpose.msra.mxu0 0.0
        %2866 = vmatprep.subr.mxu0 0.0
        %2867 = vmatpush1.xpose.msra.mxu0 0.0
        %2868 = vmatprep.subr.mxu0 0.0
        %2869 = vmatpush1.xpose.msra.mxu0 0.0
        %2870 = vmatprep.subr.mxu0 0.0
        %2871 = vmatpush1.xpose.msra.mxu0 0.0
        %2872 = vmatprep.subr.mxu0 0.0
        %2873 = vmatpush1.xpose.msra.mxu0 0.0
        %2874 = vmatprep.subr.mxu0 0.0
        %2875 = vmatpush1.xpose.msra.mxu0 0.0
        %2876 = vmatprep.subr.mxu0 0.0
        %2877 = vmatpush1.xpose.msra.mxu0 0.0
        %2878 = vmatprep.subr.mxu0 0.0
        %2879 = vmatpush1.xpose.msra.mxu0 0.0
        %2880 = vmatprep.subr.mxu0 0.0
        %2881 = vmatpush1.xpose.msra.mxu0 0.0
        %2882 = vmatprep.mubr.f32.mxu0 0.0
        %2883 = vmatmul.mubr.f32.gmra.mrb[0].mxu0 %v2814
        %v2884 = vpop.f32.mrb[0].mxu0
        %v2885 = vadd.f32 0.0, %v2884
        %v2886 = vpop.f32.mrb[0].mxu0
        %2887 = vdwg.mxu0
        %v2888 = vsel %vm1658, %v2663, -inf
        %2889 = vmax.xlane.f32.xlu0 %v2888
        %v2890 = vpop.xlane.xlu0 %2889
        %v2891 = vsel %vm1658, %v2737, -inf
        %2892 = vmax.xlane.f32.xlu0 %v2891
        %v2893 = vpop.xlane.xlu0 %2892
        %v2894 = vsel %vm1658, %v2811, -inf
        %2895 = vmax.xlane.f32.xlu0 %v2894
        %v2896 = vpop.xlane.xlu0 %2895
        %v2897 = vsel %vm1658, %v2885, -inf
        %2898 = vmax.xlane.f32.xlu0 %v2897
        %v2899 = vpop.xlane.xlu0 %2898
        %v2900 = vsub.f32 %v2663, %v2890
        %v2901 = vsub.f32 %v2737, %v2893
        %v2902 = vsub.f32 %v2811, %v2896
        %v2903 = vsub.f32 %v2885, %v2899
        %v2904 = vmul.f32 %v2900, 1.442695
        %v2905 = vpow.pop %v2904
        %v2906 = vmul.f32 %v2901, 1.442695
        %v2907 = vpow.pop %v2906
        %v2908 = vmul.f32 %v2902, 1.442695
        %v2909 = vpow.pop %v2908
        %v2910 = vmul.f32 %v2903, 1.442695
        %v2911 = vpow.pop %v2910
        %v2912 = vsel %vm1658, %v2905, 0.0
        %2913 = vadd.xlane.f32.xlu0 %v2912
        %v2914 = vpop.xlane.xlu0 %2913
        %v2915 = vsel %vm1658, %v2907, 0.0
        %2916 = vadd.xlane.f32.xlu0 %v2915
        %v2917 = vpop.xlane.xlu0 %2916
        %v2918 = vsel %vm1658, %v2909, 0.0
        %2919 = vadd.xlane.f32.xlu0 %v2918
        %v2920 = vpop.xlane.xlu0 %2919
        %v2921 = vsel %vm1658, %v2911, 0.0
        %2922 = vadd.xlane.f32.xlu0 %v2921
        %v2923 = vpop.xlane.xlu0 %2922
        %v2924 = vrcp.pop %v2914
        %v2925 = vrcp.pop %v2917
        %v2926 = vrcp.pop %v2920
        %v2927 = vrcp.pop %v2923
        %v2928 = vmul.f32 %v2905, %v2924
        %v2929 = vmul.f32 %v2907, %v2925
        %v2930 = vmul.f32 %v2909, %v2926
        %v2931 = vmul.f32 %v2911, %v2927
        %2932 = vrot.lane.b32.xlu0 %v2572, 96
        %v2933 = vpop.permute.xlu0 %2932
        %v2936 = vsel %vm1658, %v2928, 0
        %2938 = vmatprep.subr.mxu0 0.0
        %2939 = vmatpush1.msra.mxu0 %v2933
        %2940 = vmatprep.subr.mxu0 0.0
        %2941 = vmatpush1.msra.mxu0 0.0
        %2942 = vmatprep.subr.mxu0 0.0
        %2943 = vmatpush1.msra.mxu0 0.0
        %2944 = vmatprep.subr.mxu0 0.0
        %2945 = vmatpush1.msra.mxu0 0.0
        %2946 = vmatprep.subr.mxu0 0.0
        %2947 = vmatpush1.msra.mxu0 0.0
        %2948 = vmatprep.subr.mxu0 0.0
        %2949 = vmatpush1.msra.mxu0 0.0
        %2950 = vmatprep.subr.mxu0 0.0
        %2951 = vmatpush1.msra.mxu0 0.0
        %2952 = vmatprep.subr.mxu0 0.0
        %2953 = vmatpush1.msra.mxu0 0.0
        %2954 = vmatprep.subr.mxu0 0.0
        %2955 = vmatpush1.msra.mxu0 0.0
        %2956 = vmatprep.subr.mxu0 0.0
        %2957 = vmatpush1.msra.mxu0 0.0
        %2958 = vmatprep.subr.mxu0 0.0
        %2959 = vmatpush1.msra.mxu0 0.0
        %2960 = vmatprep.subr.mxu0 0.0
        %2961 = vmatpush1.msra.mxu0 0.0
        %2962 = vmatprep.subr.mxu0 0.0
        %2963 = vmatpush1.msra.mxu0 0.0
        %2964 = vmatprep.subr.mxu0 0.0
        %2965 = vmatpush1.msra.mxu0 0.0
        %2966 = vmatprep.subr.mxu0 0.0
        %2967 = vmatpush1.msra.mxu0 0.0
        %2968 = vmatprep.subr.mxu0 0.0
        %2969 = vmatpush1.msra.mxu0 0.0
        %2970 = vmatprep.subr.mxu0 0.0
        %2971 = vmatpush1.msra.mxu0 0.0
        %2972 = vmatprep.subr.mxu0 0.0
        %2973 = vmatpush1.msra.mxu0 0.0
        %2974 = vmatprep.subr.mxu0 0.0
        %2975 = vmatpush1.msra.mxu0 0.0
        %2976 = vmatprep.subr.mxu0 0.0
        %2977 = vmatpush1.msra.mxu0 0.0
        %2978 = vmatprep.subr.mxu0 0.0
        %2979 = vmatpush1.msra.mxu0 0.0
        %2980 = vmatprep.subr.mxu0 0.0
        %2981 = vmatpush1.msra.mxu0 0.0
        %2982 = vmatprep.subr.mxu0 0.0
        %2983 = vmatpush1.msra.mxu0 0.0
        %2984 = vmatprep.subr.mxu0 0.0
        %2985 = vmatpush1.msra.mxu0 0.0
        %2986 = vmatprep.subr.mxu0 0.0
        %2987 = vmatpush1.msra.mxu0 0.0
        %2988 = vmatprep.subr.mxu0 0.0
        %2989 = vmatpush1.msra.mxu0 0.0
        %2990 = vmatprep.subr.mxu0 0.0
        %2991 = vmatpush1.msra.mxu0 0.0
        %2992 = vmatprep.subr.mxu0 0.0
        %2993 = vmatpush1.msra.mxu0 0.0
        %2994 = vmatprep.subr.mxu0 0.0
        %2995 = vmatpush1.msra.mxu0 0.0
        %2996 = vmatprep.subr.mxu0 0.0
        %2997 = vmatpush1.msra.mxu0 0.0
        %2998 = vmatprep.subr.mxu0 0.0
        %2999 = vmatpush1.msra.mxu0 0.0
        %3000 = vmatprep.subr.mxu0 0.0
        %3001 = vmatpush1.msra.mxu0 0.0
        %3002 = vmatprep.mubr.f32.mxu0 0.0
        %3003 = vmatmul.mubr.f32.gmra.mrb[0].mxu0 %v2936
        %v3004 = vpop.f32.mrb[0].mxu0
        %v3005 = vadd.f32 0.0, %v3004
        %v3006 = vpop.f32.mrb[0].mxu0
        %3007 = vdwg.mxu0
        %3008 = vrot.lane.b32.xlu0 %v2587, 96
        %v3009 = vpop.permute.xlu0 %3008
        %v3012 = vsel %vm1658, %v2929, 0
        %3014 = vmatprep.subr.mxu0 0.0
        %3015 = vmatpush1.msra.mxu0 %v3009
        %3016 = vmatprep.subr.mxu0 0.0
        %3017 = vmatpush1.msra.mxu0 0.0
        %3018 = vmatprep.subr.mxu0 0.0
        %3019 = vmatpush1.msra.mxu0 0.0
        %3020 = vmatprep.subr.mxu0 0.0
        %3021 = vmatpush1.msra.mxu0 0.0
        %3022 = vmatprep.subr.mxu0 0.0
        %3023 = vmatpush1.msra.mxu0 0.0
        %3024 = vmatprep.subr.mxu0 0.0
        %3025 = vmatpush1.msra.mxu0 0.0
        %3026 = vmatprep.subr.mxu0 0.0
        %3027 = vmatpush1.msra.mxu0 0.0
        %3028 = vmatprep.subr.mxu0 0.0
        %3029 = vmatpush1.msra.mxu0 0.0
        %3030 = vmatprep.subr.mxu0 0.0
        %3031 = vmatpush1.msra.mxu0 0.0
        %3032 = vmatprep.subr.mxu0 0.0
        %3033 = vmatpush1.msra.mxu0 0.0
        %3034 = vmatprep.subr.mxu0 0.0
        %3035 = vmatpush1.msra.mxu0 0.0
        %3036 = vmatprep.subr.mxu0 0.0
        %3037 = vmatpush1.msra.mxu0 0.0
        %3038 = vmatprep.subr.mxu0 0.0
        %3039 = vmatpush1.msra.mxu0 0.0
        %3040 = vmatprep.subr.mxu0 0.0
        %3041 = vmatpush1.msra.mxu0 0.0
        %3042 = vmatprep.subr.mxu0 0.0
        %3043 = vmatpush1.msra.mxu0 0.0
        %3044 = vmatprep.subr.mxu0 0.0
        %3045 = vmatpush1.msra.mxu0 0.0
        %3046 = vmatprep.subr.mxu0 0.0
        %3047 = vmatpush1.msra.mxu0 0.0
        %3048 = vmatprep.subr.mxu0 0.0
        %3049 = vmatpush1.msra.mxu0 0.0
        %3050 = vmatprep.subr.mxu0 0.0
        %3051 = vmatpush1.msra.mxu0 0.0
        %3052 = vmatprep.subr.mxu0 0.0
        %3053 = vmatpush1.msra.mxu0 0.0
        %3054 = vmatprep.subr.mxu0 0.0
        %3055 = vmatpush1.msra.mxu0 0.0
        %3056 = vmatprep.subr.mxu0 0.0
        %3057 = vmatpush1.msra.mxu0 0.0
        %3058 = vmatprep.subr.mxu0 0.0
        %3059 = vmatpush1.msra.mxu0 0.0
        %3060 = vmatprep.subr.mxu0 0.0
        %3061 = vmatpush1.msra.mxu0 0.0
        %3062 = vmatprep.subr.mxu0 0.0
        %3063 = vmatpush1.msra.mxu0 0.0
        %3064 = vmatprep.subr.mxu0 0.0
        %3065 = vmatpush1.msra.mxu0 0.0
        %3066 = vmatprep.subr.mxu0 0.0
        %3067 = vmatpush1.msra.mxu0 0.0
        %3068 = vmatprep.subr.mxu0 0.0
        %3069 = vmatpush1.msra.mxu0 0.0
        %3070 = vmatprep.subr.mxu0 0.0
        %3071 = vmatpush1.msra.mxu0 0.0
        %3072 = vmatprep.subr.mxu0 0.0
        %3073 = vmatpush1.msra.mxu0 0.0
        %3074 = vmatprep.subr.mxu0 0.0
        %3075 = vmatpush1.msra.mxu0 0.0
        %3076 = vmatprep.subr.mxu0 0.0
        %3077 = vmatpush1.msra.mxu0 0.0
        %3078 = vmatprep.mubr.f32.mxu0 0.0
        %3079 = vmatmul.mubr.f32.gmra.mrb[0].mxu0 %v3012
        %v3080 = vpop.f32.mrb[0].mxu0
        %v3081 = vadd.f32 0.0, %v3080
        %v3082 = vpop.f32.mrb[0].mxu0
        %3083 = vdwg.mxu0
        %3084 = vrot.lane.b32.xlu0 %v2589, 96
        %v3085 = vpop.permute.xlu0 %3084
        %v3088 = vsel %vm1658, %v2930, 0
        %3090 = vmatprep.subr.mxu0 0.0
        %3091 = vmatpush1.msra.mxu0 %v3085
        %3092 = vmatprep.subr.mxu0 0.0
        %3093 = vmatpush1.msra.mxu0 0.0
        %3094 = vmatprep.subr.mxu0 0.0
        %3095 = vmatpush1.msra.mxu0 0.0
        %3096 = vmatprep.subr.mxu0 0.0
        %3097 = vmatpush1.msra.mxu0 0.0
        %3098 = vmatprep.subr.mxu0 0.0
        %3099 = vmatpush1.msra.mxu0 0.0
        %3100 = vmatprep.subr.mxu0 0.0
        %3101 = vmatpush1.msra.mxu0 0.0
        %3102 = vmatprep.subr.mxu0 0.0
        %3103 = vmatpush1.msra.mxu0 0.0
        %3104 = vmatprep.subr.mxu0 0.0
        %3105 = vmatpush1.msra.mxu0 0.0
        %3106 = vmatprep.subr.mxu0 0.0
        %3107 = vmatpush1.msra.mxu0 0.0
        %3108 = vmatprep.subr.mxu0 0.0
        %3109 = vmatpush1.msra.mxu0 0.0
        %3110 = vmatprep.subr.mxu0 0.0
        %3111 = vmatpush1.msra.mxu0 0.0
        %3112 = vmatprep.subr.mxu0 0.0
        %3113 = vmatpush1.msra.mxu0 0.0
        %3114 = vmatprep.subr.mxu0 0.0
        %3115 = vmatpush1.msra.mxu0 0.0
        %3116 = vmatprep.subr.mxu0 0.0
        %3117 = vmatpush1.msra.mxu0 0.0
        %3118 = vmatprep.subr.mxu0 0.0
        %3119 = vmatpush1.msra.mxu0 0.0
        %3120 = vmatprep.subr.mxu0 0.0
        %3121 = vmatpush1.msra.mxu0 0.0
        %3122 = vmatprep.subr.mxu0 0.0
        %3123 = vmatpush1.msra.mxu0 0.0
        %3124 = vmatprep.subr.mxu0 0.0
        %3125 = vmatpush1.msra.mxu0 0.0
        %3126 = vmatprep.subr.mxu0 0.0
        %3127 = vmatpush1.msra.mxu0 0.0
        %3128 = vmatprep.subr.mxu0 0.0
        %3129 = vmatpush1.msra.mxu0 0.0
        %3130 = vmatprep.subr.mxu0 0.0
        %3131 = vmatpush1.msra.mxu0 0.0
        %3132 = vmatprep.subr.mxu0 0.0
        %3133 = vmatpush1.msra.mxu0 0.0
        %3134 = vmatprep.subr.mxu0 0.0
        %3135 = vmatpush1.msra.mxu0 0.0
        %3136 = vmatprep.subr.mxu0 0.0
        %3137 = vmatpush1.msra.mxu0 0.0
        %3138 = vmatprep.subr.mxu0 0.0
        %3139 = vmatpush1.msra.mxu0 0.0
        %3140 = vmatprep.subr.mxu0 0.0
        %3141 = vmatpush1.msra.mxu0 0.0
        %3142 = vmatprep.subr.mxu0 0.0
        %3143 = vmatpush1.msra.mxu0 0.0
        %3144 = vmatprep.subr.mxu0 0.0
        %3145 = vmatpush1.msra.mxu0 0.0
        %3146 = vmatprep.subr.mxu0 0.0
        %3147 = vmatpush1.msra.mxu0 0.0
        %3148 = vmatprep.subr.mxu0 0.0
        %3149 = vmatpush1.msra.mxu0 0.0
        %3150 = vmatprep.subr.mxu0 0.0
        %3151 = vmatpush1.msra.mxu0 0.0
        %3152 = vmatprep.subr.mxu0 0.0
        %3153 = vmatpush1.msra.mxu0 0.0
        %3154 = vmatprep.mubr.f32.mxu0 0.0
        %3155 = vmatmul.mubr.f32.gmra.mrb[0].mxu0 %v3088
        %v3156 = vpop.f32.mrb[0].mxu0
        %v3157 = vadd.f32 0.0, %v3156
        %v3158 = vpop.f32.mrb[0].mxu0
        %3159 = vdwg.mxu0
        %3160 = vrot.lane.b32.xlu0 %v2591, 96
        %v3161 = vpop.permute.xlu0 %3160
        %v3164 = vsel %vm1658, %v2931, 0
        %3166 = vmatprep.subr.mxu0 0.0
        %3167 = vmatpush1.msra.mxu0 %v3161
        %3168 = vmatprep.subr.mxu0 0.0
        %3169 = vmatpush1.msra.mxu0 0.0
        %3170 = vmatprep.subr.mxu0 0.0
        %3171 = vmatpush1.msra.mxu0 0.0
        %3172 = vmatprep.subr.mxu0 0.0
        %3173 = vmatpush1.msra.mxu0 0.0
        %3174 = vmatprep.subr.mxu0 0.0
        %3175 = vmatpush1.msra.mxu0 0.0
        %3176 = vmatprep.subr.mxu0 0.0
        %3177 = vmatpush1.msra.mxu0 0.0
        %3178 = vmatprep.subr.mxu0 0.0
        %3179 = vmatpush1.msra.mxu0 0.0
        %3180 = vmatprep.subr.mxu0 0.0
        %3181 = vmatpush1.msra.mxu0 0.0
        %3182 = vmatprep.subr.mxu0 0.0
        %3183 = vmatpush1.msra.mxu0 0.0
        %3184 = vmatprep.subr.mxu0 0.0
        %3185 = vmatpush1.msra.mxu0 0.0
        %3186 = vmatprep.subr.mxu0 0.0
        %3187 = vmatpush1.msra.mxu0 0.0
        %3188 = vmatprep.subr.mxu0 0.0
        %3189 = vmatpush1.msra.mxu0 0.0
        %3190 = vmatprep.subr.mxu0 0.0
        %3191 = vmatpush1.msra.mxu0 0.0
        %3192 = vmatprep.subr.mxu0 0.0
        %3193 = vmatpush1.msra.mxu0 0.0
        %3194 = vmatprep.subr.mxu0 0.0
        %3195 = vmatpush1.msra.mxu0 0.0
        %3196 = vmatprep.subr.mxu0 0.0
        %3197 = vmatpush1.msra.mxu0 0.0
        %3198 = vmatprep.subr.mxu0 0.0
        %3199 = vmatpush1.msra.mxu0 0.0
        %3200 = vmatprep.subr.mxu0 0.0
        %3201 = vmatpush1.msra.mxu0 0.0
        %3202 = vmatprep.subr.mxu0 0.0
        %3203 = vmatpush1.msra.mxu0 0.0
        %3204 = vmatprep.subr.mxu0 0.0
        %3205 = vmatpush1.msra.mxu0 0.0
        %3206 = vmatprep.subr.mxu0 0.0
        %3207 = vmatpush1.msra.mxu0 0.0
        %3208 = vmatprep.subr.mxu0 0.0
        %3209 = vmatpush1.msra.mxu0 0.0
        %3210 = vmatprep.subr.mxu0 0.0
        %3211 = vmatpush1.msra.mxu0 0.0
        %3212 = vmatprep.subr.mxu0 0.0
        %3213 = vmatpush1.msra.mxu0 0.0
        %3214 = vmatprep.subr.mxu0 0.0
        %3215 = vmatpush1.msra.mxu0 0.0
        %3216 = vmatprep.subr.mxu0 0.0
        %3217 = vmatpush1.msra.mxu0 0.0
        %3218 = vmatprep.subr.mxu0 0.0
        %3219 = vmatpush1.msra.mxu0 0.0
        %3220 = vmatprep.subr.mxu0 0.0
        %3221 = vmatpush1.msra.mxu0 0.0
        %3222 = vmatprep.subr.mxu0 0.0
        %3223 = vmatpush1.msra.mxu0 0.0
        %3224 = vmatprep.subr.mxu0 0.0
        %3225 = vmatpush1.msra.mxu0 0.0
        %3226 = vmatprep.subr.mxu0 0.0
        %3227 = vmatpush1.msra.mxu0 0.0
        %3228 = vmatprep.subr.mxu0 0.0
        %3229 = vmatpush1.msra.mxu0 0.0
        %3230 = vmatprep.mubr.f32.mxu0 0.0
        %3231 = vmatmul.mubr.f32.gmra.mrb[0].mxu0 %v3164
        %v3232 = vpop.f32.mrb[0].mxu0
        %v3233 = vadd.f32 0.0, %v3232
        %v3234 = vpop.f32.mrb[0].mxu0
        %3235 = vdwg.mxu0
        %v3236 = vadd.f32 %v2488, %v3005
        %v3237 = vadd.f32 %v2577, %v3081
        %v3238 = vadd.f32 %v2580, %v3157
        %v3239 = vadd.f32 %v2583, %v3233
        %3241 = vrot.lane.b32.xlu0 %v3237, 8
        %v3242 = vpop.permute.xlu0 %3241
        %3245 = vrot.lane.b32.xlu0 %v3238, 16
        %v3246 = vpop.permute.xlu0 %3245
        %3249 = vrot.lane.b32.xlu0 %v3239, 24
        %v3250 = vpop.permute.xlu0 %3249
        %v3252 = vsel %vm1658, %v3236, %v3242
        %v3253 = vsel %vm2320, %v3252, %v3246
        %v3254 = vsel %vm2322, %v3253, %v3250
        %v3255 = vld [vmem:[%s29] sm:$0xff]
        %v3256 = vld [vmem:[%s29 + $0x8] sm:$0xff]
        %v3257 = vld [vmem:[%s29 + $0x10] sm:$0xff]
        %v3258 = vld [vmem:[%s29 + $0x18] sm:$0xff]
        %v3259 = vld [vmem:[%s23] sm:$0x1]
        %v3261 = vlaneseq
        %v3262 = vshrl.u32 %v3261, 7
        %v3263 = vsub.s32 0, %v3262
        %v3264 = vrot.slane %v3259, %v3263
        %v3267 = vsel %vm1481, %v3254, 0
        %3269 = vmatprep.subr.mxu0 0.0
        %3270 = vmatpush1.msra.mxu0 %v3255
        %3271 = vmatprep.subr.mxu0 0.0
        %3272 = vmatpush1.msra.mxu0 %v3256
        %3273 = vmatprep.subr.mxu0 0.0
        %3274 = vmatpush1.msra.mxu0 %v3257
        %3275 = vmatprep.subr.mxu0 0.0
        %3276 = vmatpush1.msra.mxu0 %v3258
        %3277 = vmatprep.subr.mxu0 0.0
        %3278 = vmatpush1.msra.mxu0 0.0
        %3279 = vmatprep.subr.mxu0 0.0
        %3280 = vmatpush1.msra.mxu0 0.0
        %3281 = vmatprep.subr.mxu0 0.0
        %3282 = vmatpush1.msra.mxu0 0.0
        %3283 = vmatprep.subr.mxu0 0.0
        %3284 = vmatpush1.msra.mxu0 0.0
        %3285 = vmatprep.subr.mxu0 0.0
        %3286 = vmatpush1.msra.mxu0 0.0
        %3287 = vmatprep.subr.mxu0 0.0
        %3288 = vmatpush1.msra.mxu0 0.0
        %3289 = vmatprep.subr.mxu0 0.0
        %3290 = vmatpush1.msra.mxu0 0.0
        %3291 = vmatprep.subr.mxu0 0.0
        %3292 = vmatpush1.msra.mxu0 0.0
        %3293 = vmatprep.subr.mxu0 0.0
        %3294 = vmatpush1.msra.mxu0 0.0
        %3295 = vmatprep.subr.mxu0 0.0
        %3296 = vmatpush1.msra.mxu0 0.0
        %3297 = vmatprep.subr.mxu0 0.0
        %3298 = vmatpush1.msra.mxu0 0.0
        %3299 = vmatprep.subr.mxu0 0.0
        %3300 = vmatpush1.msra.mxu0 0.0
        %3301 = vmatprep.subr.mxu0 0.0
        %3302 = vmatpush1.msra.mxu0 0.0
        %3303 = vmatprep.subr.mxu0 0.0
        %3304 = vmatpush1.msra.mxu0 0.0
        %3305 = vmatprep.subr.mxu0 0.0
        %3306 = vmatpush1.msra.mxu0 0.0
        %3307 = vmatprep.subr.mxu0 0.0
        %3308 = vmatpush1.msra.mxu0 0.0
        %3309 = vmatprep.subr.mxu0 0.0
        %3310 = vmatpush1.msra.mxu0 0.0
        %3311 = vmatprep.subr.mxu0 0.0
        %3312 = vmatpush1.msra.mxu0 0.0
        %3313 = vmatprep.subr.mxu0 0.0
        %3314 = vmatpush1.msra.mxu0 0.0
        %3315 = vmatprep.subr.mxu0 0.0
        %3316 = vmatpush1.msra.mxu0 0.0
        %3317 = vmatprep.subr.mxu0 0.0
        %3318 = vmatpush1.msra.mxu0 0.0
        %3319 = vmatprep.subr.mxu0 0.0
        %3320 = vmatpush1.msra.mxu0 0.0
        %3321 = vmatprep.subr.mxu0 0.0
        %3322 = vmatpush1.msra.mxu0 0.0
        %3323 = vmatprep.subr.mxu0 0.0
        %3324 = vmatpush1.msra.mxu0 0.0
        %3325 = vmatprep.subr.mxu0 0.0
        %3326 = vmatpush1.msra.mxu0 0.0
        %3327 = vmatprep.subr.mxu0 0.0
        %3328 = vmatpush1.msra.mxu0 0.0
        %3329 = vmatprep.subr.mxu0 0.0
        %3330 = vmatpush1.msra.mxu0 0.0
        %3331 = vmatprep.subr.mxu0 0.0
        %3332 = vmatpush1.msra.mxu0 0.0
        %3333 = vmatprep.mubr.f32.mxu0 0.0
        %3334 = vmatmul.mubr.f32.gmra.mrb[0].mxu0 %v3267
        %v3335 = vpop.f32.mrb[0].mxu0
        %v3336 = vadd.f32 %v3264, %v3335
        %v3337 = vpop.f32.mrb[0].mxu0
        %3338 = vdwg.mxu0
        %v3339 = vmax.f32 %v3336, 0.0
        %v3340 = vadd.f32 %v3254, %v3339
        %v3341 = vld [vmem:[%s33] sm:$0xff]
        %v3342 = vld [vmem:[%s45] sm:$0xff]
        %v3343 = vld [vmem:[%s45 + $0x8] sm:$0xff]
        %v3344 = vld [vmem:[%s45 + $0x10] sm:$0xff]
        %v3345 = vld [vmem:[%s45 + $0x18] sm:$0xff]
        %v3346 = vld [vmem:[%s39] sm:$0x1]
        %v3348 = vlaneseq
        %v3349 = vshrl.u32 %v3348, 7
        %v3350 = vsub.s32 0, %v3349
        %v3351 = vrot.slane %v3346, %v3350
        %v3354 = vsel %vm1481, %v3341, 0
        %3356 = vmatprep.subr.mxu0 0.0
        %3357 = vmatpush1.msra.mxu0 %v3342
        %3358 = vmatprep.subr.mxu0 0.0
        %3359 = vmatpush1.msra.mxu0 %v3343
        %3360 = vmatprep.subr.mxu0 0.0
        %3361 = vmatpush1.msra.mxu0 %v3344
        %3362 = vmatprep.subr.mxu0 0.0
        %3363 = vmatpush1.msra.mxu0 %v3345
        %3364 = vmatprep.subr.mxu0 0.0
        %3365 = vmatpush1.msra.mxu0 0.0
        %3366 = vmatprep.subr.mxu0 0.0
        %3367 = vmatpush1.msra.mxu0 0.0
        %3368 = vmatprep.subr.mxu0 0.0
        %3369 = vmatpush1.msra.mxu0 0.0
        %3370 = vmatprep.subr.mxu0 0.0
        %3371 = vmatpush1.msra.mxu0 0.0
        %3372 = vmatprep.subr.mxu0 0.0
        %3373 = vmatpush1.msra.mxu0 0.0
        %3374 = vmatprep.subr.mxu0 0.0
        %3375 = vmatpush1.msra.mxu0 0.0
        %3376 = vmatprep.subr.mxu0 0.0
        %3377 = vmatpush1.msra.mxu0 0.0
        %3378 = vmatprep.subr.mxu0 0.0
        %3379 = vmatpush1.msra.mxu0 0.0
        %3380 = vmatprep.subr.mxu0 0.0
        %3381 = vmatpush1.msra.mxu0 0.0
        %3382 = vmatprep.subr.mxu0 0.0
        %3383 = vmatpush1.msra.mxu0 0.0
        %3384 = vmatprep.subr.mxu0 0.0
        %3385 = vmatpush1.msra.mxu0 0.0
        %3386 = vmatprep.subr.mxu0 0.0
        %3387 = vmatpush1.msra.mxu0 0.0
        %3388 = vmatprep.subr.mxu0 0.0
        %3389 = vmatpush1.msra.mxu0 0.0
        %3390 = vmatprep.subr.mxu0 0.0
        %3391 = vmatpush1.msra.mxu0 0.0
        %3392 = vmatprep.subr.mxu0 0.0
        %3393 = vmatpush1.msra.mxu0 0.0
        %3394 = vmatprep.subr.mxu0 0.0
        %3395 = vmatpush1.msra.mxu0 0.0
        %3396 = vmatprep.subr.mxu0 0.0
        %3397 = vmatpush1.msra.mxu0 0.0
        %3398 = vmatprep.subr.mxu0 0.0
        %3399 = vmatpush1.msra.mxu0 0.0
        %3400 = vmatprep.subr.mxu0 0.0
        %3401 = vmatpush1.msra.mxu0 0.0
        %3402 = vmatprep.subr.mxu0 0.0
        %3403 = vmatpush1.msra.mxu0 0.0
        %3404 = vmatprep.subr.mxu0 0.0
        %3405 = vmatpush1.msra.mxu0 0.0
        %3406 = vmatprep.subr.mxu0 0.0
        %3407 = vmatpush1.msra.mxu0 0.0
        %3408 = vmatprep.subr.mxu0 0.0
        %3409 = vmatpush1.msra.mxu0 0.0
        %3410 = vmatprep.subr.mxu0 0.0
        %3411 = vmatpush1.msra.mxu0 0.0
        %3412 = vmatprep.subr.mxu0 0.0
        %3413 = vmatpush1.msra.mxu0 0.0
        %3414 = vmatprep.subr.mxu0 0.0
        %3415 = vmatpush1.msra.mxu0 0.0
        %3416 = vmatprep.subr.mxu0 0.0
        %3417 = vmatpush1.msra.mxu0 0.0
        %3418 = vmatprep.subr.mxu0 0.0
        %3419 = vmatpush1.msra.mxu0 0.0
        %3420 = vmatprep.mubr.f32.mxu0 0.0
        %3421 = vmatmul.mubr.f32.gmra.mrb[0].mxu0 %v3354
        %v3422 = vpop.f32.mrb[0].mxu0
        %v3423 = vadd.f32 %v3351, %v3422
        %v3424 = vpop.f32.mrb[0].mxu0
        %3425 = vdwg.mxu0
        %v3426 = vld [vmem:[%s41] sm:$0xff]
        %v3427 = vld [vmem:[%s41 + $0x8] sm:$0xff]
        %v3428 = vld [vmem:[%s41 + $0x10] sm:$0xff]
        %v3429 = vld [vmem:[%s41 + $0x18] sm:$0xff]
        %v3430 = vld [vmem:[%s35] sm:$0x1]
        %v3432 = vlaneseq
        %v3433 = vshrl.u32 %v3432, 7
        %v3434 = vsub.s32 0, %v3433
        %v3435 = vrot.slane %v3430, %v3434
        %v3438 = vsel %vm1481, %v3340, 0
        %3440 = vmatprep.subr.mxu0 0.0
        %3441 = vmatpush1.msra.mxu0 %v3426
        %3442 = vmatprep.subr.mxu0 0.0
        %3443 = vmatpush1.msra.mxu0 %v3427
        %3444 = vmatprep.subr.mxu0 0.0
        %3445 = vmatpush1.msra.mxu0 %v3428
        %3446 = vmatprep.subr.mxu0 0.0
        %3447 = vmatpush1.msra.mxu0 %v3429
        %3448 = vmatprep.subr.mxu0 0.0
        %3449 = vmatpush1.msra.mxu0 0.0
        %3450 = vmatprep.subr.mxu0 0.0
        %3451 = vmatpush1.msra.mxu0 0.0
        %3452 = vmatprep.subr.mxu0 0.0
        %3453 = vmatpush1.msra.mxu0 0.0
        %3454 = vmatprep.subr.mxu0 0.0
        %3455 = vmatpush1.msra.mxu0 0.0
        %3456 = vmatprep.subr.mxu0 0.0
        %3457 = vmatpush1.msra.mxu0 0.0
        %3458 = vmatprep.subr.mxu0 0.0
        %3459 = vmatpush1.msra.mxu0 0.0
        %3460 = vmatprep.subr.mxu0 0.0
        %3461 = vmatpush1.msra.mxu0 0.0
        %3462 = vmatprep.subr.mxu0 0.0
        %3463 = vmatpush1.msra.mxu0 0.0
        %3464 = vmatprep.subr.mxu0 0.0
        %3465 = vmatpush1.msra.mxu0 0.0
        %3466 = vmatprep.subr.mxu0 0.0
        %3467 = vmatpush1.msra.mxu0 0.0
        %3468 = vmatprep.subr.mxu0 0.0
        %3469 = vmatpush1.msra.mxu0 0.0
        %3470 = vmatprep.subr.mxu0 0.0
        %3471 = vmatpush1.msra.mxu0 0.0
        %3472 = vmatprep.subr.mxu0 0.0
        %3473 = vmatpush1.msra.mxu0 0.0
        %3474 = vmatprep.subr.mxu0 0.0
        %3475 = vmatpush1.msra.mxu0 0.0
        %3476 = vmatprep.subr.mxu0 0.0
        %3477 = vmatpush1.msra.mxu0 0.0
        %3478 = vmatprep.subr.mxu0 0.0
        %3479 = vmatpush1.msra.mxu0 0.0
        %3480 = vmatprep.subr.mxu0 0.0
        %3481 = vmatpush1.msra.mxu0 0.0
        %3482 = vmatprep.subr.mxu0 0.0
        %3483 = vmatpush1.msra.mxu0 0.0
        %3484 = vmatprep.subr.mxu0 0.0
        %3485 = vmatpush1.msra.mxu0 0.0
        %3486 = vmatprep.subr.mxu0 0.0
        %3487 = vmatpush1.msra.mxu0 0.0
        %3488 = vmatprep.subr.mxu0 0.0
        %3489 = vmatpush1.msra.mxu0 0.0
        %3490 = vmatprep.subr.mxu0 0.0
        %3491 = vmatpush1.msra.mxu0 0.0
        %3492 = vmatprep.subr.mxu0 0.0
        %3493 = vmatpush1.msra.mxu0 0.0
        %3494 = vmatprep.subr.mxu0 0.0
        %3495 = vmatpush1.msra.mxu0 0.0
        %3496 = vmatprep.subr.mxu0 0.0
        %3497 = vmatpush1.msra.mxu0 0.0
        %3498 = vmatprep.subr.mxu0 0.0
        %3499 = vmatpush1.msra.mxu0 0.0
        %3500 = vmatprep.subr.mxu0 0.0
        %3501 = vmatpush1.msra.mxu0 0.0
        %3502 = vmatprep.subr.mxu0 0.0
        %3503 = vmatpush1.msra.mxu0 0.0
        %3504 = vmatprep.mubr.f32.mxu0 0.0
        %3505 = vmatmul.mubr.f32.gmra.mrb[0].mxu0 %v3438
        %v3506 = vpop.f32.mrb[0].mxu0
        %v3507 = vadd.f32 %v3435, %v3506
        %v3508 = vpop.f32.mrb[0].mxu0
        %3509 = vdwg.mxu0
        %3511 = vrot.lane.b32.xlu0 %v3423, 120
        %v3512 = vpop.permute.xlu0 %3511
        %3514 = vrot.lane.b32.xlu0 %v3423, 112
        %v3515 = vpop.permute.xlu0 %3514
        %3517 = vrot.lane.b32.xlu0 %v3423, 104
        %v3518 = vpop.permute.xlu0 %3517
        %3521 = vrot.lane.b32.xlu0 %v3507, 120
        %v3522 = vpop.permute.xlu0 %3521
        %3523 = vrot.lane.b32.xlu0 %v3507, 112
        %v3524 = vpop.permute.xlu0 %3523
        %3525 = vrot.lane.b32.xlu0 %v3507, 104
        %v3526 = vpop.permute.xlu0 %3525
        %v3527 = vsel %vm1658, %v3423, 0
        %v3529 = vsel %vm1658, %v3507, 0
        %3531 = vmatprep.subr.mxu0 0.0
        %3532 = vmatpush1.xpose.msra.mxu0 %v3529
        %3533 = vmatprep.subr.mxu0 0.0
        %3534 = vmatpush1.xpose.msra.mxu0 0.0
        %3535 = vmatprep.subr.mxu0 0.0
        %3536 = vmatpush1.xpose.msra.mxu0 0.0
        %3537 = vmatprep.subr.mxu0 0.0
        %3538 = vmatpush1.xpose.msra.mxu0 0.0
        %3539 = vmatprep.subr.mxu0 0.0
        %3540 = vmatpush1.xpose.msra.mxu0 0.0
        %3541 = vmatprep.subr.mxu0 0.0
        %3542 = vmatpush1.xpose.msra.mxu0 0.0
        %3543 = vmatprep.subr.mxu0 0.0
        %3544 = vmatpush1.xpose.msra.mxu0 0.0
        %3545 = vmatprep.subr.mxu0 0.0
        %3546 = vmatpush1.xpose.msra.mxu0 0.0
        %3547 = vmatprep.subr.mxu0 0.0
        %3548 = vmatpush1.xpose.msra.mxu0 0.0
        %3549 = vmatprep.subr.mxu0 0.0
        %3550 = vmatpush1.xpose.msra.mxu0 0.0
        %3551 = vmatprep.subr.mxu0 0.0
        %3552 = vmatpush1.xpose.msra.mxu0 0.0
        %3553 = vmatprep.subr.mxu0 0.0
        %3554 = vmatpush1.xpose.msra.mxu0 0.0
        %3555 = vmatprep.subr.mxu0 0.0
        %3556 = vmatpush1.xpose.msra.mxu0 0.0
        %3557 = vmatprep.subr.mxu0 0.0
        %3558 = vmatpush1.xpose.msra.mxu0 0.0
        %3559 = vmatprep.subr.mxu0 0.0
        %3560 = vmatpush1.xpose.msra.mxu0 0.0
        %3561 = vmatprep.subr.mxu0 0.0
        %3562 = vmatpush1.xpose.msra.mxu0 0.0
        %3563 = vmatprep.subr.mxu0 0.0
        %3564 = vmatpush1.xpose.msra.mxu0 0.0
        %3565 = vmatprep.subr.mxu0 0.0
        %3566 = vmatpush1.xpose.msra.mxu0 0.0
        %3567 = vmatprep.subr.mxu0 0.0
        %3568 = vmatpush1.xpose.msra.mxu0 0.0
        %3569 = vmatprep.subr.mxu0 0.0
        %3570 = vmatpush1.xpose.msra.mxu0 0.0
        %3571 = vmatprep.subr.mxu0 0.0
        %3572 = vmatpush1.xpose.msra.mxu0 0.0
        %3573 = vmatprep.subr.mxu0 0.0
        %3574 = vmatpush1.xpose.msra.mxu0 0.0
        %3575 = vmatprep.subr.mxu0 0.0
        %3576 = vmatpush1.xpose.msra.mxu0 0.0
        %3577 = vmatprep.subr.mxu0 0.0
        %3578 = vmatpush1.xpose.msra.mxu0 0.0
        %3579 = vmatprep.subr.mxu0 0.0
        %3580 = vmatpush1.xpose.msra.mxu0 0.0
        %3581 = vmatprep.subr.mxu0 0.0
        %3582 = vmatpush1.xpose.msra.mxu0 0.0
        %3583 = vmatprep.subr.mxu0 0.0
        %3584 = vmatpush1.xpose.msra.mxu0 0.0
        %3585 = vmatprep.subr.mxu0 0.0
        %3586 = vmatpush1.xpose.msra.mxu0 0.0
        %3587 = vmatprep.subr.mxu0 0.0
        %3588 = vmatpush1.xpose.msra.mxu0 0.0
        %3589 = vmatprep.subr.mxu0 0.0
        %3590 = vmatpush1.xpose.msra.mxu0 0.0
        %3591 = vmatprep.subr.mxu0 0.0
        %3592 = vmatpush1.xpose.msra.mxu0 0.0
        %3593 = vmatprep.subr.mxu0 0.0
        %3594 = vmatpush1.xpose.msra.mxu0 0.0
        %3595 = vmatprep.mubr.f32.mxu0 0.0
        %3596 = vmatmul.mubr.f32.gmra.mrb[0].mxu0 %v3527
        %v3597 = vpop.f32.mrb[0].mxu0
        %v3598 = vadd.f32 0.0, %v3597
        %v3599 = vpop.f32.mrb[0].mxu0
        %3600 = vdwg.mxu0
        %v3601 = vsel %vm1658, %v3512, 0
        %v3603 = vsel %vm1658, %v3522, 0
        %3605 = vmatprep.subr.mxu0 0.0
        %3606 = vmatpush1.xpose.msra.mxu0 %v3603
        %3607 = vmatprep.subr.mxu0 0.0
        %3608 = vmatpush1.xpose.msra.mxu0 0.0
        %3609 = vmatprep.subr.mxu0 0.0
        %3610 = vmatpush1.xpose.msra.mxu0 0.0
        %3611 = vmatprep.subr.mxu0 0.0
        %3612 = vmatpush1.xpose.msra.mxu0 0.0
        %3613 = vmatprep.subr.mxu0 0.0
        %3614 = vmatpush1.xpose.msra.mxu0 0.0
        %3615 = vmatprep.subr.mxu0 0.0
        %3616 = vmatpush1.xpose.msra.mxu0 0.0
        %3617 = vmatprep.subr.mxu0 0.0
        %3618 = vmatpush1.xpose.msra.mxu0 0.0
        %3619 = vmatprep.subr.mxu0 0.0
        %3620 = vmatpush1.xpose.msra.mxu0 0.0
        %3621 = vmatprep.subr.mxu0 0.0
        %3622 = vmatpush1.xpose.msra.mxu0 0.0
        %3623 = vmatprep.subr.mxu0 0.0
        %3624 = vmatpush1.xpose.msra.mxu0 0.0
        %3625 = vmatprep.subr.mxu0 0.0
        %3626 = vmatpush1.xpose.msra.mxu0 0.0
        %3627 = vmatprep.subr.mxu0 0.0
        %3628 = vmatpush1.xpose.msra.mxu0 0.0
        %3629 = vmatprep.subr.mxu0 0.0
        %3630 = vmatpush1.xpose.msra.mxu0 0.0
        %3631 = vmatprep.subr.mxu0 0.0
        %3632 = vmatpush1.xpose.msra.mxu0 0.0
        %3633 = vmatprep.subr.mxu0 0.0
        %3634 = vmatpush1.xpose.msra.mxu0 0.0
        %3635 = vmatprep.subr.mxu0 0.0
        %3636 = vmatpush1.xpose.msra.mxu0 0.0
        %3637 = vmatprep.subr.mxu0 0.0
        %3638 = vmatpush1.xpose.msra.mxu0 0.0
        %3639 = vmatprep.subr.mxu0 0.0
        %3640 = vmatpush1.xpose.msra.mxu0 0.0
        %3641 = vmatprep.subr.mxu0 0.0
        %3642 = vmatpush1.xpose.msra.mxu0 0.0
        %3643 = vmatprep.subr.mxu0 0.0
        %3644 = vmatpush1.xpose.msra.mxu0 0.0
        %3645 = vmatprep.subr.mxu0 0.0
        %3646 = vmatpush1.xpose.msra.mxu0 0.0
        %3647 = vmatprep.subr.mxu0 0.0
        %3648 = vmatpush1.xpose.msra.mxu0 0.0
        %3649 = vmatprep.subr.mxu0 0.0
        %3650 = vmatpush1.xpose.msra.mxu0 0.0
        %3651 = vmatprep.subr.mxu0 0.0
        %3652 = vmatpush1.xpose.msra.mxu0 0.0
        %3653 = vmatprep.subr.mxu0 0.0
        %3654 = vmatpush1.xpose.msra.mxu0 0.0
        %3655 = vmatprep.subr.mxu0 0.0
        %3656 = vmatpush1.xpose.msra.mxu0 0.0
        %3657 = vmatprep.subr.mxu0 0.0
        %3658 = vmatpush1.xpose.msra.mxu0 0.0
        %3659 = vmatprep.subr.mxu0 0.0
        %3660 = vmatpush1.xpose.msra.mxu0 0.0
        %3661 = vmatprep.subr.mxu0 0.0
        %3662 = vmatpush1.xpose.msra.mxu0 0.0
        %3663 = vmatprep.subr.mxu0 0.0
        %3664 = vmatpush1.xpose.msra.mxu0 0.0
        %3665 = vmatprep.subr.mxu0 0.0
        %3666 = vmatpush1.xpose.msra.mxu0 0.0
        %3667 = vmatprep.subr.mxu0 0.0
        %3668 = vmatpush1.xpose.msra.mxu0 0.0
        %3669 = vmatprep.mubr.f32.mxu0 0.0
        %3670 = vmatmul.mubr.f32.gmra.mrb[0].mxu0 %v3601
        %v3671 = vpop.f32.mrb[0].mxu0
        %v3672 = vadd.f32 0.0, %v3671
        %v3673 = vpop.f32.mrb[0].mxu0
        %3674 = vdwg.mxu0
        %v3675 = vsel %vm1658, %v3515, 0
        %v3677 = vsel %vm1658, %v3524, 0
        %3679 = vmatprep.subr.mxu0 0.0
        %3680 = vmatpush1.xpose.msra.mxu0 %v3677
        %3681 = vmatprep.subr.mxu0 0.0
        %3682 = vmatpush1.xpose.msra.mxu0 0.0
        %3683 = vmatprep.subr.mxu0 0.0
        %3684 = vmatpush1.xpose.msra.mxu0 0.0
        %3685 = vmatprep.subr.mxu0 0.0
        %3686 = vmatpush1.xpose.msra.mxu0 0.0
        %3687 = vmatprep.subr.mxu0 0.0
        %3688 = vmatpush1.xpose.msra.mxu0 0.0
        %3689 = vmatprep.subr.mxu0 0.0
        %3690 = vmatpush1.xpose.msra.mxu0 0.0
        %3691 = vmatprep.subr.mxu0 0.0
        %3692 = vmatpush1.xpose.msra.mxu0 0.0
        %3693 = vmatprep.subr.mxu0 0.0
        %3694 = vmatpush1.xpose.msra.mxu0 0.0
        %3695 = vmatprep.subr.mxu0 0.0
        %3696 = vmatpush1.xpose.msra.mxu0 0.0
        %3697 = vmatprep.subr.mxu0 0.0
        %3698 = vmatpush1.xpose.msra.mxu0 0.0
        %3699 = vmatprep.subr.mxu0 0.0
        %3700 = vmatpush1.xpose.msra.mxu0 0.0
        %3701 = vmatprep.subr.mxu0 0.0
        %3702 = vmatpush1.xpose.msra.mxu0 0.0
        %3703 = vmatprep.subr.mxu0 0.0
        %3704 = vmatpush1.xpose.msra.mxu0 0.0
        %3705 = vmatprep.subr.mxu0 0.0
        %3706 = vmatpush1.xpose.msra.mxu0 0.0
        %3707 = vmatprep.subr.mxu0 0.0
        %3708 = vmatpush1.xpose.msra.mxu0 0.0
        %3709 = vmatprep.subr.mxu0 0.0
        %3710 = vmatpush1.xpose.msra.mxu0 0.0
        %3711 = vmatprep.subr.mxu0 0.0
        %3712 = vmatpush1.xpose.msra.mxu0 0.0
        %3713 = vmatprep.subr.mxu0 0.0
        %3714 = vmatpush1.xpose.msra.mxu0 0.0
        %3715 = vmatprep.subr.mxu0 0.0
        %3716 = vmatpush1.xpose.msra.mxu0 0.0
        %3717 = vmatprep.subr.mxu0 0.0
        %3718 = vmatpush1.xpose.msra.mxu0 0.0
        %3719 = vmatprep.subr.mxu0 0.0
        %3720 = vmatpush1.xpose.msra.mxu0 0.0
        %3721 = vmatprep.subr.mxu0 0.0
        %3722 = vmatpush1.xpose.msra.mxu0 0.0
        %3723 = vmatprep.subr.mxu0 0.0
        %3724 = vmatpush1.xpose.msra.mxu0 0.0
        %3725 = vmatprep.subr.mxu0 0.0
        %3726 = vmatpush1.xpose.msra.mxu0 0.0
        %3727 = vmatprep.subr.mxu0 0.0
        %3728 = vmatpush1.xpose.msra.mxu0 0.0
        %3729 = vmatprep.subr.mxu0 0.0
        %3730 = vmatpush1.xpose.msra.mxu0 0.0
        %3731 = vmatprep.subr.mxu0 0.0
        %3732 = vmatpush1.xpose.msra.mxu0 0.0
        %3733 = vmatprep.subr.mxu0 0.0
        %3734 = vmatpush1.xpose.msra.mxu0 0.0
        %3735 = vmatprep.subr.mxu0 0.0
        %3736 = vmatpush1.xpose.msra.mxu0 0.0
        %3737 = vmatprep.subr.mxu0 0.0
        %3738 = vmatpush1.xpose.msra.mxu0 0.0
        %3739 = vmatprep.subr.mxu0 0.0
        %3740 = vmatpush1.xpose.msra.mxu0 0.0
        %3741 = vmatprep.subr.mxu0 0.0
        %3742 = vmatpush1.xpose.msra.mxu0 0.0
        %3743 = vmatprep.mubr.f32.mxu0 0.0
        %3744 = vmatmul.mubr.f32.gmra.mrb[0].mxu0 %v3675
        %v3745 = vpop.f32.mrb[0].mxu0
        %v3746 = vadd.f32 0.0, %v3745
        %v3747 = vpop.f32.mrb[0].mxu0
        %3748 = vdwg.mxu0
        %v3749 = vsel %vm1658, %v3518, 0
        %v3751 = vsel %vm1658, %v3526, 0
        %3753 = vmatprep.subr.mxu0 0.0
        %3754 = vmatpush1.xpose.msra.mxu0 %v3751
        %3755 = vmatprep.subr.mxu0 0.0
        %3756 = vmatpush1.xpose.msra.mxu0 0.0
        %3757 = vmatprep.subr.mxu0 0.0
        %3758 = vmatpush1.xpose.msra.mxu0 0.0
        %3759 = vmatprep.subr.mxu0 0.0
        %3760 = vmatpush1.xpose.msra.mxu0 0.0
        %3761 = vmatprep.subr.mxu0 0.0
        %3762 = vmatpush1.xpose.msra.mxu0 0.0
        %3763 = vmatprep.subr.mxu0 0.0
        %3764 = vmatpush1.xpose.msra.mxu0 0.0
        %3765 = vmatprep.subr.mxu0 0.0
        %3766 = vmatpush1.xpose.msra.mxu0 0.0
        %3767 = vmatprep.subr.mxu0 0.0
        %3768 = vmatpush1.xpose.msra.mxu0 0.0
        %3769 = vmatprep.subr.mxu0 0.0
        %3770 = vmatpush1.xpose.msra.mxu0 0.0
        %3771 = vmatprep.subr.mxu0 0.0
        %3772 = vmatpush1.xpose.msra.mxu0 0.0
        %3773 = vmatprep.subr.mxu0 0.0
        %3774 = vmatpush1.xpose.msra.mxu0 0.0
        %3775 = vmatprep.subr.mxu0 0.0
        %3776 = vmatpush1.xpose.msra.mxu0 0.0
        %3777 = vmatprep.subr.mxu0 0.0
        %3778 = vmatpush1.xpose.msra.mxu0 0.0
        %3779 = vmatprep.subr.mxu0 0.0
        %3780 = vmatpush1.xpose.msra.mxu0 0.0
        %3781 = vmatprep.subr.mxu0 0.0
        %3782 = vmatpush1.xpose.msra.mxu0 0.0
        %3783 = vmatprep.subr.mxu0 0.0
        %3784 = vmatpush1.xpose.msra.mxu0 0.0
        %3785 = vmatprep.subr.mxu0 0.0
        %3786 = vmatpush1.xpose.msra.mxu0 0.0
        %3787 = vmatprep.subr.mxu0 0.0
        %3788 = vmatpush1.xpose.msra.mxu0 0.0
        %3789 = vmatprep.subr.mxu0 0.0
        %3790 = vmatpush1.xpose.msra.mxu0 0.0
        %3791 = vmatprep.subr.mxu0 0.0
        %3792 = vmatpush1.xpose.msra.mxu0 0.0
        %3793 = vmatprep.subr.mxu0 0.0
        %3794 = vmatpush1.xpose.msra.mxu0 0.0
        %3795 = vmatprep.subr.mxu0 0.0
        %3796 = vmatpush1.xpose.msra.mxu0 0.0
        %3797 = vmatprep.subr.mxu0 0.0
        %3798 = vmatpush1.xpose.msra.mxu0 0.0
        %3799 = vmatprep.subr.mxu0 0.0
        %3800 = vmatpush1.xpose.msra.mxu0 0.0
        %3801 = vmatprep.subr.mxu0 0.0
        %3802 = vmatpush1.xpose.msra.mxu0 0.0
        %3803 = vmatprep.subr.mxu0 0.0
        %3804 = vmatpush1.xpose.msra.mxu0 0.0
        %3805 = vmatprep.subr.mxu0 0.0
        %3806 = vmatpush1.xpose.msra.mxu0 0.0
        %3807 = vmatprep.subr.mxu0 0.0
        %3808 = vmatpush1.xpose.msra.mxu0 0.0
        %3809 = vmatprep.subr.mxu0 0.0
        %3810 = vmatpush1.xpose.msra.mxu0 0.0
        %3811 = vmatprep.subr.mxu0 0.0
        %3812 = vmatpush1.xpose.msra.mxu0 0.0
        %3813 = vmatprep.subr.mxu0 0.0
        %3814 = vmatpush1.xpose.msra.mxu0 0.0
        %3815 = vmatprep.subr.mxu0 0.0
        %3816 = vmatpush1.xpose.msra.mxu0 0.0
        %3817 = vmatprep.mubr.f32.mxu0 0.0
        %3818 = vmatmul.mubr.f32.gmra.mrb[0].mxu0 %v3749
        %v3819 = vpop.f32.mrb[0].mxu0
        %v3820 = vadd.f32 0.0, %v3819
        %v3821 = vpop.f32.mrb[0].mxu0
        %3822 = vdwg.mxu0
        %v3823 = vsel %vm1658, %v3598, -inf
        %3824 = vmax.xlane.f32.xlu0 %v3823
        %v3825 = vpop.xlane.xlu0 %3824
        %v3826 = vsel %vm1658, %v3672, -inf
        %3827 = vmax.xlane.f32.xlu0 %v3826
        %v3828 = vpop.xlane.xlu0 %3827
        %v3829 = vsel %vm1658, %v3746, -inf
        %3830 = vmax.xlane.f32.xlu0 %v3829
        %v3831 = vpop.xlane.xlu0 %3830
        %v3832 = vsel %vm1658, %v3820, -inf
        %3833 = vmax.xlane.f32.xlu0 %v3832
        %v3834 = vpop.xlane.xlu0 %3833
        %v3835 = vsub.f32 %v3598, %v3825
        %v3836 = vsub.f32 %v3672, %v3828
        %v3837 = vsub.f32 %v3746, %v3831
        %v3838 = vsub.f32 %v3820, %v3834
        %v3839 = vmul.f32 %v3835, 1.442695
        %v3840 = vpow.pop %v3839
        %v3841 = vmul.f32 %v3836, 1.442695
        %v3842 = vpow.pop %v3841
        %v3843 = vmul.f32 %v3837, 1.442695
        %v3844 = vpow.pop %v3843
        %v3845 = vmul.f32 %v3838, 1.442695
        %v3846 = vpow.pop %v3845
        %v3847 = vsel %vm1658, %v3840, 0.0
        %3848 = vadd.xlane.f32.xlu0 %v3847
        %v3849 = vpop.xlane.xlu0 %3848
        %v3850 = vsel %vm1658, %v3842, 0.0
        %3851 = vadd.xlane.f32.xlu0 %v3850
        %v3852 = vpop.xlane.xlu0 %3851
        %v3853 = vsel %vm1658, %v3844, 0.0
        %3854 = vadd.xlane.f32.xlu0 %v3853
        %v3855 = vpop.xlane.xlu0 %3854
        %v3856 = vsel %vm1658, %v3846, 0.0
        %3857 = vadd.xlane.f32.xlu0 %v3856
        %v3858 = vpop.xlane.xlu0 %3857
        %v3859 = vrcp.pop %v3849
        %v3860 = vrcp.pop %v3852
        %v3861 = vrcp.pop %v3855
        %v3862 = vrcp.pop %v3858
        %v3863 = vmul.f32 %v3840, %v3859
        %v3864 = vmul.f32 %v3842, %v3860
        %v3865 = vmul.f32 %v3844, %v3861
        %v3866 = vmul.f32 %v3846, %v3862
        %3867 = vrot.lane.b32.xlu0 %v3507, 96
        %v3868 = vpop.permute.xlu0 %3867
        %v3871 = vsel %vm1658, %v3863, 0
        %3873 = vmatprep.subr.mxu0 0.0
        %3874 = vmatpush1.msra.mxu0 %v3868
        %3875 = vmatprep.subr.mxu0 0.0
        %3876 = vmatpush1.msra.mxu0 0.0
        %3877 = vmatprep.subr.mxu0 0.0
        %3878 = vmatpush1.msra.mxu0 0.0
        %3879 = vmatprep.subr.mxu0 0.0
        %3880 = vmatpush1.msra.mxu0 0.0
        %3881 = vmatprep.subr.mxu0 0.0
        %3882 = vmatpush1.msra.mxu0 0.0
        %3883 = vmatprep.subr.mxu0 0.0
        %3884 = vmatpush1.msra.mxu0 0.0
        %3885 = vmatprep.subr.mxu0 0.0
        %3886 = vmatpush1.msra.mxu0 0.0
        %3887 = vmatprep.subr.mxu0 0.0
        %3888 = vmatpush1.msra.mxu0 0.0
        %3889 = vmatprep.subr.mxu0 0.0
        %3890 = vmatpush1.msra.mxu0 0.0
        %3891 = vmatprep.subr.mxu0 0.0
        %3892 = vmatpush1.msra.mxu0 0.0
        %3893 = vmatprep.subr.mxu0 0.0
        %3894 = vmatpush1.msra.mxu0 0.0
        %3895 = vmatprep.subr.mxu0 0.0
        %3896 = vmatpush1.msra.mxu0 0.0
        %3897 = vmatprep.subr.mxu0 0.0
        %3898 = vmatpush1.msra.mxu0 0.0
        %3899 = vmatprep.subr.mxu0 0.0
        %3900 = vmatpush1.msra.mxu0 0.0
        %3901 = vmatprep.subr.mxu0 0.0
        %3902 = vmatpush1.msra.mxu0 0.0
        %3903 = vmatprep.subr.mxu0 0.0
        %3904 = vmatpush1.msra.mxu0 0.0
        %3905 = vmatprep.subr.mxu0 0.0
        %3906 = vmatpush1.msra.mxu0 0.0
        %3907 = vmatprep.subr.mxu0 0.0
        %3908 = vmatpush1.msra.mxu0 0.0
        %3909 = vmatprep.subr.mxu0 0.0
        %3910 = vmatpush1.msra.mxu0 0.0
        %3911 = vmatprep.subr.mxu0 0.0
        %3912 = vmatpush1.msra.mxu0 0.0
        %3913 = vmatprep.subr.mxu0 0.0
        %3914 = vmatpush1.msra.mxu0 0.0
        %3915 = vmatprep.subr.mxu0 0.0
        %3916 = vmatpush1.msra.mxu0 0.0
        %3917 = vmatprep.subr.mxu0 0.0
        %3918 = vmatpush1.msra.mxu0 0.0
        %3919 = vmatprep.subr.mxu0 0.0
        %3920 = vmatpush1.msra.mxu0 0.0
        %3921 = vmatprep.subr.mxu0 0.0
        %3922 = vmatpush1.msra.mxu0 0.0
        %3923 = vmatprep.subr.mxu0 0.0
        %3924 = vmatpush1.msra.mxu0 0.0
        %3925 = vmatprep.subr.mxu0 0.0
        %3926 = vmatpush1.msra.mxu0 0.0
        %3927 = vmatprep.subr.mxu0 0.0
        %3928 = vmatpush1.msra.mxu0 0.0
        %3929 = vmatprep.subr.mxu0 0.0
        %3930 = vmatpush1.msra.mxu0 0.0
        %3931 = vmatprep.subr.mxu0 0.0
        %3932 = vmatpush1.msra.mxu0 0.0
        %3933 = vmatprep.subr.mxu0 0.0
        %3934 = vmatpush1.msra.mxu0 0.0
        %3935 = vmatprep.subr.mxu0 0.0
        %3936 = vmatpush1.msra.mxu0 0.0
        %3937 = vmatprep.mubr.f32.mxu0 0.0
        %3938 = vmatmul.mubr.f32.gmra.mrb[0].mxu0 %v3871
        %v3939 = vpop.f32.mrb[0].mxu0
        %v3940 = vadd.f32 0.0, %v3939
        %v3941 = vpop.f32.mrb[0].mxu0
        %3942 = vdwg.mxu0
        %3943 = vrot.lane.b32.xlu0 %v3522, 96
        %v3944 = vpop.permute.xlu0 %3943
        %v3947 = vsel %vm1658, %v3864, 0
        %3949 = vmatprep.subr.mxu0 0.0
        %3950 = vmatpush1.msra.mxu0 %v3944
        %3951 = vmatprep.subr.mxu0 0.0
        %3952 = vmatpush1.msra.mxu0 0.0
        %3953 = vmatprep.subr.mxu0 0.0
        %3954 = vmatpush1.msra.mxu0 0.0
        %3955 = vmatprep.subr.mxu0 0.0
        %3956 = vmatpush1.msra.mxu0 0.0
        %3957 = vmatprep.subr.mxu0 0.0
        %3958 = vmatpush1.msra.mxu0 0.0
        %3959 = vmatprep.subr.mxu0 0.0
        %3960 = vmatpush1.msra.mxu0 0.0
        %3961 = vmatprep.subr.mxu0 0.0
        %3962 = vmatpush1.msra.mxu0 0.0
        %3963 = vmatprep.subr.mxu0 0.0
        %3964 = vmatpush1.msra.mxu0 0.0
        %3965 = vmatprep.subr.mxu0 0.0
        %3966 = vmatpush1.msra.mxu0 0.0
        %3967 = vmatprep.subr.mxu0 0.0
        %3968 = vmatpush1.msra.mxu0 0.0
        %3969 = vmatprep.subr.mxu0 0.0
        %3970 = vmatpush1.msra.mxu0 0.0
        %3971 = vmatprep.subr.mxu0 0.0
        %3972 = vmatpush1.msra.mxu0 0.0
        %3973 = vmatprep.subr.mxu0 0.0
        %3974 = vmatpush1.msra.mxu0 0.0
        %3975 = vmatprep.subr.mxu0 0.0
        %3976 = vmatpush1.msra.mxu0 0.0
        %3977 = vmatprep.subr.mxu0 0.0
        %3978 = vmatpush1.msra.mxu0 0.0
        %3979 = vmatprep.subr.mxu0 0.0
        %3980 = vmatpush1.msra.mxu0 0.0
        %3981 = vmatprep.subr.mxu0 0.0
        %3982 = vmatpush1.msra.mxu0 0.0
        %3983 = vmatprep.subr.mxu0 0.0
        %3984 = vmatpush1.msra.mxu0 0.0
        %3985 = vmatprep.subr.mxu0 0.0
        %3986 = vmatpush1.msra.mxu0 0.0
        %3987 = vmatprep.subr.mxu0 0.0
        %3988 = vmatpush1.msra.mxu0 0.0
        %3989 = vmatprep.subr.mxu0 0.0
        %3990 = vmatpush1.msra.mxu0 0.0
        %3991 = vmatprep.subr.mxu0 0.0
        %3992 = vmatpush1.msra.mxu0 0.0
        %3993 = vmatprep.subr.mxu0 0.0
        %3994 = vmatpush1.msra.mxu0 0.0
        %3995 = vmatprep.subr.mxu0 0.0
        %3996 = vmatpush1.msra.mxu0 0.0
        %3997 = vmatprep.subr.mxu0 0.0
        %3998 = vmatpush1.msra.mxu0 0.0
        %3999 = vmatprep.subr.mxu0 0.0
        %4000 = vmatpush1.msra.mxu0 0.0
        %4001 = vmatprep.subr.mxu0 0.0
        %4002 = vmatpush1.msra.mxu0 0.0
        %4003 = vmatprep.subr.mxu0 0.0
        %4004 = vmatpush1.msra.mxu0 0.0
        %4005 = vmatprep.subr.mxu0 0.0
        %4006 = vmatpush1.msra.mxu0 0.0
        %4007 = vmatprep.subr.mxu0 0.0
        %4008 = vmatpush1.msra.mxu0 0.0
        %4009 = vmatprep.subr.mxu0 0.0
        %4010 = vmatpush1.msra.mxu0 0.0
        %4011 = vmatprep.subr.mxu0 0.0
        %4012 = vmatpush1.msra.mxu0 0.0
        %4013 = vmatprep.mubr.f32.mxu0 0.0
        %4014 = vmatmul.mubr.f32.gmra.mrb[0].mxu0 %v3947
        %v4015 = vpop.f32.mrb[0].mxu0
        %v4016 = vadd.f32 0.0, %v4015
        %v4017 = vpop.f32.mrb[0].mxu0
        %4018 = vdwg.mxu0
        %4019 = vrot.lane.b32.xlu0 %v3524, 96
        %v4020 = vpop.permute.xlu0 %4019
        %v4023 = vsel %vm1658, %v3865, 0
        %4025 = vmatprep.subr.mxu0 0.0
        %4026 = vmatpush1.msra.mxu0 %v4020
        %4027 = vmatprep.subr.mxu0 0.0
        %4028 = vmatpush1.msra.mxu0 0.0
        %4029 = vmatprep.subr.mxu0 0.0
        %4030 = vmatpush1.msra.mxu0 0.0
        %4031 = vmatprep.subr.mxu0 0.0
        %4032 = vmatpush1.msra.mxu0 0.0
        %4033 = vmatprep.subr.mxu0 0.0
        %4034 = vmatpush1.msra.mxu0 0.0
        %4035 = vmatprep.subr.mxu0 0.0
        %4036 = vmatpush1.msra.mxu0 0.0
        %4037 = vmatprep.subr.mxu0 0.0
        %4038 = vmatpush1.msra.mxu0 0.0
        %4039 = vmatprep.subr.mxu0 0.0
        %4040 = vmatpush1.msra.mxu0 0.0
        %4041 = vmatprep.subr.mxu0 0.0
        %4042 = vmatpush1.msra.mxu0 0.0
        %4043 = vmatprep.subr.mxu0 0.0
        %4044 = vmatpush1.msra.mxu0 0.0
        %4045 = vmatprep.subr.mxu0 0.0
        %4046 = vmatpush1.msra.mxu0 0.0
        %4047 = vmatprep.subr.mxu0 0.0
        %4048 = vmatpush1.msra.mxu0 0.0
        %4049 = vmatprep.subr.mxu0 0.0
        %4050 = vmatpush1.msra.mxu0 0.0
        %4051 = vmatprep.subr.mxu0 0.0
        %4052 = vmatpush1.msra.mxu0 0.0
        %4053 = vmatprep.subr.mxu0 0.0
        %4054 = vmatpush1.msra.mxu0 0.0
        %4055 = vmatprep.subr.mxu0 0.0
        %4056 = vmatpush1.msra.mxu0 0.0
        %4057 = vmatprep.subr.mxu0 0.0
        %4058 = vmatpush1.msra.mxu0 0.0
        %4059 = vmatprep.subr.mxu0 0.0
        %4060 = vmatpush1.msra.mxu0 0.0
        %4061 = vmatprep.subr.mxu0 0.0
        %4062 = vmatpush1.msra.mxu0 0.0
        %4063 = vmatprep.subr.mxu0 0.0
        %4064 = vmatpush1.msra.mxu0 0.0
        %4065 = vmatprep.subr.mxu0 0.0
        %4066 = vmatpush1.msra.mxu0 0.0
        %4067 = vmatprep.subr.mxu0 0.0
        %4068 = vmatpush1.msra.mxu0 0.0
        %4069 = vmatprep.subr.mxu0 0.0
        %4070 = vmatpush1.msra.mxu0 0.0
        %4071 = vmatprep.subr.mxu0 0.0
        %4072 = vmatpush1.msra.mxu0 0.0
        %4073 = vmatprep.subr.mxu0 0.0
        %4074 = vmatpush1.msra.mxu0 0.0
        %4075 = vmatprep.subr.mxu0 0.0
        %4076 = vmatpush1.msra.mxu0 0.0
        %4077 = vmatprep.subr.mxu0 0.0
        %4078 = vmatpush1.msra.mxu0 0.0
        %4079 = vmatprep.subr.mxu0 0.0
        %4080 = vmatpush1.msra.mxu0 0.0
        %4081 = vmatprep.subr.mxu0 0.0
        %4082 = vmatpush1.msra.mxu0 0.0
        %4083 = vmatprep.subr.mxu0 0.0
        %4084 = vmatpush1.msra.mxu0 0.0
        %4085 = vmatprep.subr.mxu0 0.0
        %4086 = vmatpush1.msra.mxu0 0.0
        %4087 = vmatprep.subr.mxu0 0.0
        %4088 = vmatpush1.msra.mxu0 0.0
        %4089 = vmatprep.mubr.f32.mxu0 0.0
        %4090 = vmatmul.mubr.f32.gmra.mrb[0].mxu0 %v4023
        %v4091 = vpop.f32.mrb[0].mxu0
        %v4092 = vadd.f32 0.0, %v4091
        %v4093 = vpop.f32.mrb[0].mxu0
        %4094 = vdwg.mxu0
        %4095 = vrot.lane.b32.xlu0 %v3526, 96
        %v4096 = vpop.permute.xlu0 %4095
        %v4099 = vsel %vm1658, %v3866, 0
        %4101 = vmatprep.subr.mxu0 0.0
        %4102 = vmatpush1.msra.mxu0 %v4096
        %4103 = vmatprep.subr.mxu0 0.0
        %4104 = vmatpush1.msra.mxu0 0.0
        %4105 = vmatprep.subr.mxu0 0.0
        %4106 = vmatpush1.msra.mxu0 0.0
        %4107 = vmatprep.subr.mxu0 0.0
        %4108 = vmatpush1.msra.mxu0 0.0
        %4109 = vmatprep.subr.mxu0 0.0
        %4110 = vmatpush1.msra.mxu0 0.0
        %4111 = vmatprep.subr.mxu0 0.0
        %4112 = vmatpush1.msra.mxu0 0.0
        %4113 = vmatprep.subr.mxu0 0.0
        %4114 = vmatpush1.msra.mxu0 0.0
        %4115 = vmatprep.subr.mxu0 0.0
        %4116 = vmatpush1.msra.mxu0 0.0
        %4117 = vmatprep.subr.mxu0 0.0
        %4118 = vmatpush1.msra.mxu0 0.0
        %4119 = vmatprep.subr.mxu0 0.0
        %4120 = vmatpush1.msra.mxu0 0.0
        %4121 = vmatprep.subr.mxu0 0.0
        %4122 = vmatpush1.msra.mxu0 0.0
        %4123 = vmatprep.subr.mxu0 0.0
        %4124 = vmatpush1.msra.mxu0 0.0
        %4125 = vmatprep.subr.mxu0 0.0
        %4126 = vmatpush1.msra.mxu0 0.0
        %4127 = vmatprep.subr.mxu0 0.0
        %4128 = vmatpush1.msra.mxu0 0.0
        %4129 = vmatprep.subr.mxu0 0.0
        %4130 = vmatpush1.msra.mxu0 0.0
        %4131 = vmatprep.subr.mxu0 0.0
        %4132 = vmatpush1.msra.mxu0 0.0
        %4133 = vmatprep.subr.mxu0 0.0
        %4134 = vmatpush1.msra.mxu0 0.0
        %4135 = vmatprep.subr.mxu0 0.0
        %4136 = vmatpush1.msra.mxu0 0.0
        %4137 = vmatprep.subr.mxu0 0.0
        %4138 = vmatpush1.msra.mxu0 0.0
        %4139 = vmatprep.subr.mxu0 0.0
        %4140 = vmatpush1.msra.mxu0 0.0
        %4141 = vmatprep.subr.mxu0 0.0
        %4142 = vmatpush1.msra.mxu0 0.0
        %4143 = vmatprep.subr.mxu0 0.0
        %4144 = vmatpush1.msra.mxu0 0.0
        %4145 = vmatprep.subr.mxu0 0.0
        %4146 = vmatpush1.msra.mxu0 0.0
        %4147 = vmatprep.subr.mxu0 0.0
        %4148 = vmatpush1.msra.mxu0 0.0
        %4149 = vmatprep.subr.mxu0 0.0
        %4150 = vmatpush1.msra.mxu0 0.0
        %4151 = vmatprep.subr.mxu0 0.0
        %4152 = vmatpush1.msra.mxu0 0.0
        %4153 = vmatprep.subr.mxu0 0.0
        %4154 = vmatpush1.msra.mxu0 0.0
        %4155 = vmatprep.subr.mxu0 0.0
        %4156 = vmatpush1.msra.mxu0 0.0
        %4157 = vmatprep.subr.mxu0 0.0
        %4158 = vmatpush1.msra.mxu0 0.0
        %4159 = vmatprep.subr.mxu0 0.0
        %4160 = vmatpush1.msra.mxu0 0.0
        %4161 = vmatprep.subr.mxu0 0.0
        %4162 = vmatpush1.msra.mxu0 0.0
        %4163 = vmatprep.subr.mxu0 0.0
        %4164 = vmatpush1.msra.mxu0 0.0
        %4165 = vmatprep.mubr.f32.mxu0 0.0
        %4166 = vmatmul.mubr.f32.gmra.mrb[0].mxu0 %v4099
        %v4167 = vpop.f32.mrb[0].mxu0
        %v4168 = vadd.f32 0.0, %v4167
        %v4169 = vpop.f32.mrb[0].mxu0
        %4170 = vdwg.mxu0
        %v4171 = vadd.f32 %v3423, %v3940
        %v4172 = vadd.f32 %v3512, %v4016
        %v4173 = vadd.f32 %v3515, %v4092
        %v4174 = vadd.f32 %v3518, %v4168
        %4176 = vrot.lane.b32.xlu0 %v4172, 8
        %v4177 = vpop.permute.xlu0 %4176
        %4180 = vrot.lane.b32.xlu0 %v4173, 16
        %v4181 = vpop.permute.xlu0 %4180
        %4184 = vrot.lane.b32.xlu0 %v4174, 24
        %v4185 = vpop.permute.xlu0 %4184
        %v4187 = vsel %vm1658, %v4171, %v4177
        %v4188 = vsel %vm2320, %v4187, %v4181
        %v4189 = vsel %vm2322, %v4188, %v4185
        %v4190 = vld [vmem:[%s43] sm:$0xff]
        %v4191 = vld [vmem:[%s43 + $0x8] sm:$0xff]
        %v4192 = vld [vmem:[%s43 + $0x10] sm:$0xff]
        %v4193 = vld [vmem:[%s43 + $0x18] sm:$0xff]
        %v4194 = vld [vmem:[%s37] sm:$0x1]
        %v4196 = vlaneseq
        %v4197 = vshrl.u32 %v4196, 7
        %v4198 = vsub.s32 0, %v4197
        %v4199 = vrot.slane %v4194, %v4198
        %v4202 = vsel %vm1481, %v4189, 0
        %4204 = vmatprep.subr.mxu0 0.0
        %4205 = vmatpush1.msra.mxu0 %v4190
        %4206 = vmatprep.subr.mxu0 0.0
        %4207 = vmatpush1.msra.mxu0 %v4191
        %4208 = vmatprep.subr.mxu0 0.0
        %4209 = vmatpush1.msra.mxu0 %v4192
        %4210 = vmatprep.subr.mxu0 0.0
        %4211 = vmatpush1.msra.mxu0 %v4193
        %4212 = vmatprep.subr.mxu0 0.0
        %4213 = vmatpush1.msra.mxu0 0.0
        %4214 = vmatprep.subr.mxu0 0.0
        %4215 = vmatpush1.msra.mxu0 0.0
        %4216 = vmatprep.subr.mxu0 0.0
        %4217 = vmatpush1.msra.mxu0 0.0
        %4218 = vmatprep.subr.mxu0 0.0
        %4219 = vmatpush1.msra.mxu0 0.0
        %4220 = vmatprep.subr.mxu0 0.0
        %4221 = vmatpush1.msra.mxu0 0.0
        %4222 = vmatprep.subr.mxu0 0.0
        %4223 = vmatpush1.msra.mxu0 0.0
        %4224 = vmatprep.subr.mxu0 0.0
        %4225 = vmatpush1.msra.mxu0 0.0
        %4226 = vmatprep.subr.mxu0 0.0
        %4227 = vmatpush1.msra.mxu0 0.0
        %4228 = vmatprep.subr.mxu0 0.0
        %4229 = vmatpush1.msra.mxu0 0.0
        %4230 = vmatprep.subr.mxu0 0.0
        %4231 = vmatpush1.msra.mxu0 0.0
        %4232 = vmatprep.subr.mxu0 0.0
        %4233 = vmatpush1.msra.mxu0 0.0
        %4234 = vmatprep.subr.mxu0 0.0
        %4235 = vmatpush1.msra.mxu0 0.0
        %4236 = vmatprep.subr.mxu0 0.0
        %4237 = vmatpush1.msra.mxu0 0.0
        %4238 = vmatprep.subr.mxu0 0.0
        %4239 = vmatpush1.msra.mxu0 0.0
        %4240 = vmatprep.subr.mxu0 0.0
        %4241 = vmatpush1.msra.mxu0 0.0
        %4242 = vmatprep.subr.mxu0 0.0
        %4243 = vmatpush1.msra.mxu0 0.0
        %4244 = vmatprep.subr.mxu0 0.0
        %4245 = vmatpush1.msra.mxu0 0.0
        %4246 = vmatprep.subr.mxu0 0.0
        %4247 = vmatpush1.msra.mxu0 0.0
        %4248 = vmatprep.subr.mxu0 0.0
        %4249 = vmatpush1.msra.mxu0 0.0
        %4250 = vmatprep.subr.mxu0 0.0
        %4251 = vmatpush1.msra.mxu0 0.0
        %4252 = vmatprep.subr.mxu0 0.0
        %4253 = vmatpush1.msra.mxu0 0.0
        %4254 = vmatprep.subr.mxu0 0.0
        %4255 = vmatpush1.msra.mxu0 0.0
        %4256 = vmatprep.subr.mxu0 0.0
        %4257 = vmatpush1.msra.mxu0 0.0
        %4258 = vmatprep.subr.mxu0 0.0
        %4259 = vmatpush1.msra.mxu0 0.0
        %4260 = vmatprep.subr.mxu0 0.0
        %4261 = vmatpush1.msra.mxu0 0.0
        %4262 = vmatprep.subr.mxu0 0.0
        %4263 = vmatpush1.msra.mxu0 0.0
        %4264 = vmatprep.subr.mxu0 0.0
        %4265 = vmatpush1.msra.mxu0 0.0
        %4266 = vmatprep.subr.mxu0 0.0
        %4267 = vmatpush1.msra.mxu0 0.0
        %4268 = vmatprep.mubr.f32.mxu0 0.0
        %4269 = vmatmul.mubr.f32.gmra.mrb[0].mxu0 %v4202
        %v4270 = vpop.f32.mrb[0].mxu0
        %v4271 = vadd.f32 %v4199, %v4270
        %v4272 = vpop.f32.mrb[0].mxu0
        %4273 = vdwg.mxu0
        %v4274 = vmax.f32 %v4271, 0.0
        %v4275 = vadd.f32 %v4189, %v4274
        %v4276 = vld [vmem:[%s57] sm:$0xff]
        %v4277 = vld [vmem:[%s57 + $0x8] sm:$0xff]
        %v4278 = vld [vmem:[%s57 + $0x10] sm:$0xff]
        %v4279 = vld [vmem:[%s57 + $0x18] sm:$0xff]
        %v4280 = vld [vmem:[%s51] sm:$0x1]
        %v4282 = vlaneseq
        %v4283 = vshrl.u32 %v4282, 7
        %v4284 = vsub.s32 0, %v4283
        %v4285 = vrot.slane %v4280, %v4284
        %4287 = vmatprep.subr.mxu0 0.0
        %4288 = vmatpush1.msra.mxu0 %v4276
        %4289 = vmatprep.subr.mxu0 0.0
        %4290 = vmatpush1.msra.mxu0 %v4277
        %4291 = vmatprep.subr.mxu0 0.0
        %4292 = vmatpush1.msra.mxu0 %v4278
        %4293 = vmatprep.subr.mxu0 0.0
        %4294 = vmatpush1.msra.mxu0 %v4279
        %4295 = vmatprep.subr.mxu0 0.0
        %4296 = vmatpush1.msra.mxu0 0.0
        %4297 = vmatprep.subr.mxu0 0.0
        %4298 = vmatpush1.msra.mxu0 0.0
        %4299 = vmatprep.subr.mxu0 0.0
        %4300 = vmatpush1.msra.mxu0 0.0
        %4301 = vmatprep.subr.mxu0 0.0
        %4302 = vmatpush1.msra.mxu0 0.0
        %4303 = vmatprep.subr.mxu0 0.0
        %4304 = vmatpush1.msra.mxu0 0.0
        %4305 = vmatprep.subr.mxu0 0.0
        %4306 = vmatpush1.msra.mxu0 0.0
        %4307 = vmatprep.subr.mxu0 0.0
        %4308 = vmatpush1.msra.mxu0 0.0
        %4309 = vmatprep.subr.mxu0 0.0
        %4310 = vmatpush1.msra.mxu0 0.0
        %4311 = vmatprep.subr.mxu0 0.0
        %4312 = vmatpush1.msra.mxu0 0.0
        %4313 = vmatprep.subr.mxu0 0.0
        %4314 = vmatpush1.msra.mxu0 0.0
        %4315 = vmatprep.subr.mxu0 0.0
        %4316 = vmatpush1.msra.mxu0 0.0
        %4317 = vmatprep.subr.mxu0 0.0
        %4318 = vmatpush1.msra.mxu0 0.0
        %4319 = vmatprep.subr.mxu0 0.0
        %4320 = vmatpush1.msra.mxu0 0.0
        %4321 = vmatprep.subr.mxu0 0.0
        %4322 = vmatpush1.msra.mxu0 0.0
        %4323 = vmatprep.subr.mxu0 0.0
        %4324 = vmatpush1.msra.mxu0 0.0
        %4325 = vmatprep.subr.mxu0 0.0
        %4326 = vmatpush1.msra.mxu0 0.0
        %4327 = vmatprep.subr.mxu0 0.0
        %4328 = vmatpush1.msra.mxu0 0.0
        %4329 = vmatprep.subr.mxu0 0.0
        %4330 = vmatpush1.msra.mxu0 0.0
        %4331 = vmatprep.subr.mxu0 0.0
        %4332 = vmatpush1.msra.mxu0 0.0
        %4333 = vmatprep.subr.mxu0 0.0
        %4334 = vmatpush1.msra.mxu0 0.0
        %4335 = vmatprep.subr.mxu0 0.0
        %4336 = vmatpush1.msra.mxu0 0.0
        %4337 = vmatprep.subr.mxu0 0.0
        %4338 = vmatpush1.msra.mxu0 0.0
        %4339 = vmatprep.subr.mxu0 0.0
        %4340 = vmatpush1.msra.mxu0 0.0
        %4341 = vmatprep.subr.mxu0 0.0
        %4342 = vmatpush1.msra.mxu0 0.0
        %4343 = vmatprep.subr.mxu0 0.0
        %4344 = vmatpush1.msra.mxu0 0.0
        %4345 = vmatprep.subr.mxu0 0.0
        %4346 = vmatpush1.msra.mxu0 0.0
        %4347 = vmatprep.subr.mxu0 0.0
        %4348 = vmatpush1.msra.mxu0 0.0
        %4349 = vmatprep.subr.mxu0 0.0
        %4350 = vmatpush1.msra.mxu0 0.0
        %4351 = vmatprep.mubr.f32.mxu0 0.0
        %4352 = vmatmul.mubr.f32.gmra.mrb[0].mxu0 %v3438
        %v4353 = vpop.f32.mrb[0].mxu0
        %v4354 = vadd.f32 %v4285, %v4353
        %v4355 = vpop.f32.mrb[0].mxu0
        %4356 = vdwg.mxu0
        %v4357 = vld [vmem:[%s53] sm:$0xff]
        %v4358 = vld [vmem:[%s53 + $0x8] sm:$0xff]
        %v4359 = vld [vmem:[%s53 + $0x10] sm:$0xff]
        %v4360 = vld [vmem:[%s53 + $0x18] sm:$0xff]
        %v4361 = vld [vmem:[%s47] sm:$0x1]
        %v4363 = vlaneseq
        %v4364 = vshrl.u32 %v4363, 7
        %v4365 = vsub.s32 0, %v4364
        %v4366 = vrot.slane %v4361, %v4365
        %v4369 = vsel %vm1481, %v4275, 0
        %4371 = vmatprep.subr.mxu0 0.0
        %4372 = vmatpush1.msra.mxu0 %v4357
        %4373 = vmatprep.subr.mxu0 0.0
        %4374 = vmatpush1.msra.mxu0 %v4358
        %4375 = vmatprep.subr.mxu0 0.0
        %4376 = vmatpush1.msra.mxu0 %v4359
        %4377 = vmatprep.subr.mxu0 0.0
        %4378 = vmatpush1.msra.mxu0 %v4360
        %4379 = vmatprep.subr.mxu0 0.0
        %4380 = vmatpush1.msra.mxu0 0.0
        %4381 = vmatprep.subr.mxu0 0.0
        %4382 = vmatpush1.msra.mxu0 0.0
        %4383 = vmatprep.subr.mxu0 0.0
        %4384 = vmatpush1.msra.mxu0 0.0
        %4385 = vmatprep.subr.mxu0 0.0
        %4386 = vmatpush1.msra.mxu0 0.0
        %4387 = vmatprep.subr.mxu0 0.0
        %4388 = vmatpush1.msra.mxu0 0.0
        %4389 = vmatprep.subr.mxu0 0.0
        %4390 = vmatpush1.msra.mxu0 0.0
        %4391 = vmatprep.subr.mxu0 0.0
        %4392 = vmatpush1.msra.mxu0 0.0
        %4393 = vmatprep.subr.mxu0 0.0
        %4394 = vmatpush1.msra.mxu0 0.0
        %4395 = vmatprep.subr.mxu0 0.0
        %4396 = vmatpush1.msra.mxu0 0.0
        %4397 = vmatprep.subr.mxu0 0.0
        %4398 = vmatpush1.msra.mxu0 0.0
        %4399 = vmatprep.subr.mxu0 0.0
        %4400 = vmatpush1.msra.mxu0 0.0
        %4401 = vmatprep.subr.mxu0 0.0
        %4402 = vmatpush1.msra.mxu0 0.0
        %4403 = vmatprep.subr.mxu0 0.0
        %4404 = vmatpush1.msra.mxu0 0.0
        %4405 = vmatprep.subr.mxu0 0.0
        %4406 = vmatpush1.msra.mxu0 0.0
        %4407 = vmatprep.subr.mxu0 0.0
        %4408 = vmatpush1.msra.mxu0 0.0
        %4409 = vmatprep.subr.mxu0 0.0
        %4410 = vmatpush1.msra.mxu0 0.0
        %4411 = vmatprep.subr.mxu0 0.0
        %4412 = vmatpush1.msra.mxu0 0.0
        %4413 = vmatprep.subr.mxu0 0.0
        %4414 = vmatpush1.msra.mxu0 0.0
        %4415 = vmatprep.subr.mxu0 0.0
        %4416 = vmatpush1.msra.mxu0 0.0
        %4417 = vmatprep.subr.mxu0 0.0
        %4418 = vmatpush1.msra.mxu0 0.0
        %4419 = vmatprep.subr.mxu0 0.0
        %4420 = vmatpush1.msra.mxu0 0.0
        %4421 = vmatprep.subr.mxu0 0.0
        %4422 = vmatpush1.msra.mxu0 0.0
        %4423 = vmatprep.subr.mxu0 0.0
        %4424 = vmatpush1.msra.mxu0 0.0
        %4425 = vmatprep.subr.mxu0 0.0
        %4426 = vmatpush1.msra.mxu0 0.0
        %4427 = vmatprep.subr.mxu0 0.0
        %4428 = vmatpush1.msra.mxu0 0.0
        %4429 = vmatprep.subr.mxu0 0.0
        %4430 = vmatpush1.msra.mxu0 0.0
        %4431 = vmatprep.subr.mxu0 0.0
        %4432 = vmatpush1.msra.mxu0 0.0
        %4433 = vmatprep.subr.mxu0 0.0
        %4434 = vmatpush1.msra.mxu0 0.0
        %4435 = vmatprep.mubr.f32.mxu0 0.0
        %4436 = vmatmul.mubr.f32.gmra.mrb[0].mxu0 %v4369
        %v4437 = vpop.f32.mrb[0].mxu0
        %v4438 = vadd.f32 %v4366, %v4437
        %v4439 = vpop.f32.mrb[0].mxu0
        %4440 = vdwg.mxu0
        %4442 = vrot.lane.b32.xlu0 %v4354, 120
        %v4443 = vpop.permute.xlu0 %4442
        %4445 = vrot.lane.b32.xlu0 %v4354, 112
        %v4446 = vpop.permute.xlu0 %4445
        %4448 = vrot.lane.b32.xlu0 %v4354, 104
        %v4449 = vpop.permute.xlu0 %4448
        %4452 = vrot.lane.b32.xlu0 %v4438, 120
        %v4453 = vpop.permute.xlu0 %4452
        %4454 = vrot.lane.b32.xlu0 %v4438, 112
        %v4455 = vpop.permute.xlu0 %4454
        %4456 = vrot.lane.b32.xlu0 %v4438, 104
        %v4457 = vpop.permute.xlu0 %4456
        %v4458 = vsel %vm1658, %v4354, 0
        %v4460 = vsel %vm1658, %v4438, 0
        %4462 = vmatprep.subr.mxu0 0.0
        %4463 = vmatpush1.xpose.msra.mxu0 %v4460
        %4464 = vmatprep.subr.mxu0 0.0
        %4465 = vmatpush1.xpose.msra.mxu0 0.0
        %4466 = vmatprep.subr.mxu0 0.0
        %4467 = vmatpush1.xpose.msra.mxu0 0.0
        %4468 = vmatprep.subr.mxu0 0.0
        %4469 = vmatpush1.xpose.msra.mxu0 0.0
        %4470 = vmatprep.subr.mxu0 0.0
        %4471 = vmatpush1.xpose.msra.mxu0 0.0
        %4472 = vmatprep.subr.mxu0 0.0
        %4473 = vmatpush1.xpose.msra.mxu0 0.0
        %4474 = vmatprep.subr.mxu0 0.0
        %4475 = vmatpush1.xpose.msra.mxu0 0.0
        %4476 = vmatprep.subr.mxu0 0.0
        %4477 = vmatpush1.xpose.msra.mxu0 0.0
        %4478 = vmatprep.subr.mxu0 0.0
        %4479 = vmatpush1.xpose.msra.mxu0 0.0
        %4480 = vmatprep.subr.mxu0 0.0
        %4481 = vmatpush1.xpose.msra.mxu0 0.0
        %4482 = vmatprep.subr.mxu0 0.0
        %4483 = vmatpush1.xpose.msra.mxu0 0.0
        %4484 = vmatprep.subr.mxu0 0.0
        %4485 = vmatpush1.xpose.msra.mxu0 0.0
        %4486 = vmatprep.subr.mxu0 0.0
        %4487 = vmatpush1.xpose.msra.mxu0 0.0
        %4488 = vmatprep.subr.mxu0 0.0
        %4489 = vmatpush1.xpose.msra.mxu0 0.0
        %4490 = vmatprep.subr.mxu0 0.0
        %4491 = vmatpush1.xpose.msra.mxu0 0.0
        %4492 = vmatprep.subr.mxu0 0.0
        %4493 = vmatpush1.xpose.msra.mxu0 0.0
        %4494 = vmatprep.subr.mxu0 0.0
        %4495 = vmatpush1.xpose.msra.mxu0 0.0
        %4496 = vmatprep.subr.mxu0 0.0
        %4497 = vmatpush1.xpose.msra.mxu0 0.0
        %4498 = vmatprep.subr.mxu0 0.0
        %4499 = vmatpush1.xpose.msra.mxu0 0.0
        %4500 = vmatprep.subr.mxu0 0.0
        %4501 = vmatpush1.xpose.msra.mxu0 0.0
        %4502 = vmatprep.subr.mxu0 0.0
        %4503 = vmatpush1.xpose.msra.mxu0 0.0
        %4504 = vmatprep.subr.mxu0 0.0
        %4505 = vmatpush1.xpose.msra.mxu0 0.0
        %4506 = vmatprep.subr.mxu0 0.0
        %4507 = vmatpush1.xpose.msra.mxu0 0.0
        %4508 = vmatprep.subr.mxu0 0.0
        %4509 = vmatpush1.xpose.msra.mxu0 0.0
        %4510 = vmatprep.subr.mxu0 0.0
        %4511 = vmatpush1.xpose.msra.mxu0 0.0
        %4512 = vmatprep.subr.mxu0 0.0
        %4513 = vmatpush1.xpose.msra.mxu0 0.0
        %4514 = vmatprep.subr.mxu0 0.0
        %4515 = vmatpush1.xpose.msra.mxu0 0.0
        %4516 = vmatprep.subr.mxu0 0.0
        %4517 = vmatpush1.xpose.msra.mxu0 0.0
        %4518 = vmatprep.subr.mxu0 0.0
        %4519 = vmatpush1.xpose.msra.mxu0 0.0
        %4520 = vmatprep.subr.mxu0 0.0
        %4521 = vmatpush1.xpose.msra.mxu0 0.0
        %4522 = vmatprep.subr.mxu0 0.0
        %4523 = vmatpush1.xpose.msra.mxu0 0.0
        %4524 = vmatprep.subr.mxu0 0.0
        %4525 = vmatpush1.xpose.msra.mxu0 0.0
        %4526 = vmatprep.mubr.f32.mxu0 0.0
        %4527 = vmatmul.mubr.f32.gmra.mrb[0].mxu0 %v4458
        %v4528 = vpop.f32.mrb[0].mxu0
        %v4529 = vadd.f32 0.0, %v4528
        %v4530 = vpop.f32.mrb[0].mxu0
        %4531 = vdwg.mxu0
        %v4532 = vsel %vm1658, %v4443, 0
        %v4534 = vsel %vm1658, %v4453, 0
        %4536 = vmatprep.subr.mxu0 0.0
        %4537 = vmatpush1.xpose.msra.mxu0 %v4534
        %4538 = vmatprep.subr.mxu0 0.0
        %4539 = vmatpush1.xpose.msra.mxu0 0.0
        %4540 = vmatprep.subr.mxu0 0.0
        %4541 = vmatpush1.xpose.msra.mxu0 0.0
        %4542 = vmatprep.subr.mxu0 0.0
        %4543 = vmatpush1.xpose.msra.mxu0 0.0
        %4544 = vmatprep.subr.mxu0 0.0
        %4545 = vmatpush1.xpose.msra.mxu0 0.0
        %4546 = vmatprep.subr.mxu0 0.0
        %4547 = vmatpush1.xpose.msra.mxu0 0.0
        %4548 = vmatprep.subr.mxu0 0.0
        %4549 = vmatpush1.xpose.msra.mxu0 0.0
        %4550 = vmatprep.subr.mxu0 0.0
        %4551 = vmatpush1.xpose.msra.mxu0 0.0
        %4552 = vmatprep.subr.mxu0 0.0
        %4553 = vmatpush1.xpose.msra.mxu0 0.0
        %4554 = vmatprep.subr.mxu0 0.0
        %4555 = vmatpush1.xpose.msra.mxu0 0.0
        %4556 = vmatprep.subr.mxu0 0.0
        %4557 = vmatpush1.xpose.msra.mxu0 0.0
        %4558 = vmatprep.subr.mxu0 0.0
        %4559 = vmatpush1.xpose.msra.mxu0 0.0
        %4560 = vmatprep.subr.mxu0 0.0
        %4561 = vmatpush1.xpose.msra.mxu0 0.0
        %4562 = vmatprep.subr.mxu0 0.0
        %4563 = vmatpush1.xpose.msra.mxu0 0.0
        %4564 = vmatprep.subr.mxu0 0.0
        %4565 = vmatpush1.xpose.msra.mxu0 0.0
        %4566 = vmatprep.subr.mxu0 0.0
        %4567 = vmatpush1.xpose.msra.mxu0 0.0
        %4568 = vmatprep.subr.mxu0 0.0
        %4569 = vmatpush1.xpose.msra.mxu0 0.0
        %4570 = vmatprep.subr.mxu0 0.0
        %4571 = vmatpush1.xpose.msra.mxu0 0.0
        %4572 = vmatprep.subr.mxu0 0.0
        %4573 = vmatpush1.xpose.msra.mxu0 0.0
        %4574 = vmatprep.subr.mxu0 0.0
        %4575 = vmatpush1.xpose.msra.mxu0 0.0
        %4576 = vmatprep.subr.mxu0 0.0
        %4577 = vmatpush1.xpose.msra.mxu0 0.0
        %4578 = vmatprep.subr.mxu0 0.0
        %4579 = vmatpush1.xpose.msra.mxu0 0.0
        %4580 = vmatprep.subr.mxu0 0.0
        %4581 = vmatpush1.xpose.msra.mxu0 0.0
        %4582 = vmatprep.subr.mxu0 0.0
        %4583 = vmatpush1.xpose.msra.mxu0 0.0
        %4584 = vmatprep.subr.mxu0 0.0
        %4585 = vmatpush1.xpose.msra.mxu0 0.0
        %4586 = vmatprep.subr.mxu0 0.0
        %4587 = vmatpush1.xpose.msra.mxu0 0.0
        %4588 = vmatprep.subr.mxu0 0.0
        %4589 = vmatpush1.xpose.msra.mxu0 0.0
        %4590 = vmatprep.subr.mxu0 0.0
        %4591 = vmatpush1.xpose.msra.mxu0 0.0
        %4592 = vmatprep.subr.mxu0 0.0
        %4593 = vmatpush1.xpose.msra.mxu0 0.0
        %4594 = vmatprep.subr.mxu0 0.0
        %4595 = vmatpush1.xpose.msra.mxu0 0.0
        %4596 = vmatprep.subr.mxu0 0.0
        %4597 = vmatpush1.xpose.msra.mxu0 0.0
        %4598 = vmatprep.subr.mxu0 0.0
        %4599 = vmatpush1.xpose.msra.mxu0 0.0
        %4600 = vmatprep.mubr.f32.mxu0 0.0
        %4601 = vmatmul.mubr.f32.gmra.mrb[0].mxu0 %v4532
        %v4602 = vpop.f32.mrb[0].mxu0
        %v4603 = vadd.f32 0.0, %v4602
        %v4604 = vpop.f32.mrb[0].mxu0
        %4605 = vdwg.mxu0
        %v4606 = vsel %vm1658, %v4446, 0
        %v4608 = vsel %vm1658, %v4455, 0
        %4610 = vmatprep.subr.mxu0 0.0
        %4611 = vmatpush1.xpose.msra.mxu0 %v4608
        %4612 = vmatprep.subr.mxu0 0.0
        %4613 = vmatpush1.xpose.msra.mxu0 0.0
        %4614 = vmatprep.subr.mxu0 0.0
        %4615 = vmatpush1.xpose.msra.mxu0 0.0
        %4616 = vmatprep.subr.mxu0 0.0
        %4617 = vmatpush1.xpose.msra.mxu0 0.0
        %4618 = vmatprep.subr.mxu0 0.0
        %4619 = vmatpush1.xpose.msra.mxu0 0.0
        %4620 = vmatprep.subr.mxu0 0.0
        %4621 = vmatpush1.xpose.msra.mxu0 0.0
        %4622 = vmatprep.subr.mxu0 0.0
        %4623 = vmatpush1.xpose.msra.mxu0 0.0
        %4624 = vmatprep.subr.mxu0 0.0
        %4625 = vmatpush1.xpose.msra.mxu0 0.0
        %4626 = vmatprep.subr.mxu0 0.0
        %4627 = vmatpush1.xpose.msra.mxu0 0.0
        %4628 = vmatprep.subr.mxu0 0.0
        %4629 = vmatpush1.xpose.msra.mxu0 0.0
        %4630 = vmatprep.subr.mxu0 0.0
        %4631 = vmatpush1.xpose.msra.mxu0 0.0
        %4632 = vmatprep.subr.mxu0 0.0
        %4633 = vmatpush1.xpose.msra.mxu0 0.0
        %4634 = vmatprep.subr.mxu0 0.0
        %4635 = vmatpush1.xpose.msra.mxu0 0.0
        %4636 = vmatprep.subr.mxu0 0.0
        %4637 = vmatpush1.xpose.msra.mxu0 0.0
        %4638 = vmatprep.subr.mxu0 0.0
        %4639 = vmatpush1.xpose.msra.mxu0 0.0
        %4640 = vmatprep.subr.mxu0 0.0
        %4641 = vmatpush1.xpose.msra.mxu0 0.0
        %4642 = vmatprep.subr.mxu0 0.0
        %4643 = vmatpush1.xpose.msra.mxu0 0.0
        %4644 = vmatprep.subr.mxu0 0.0
        %4645 = vmatpush1.xpose.msra.mxu0 0.0
        %4646 = vmatprep.subr.mxu0 0.0
        %4647 = vmatpush1.xpose.msra.mxu0 0.0
        %4648 = vmatprep.subr.mxu0 0.0
        %4649 = vmatpush1.xpose.msra.mxu0 0.0
        %4650 = vmatprep.subr.mxu0 0.0
        %4651 = vmatpush1.xpose.msra.mxu0 0.0
        %4652 = vmatprep.subr.mxu0 0.0
        %4653 = vmatpush1.xpose.msra.mxu0 0.0
        %4654 = vmatprep.subr.mxu0 0.0
        %4655 = vmatpush1.xpose.msra.mxu0 0.0
        %4656 = vmatprep.subr.mxu0 0.0
        %4657 = vmatpush1.xpose.msra.mxu0 0.0
        %4658 = vmatprep.subr.mxu0 0.0
        %4659 = vmatpush1.xpose.msra.mxu0 0.0
        %4660 = vmatprep.subr.mxu0 0.0
        %4661 = vmatpush1.xpose.msra.mxu0 0.0
        %4662 = vmatprep.subr.mxu0 0.0
        %4663 = vmatpush1.xpose.msra.mxu0 0.0
        %4664 = vmatprep.subr.mxu0 0.0
        %4665 = vmatpush1.xpose.msra.mxu0 0.0
        %4666 = vmatprep.subr.mxu0 0.0
        %4667 = vmatpush1.xpose.msra.mxu0 0.0
        %4668 = vmatprep.subr.mxu0 0.0
        %4669 = vmatpush1.xpose.msra.mxu0 0.0
        %4670 = vmatprep.subr.mxu0 0.0
        %4671 = vmatpush1.xpose.msra.mxu0 0.0
        %4672 = vmatprep.subr.mxu0 0.0
        %4673 = vmatpush1.xpose.msra.mxu0 0.0
        %4674 = vmatprep.mubr.f32.mxu0 0.0
        %4675 = vmatmul.mubr.f32.gmra.mrb[0].mxu0 %v4606
        %v4676 = vpop.f32.mrb[0].mxu0
        %v4677 = vadd.f32 0.0, %v4676
        %v4678 = vpop.f32.mrb[0].mxu0
        %4679 = vdwg.mxu0
        %v4680 = vsel %vm1658, %v4449, 0
        %v4682 = vsel %vm1658, %v4457, 0
        %4684 = vmatprep.subr.mxu0 0.0
        %4685 = vmatpush1.xpose.msra.mxu0 %v4682
        %4686 = vmatprep.subr.mxu0 0.0
        %4687 = vmatpush1.xpose.msra.mxu0 0.0
        %4688 = vmatprep.subr.mxu0 0.0
        %4689 = vmatpush1.xpose.msra.mxu0 0.0
        %4690 = vmatprep.subr.mxu0 0.0
        %4691 = vmatpush1.xpose.msra.mxu0 0.0
        %4692 = vmatprep.subr.mxu0 0.0
        %4693 = vmatpush1.xpose.msra.mxu0 0.0
        %4694 = vmatprep.subr.mxu0 0.0
        %4695 = vmatpush1.xpose.msra.mxu0 0.0
        %4696 = vmatprep.subr.mxu0 0.0
        %4697 = vmatpush1.xpose.msra.mxu0 0.0
        %4698 = vmatprep.subr.mxu0 0.0
        %4699 = vmatpush1.xpose.msra.mxu0 0.0
        %4700 = vmatprep.subr.mxu0 0.0
        %4701 = vmatpush1.xpose.msra.mxu0 0.0
        %4702 = vmatprep.subr.mxu0 0.0
        %4703 = vmatpush1.xpose.msra.mxu0 0.0
        %4704 = vmatprep.subr.mxu0 0.0
        %4705 = vmatpush1.xpose.msra.mxu0 0.0
        %4706 = vmatprep.subr.mxu0 0.0
        %4707 = vmatpush1.xpose.msra.mxu0 0.0
        %4708 = vmatprep.subr.mxu0 0.0
        %4709 = vmatpush1.xpose.msra.mxu0 0.0
        %4710 = vmatprep.subr.mxu0 0.0
        %4711 = vmatpush1.xpose.msra.mxu0 0.0
        %4712 = vmatprep.subr.mxu0 0.0
        %4713 = vmatpush1.xpose.msra.mxu0 0.0
        %4714 = vmatprep.subr.mxu0 0.0
        %4715 = vmatpush1.xpose.msra.mxu0 0.0
        %4716 = vmatprep.subr.mxu0 0.0
        %4717 = vmatpush1.xpose.msra.mxu0 0.0
        %4718 = vmatprep.subr.mxu0 0.0
        %4719 = vmatpush1.xpose.msra.mxu0 0.0
        %4720 = vmatprep.subr.mxu0 0.0
        %4721 = vmatpush1.xpose.msra.mxu0 0.0
        %4722 = vmatprep.subr.mxu0 0.0
        %4723 = vmatpush1.xpose.msra.mxu0 0.0
        %4724 = vmatprep.subr.mxu0 0.0
        %4725 = vmatpush1.xpose.msra.mxu0 0.0
        %4726 = vmatprep.subr.mxu0 0.0
        %4727 = vmatpush1.xpose.msra.mxu0 0.0
        %4728 = vmatprep.subr.mxu0 0.0
        %4729 = vmatpush1.xpose.msra.mxu0 0.0
        %4730 = vmatprep.subr.mxu0 0.0
        %4731 = vmatpush1.xpose.msra.mxu0 0.0
        %4732 = vmatprep.subr.mxu0 0.0
        %4733 = vmatpush1.xpose.msra.mxu0 0.0
        %4734 = vmatprep.subr.mxu0 0.0
        %4735 = vmatpush1.xpose.msra.mxu0 0.0
        %4736 = vmatprep.subr.mxu0 0.0
        %4737 = vmatpush1.xpose.msra.mxu0 0.0
        %4738 = vmatprep.subr.mxu0 0.0
        %4739 = vmatpush1.xpose.msra.mxu0 0.0
        %4740 = vmatprep.subr.mxu0 0.0
        %4741 = vmatpush1.xpose.msra.mxu0 0.0
        %4742 = vmatprep.subr.mxu0 0.0
        %4743 = vmatpush1.xpose.msra.mxu0 0.0
        %4744 = vmatprep.subr.mxu0 0.0
        %4745 = vmatpush1.xpose.msra.mxu0 0.0
        %4746 = vmatprep.subr.mxu0 0.0
        %4747 = vmatpush1.xpose.msra.mxu0 0.0
        %4748 = vmatprep.mubr.f32.mxu0 0.0
        %4749 = vmatmul.mubr.f32.gmra.mrb[0].mxu0 %v4680
        %v4750 = vpop.f32.mrb[0].mxu0
        %v4751 = vadd.f32 0.0, %v4750
        %v4752 = vpop.f32.mrb[0].mxu0
        %4753 = vdwg.mxu0
        %v4754 = vsel %vm1658, %v4529, -inf
        %4755 = vmax.xlane.f32.xlu0 %v4754
        %v4756 = vpop.xlane.xlu0 %4755
        %v4757 = vsel %vm1658, %v4603, -inf
        %4758 = vmax.xlane.f32.xlu0 %v4757
        %v4759 = vpop.xlane.xlu0 %4758
        %v4760 = vsel %vm1658, %v4677, -inf
        %4761 = vmax.xlane.f32.xlu0 %v4760
        %v4762 = vpop.xlane.xlu0 %4761
        %v4763 = vsel %vm1658, %v4751, -inf
        %4764 = vmax.xlane.f32.xlu0 %v4763
        %v4765 = vpop.xlane.xlu0 %4764
        %v4766 = vsub.f32 %v4529, %v4756
        %v4767 = vsub.f32 %v4603, %v4759
        %v4768 = vsub.f32 %v4677, %v4762
        %v4769 = vsub.f32 %v4751, %v4765
        %v4770 = vmul.f32 %v4766, 1.442695
        %v4771 = vpow.pop %v4770
        %v4772 = vmul.f32 %v4767, 1.442695
        %v4773 = vpow.pop %v4772
        %v4774 = vmul.f32 %v4768, 1.442695
        %v4775 = vpow.pop %v4774
        %v4776 = vmul.f32 %v4769, 1.442695
        %v4777 = vpow.pop %v4776
        %v4778 = vsel %vm1658, %v4771, 0.0
        %4779 = vadd.xlane.f32.xlu0 %v4778
        %v4780 = vpop.xlane.xlu0 %4779
        %v4781 = vsel %vm1658, %v4773, 0.0
        %4782 = vadd.xlane.f32.xlu0 %v4781
        %v4783 = vpop.xlane.xlu0 %4782
        %v4784 = vsel %vm1658, %v4775, 0.0
        %4785 = vadd.xlane.f32.xlu0 %v4784
        %v4786 = vpop.xlane.xlu0 %4785
        %v4787 = vsel %vm1658, %v4777, 0.0
        %4788 = vadd.xlane.f32.xlu0 %v4787
        %v4789 = vpop.xlane.xlu0 %4788
        %v4790 = vrcp.pop %v4780
        %v4791 = vrcp.pop %v4783
        %v4792 = vrcp.pop %v4786
        %v4793 = vrcp.pop %v4789
        %v4794 = vmul.f32 %v4771, %v4790
        %v4795 = vmul.f32 %v4773, %v4791
        %v4796 = vmul.f32 %v4775, %v4792
        %v4797 = vmul.f32 %v4777, %v4793
        %4798 = vrot.lane.b32.xlu0 %v4438, 96
        %v4799 = vpop.permute.xlu0 %4798
        %v4802 = vsel %vm1658, %v4794, 0
        %4804 = vmatprep.subr.mxu0 0.0
        %4805 = vmatpush1.msra.mxu0 %v4799
        %4806 = vmatprep.subr.mxu0 0.0
        %4807 = vmatpush1.msra.mxu0 0.0
        %4808 = vmatprep.subr.mxu0 0.0
        %4809 = vmatpush1.msra.mxu0 0.0
        %4810 = vmatprep.subr.mxu0 0.0
        %4811 = vmatpush1.msra.mxu0 0.0
        %4812 = vmatprep.subr.mxu0 0.0
        %4813 = vmatpush1.msra.mxu0 0.0
        %4814 = vmatprep.subr.mxu0 0.0
        %4815 = vmatpush1.msra.mxu0 0.0
        %4816 = vmatprep.subr.mxu0 0.0
        %4817 = vmatpush1.msra.mxu0 0.0
        %4818 = vmatprep.subr.mxu0 0.0
        %4819 = vmatpush1.msra.mxu0 0.0
        %4820 = vmatprep.subr.mxu0 0.0
        %4821 = vmatpush1.msra.mxu0 0.0
        %4822 = vmatprep.subr.mxu0 0.0
        %4823 = vmatpush1.msra.mxu0 0.0
        %4824 = vmatprep.subr.mxu0 0.0
        %4825 = vmatpush1.msra.mxu0 0.0
        %4826 = vmatprep.subr.mxu0 0.0
        %4827 = vmatpush1.msra.mxu0 0.0
        %4828 = vmatprep.subr.mxu0 0.0
        %4829 = vmatpush1.msra.mxu0 0.0
        %4830 = vmatprep.subr.mxu0 0.0
        %4831 = vmatpush1.msra.mxu0 0.0
        %4832 = vmatprep.subr.mxu0 0.0
        %4833 = vmatpush1.msra.mxu0 0.0
        %4834 = vmatprep.subr.mxu0 0.0
        %4835 = vmatpush1.msra.mxu0 0.0
        %4836 = vmatprep.subr.mxu0 0.0
        %4837 = vmatpush1.msra.mxu0 0.0
        %4838 = vmatprep.subr.mxu0 0.0
        %4839 = vmatpush1.msra.mxu0 0.0
        %4840 = vmatprep.subr.mxu0 0.0
        %4841 = vmatpush1.msra.mxu0 0.0
        %4842 = vmatprep.subr.mxu0 0.0
        %4843 = vmatpush1.msra.mxu0 0.0
        %4844 = vmatprep.subr.mxu0 0.0
        %4845 = vmatpush1.msra.mxu0 0.0
        %4846 = vmatprep.subr.mxu0 0.0
        %4847 = vmatpush1.msra.mxu0 0.0
        %4848 = vmatprep.subr.mxu0 0.0
        %4849 = vmatpush1.msra.mxu0 0.0
        %4850 = vmatprep.subr.mxu0 0.0
        %4851 = vmatpush1.msra.mxu0 0.0
        %4852 = vmatprep.subr.mxu0 0.0
        %4853 = vmatpush1.msra.mxu0 0.0
        %4854 = vmatprep.subr.mxu0 0.0
        %4855 = vmatpush1.msra.mxu0 0.0
        %4856 = vmatprep.subr.mxu0 0.0
        %4857 = vmatpush1.msra.mxu0 0.0
        %4858 = vmatprep.subr.mxu0 0.0
        %4859 = vmatpush1.msra.mxu0 0.0
        %4860 = vmatprep.subr.mxu0 0.0
        %4861 = vmatpush1.msra.mxu0 0.0
        %4862 = vmatprep.subr.mxu0 0.0
        %4863 = vmatpush1.msra.mxu0 0.0
        %4864 = vmatprep.subr.mxu0 0.0
        %4865 = vmatpush1.msra.mxu0 0.0
        %4866 = vmatprep.subr.mxu0 0.0
        %4867 = vmatpush1.msra.mxu0 0.0
        %4868 = vmatprep.mubr.f32.mxu0 0.0
        %4869 = vmatmul.mubr.f32.gmra.mrb[0].mxu0 %v4802
        %v4870 = vpop.f32.mrb[0].mxu0
        %v4871 = vadd.f32 0.0, %v4870
        %v4872 = vpop.f32.mrb[0].mxu0
        %4873 = vdwg.mxu0
        %4874 = vrot.lane.b32.xlu0 %v4453, 96
        %v4875 = vpop.permute.xlu0 %4874
        %v4878 = vsel %vm1658, %v4795, 0
        %4880 = vmatprep.subr.mxu0 0.0
        %4881 = vmatpush1.msra.mxu0 %v4875
        %4882 = vmatprep.subr.mxu0 0.0
        %4883 = vmatpush1.msra.mxu0 0.0
        %4884 = vmatprep.subr.mxu0 0.0
        %4885 = vmatpush1.msra.mxu0 0.0
        %4886 = vmatprep.subr.mxu0 0.0
        %4887 = vmatpush1.msra.mxu0 0.0
        %4888 = vmatprep.subr.mxu0 0.0
        %4889 = vmatpush1.msra.mxu0 0.0
        %4890 = vmatprep.subr.mxu0 0.0
        %4891 = vmatpush1.msra.mxu0 0.0
        %4892 = vmatprep.subr.mxu0 0.0
        %4893 = vmatpush1.msra.mxu0 0.0
        %4894 = vmatprep.subr.mxu0 0.0
        %4895 = vmatpush1.msra.mxu0 0.0
        %4896 = vmatprep.subr.mxu0 0.0
        %4897 = vmatpush1.msra.mxu0 0.0
        %4898 = vmatprep.subr.mxu0 0.0
        %4899 = vmatpush1.msra.mxu0 0.0
        %4900 = vmatprep.subr.mxu0 0.0
        %4901 = vmatpush1.msra.mxu0 0.0
        %4902 = vmatprep.subr.mxu0 0.0
        %4903 = vmatpush1.msra.mxu0 0.0
        %4904 = vmatprep.subr.mxu0 0.0
        %4905 = vmatpush1.msra.mxu0 0.0
        %4906 = vmatprep.subr.mxu0 0.0
        %4907 = vmatpush1.msra.mxu0 0.0
        %4908 = vmatprep.subr.mxu0 0.0
        %4909 = vmatpush1.msra.mxu0 0.0
        %4910 = vmatprep.subr.mxu0 0.0
        %4911 = vmatpush1.msra.mxu0 0.0
        %4912 = vmatprep.subr.mxu0 0.0
        %4913 = vmatpush1.msra.mxu0 0.0
        %4914 = vmatprep.subr.mxu0 0.0
        %4915 = vmatpush1.msra.mxu0 0.0
        %4916 = vmatprep.subr.mxu0 0.0
        %4917 = vmatpush1.msra.mxu0 0.0
        %4918 = vmatprep.subr.mxu0 0.0
        %4919 = vmatpush1.msra.mxu0 0.0
        %4920 = vmatprep.subr.mxu0 0.0
        %4921 = vmatpush1.msra.mxu0 0.0
        %4922 = vmatprep.subr.mxu0 0.0
        %4923 = vmatpush1.msra.mxu0 0.0
        %4924 = vmatprep.subr.mxu0 0.0
        %4925 = vmatpush1.msra.mxu0 0.0
        %4926 = vmatprep.subr.mxu0 0.0
        %4927 = vmatpush1.msra.mxu0 0.0
        %4928 = vmatprep.subr.mxu0 0.0
        %4929 = vmatpush1.msra.mxu0 0.0
        %4930 = vmatprep.subr.mxu0 0.0
        %4931 = vmatpush1.msra.mxu0 0.0
        %4932 = vmatprep.subr.mxu0 0.0
        %4933 = vmatpush1.msra.mxu0 0.0
        %4934 = vmatprep.subr.mxu0 0.0
        %4935 = vmatpush1.msra.mxu0 0.0
        %4936 = vmatprep.subr.mxu0 0.0
        %4937 = vmatpush1.msra.mxu0 0.0
        %4938 = vmatprep.subr.mxu0 0.0
        %4939 = vmatpush1.msra.mxu0 0.0
        %4940 = vmatprep.subr.mxu0 0.0
        %4941 = vmatpush1.msra.mxu0 0.0
        %4942 = vmatprep.subr.mxu0 0.0
        %4943 = vmatpush1.msra.mxu0 0.0
        %4944 = vmatprep.mubr.f32.mxu0 0.0
        %4945 = vmatmul.mubr.f32.gmra.mrb[0].mxu0 %v4878
        %v4946 = vpop.f32.mrb[0].mxu0
        %v4947 = vadd.f32 0.0, %v4946
        %v4948 = vpop.f32.mrb[0].mxu0
        %4949 = vdwg.mxu0
        %4950 = vrot.lane.b32.xlu0 %v4455, 96
        %v4951 = vpop.permute.xlu0 %4950
        %v4954 = vsel %vm1658, %v4796, 0
        %4956 = vmatprep.subr.mxu0 0.0
        %4957 = vmatpush1.msra.mxu0 %v4951
        %4958 = vmatprep.subr.mxu0 0.0
        %4959 = vmatpush1.msra.mxu0 0.0
        %4960 = vmatprep.subr.mxu0 0.0
        %4961 = vmatpush1.msra.mxu0 0.0
        %4962 = vmatprep.subr.mxu0 0.0
        %4963 = vmatpush1.msra.mxu0 0.0
        %4964 = vmatprep.subr.mxu0 0.0
        %4965 = vmatpush1.msra.mxu0 0.0
        %4966 = vmatprep.subr.mxu0 0.0
        %4967 = vmatpush1.msra.mxu0 0.0
        %4968 = vmatprep.subr.mxu0 0.0
        %4969 = vmatpush1.msra.mxu0 0.0
        %4970 = vmatprep.subr.mxu0 0.0
        %4971 = vmatpush1.msra.mxu0 0.0
        %4972 = vmatprep.subr.mxu0 0.0
        %4973 = vmatpush1.msra.mxu0 0.0
        %4974 = vmatprep.subr.mxu0 0.0
        %4975 = vmatpush1.msra.mxu0 0.0
        %4976 = vmatprep.subr.mxu0 0.0
        %4977 = vmatpush1.msra.mxu0 0.0
        %4978 = vmatprep.subr.mxu0 0.0
        %4979 = vmatpush1.msra.mxu0 0.0
        %4980 = vmatprep.subr.mxu0 0.0
        %4981 = vmatpush1.msra.mxu0 0.0
        %4982 = vmatprep.subr.mxu0 0.0
        %4983 = vmatpush1.msra.mxu0 0.0
        %4984 = vmatprep.subr.mxu0 0.0
        %4985 = vmatpush1.msra.mxu0 0.0
        %4986 = vmatprep.subr.mxu0 0.0
        %4987 = vmatpush1.msra.mxu0 0.0
        %4988 = vmatprep.subr.mxu0 0.0
        %4989 = vmatpush1.msra.mxu0 0.0
        %4990 = vmatprep.subr.mxu0 0.0
        %4991 = vmatpush1.msra.mxu0 0.0
        %4992 = vmatprep.subr.mxu0 0.0
        %4993 = vmatpush1.msra.mxu0 0.0
        %4994 = vmatprep.subr.mxu0 0.0
        %4995 = vmatpush1.msra.mxu0 0.0
        %4996 = vmatprep.subr.mxu0 0.0
        %4997 = vmatpush1.msra.mxu0 0.0
        %4998 = vmatprep.subr.mxu0 0.0
        %4999 = vmatpush1.msra.mxu0 0.0
        %5000 = vmatprep.subr.mxu0 0.0
        %5001 = vmatpush1.msra.mxu0 0.0
        %5002 = vmatprep.subr.mxu0 0.0
        %5003 = vmatpush1.msra.mxu0 0.0
        %5004 = vmatprep.subr.mxu0 0.0
        %5005 = vmatpush1.msra.mxu0 0.0
        %5006 = vmatprep.subr.mxu0 0.0
        %5007 = vmatpush1.msra.mxu0 0.0
        %5008 = vmatprep.subr.mxu0 0.0
        %5009 = vmatpush1.msra.mxu0 0.0
        %5010 = vmatprep.subr.mxu0 0.0
        %5011 = vmatpush1.msra.mxu0 0.0
        %5012 = vmatprep.subr.mxu0 0.0
        %5013 = vmatpush1.msra.mxu0 0.0
        %5014 = vmatprep.subr.mxu0 0.0
        %5015 = vmatpush1.msra.mxu0 0.0
        %5016 = vmatprep.subr.mxu0 0.0
        %5017 = vmatpush1.msra.mxu0 0.0
        %5018 = vmatprep.subr.mxu0 0.0
        %5019 = vmatpush1.msra.mxu0 0.0
        %5020 = vmatprep.mubr.f32.mxu0 0.0
        %5021 = vmatmul.mubr.f32.gmra.mrb[0].mxu0 %v4954
        %v5022 = vpop.f32.mrb[0].mxu0
        %v5023 = vadd.f32 0.0, %v5022
        %v5024 = vpop.f32.mrb[0].mxu0
        %5025 = vdwg.mxu0
        %5026 = vrot.lane.b32.xlu0 %v4457, 96
        %v5027 = vpop.permute.xlu0 %5026
        %v5030 = vsel %vm1658, %v4797, 0
        %5032 = vmatprep.subr.mxu0 0.0
        %5033 = vmatpush1.msra.mxu0 %v5027
        %5034 = vmatprep.subr.mxu0 0.0
        %5035 = vmatpush1.msra.mxu0 0.0
        %5036 = vmatprep.subr.mxu0 0.0
        %5037 = vmatpush1.msra.mxu0 0.0
        %5038 = vmatprep.subr.mxu0 0.0
        %5039 = vmatpush1.msra.mxu0 0.0
        %5040 = vmatprep.subr.mxu0 0.0
        %5041 = vmatpush1.msra.mxu0 0.0
        %5042 = vmatprep.subr.mxu0 0.0
        %5043 = vmatpush1.msra.mxu0 0.0
        %5044 = vmatprep.subr.mxu0 0.0
        %5045 = vmatpush1.msra.mxu0 0.0
        %5046 = vmatprep.subr.mxu0 0.0
        %5047 = vmatpush1.msra.mxu0 0.0
        %5048 = vmatprep.subr.mxu0 0.0
        %5049 = vmatpush1.msra.mxu0 0.0
        %5050 = vmatprep.subr.mxu0 0.0
        %5051 = vmatpush1.msra.mxu0 0.0
        %5052 = vmatprep.subr.mxu0 0.0
        %5053 = vmatpush1.msra.mxu0 0.0
        %5054 = vmatprep.subr.mxu0 0.0
        %5055 = vmatpush1.msra.mxu0 0.0
        %5056 = vmatprep.subr.mxu0 0.0
        %5057 = vmatpush1.msra.mxu0 0.0
        %5058 = vmatprep.subr.mxu0 0.0
        %5059 = vmatpush1.msra.mxu0 0.0
        %5060 = vmatprep.subr.mxu0 0.0
        %5061 = vmatpush1.msra.mxu0 0.0
        %5062 = vmatprep.subr.mxu0 0.0
        %5063 = vmatpush1.msra.mxu0 0.0
        %5064 = vmatprep.subr.mxu0 0.0
        %5065 = vmatpush1.msra.mxu0 0.0
        %5066 = vmatprep.subr.mxu0 0.0
        %5067 = vmatpush1.msra.mxu0 0.0
        %5068 = vmatprep.subr.mxu0 0.0
        %5069 = vmatpush1.msra.mxu0 0.0
        %5070 = vmatprep.subr.mxu0 0.0
        %5071 = vmatpush1.msra.mxu0 0.0
        %5072 = vmatprep.subr.mxu0 0.0
        %5073 = vmatpush1.msra.mxu0 0.0
        %5074 = vmatprep.subr.mxu0 0.0
        %5075 = vmatpush1.msra.mxu0 0.0
        %5076 = vmatprep.subr.mxu0 0.0
        %5077 = vmatpush1.msra.mxu0 0.0
        %5078 = vmatprep.subr.mxu0 0.0
        %5079 = vmatpush1.msra.mxu0 0.0
        %5080 = vmatprep.subr.mxu0 0.0
        %5081 = vmatpush1.msra.mxu0 0.0
        %5082 = vmatprep.subr.mxu0 0.0
        %5083 = vmatpush1.msra.mxu0 0.0
        %5084 = vmatprep.subr.mxu0 0.0
        %5085 = vmatpush1.msra.mxu0 0.0
        %5086 = vmatprep.subr.mxu0 0.0
        %5087 = vmatpush1.msra.mxu0 0.0
        %5088 = vmatprep.subr.mxu0 0.0
        %5089 = vmatpush1.msra.mxu0 0.0
        %5090 = vmatprep.subr.mxu0 0.0
        %5091 = vmatpush1.msra.mxu0 0.0
        %5092 = vmatprep.subr.mxu0 0.0
        %5093 = vmatpush1.msra.mxu0 0.0
        %5094 = vmatprep.subr.mxu0 0.0
        %5095 = vmatpush1.msra.mxu0 0.0
        %5096 = vmatprep.mubr.f32.mxu0 0.0
        %5097 = vmatmul.mubr.f32.gmra.mrb[0].mxu0 %v5030
        %v5098 = vpop.f32.mrb[0].mxu0
        %v5099 = vadd.f32 0.0, %v5098
        %v5100 = vpop.f32.mrb[0].mxu0
        %5101 = vdwg.mxu0
        %v5102 = vadd.f32 %v4354, %v4871
        %v5103 = vadd.f32 %v4443, %v4947
        %v5104 = vadd.f32 %v4446, %v5023
        %v5105 = vadd.f32 %v4449, %v5099
        %5107 = vrot.lane.b32.xlu0 %v5103, 8
        %v5108 = vpop.permute.xlu0 %5107
        %5111 = vrot.lane.b32.xlu0 %v5104, 16
        %v5112 = vpop.permute.xlu0 %5111
        %5115 = vrot.lane.b32.xlu0 %v5105, 24
        %v5116 = vpop.permute.xlu0 %5115
        %v5118 = vsel %vm1658, %v5102, %v5108
        %v5119 = vsel %vm2320, %v5118, %v5112
        %v5120 = vsel %vm2322, %v5119, %v5116
        %v5121 = vld [vmem:[%s55] sm:$0xff]
        %v5122 = vld [vmem:[%s55 + $0x8] sm:$0xff]
        %v5123 = vld [vmem:[%s55 + $0x10] sm:$0xff]
        %v5124 = vld [vmem:[%s55 + $0x18] sm:$0xff]
        %v5125 = vld [vmem:[%s49] sm:$0x1]
        %v5127 = vlaneseq
        %v5128 = vshrl.u32 %v5127, 7
        %v5129 = vsub.s32 0, %v5128
        %v5130 = vrot.slane %v5125, %v5129
        %v5133 = vsel %vm1481, %v5120, 0
        %5135 = vmatprep.subr.mxu0 0.0
        %5136 = vmatpush1.msra.mxu0 %v5121
        %5137 = vmatprep.subr.mxu0 0.0
        %5138 = vmatpush1.msra.mxu0 %v5122
        %5139 = vmatprep.subr.mxu0 0.0
        %5140 = vmatpush1.msra.mxu0 %v5123
        %5141 = vmatprep.subr.mxu0 0.0
        %5142 = vmatpush1.msra.mxu0 %v5124
        %5143 = vmatprep.subr.mxu0 0.0
        %5144 = vmatpush1.msra.mxu0 0.0
        %5145 = vmatprep.subr.mxu0 0.0
        %5146 = vmatpush1.msra.mxu0 0.0
        %5147 = vmatprep.subr.mxu0 0.0
        %5148 = vmatpush1.msra.mxu0 0.0
        %5149 = vmatprep.subr.mxu0 0.0
        %5150 = vmatpush1.msra.mxu0 0.0
        %5151 = vmatprep.subr.mxu0 0.0
        %5152 = vmatpush1.msra.mxu0 0.0
        %5153 = vmatprep.subr.mxu0 0.0
        %5154 = vmatpush1.msra.mxu0 0.0
        %5155 = vmatprep.subr.mxu0 0.0
        %5156 = vmatpush1.msra.mxu0 0.0
        %5157 = vmatprep.subr.mxu0 0.0
        %5158 = vmatpush1.msra.mxu0 0.0
        %5159 = vmatprep.subr.mxu0 0.0
        %5160 = vmatpush1.msra.mxu0 0.0
        %5161 = vmatprep.subr.mxu0 0.0
        %5162 = vmatpush1.msra.mxu0 0.0
        %5163 = vmatprep.subr.mxu0 0.0
        %5164 = vmatpush1.msra.mxu0 0.0
        %5165 = vmatprep.subr.mxu0 0.0
        %5166 = vmatpush1.msra.mxu0 0.0
        %5167 = vmatprep.subr.mxu0 0.0
        %5168 = vmatpush1.msra.mxu0 0.0
        %5169 = vmatprep.subr.mxu0 0.0
        %5170 = vmatpush1.msra.mxu0 0.0
        %5171 = vmatprep.subr.mxu0 0.0
        %5172 = vmatpush1.msra.mxu0 0.0
        %5173 = vmatprep.subr.mxu0 0.0
        %5174 = vmatpush1.msra.mxu0 0.0
        %5175 = vmatprep.subr.mxu0 0.0
        %5176 = vmatpush1.msra.mxu0 0.0
        %5177 = vmatprep.subr.mxu0 0.0
        %5178 = vmatpush1.msra.mxu0 0.0
        %5179 = vmatprep.subr.mxu0 0.0
        %5180 = vmatpush1.msra.mxu0 0.0
        %5181 = vmatprep.subr.mxu0 0.0
        %5182 = vmatpush1.msra.mxu0 0.0
        %5183 = vmatprep.subr.mxu0 0.0
        %5184 = vmatpush1.msra.mxu0 0.0
        %5185 = vmatprep.subr.mxu0 0.0
        %5186 = vmatpush1.msra.mxu0 0.0
        %5187 = vmatprep.subr.mxu0 0.0
        %5188 = vmatpush1.msra.mxu0 0.0
        %5189 = vmatprep.subr.mxu0 0.0
        %5190 = vmatpush1.msra.mxu0 0.0
        %5191 = vmatprep.subr.mxu0 0.0
        %5192 = vmatpush1.msra.mxu0 0.0
        %5193 = vmatprep.subr.mxu0 0.0
        %5194 = vmatpush1.msra.mxu0 0.0
        %5195 = vmatprep.subr.mxu0 0.0
        %5196 = vmatpush1.msra.mxu0 0.0
        %5197 = vmatprep.subr.mxu0 0.0
        %5198 = vmatpush1.msra.mxu0 0.0
        %5199 = vmatprep.mubr.f32.mxu0 0.0
        %5200 = vmatmul.mubr.f32.gmra.mrb[0].mxu0 %v5133
        %v5201 = vpop.f32.mrb[0].mxu0
        %v5202 = vadd.f32 %v5130, %v5201
        %v5203 = vpop.f32.mrb[0].mxu0
        %5204 = vdwg.mxu0
        %v5205 = vmax.f32 %v5202, 0.0
        %v5206 = vadd.f32 %v5120, %v5205
        %v5207 = vld [vmem:[%s59] sm:$0xf]
        %v5208 = vld [vmem:[%s71] sm:$0xff]
        %v5209 = vld [vmem:[%s71 + $0x8] sm:$0xff]
        %v5210 = vld [vmem:[%s71 + $0x10] sm:$0xff]
        %v5211 = vld [vmem:[%s71 + $0x18] sm:$0xff]
        %v5212 = vld [vmem:[%s65] sm:$0x1]
        %v5214 = vlaneseq
        %v5215 = vshrl.u32 %v5214, 7
        %v5216 = vsub.s32 0, %v5215
        %v5217 = vrot.slane %v5212, %v5216
        %v5220 = vsel %vm1481, %v5207, 0
        %5222 = vmatprep.subr.mxu0 0.0
        %5223 = vmatpush1.msra.mxu0 %v5208
        %5224 = vmatprep.subr.mxu0 0.0
        %5225 = vmatpush1.msra.mxu0 %v5209
        %5226 = vmatprep.subr.mxu0 0.0
        %5227 = vmatpush1.msra.mxu0 %v5210
        %5228 = vmatprep.subr.mxu0 0.0
        %5229 = vmatpush1.msra.mxu0 %v5211
        %5230 = vmatprep.subr.mxu0 0.0
        %5231 = vmatpush1.msra.mxu0 0.0
        %5232 = vmatprep.subr.mxu0 0.0
        %5233 = vmatpush1.msra.mxu0 0.0
        %5234 = vmatprep.subr.mxu0 0.0
        %5235 = vmatpush1.msra.mxu0 0.0
        %5236 = vmatprep.subr.mxu0 0.0
        %5237 = vmatpush1.msra.mxu0 0.0
        %5238 = vmatprep.subr.mxu0 0.0
        %5239 = vmatpush1.msra.mxu0 0.0
        %5240 = vmatprep.subr.mxu0 0.0
        %5241 = vmatpush1.msra.mxu0 0.0
        %5242 = vmatprep.subr.mxu0 0.0
        %5243 = vmatpush1.msra.mxu0 0.0
        %5244 = vmatprep.subr.mxu0 0.0
        %5245 = vmatpush1.msra.mxu0 0.0
        %5246 = vmatprep.subr.mxu0 0.0
        %5247 = vmatpush1.msra.mxu0 0.0
        %5248 = vmatprep.subr.mxu0 0.0
        %5249 = vmatpush1.msra.mxu0 0.0
        %5250 = vmatprep.subr.mxu0 0.0
        %5251 = vmatpush1.msra.mxu0 0.0
        %5252 = vmatprep.subr.mxu0 0.0
        %5253 = vmatpush1.msra.mxu0 0.0
        %5254 = vmatprep.subr.mxu0 0.0
        %5255 = vmatpush1.msra.mxu0 0.0
        %5256 = vmatprep.subr.mxu0 0.0
        %5257 = vmatpush1.msra.mxu0 0.0
        %5258 = vmatprep.subr.mxu0 0.0
        %5259 = vmatpush1.msra.mxu0 0.0
        %5260 = vmatprep.subr.mxu0 0.0
        %5261 = vmatpush1.msra.mxu0 0.0
        %5262 = vmatprep.subr.mxu0 0.0
        %5263 = vmatpush1.msra.mxu0 0.0
        %5264 = vmatprep.subr.mxu0 0.0
        %5265 = vmatpush1.msra.mxu0 0.0
        %5266 = vmatprep.subr.mxu0 0.0
        %5267 = vmatpush1.msra.mxu0 0.0
        %5268 = vmatprep.subr.mxu0 0.0
        %5269 = vmatpush1.msra.mxu0 0.0
        %5270 = vmatprep.subr.mxu0 0.0
        %5271 = vmatpush1.msra.mxu0 0.0
        %5272 = vmatprep.subr.mxu0 0.0
        %5273 = vmatpush1.msra.mxu0 0.0
        %5274 = vmatprep.subr.mxu0 0.0
        %5275 = vmatpush1.msra.mxu0 0.0
        %5276 = vmatprep.subr.mxu0 0.0
        %5277 = vmatpush1.msra.mxu0 0.0
        %5278 = vmatprep.subr.mxu0 0.0
        %5279 = vmatpush1.msra.mxu0 0.0
        %5280 = vmatprep.subr.mxu0 0.0
        %5281 = vmatpush1.msra.mxu0 0.0
        %5282 = vmatprep.subr.mxu0 0.0
        %5283 = vmatpush1.msra.mxu0 0.0
        %5284 = vmatprep.subr.mxu0 0.0
        %5285 = vmatpush1.msra.mxu0 0.0
        %5286 = vmatprep.mubr.f32.mxu0 0.0
        %5287 = vmatmul.mubr.f32.gmra.mrb[0].mxu0 %v5220
        %v5288 = vpop.f32.mrb[0].mxu0
        %v5289 = vadd.f32 %v5217, %v5288
        %v5290 = vpop.f32.mrb[0].mxu0
        %5291 = vdwg.mxu0
        %v5292 = vld [vmem:[%s67] sm:$0xff]
        %v5293 = vld [vmem:[%s67 + $0x8] sm:$0xff]
        %v5294 = vld [vmem:[%s67 + $0x10] sm:$0xff]
        %v5295 = vld [vmem:[%s67 + $0x18] sm:$0xff]
        %v5296 = vld [vmem:[%s61] sm:$0x1]
        %v5298 = vlaneseq
        %v5299 = vshrl.u32 %v5298, 7
        %v5300 = vsub.s32 0, %v5299
        %v5301 = vrot.slane %v5296, %v5300
        %v5304 = vsel %vm1481, %v5206, 0
        %5306 = vmatprep.subr.mxu0 0.0
        %5307 = vmatpush1.msra.mxu0 %v5292
        %5308 = vmatprep.subr.mxu0 0.0
        %5309 = vmatpush1.msra.mxu0 %v5293
        %5310 = vmatprep.subr.mxu0 0.0
        %5311 = vmatpush1.msra.mxu0 %v5294
        %5312 = vmatprep.subr.mxu0 0.0
        %5313 = vmatpush1.msra.mxu0 %v5295
        %5314 = vmatprep.subr.mxu0 0.0
        %5315 = vmatpush1.msra.mxu0 0.0
        %5316 = vmatprep.subr.mxu0 0.0
        %5317 = vmatpush1.msra.mxu0 0.0
        %5318 = vmatprep.subr.mxu0 0.0
        %5319 = vmatpush1.msra.mxu0 0.0
        %5320 = vmatprep.subr.mxu0 0.0
        %5321 = vmatpush1.msra.mxu0 0.0
        %5322 = vmatprep.subr.mxu0 0.0
        %5323 = vmatpush1.msra.mxu0 0.0
        %5324 = vmatprep.subr.mxu0 0.0
        %5325 = vmatpush1.msra.mxu0 0.0
        %5326 = vmatprep.subr.mxu0 0.0
        %5327 = vmatpush1.msra.mxu0 0.0
        %5328 = vmatprep.subr.mxu0 0.0
        %5329 = vmatpush1.msra.mxu0 0.0
        %5330 = vmatprep.subr.mxu0 0.0
        %5331 = vmatpush1.msra.mxu0 0.0
        %5332 = vmatprep.subr.mxu0 0.0
        %5333 = vmatpush1.msra.mxu0 0.0
        %5334 = vmatprep.subr.mxu0 0.0
        %5335 = vmatpush1.msra.mxu0 0.0
        %5336 = vmatprep.subr.mxu0 0.0
        %5337 = vmatpush1.msra.mxu0 0.0
        %5338 = vmatprep.subr.mxu0 0.0
        %5339 = vmatpush1.msra.mxu0 0.0
        %5340 = vmatprep.subr.mxu0 0.0
        %5341 = vmatpush1.msra.mxu0 0.0
        %5342 = vmatprep.subr.mxu0 0.0
        %5343 = vmatpush1.msra.mxu0 0.0
        %5344 = vmatprep.subr.mxu0 0.0
        %5345 = vmatpush1.msra.mxu0 0.0
        %5346 = vmatprep.subr.mxu0 0.0
        %5347 = vmatpush1.msra.mxu0 0.0
        %5348 = vmatprep.subr.mxu0 0.0
        %5349 = vmatpush1.msra.mxu0 0.0
        %5350 = vmatprep.subr.mxu0 0.0
        %5351 = vmatpush1.msra.mxu0 0.0
        %5352 = vmatprep.subr.mxu0 0.0
        %5353 = vmatpush1.msra.mxu0 0.0
        %5354 = vmatprep.subr.mxu0 0.0
        %5355 = vmatpush1.msra.mxu0 0.0
        %5356 = vmatprep.subr.mxu0 0.0
        %5357 = vmatpush1.msra.mxu0 0.0
        %5358 = vmatprep.subr.mxu0 0.0
        %5359 = vmatpush1.msra.mxu0 0.0
        %5360 = vmatprep.subr.mxu0 0.0
        %5361 = vmatpush1.msra.mxu0 0.0
        %5362 = vmatprep.subr.mxu0 0.0
        %5363 = vmatpush1.msra.mxu0 0.0
        %5364 = vmatprep.subr.mxu0 0.0
        %5365 = vmatpush1.msra.mxu0 0.0
        %5366 = vmatprep.subr.mxu0 0.0
        %5367 = vmatpush1.msra.mxu0 0.0
        %5368 = vmatprep.subr.mxu0 0.0
        %5369 = vmatpush1.msra.mxu0 0.0
        %5370 = vmatprep.mubr.f32.mxu0 0.0
        %5371 = vmatmul.mubr.f32.gmra.mrb[0].mxu0 %v5304
        %v5372 = vpop.f32.mrb[0].mxu0
        %v5373 = vadd.f32 %v5301, %v5372
        %v5374 = vpop.f32.mrb[0].mxu0
        %5375 = vdwg.mxu0
        %5377 = vrot.lane.b32.xlu0 %v5289, 120
        %v5378 = vpop.permute.xlu0 %5377
        %5380 = vrot.lane.b32.xlu0 %v5289, 112
        %v5381 = vpop.permute.xlu0 %5380
        %5383 = vrot.lane.b32.xlu0 %v5289, 104
        %v5384 = vpop.permute.xlu0 %5383
        %5387 = vrot.lane.b32.xlu0 %v5373, 120
        %v5388 = vpop.permute.xlu0 %5387
        %5389 = vrot.lane.b32.xlu0 %v5373, 112
        %v5390 = vpop.permute.xlu0 %5389
        %5391 = vrot.lane.b32.xlu0 %v5373, 104
        %v5392 = vpop.permute.xlu0 %5391
        %v5393 = vsel %vm1658, %v5289, 0
        %v5395 = vsel %vm1658, %v5373, 0
        %5397 = vmatprep.subr.mxu0 0.0
        %5398 = vmatpush1.xpose.msra.mxu0 %v5395
        %5399 = vmatprep.subr.mxu0 0.0
        %5400 = vmatpush1.xpose.msra.mxu0 0.0
        %5401 = vmatprep.subr.mxu0 0.0
        %5402 = vmatpush1.xpose.msra.mxu0 0.0
        %5403 = vmatprep.subr.mxu0 0.0
        %5404 = vmatpush1.xpose.msra.mxu0 0.0
        %5405 = vmatprep.subr.mxu0 0.0
        %5406 = vmatpush1.xpose.msra.mxu0 0.0
        %5407 = vmatprep.subr.mxu0 0.0
        %5408 = vmatpush1.xpose.msra.mxu0 0.0
        %5409 = vmatprep.subr.mxu0 0.0
        %5410 = vmatpush1.xpose.msra.mxu0 0.0
        %5411 = vmatprep.subr.mxu0 0.0
        %5412 = vmatpush1.xpose.msra.mxu0 0.0
        %5413 = vmatprep.subr.mxu0 0.0
        %5414 = vmatpush1.xpose.msra.mxu0 0.0
        %5415 = vmatprep.subr.mxu0 0.0
        %5416 = vmatpush1.xpose.msra.mxu0 0.0
        %5417 = vmatprep.subr.mxu0 0.0
        %5418 = vmatpush1.xpose.msra.mxu0 0.0
        %5419 = vmatprep.subr.mxu0 0.0
        %5420 = vmatpush1.xpose.msra.mxu0 0.0
        %5421 = vmatprep.subr.mxu0 0.0
        %5422 = vmatpush1.xpose.msra.mxu0 0.0
        %5423 = vmatprep.subr.mxu0 0.0
        %5424 = vmatpush1.xpose.msra.mxu0 0.0
        %5425 = vmatprep.subr.mxu0 0.0
        %5426 = vmatpush1.xpose.msra.mxu0 0.0
        %5427 = vmatprep.subr.mxu0 0.0
        %5428 = vmatpush1.xpose.msra.mxu0 0.0
        %5429 = vmatprep.subr.mxu0 0.0
        %5430 = vmatpush1.xpose.msra.mxu0 0.0
        %5431 = vmatprep.subr.mxu0 0.0
        %5432 = vmatpush1.xpose.msra.mxu0 0.0
        %5433 = vmatprep.subr.mxu0 0.0
        %5434 = vmatpush1.xpose.msra.mxu0 0.0
        %5435 = vmatprep.subr.mxu0 0.0
        %5436 = vmatpush1.xpose.msra.mxu0 0.0
        %5437 = vmatprep.subr.mxu0 0.0
        %5438 = vmatpush1.xpose.msra.mxu0 0.0
        %5439 = vmatprep.subr.mxu0 0.0
        %5440 = vmatpush1.xpose.msra.mxu0 0.0
        %5441 = vmatprep.subr.mxu0 0.0
        %5442 = vmatpush1.xpose.msra.mxu0 0.0
        %5443 = vmatprep.subr.mxu0 0.0
        %5444 = vmatpush1.xpose.msra.mxu0 0.0
        %5445 = vmatprep.subr.mxu0 0.0
        %5446 = vmatpush1.xpose.msra.mxu0 0.0
        %5447 = vmatprep.subr.mxu0 0.0
        %5448 = vmatpush1.xpose.msra.mxu0 0.0
        %5449 = vmatprep.subr.mxu0 0.0
        %5450 = vmatpush1.xpose.msra.mxu0 0.0
        %5451 = vmatprep.subr.mxu0 0.0
        %5452 = vmatpush1.xpose.msra.mxu0 0.0
        %5453 = vmatprep.subr.mxu0 0.0
        %5454 = vmatpush1.xpose.msra.mxu0 0.0
        %5455 = vmatprep.subr.mxu0 0.0
        %5456 = vmatpush1.xpose.msra.mxu0 0.0
        %5457 = vmatprep.subr.mxu0 0.0
        %5458 = vmatpush1.xpose.msra.mxu0 0.0
        %5459 = vmatprep.subr.mxu0 0.0
        %5460 = vmatpush1.xpose.msra.mxu0 0.0
        %5461 = vmatprep.mubr.f32.mxu0 0.0
        %5462 = vmatmul.mubr.f32.gmra.mrb[0].mxu0 %v5393
        %v5463 = vpop.f32.mrb[0].mxu0
        %v5464 = vadd.f32 0.0, %v5463
        %v5465 = vpop.f32.mrb[0].mxu0
        %5466 = vdwg.mxu0
        %v5467 = vsel %vm1658, %v5378, 0
        %v5469 = vsel %vm1658, %v5388, 0
        %5471 = vmatprep.subr.mxu0 0.0
        %5472 = vmatpush1.xpose.msra.mxu0 %v5469
        %5473 = vmatprep.subr.mxu0 0.0
        %5474 = vmatpush1.xpose.msra.mxu0 0.0
        %5475 = vmatprep.subr.mxu0 0.0
        %5476 = vmatpush1.xpose.msra.mxu0 0.0
        %5477 = vmatprep.subr.mxu0 0.0
        %5478 = vmatpush1.xpose.msra.mxu0 0.0
        %5479 = vmatprep.subr.mxu0 0.0
        %5480 = vmatpush1.xpose.msra.mxu0 0.0
        %5481 = vmatprep.subr.mxu0 0.0
        %5482 = vmatpush1.xpose.msra.mxu0 0.0
        %5483 = vmatprep.subr.mxu0 0.0
        %5484 = vmatpush1.xpose.msra.mxu0 0.0
        %5485 = vmatprep.subr.mxu0 0.0
        %5486 = vmatpush1.xpose.msra.mxu0 0.0
        %5487 = vmatprep.subr.mxu0 0.0
        %5488 = vmatpush1.xpose.msra.mxu0 0.0
        %5489 = vmatprep.subr.mxu0 0.0
        %5490 = vmatpush1.xpose.msra.mxu0 0.0
        %5491 = vmatprep.subr.mxu0 0.0
        %5492 = vmatpush1.xpose.msra.mxu0 0.0
        %5493 = vmatprep.subr.mxu0 0.0
        %5494 = vmatpush1.xpose.msra.mxu0 0.0
        %5495 = vmatprep.subr.mxu0 0.0
        %5496 = vmatpush1.xpose.msra.mxu0 0.0
        %5497 = vmatprep.subr.mxu0 0.0
        %5498 = vmatpush1.xpose.msra.mxu0 0.0
        %5499 = vmatprep.subr.mxu0 0.0
        %5500 = vmatpush1.xpose.msra.mxu0 0.0
        %5501 = vmatprep.subr.mxu0 0.0
        %5502 = vmatpush1.xpose.msra.mxu0 0.0
        %5503 = vmatprep.subr.mxu0 0.0
        %5504 = vmatpush1.xpose.msra.mxu0 0.0
        %5505 = vmatprep.subr.mxu0 0.0
        %5506 = vmatpush1.xpose.msra.mxu0 0.0
        %5507 = vmatprep.subr.mxu0 0.0
        %5508 = vmatpush1.xpose.msra.mxu0 0.0
        %5509 = vmatprep.subr.mxu0 0.0
        %5510 = vmatpush1.xpose.msra.mxu0 0.0
        %5511 = vmatprep.subr.mxu0 0.0
        %5512 = vmatpush1.xpose.msra.mxu0 0.0
        %5513 = vmatprep.subr.mxu0 0.0
        %5514 = vmatpush1.xpose.msra.mxu0 0.0
        %5515 = vmatprep.subr.mxu0 0.0
        %5516 = vmatpush1.xpose.msra.mxu0 0.0
        %5517 = vmatprep.subr.mxu0 0.0
        %5518 = vmatpush1.xpose.msra.mxu0 0.0
        %5519 = vmatprep.subr.mxu0 0.0
        %5520 = vmatpush1.xpose.msra.mxu0 0.0
        %5521 = vmatprep.subr.mxu0 0.0
        %5522 = vmatpush1.xpose.msra.mxu0 0.0
        %5523 = vmatprep.subr.mxu0 0.0
        %5524 = vmatpush1.xpose.msra.mxu0 0.0
        %5525 = vmatprep.subr.mxu0 0.0
        %5526 = vmatpush1.xpose.msra.mxu0 0.0
        %5527 = vmatprep.subr.mxu0 0.0
        %5528 = vmatpush1.xpose.msra.mxu0 0.0
        %5529 = vmatprep.subr.mxu0 0.0
        %5530 = vmatpush1.xpose.msra.mxu0 0.0
        %5531 = vmatprep.subr.mxu0 0.0
        %5532 = vmatpush1.xpose.msra.mxu0 0.0
        %5533 = vmatprep.subr.mxu0 0.0
        %5534 = vmatpush1.xpose.msra.mxu0 0.0
        %5535 = vmatprep.mubr.f32.mxu0 0.0
        %5536 = vmatmul.mubr.f32.gmra.mrb[0].mxu0 %v5467
        %v5537 = vpop.f32.mrb[0].mxu0
        %v5538 = vadd.f32 0.0, %v5537
        %v5539 = vpop.f32.mrb[0].mxu0
        %5540 = vdwg.mxu0
        %v5541 = vsel %vm1658, %v5381, 0
        %v5543 = vsel %vm1658, %v5390, 0
        %5545 = vmatprep.subr.mxu0 0.0
        %5546 = vmatpush1.xpose.msra.mxu0 %v5543
        %5547 = vmatprep.subr.mxu0 0.0
        %5548 = vmatpush1.xpose.msra.mxu0 0.0
        %5549 = vmatprep.subr.mxu0 0.0
        %5550 = vmatpush1.xpose.msra.mxu0 0.0
        %5551 = vmatprep.subr.mxu0 0.0
        %5552 = vmatpush1.xpose.msra.mxu0 0.0
        %5553 = vmatprep.subr.mxu0 0.0
        %5554 = vmatpush1.xpose.msra.mxu0 0.0
        %5555 = vmatprep.subr.mxu0 0.0
        %5556 = vmatpush1.xpose.msra.mxu0 0.0
        %5557 = vmatprep.subr.mxu0 0.0
        %5558 = vmatpush1.xpose.msra.mxu0 0.0
        %5559 = vmatprep.subr.mxu0 0.0
        %5560 = vmatpush1.xpose.msra.mxu0 0.0
        %5561 = vmatprep.subr.mxu0 0.0
        %5562 = vmatpush1.xpose.msra.mxu0 0.0
        %5563 = vmatprep.subr.mxu0 0.0
        %5564 = vmatpush1.xpose.msra.mxu0 0.0
        %5565 = vmatprep.subr.mxu0 0.0
        %5566 = vmatpush1.xpose.msra.mxu0 0.0
        %5567 = vmatprep.subr.mxu0 0.0
        %5568 = vmatpush1.xpose.msra.mxu0 0.0
        %5569 = vmatprep.subr.mxu0 0.0
        %5570 = vmatpush1.xpose.msra.mxu0 0.0
        %5571 = vmatprep.subr.mxu0 0.0
        %5572 = vmatpush1.xpose.msra.mxu0 0.0
        %5573 = vmatprep.subr.mxu0 0.0
        %5574 = vmatpush1.xpose.msra.mxu0 0.0
        %5575 = vmatprep.subr.mxu0 0.0
        %5576 = vmatpush1.xpose.msra.mxu0 0.0
        %5577 = vmatprep.subr.mxu0 0.0
        %5578 = vmatpush1.xpose.msra.mxu0 0.0
        %5579 = vmatprep.subr.mxu0 0.0
        %5580 = vmatpush1.xpose.msra.mxu0 0.0
        %5581 = vmatprep.subr.mxu0 0.0
        %5582 = vmatpush1.xpose.msra.mxu0 0.0
        %5583 = vmatprep.subr.mxu0 0.0
        %5584 = vmatpush1.xpose.msra.mxu0 0.0
        %5585 = vmatprep.subr.mxu0 0.0
        %5586 = vmatpush1.xpose.msra.mxu0 0.0
        %5587 = vmatprep.subr.mxu0 0.0
        %5588 = vmatpush1.xpose.msra.mxu0 0.0
        %5589 = vmatprep.subr.mxu0 0.0
        %5590 = vmatpush1.xpose.msra.mxu0 0.0
        %5591 = vmatprep.subr.mxu0 0.0
        %5592 = vmatpush1.xpose.msra.mxu0 0.0
        %5593 = vmatprep.subr.mxu0 0.0
        %5594 = vmatpush1.xpose.msra.mxu0 0.0
        %5595 = vmatprep.subr.mxu0 0.0
        %5596 = vmatpush1.xpose.msra.mxu0 0.0
        %5597 = vmatprep.subr.mxu0 0.0
        %5598 = vmatpush1.xpose.msra.mxu0 0.0
        %5599 = vmatprep.subr.mxu0 0.0
        %5600 = vmatpush1.xpose.msra.mxu0 0.0
        %5601 = vmatprep.subr.mxu0 0.0
        %5602 = vmatpush1.xpose.msra.mxu0 0.0
        %5603 = vmatprep.subr.mxu0 0.0
        %5604 = vmatpush1.xpose.msra.mxu0 0.0
        %5605 = vmatprep.subr.mxu0 0.0
        %5606 = vmatpush1.xpose.msra.mxu0 0.0
        %5607 = vmatprep.subr.mxu0 0.0
        %5608 = vmatpush1.xpose.msra.mxu0 0.0
        %5609 = vmatprep.mubr.f32.mxu0 0.0
        %5610 = vmatmul.mubr.f32.gmra.mrb[0].mxu0 %v5541
        %v5611 = vpop.f32.mrb[0].mxu0
        %v5612 = vadd.f32 0.0, %v5611
        %v5613 = vpop.f32.mrb[0].mxu0
        %5614 = vdwg.mxu0
        %v5615 = vsel %vm1658, %v5384, 0
        %v5617 = vsel %vm1658, %v5392, 0
        %5619 = vmatprep.subr.mxu0 0.0
        %5620 = vmatpush1.xpose.msra.mxu0 %v5617
        %5621 = vmatprep.subr.mxu0 0.0
        %5622 = vmatpush1.xpose.msra.mxu0 0.0
        %5623 = vmatprep.subr.mxu0 0.0
        %5624 = vmatpush1.xpose.msra.mxu0 0.0
        %5625 = vmatprep.subr.mxu0 0.0
        %5626 = vmatpush1.xpose.msra.mxu0 0.0
        %5627 = vmatprep.subr.mxu0 0.0
        %5628 = vmatpush1.xpose.msra.mxu0 0.0
        %5629 = vmatprep.subr.mxu0 0.0
        %5630 = vmatpush1.xpose.msra.mxu0 0.0
        %5631 = vmatprep.subr.mxu0 0.0
        %5632 = vmatpush1.xpose.msra.mxu0 0.0
        %5633 = vmatprep.subr.mxu0 0.0
        %5634 = vmatpush1.xpose.msra.mxu0 0.0
        %5635 = vmatprep.subr.mxu0 0.0
        %5636 = vmatpush1.xpose.msra.mxu0 0.0
        %5637 = vmatprep.subr.mxu0 0.0
        %5638 = vmatpush1.xpose.msra.mxu0 0.0
        %5639 = vmatprep.subr.mxu0 0.0
        %5640 = vmatpush1.xpose.msra.mxu0 0.0
        %5641 = vmatprep.subr.mxu0 0.0
        %5642 = vmatpush1.xpose.msra.mxu0 0.0
        %5643 = vmatprep.subr.mxu0 0.0
        %5644 = vmatpush1.xpose.msra.mxu0 0.0
        %5645 = vmatprep.subr.mxu0 0.0
        %5646 = vmatpush1.xpose.msra.mxu0 0.0
        %5647 = vmatprep.subr.mxu0 0.0
        %5648 = vmatpush1.xpose.msra.mxu0 0.0
        %5649 = vmatprep.subr.mxu0 0.0
        %5650 = vmatpush1.xpose.msra.mxu0 0.0
        %5651 = vmatprep.subr.mxu0 0.0
        %5652 = vmatpush1.xpose.msra.mxu0 0.0
        %5653 = vmatprep.subr.mxu0 0.0
        %5654 = vmatpush1.xpose.msra.mxu0 0.0
        %5655 = vmatprep.subr.mxu0 0.0
        %5656 = vmatpush1.xpose.msra.mxu0 0.0
        %5657 = vmatprep.subr.mxu0 0.0
        %5658 = vmatpush1.xpose.msra.mxu0 0.0
        %5659 = vmatprep.subr.mxu0 0.0
        %5660 = vmatpush1.xpose.msra.mxu0 0.0
        %5661 = vmatprep.subr.mxu0 0.0
        %5662 = vmatpush1.xpose.msra.mxu0 0.0
        %5663 = vmatprep.subr.mxu0 0.0
        %5664 = vmatpush1.xpose.msra.mxu0 0.0
        %5665 = vmatprep.subr.mxu0 0.0
        %5666 = vmatpush1.xpose.msra.mxu0 0.0
        %5667 = vmatprep.subr.mxu0 0.0
        %5668 = vmatpush1.xpose.msra.mxu0 0.0
        %5669 = vmatprep.subr.mxu0 0.0
        %5670 = vmatpush1.xpose.msra.mxu0 0.0
        %5671 = vmatprep.subr.mxu0 0.0
        %5672 = vmatpush1.xpose.msra.mxu0 0.0
        %5673 = vmatprep.subr.mxu0 0.0
        %5674 = vmatpush1.xpose.msra.mxu0 0.0
        %5675 = vmatprep.subr.mxu0 0.0
        %5676 = vmatpush1.xpose.msra.mxu0 0.0
        %5677 = vmatprep.subr.mxu0 0.0
        %5678 = vmatpush1.xpose.msra.mxu0 0.0
        %5679 = vmatprep.subr.mxu0 0.0
        %5680 = vmatpush1.xpose.msra.mxu0 0.0
        %5681 = vmatprep.subr.mxu0 0.0
        %5682 = vmatpush1.xpose.msra.mxu0 0.0
        %5683 = vmatprep.mubr.f32.mxu0 0.0
        %5684 = vmatmul.mubr.f32.gmra.mrb[0].mxu0 %v5615
        %v5685 = vpop.f32.mrb[0].mxu0
        %v5686 = vadd.f32 0.0, %v5685
        %v5687 = vpop.f32.mrb[0].mxu0
        %5688 = vdwg.mxu0
        %vm5689 = vcmask 60416
        %v5690 = vsel %vm5689, %v5464, -inf
        %5691 = vmax.xlane.f32.xlu0 %v5690
        %v5692 = vpop.xlane.xlu0 %5691
        %v5693 = vsel %vm5689, %v5538, -inf
        %5694 = vmax.xlane.f32.xlu0 %v5693
        %v5695 = vpop.xlane.xlu0 %5694
        %v5696 = vsel %vm5689, %v5612, -inf
        %5697 = vmax.xlane.f32.xlu0 %v5696
        %v5698 = vpop.xlane.xlu0 %5697
        %v5699 = vsel %vm5689, %v5686, -inf
        %5700 = vmax.xlane.f32.xlu0 %v5699
        %v5701 = vpop.xlane.xlu0 %5700
        %v5702 = vsub.f32 %v5464, %v5692
        %v5703 = vsub.f32 %v5538, %v5695
        %v5704 = vsub.f32 %v5612, %v5698
        %v5705 = vsub.f32 %v5686, %v5701
        %v5706 = vmul.f32 %v5702, 1.442695
        %v5707 = vpow.pop %v5706
        %v5708 = vmul.f32 %v5703, 1.442695
        %v5709 = vpow.pop %v5708
        %v5710 = vmul.f32 %v5704, 1.442695
        %v5711 = vpow.pop %v5710
        %v5712 = vmul.f32 %v5705, 1.442695
        %v5713 = vpow.pop %v5712
        %v5714 = vsel %vm5689, %v5707, 0.0
        %5715 = vadd.xlane.f32.xlu0 %v5714
        %v5716 = vpop.xlane.xlu0 %5715
        %v5717 = vsel %vm5689, %v5709, 0.0
        %5718 = vadd.xlane.f32.xlu0 %v5717
        %v5719 = vpop.xlane.xlu0 %5718
        %v5720 = vsel %vm5689, %v5711, 0.0
        %5721 = vadd.xlane.f32.xlu0 %v5720
        %v5722 = vpop.xlane.xlu0 %5721
        %v5723 = vsel %vm5689, %v5713, 0.0
        %5724 = vadd.xlane.f32.xlu0 %v5723
        %v5725 = vpop.xlane.xlu0 %5724
        %v5726 = vrcp.pop %v5716
        %v5727 = vrcp.pop %v5719
        %v5728 = vrcp.pop %v5722
        %v5729 = vrcp.pop %v5725
        %v5730 = vmul.f32 %v5707, %v5726
        %v5731 = vmul.f32 %v5709, %v5727
        %v5732 = vmul.f32 %v5711, %v5728
        %v5733 = vmul.f32 %v5713, %v5729
        %5734 = vrot.lane.b32.xlu0 %v5373, 96
        %v5735 = vpop.permute.xlu0 %5734
        %v5738 = vsel %vm1658, %v5730, 0
        %5740 = vmatprep.subr.mxu0 0.0
        %5741 = vmatpush1.msra.mxu0 %v5735
        %5742 = vmatprep.subr.mxu0 0.0
        %5743 = vmatpush1.msra.mxu0 0.0
        %5744 = vmatprep.subr.mxu0 0.0
        %5745 = vmatpush1.msra.mxu0 0.0
        %5746 = vmatprep.subr.mxu0 0.0
        %5747 = vmatpush1.msra.mxu0 0.0
        %5748 = vmatprep.subr.mxu0 0.0
        %5749 = vmatpush1.msra.mxu0 0.0
        %5750 = vmatprep.subr.mxu0 0.0
        %5751 = vmatpush1.msra.mxu0 0.0
        %5752 = vmatprep.subr.mxu0 0.0
        %5753 = vmatpush1.msra.mxu0 0.0
        %5754 = vmatprep.subr.mxu0 0.0
        %5755 = vmatpush1.msra.mxu0 0.0
        %5756 = vmatprep.subr.mxu0 0.0
        %5757 = vmatpush1.msra.mxu0 0.0
        %5758 = vmatprep.subr.mxu0 0.0
        %5759 = vmatpush1.msra.mxu0 0.0
        %5760 = vmatprep.subr.mxu0 0.0
        %5761 = vmatpush1.msra.mxu0 0.0
        %5762 = vmatprep.subr.mxu0 0.0
        %5763 = vmatpush1.msra.mxu0 0.0
        %5764 = vmatprep.subr.mxu0 0.0
        %5765 = vmatpush1.msra.mxu0 0.0
        %5766 = vmatprep.subr.mxu0 0.0
        %5767 = vmatpush1.msra.mxu0 0.0
        %5768 = vmatprep.subr.mxu0 0.0
        %5769 = vmatpush1.msra.mxu0 0.0
        %5770 = vmatprep.subr.mxu0 0.0
        %5771 = vmatpush1.msra.mxu0 0.0
        %5772 = vmatprep.subr.mxu0 0.0
        %5773 = vmatpush1.msra.mxu0 0.0
        %5774 = vmatprep.subr.mxu0 0.0
        %5775 = vmatpush1.msra.mxu0 0.0
        %5776 = vmatprep.subr.mxu0 0.0
        %5777 = vmatpush1.msra.mxu0 0.0
        %5778 = vmatprep.subr.mxu0 0.0
        %5779 = vmatpush1.msra.mxu0 0.0
        %5780 = vmatprep.subr.mxu0 0.0
        %5781 = vmatpush1.msra.mxu0 0.0
        %5782 = vmatprep.subr.mxu0 0.0
        %5783 = vmatpush1.msra.mxu0 0.0
        %5784 = vmatprep.subr.mxu0 0.0
        %5785 = vmatpush1.msra.mxu0 0.0
        %5786 = vmatprep.subr.mxu0 0.0
        %5787 = vmatpush1.msra.mxu0 0.0
        %5788 = vmatprep.subr.mxu0 0.0
        %5789 = vmatpush1.msra.mxu0 0.0
        %5790 = vmatprep.subr.mxu0 0.0
        %5791 = vmatpush1.msra.mxu0 0.0
        %5792 = vmatprep.subr.mxu0 0.0
        %5793 = vmatpush1.msra.mxu0 0.0
        %5794 = vmatprep.subr.mxu0 0.0
        %5795 = vmatpush1.msra.mxu0 0.0
        %5796 = vmatprep.subr.mxu0 0.0
        %5797 = vmatpush1.msra.mxu0 0.0
        %5798 = vmatprep.subr.mxu0 0.0
        %5799 = vmatpush1.msra.mxu0 0.0
        %5800 = vmatprep.subr.mxu0 0.0
        %5801 = vmatpush1.msra.mxu0 0.0
        %5802 = vmatprep.subr.mxu0 0.0
        %5803 = vmatpush1.msra.mxu0 0.0
        %5804 = vmatprep.mubr.f32.mxu0 0.0
        %5805 = vmatmul.mubr.f32.gmra.mrb[0].mxu0 %v5738
        %v5806 = vpop.f32.mrb[0].mxu0
        %v5807 = vadd.f32 0.0, %v5806
        %v5808 = vpop.f32.mrb[0].mxu0
        %5809 = vdwg.mxu0
        %5810 = vrot.lane.b32.xlu0 %v5388, 96
        %v5811 = vpop.permute.xlu0 %5810
        %v5814 = vsel %vm1658, %v5731, 0
        %5816 = vmatprep.subr.mxu0 0.0
        %5817 = vmatpush1.msra.mxu0 %v5811
        %5818 = vmatprep.subr.mxu0 0.0
        %5819 = vmatpush1.msra.mxu0 0.0
        %5820 = vmatprep.subr.mxu0 0.0
        %5821 = vmatpush1.msra.mxu0 0.0
        %5822 = vmatprep.subr.mxu0 0.0
        %5823 = vmatpush1.msra.mxu0 0.0
        %5824 = vmatprep.subr.mxu0 0.0
        %5825 = vmatpush1.msra.mxu0 0.0
        %5826 = vmatprep.subr.mxu0 0.0
        %5827 = vmatpush1.msra.mxu0 0.0
        %5828 = vmatprep.subr.mxu0 0.0
        %5829 = vmatpush1.msra.mxu0 0.0
        %5830 = vmatprep.subr.mxu0 0.0
        %5831 = vmatpush1.msra.mxu0 0.0
        %5832 = vmatprep.subr.mxu0 0.0
        %5833 = vmatpush1.msra.mxu0 0.0
        %5834 = vmatprep.subr.mxu0 0.0
        %5835 = vmatpush1.msra.mxu0 0.0
        %5836 = vmatprep.subr.mxu0 0.0
        %5837 = vmatpush1.msra.mxu0 0.0
        %5838 = vmatprep.subr.mxu0 0.0
        %5839 = vmatpush1.msra.mxu0 0.0
        %5840 = vmatprep.subr.mxu0 0.0
        %5841 = vmatpush1.msra.mxu0 0.0
        %5842 = vmatprep.subr.mxu0 0.0
        %5843 = vmatpush1.msra.mxu0 0.0
        %5844 = vmatprep.subr.mxu0 0.0
        %5845 = vmatpush1.msra.mxu0 0.0
        %5846 = vmatprep.subr.mxu0 0.0
        %5847 = vmatpush1.msra.mxu0 0.0
        %5848 = vmatprep.subr.mxu0 0.0
        %5849 = vmatpush1.msra.mxu0 0.0
        %5850 = vmatprep.subr.mxu0 0.0
        %5851 = vmatpush1.msra.mxu0 0.0
        %5852 = vmatprep.subr.mxu0 0.0
        %5853 = vmatpush1.msra.mxu0 0.0
        %5854 = vmatprep.subr.mxu0 0.0
        %5855 = vmatpush1.msra.mxu0 0.0
        %5856 = vmatprep.subr.mxu0 0.0
        %5857 = vmatpush1.msra.mxu0 0.0
        %5858 = vmatprep.subr.mxu0 0.0
        %5859 = vmatpush1.msra.mxu0 0.0
        %5860 = vmatprep.subr.mxu0 0.0
        %5861 = vmatpush1.msra.mxu0 0.0
        %5862 = vmatprep.subr.mxu0 0.0
        %5863 = vmatpush1.msra.mxu0 0.0
        %5864 = vmatprep.subr.mxu0 0.0
        %5865 = vmatpush1.msra.mxu0 0.0
        %5866 = vmatprep.subr.mxu0 0.0
        %5867 = vmatpush1.msra.mxu0 0.0
        %5868 = vmatprep.subr.mxu0 0.0
        %5869 = vmatpush1.msra.mxu0 0.0
        %5870 = vmatprep.subr.mxu0 0.0
        %5871 = vmatpush1.msra.mxu0 0.0
        %5872 = vmatprep.subr.mxu0 0.0
        %5873 = vmatpush1.msra.mxu0 0.0
        %5874 = vmatprep.subr.mxu0 0.0
        %5875 = vmatpush1.msra.mxu0 0.0
        %5876 = vmatprep.subr.mxu0 0.0
        %5877 = vmatpush1.msra.mxu0 0.0
        %5878 = vmatprep.subr.mxu0 0.0
        %5879 = vmatpush1.msra.mxu0 0.0
        %5880 = vmatprep.mubr.f32.mxu0 0.0
        %5881 = vmatmul.mubr.f32.gmra.mrb[0].mxu0 %v5814
        %v5882 = vpop.f32.mrb[0].mxu0
        %v5883 = vadd.f32 0.0, %v5882
        %v5884 = vpop.f32.mrb[0].mxu0
        %5885 = vdwg.mxu0
        %5886 = vrot.lane.b32.xlu0 %v5390, 96
        %v5887 = vpop.permute.xlu0 %5886
        %v5890 = vsel %vm1658, %v5732, 0
        %5892 = vmatprep.subr.mxu0 0.0
        %5893 = vmatpush1.msra.mxu0 %v5887
        %5894 = vmatprep.subr.mxu0 0.0
        %5895 = vmatpush1.msra.mxu0 0.0
        %5896 = vmatprep.subr.mxu0 0.0
        %5897 = vmatpush1.msra.mxu0 0.0
        %5898 = vmatprep.subr.mxu0 0.0
        %5899 = vmatpush1.msra.mxu0 0.0
        %5900 = vmatprep.subr.mxu0 0.0
        %5901 = vmatpush1.msra.mxu0 0.0
        %5902 = vmatprep.subr.mxu0 0.0
        %5903 = vmatpush1.msra.mxu0 0.0
        %5904 = vmatprep.subr.mxu0 0.0
        %5905 = vmatpush1.msra.mxu0 0.0
        %5906 = vmatprep.subr.mxu0 0.0
        %5907 = vmatpush1.msra.mxu0 0.0
        %5908 = vmatprep.subr.mxu0 0.0
        %5909 = vmatpush1.msra.mxu0 0.0
        %5910 = vmatprep.subr.mxu0 0.0
        %5911 = vmatpush1.msra.mxu0 0.0
        %5912 = vmatprep.subr.mxu0 0.0
        %5913 = vmatpush1.msra.mxu0 0.0
        %5914 = vmatprep.subr.mxu0 0.0
        %5915 = vmatpush1.msra.mxu0 0.0
        %5916 = vmatprep.subr.mxu0 0.0
        %5917 = vmatpush1.msra.mxu0 0.0
        %5918 = vmatprep.subr.mxu0 0.0
        %5919 = vmatpush1.msra.mxu0 0.0
        %5920 = vmatprep.subr.mxu0 0.0
        %5921 = vmatpush1.msra.mxu0 0.0
        %5922 = vmatprep.subr.mxu0 0.0
        %5923 = vmatpush1.msra.mxu0 0.0
        %5924 = vmatprep.subr.mxu0 0.0
        %5925 = vmatpush1.msra.mxu0 0.0
        %5926 = vmatprep.subr.mxu0 0.0
        %5927 = vmatpush1.msra.mxu0 0.0
        %5928 = vmatprep.subr.mxu0 0.0
        %5929 = vmatpush1.msra.mxu0 0.0
        %5930 = vmatprep.subr.mxu0 0.0
        %5931 = vmatpush1.msra.mxu0 0.0
        %5932 = vmatprep.subr.mxu0 0.0
        %5933 = vmatpush1.msra.mxu0 0.0
        %5934 = vmatprep.subr.mxu0 0.0
        %5935 = vmatpush1.msra.mxu0 0.0
        %5936 = vmatprep.subr.mxu0 0.0
        %5937 = vmatpush1.msra.mxu0 0.0
        %5938 = vmatprep.subr.mxu0 0.0
        %5939 = vmatpush1.msra.mxu0 0.0
        %5940 = vmatprep.subr.mxu0 0.0
        %5941 = vmatpush1.msra.mxu0 0.0
        %5942 = vmatprep.subr.mxu0 0.0
        %5943 = vmatpush1.msra.mxu0 0.0
        %5944 = vmatprep.subr.mxu0 0.0
        %5945 = vmatpush1.msra.mxu0 0.0
        %5946 = vmatprep.subr.mxu0 0.0
        %5947 = vmatpush1.msra.mxu0 0.0
        %5948 = vmatprep.subr.mxu0 0.0
        %5949 = vmatpush1.msra.mxu0 0.0
        %5950 = vmatprep.subr.mxu0 0.0
        %5951 = vmatpush1.msra.mxu0 0.0
        %5952 = vmatprep.subr.mxu0 0.0
        %5953 = vmatpush1.msra.mxu0 0.0
        %5954 = vmatprep.subr.mxu0 0.0
        %5955 = vmatpush1.msra.mxu0 0.0
        %5956 = vmatprep.mubr.f32.mxu0 0.0
        %5957 = vmatmul.mubr.f32.gmra.mrb[0].mxu0 %v5890
        %v5958 = vpop.f32.mrb[0].mxu0
        %v5959 = vadd.f32 0.0, %v5958
        %v5960 = vpop.f32.mrb[0].mxu0
        %5961 = vdwg.mxu0
        %5962 = vrot.lane.b32.xlu0 %v5392, 96
        %v5963 = vpop.permute.xlu0 %5962
        %v5966 = vsel %vm1658, %v5733, 0
        %5968 = vmatprep.subr.mxu0 0.0
        %5969 = vmatpush1.msra.mxu0 %v5963
        %5970 = vmatprep.subr.mxu0 0.0
        %5971 = vmatpush1.msra.mxu0 0.0
        %5972 = vmatprep.subr.mxu0 0.0
        %5973 = vmatpush1.msra.mxu0 0.0
        %5974 = vmatprep.subr.mxu0 0.0
        %5975 = vmatpush1.msra.mxu0 0.0
        %5976 = vmatprep.subr.mxu0 0.0
        %5977 = vmatpush1.msra.mxu0 0.0
        %5978 = vmatprep.subr.mxu0 0.0
        %5979 = vmatpush1.msra.mxu0 0.0
        %5980 = vmatprep.subr.mxu0 0.0
        %5981 = vmatpush1.msra.mxu0 0.0
        %5982 = vmatprep.subr.mxu0 0.0
        %5983 = vmatpush1.msra.mxu0 0.0
        %5984 = vmatprep.subr.mxu0 0.0
        %5985 = vmatpush1.msra.mxu0 0.0
        %5986 = vmatprep.subr.mxu0 0.0
        %5987 = vmatpush1.msra.mxu0 0.0
        %5988 = vmatprep.subr.mxu0 0.0
        %5989 = vmatpush1.msra.mxu0 0.0
        %5990 = vmatprep.subr.mxu0 0.0
        %5991 = vmatpush1.msra.mxu0 0.0
        %5992 = vmatprep.subr.mxu0 0.0
        %5993 = vmatpush1.msra.mxu0 0.0
        %5994 = vmatprep.subr.mxu0 0.0
        %5995 = vmatpush1.msra.mxu0 0.0
        %5996 = vmatprep.subr.mxu0 0.0
        %5997 = vmatpush1.msra.mxu0 0.0
        %5998 = vmatprep.subr.mxu0 0.0
        %5999 = vmatpush1.msra.mxu0 0.0
        %6000 = vmatprep.subr.mxu0 0.0
        %6001 = vmatpush1.msra.mxu0 0.0
        %6002 = vmatprep.subr.mxu0 0.0
        %6003 = vmatpush1.msra.mxu0 0.0
        %6004 = vmatprep.subr.mxu0 0.0
        %6005 = vmatpush1.msra.mxu0 0.0
        %6006 = vmatprep.subr.mxu0 0.0
        %6007 = vmatpush1.msra.mxu0 0.0
        %6008 = vmatprep.subr.mxu0 0.0
        %6009 = vmatpush1.msra.mxu0 0.0
        %6010 = vmatprep.subr.mxu0 0.0
        %6011 = vmatpush1.msra.mxu0 0.0
        %6012 = vmatprep.subr.mxu0 0.0
        %6013 = vmatpush1.msra.mxu0 0.0
        %6014 = vmatprep.subr.mxu0 0.0
        %6015 = vmatpush1.msra.mxu0 0.0
        %6016 = vmatprep.subr.mxu0 0.0
        %6017 = vmatpush1.msra.mxu0 0.0
        %6018 = vmatprep.subr.mxu0 0.0
        %6019 = vmatpush1.msra.mxu0 0.0
        %6020 = vmatprep.subr.mxu0 0.0
        %6021 = vmatpush1.msra.mxu0 0.0
        %6022 = vmatprep.subr.mxu0 0.0
        %6023 = vmatpush1.msra.mxu0 0.0
        %6024 = vmatprep.subr.mxu0 0.0
        %6025 = vmatpush1.msra.mxu0 0.0
        %6026 = vmatprep.subr.mxu0 0.0
        %6027 = vmatpush1.msra.mxu0 0.0
        %6028 = vmatprep.subr.mxu0 0.0
        %6029 = vmatpush1.msra.mxu0 0.0
        %6030 = vmatprep.subr.mxu0 0.0
        %6031 = vmatpush1.msra.mxu0 0.0
        %6032 = vmatprep.mubr.f32.mxu0 0.0
        %6033 = vmatmul.mubr.f32.gmra.mrb[0].mxu0 %v5966
        %v6034 = vpop.f32.mrb[0].mxu0
        %v6035 = vadd.f32 0.0, %v6034
        %v6036 = vpop.f32.mrb[0].mxu0
        %6037 = vdwg.mxu0
        %v6038 = vadd.f32 %v5289, %v5807
        %v6039 = vadd.f32 %v5378, %v5883
        %v6040 = vadd.f32 %v5381, %v5959
        %v6041 = vadd.f32 %v5384, %v6035
        %6043 = vrot.lane.b32.xlu0 %v6039, 8
        %v6044 = vpop.permute.xlu0 %6043
        %6047 = vrot.lane.b32.xlu0 %v6040, 16
        %v6048 = vpop.permute.xlu0 %6047
        %6051 = vrot.lane.b32.xlu0 %v6041, 24
        %v6052 = vpop.permute.xlu0 %6051
        %v6054 = vsel %vm1658, %v6038, %v6044
        %v6055 = vsel %vm2320, %v6054, %v6048
        %v6056 = vsel %vm2322, %v6055, %v6052
        %v6057 = vld [vmem:[%s69] sm:$0xff]
        %v6058 = vld [vmem:[%s69 + $0x8] sm:$0xff]
        %v6059 = vld [vmem:[%s69 + $0x10] sm:$0xff]
        %v6060 = vld [vmem:[%s69 + $0x18] sm:$0xff]
        %v6061 = vld [vmem:[%s63] sm:$0x1]
        %v6063 = vlaneseq
        %v6064 = vshrl.u32 %v6063, 7
        %v6065 = vsub.s32 0, %v6064
        %v6066 = vrot.slane %v6061, %v6065
        %v6069 = vsel %vm1481, %v6056, 0
        %6071 = vmatprep.subr.mxu0 0.0
        %6072 = vmatpush1.msra.mxu0 %v6057
        %6073 = vmatprep.subr.mxu0 0.0
        %6074 = vmatpush1.msra.mxu0 %v6058
        %6075 = vmatprep.subr.mxu0 0.0
        %6076 = vmatpush1.msra.mxu0 %v6059
        %6077 = vmatprep.subr.mxu0 0.0
        %6078 = vmatpush1.msra.mxu0 %v6060
        %6079 = vmatprep.subr.mxu0 0.0
        %6080 = vmatpush1.msra.mxu0 0.0
        %6081 = vmatprep.subr.mxu0 0.0
        %6082 = vmatpush1.msra.mxu0 0.0
        %6083 = vmatprep.subr.mxu0 0.0
        %6084 = vmatpush1.msra.mxu0 0.0
        %6085 = vmatprep.subr.mxu0 0.0
        %6086 = vmatpush1.msra.mxu0 0.0
        %6087 = vmatprep.subr.mxu0 0.0
        %6088 = vmatpush1.msra.mxu0 0.0
        %6089 = vmatprep.subr.mxu0 0.0
        %6090 = vmatpush1.msra.mxu0 0.0
        %6091 = vmatprep.subr.mxu0 0.0
        %6092 = vmatpush1.msra.mxu0 0.0
        %6093 = vmatprep.subr.mxu0 0.0
        %6094 = vmatpush1.msra.mxu0 0.0
        %6095 = vmatprep.subr.mxu0 0.0
        %6096 = vmatpush1.msra.mxu0 0.0
        %6097 = vmatprep.subr.mxu0 0.0
        %6098 = vmatpush1.msra.mxu0 0.0
        %6099 = vmatprep.subr.mxu0 0.0
        %6100 = vmatpush1.msra.mxu0 0.0
        %6101 = vmatprep.subr.mxu0 0.0
        %6102 = vmatpush1.msra.mxu0 0.0
        %6103 = vmatprep.subr.mxu0 0.0
        %6104 = vmatpush1.msra.mxu0 0.0
        %6105 = vmatprep.subr.mxu0 0.0
        %6106 = vmatpush1.msra.mxu0 0.0
        %6107 = vmatprep.subr.mxu0 0.0
        %6108 = vmatpush1.msra.mxu0 0.0
        %6109 = vmatprep.subr.mxu0 0.0
        %6110 = vmatpush1.msra.mxu0 0.0
        %6111 = vmatprep.subr.mxu0 0.0
        %6112 = vmatpush1.msra.mxu0 0.0
        %6113 = vmatprep.subr.mxu0 0.0
        %6114 = vmatpush1.msra.mxu0 0.0
        %6115 = vmatprep.subr.mxu0 0.0
        %6116 = vmatpush1.msra.mxu0 0.0
        %6117 = vmatprep.subr.mxu0 0.0
        %6118 = vmatpush1.msra.mxu0 0.0
        %6119 = vmatprep.subr.mxu0 0.0
        %6120 = vmatpush1.msra.mxu0 0.0
        %6121 = vmatprep.subr.mxu0 0.0
        %6122 = vmatpush1.msra.mxu0 0.0
        %6123 = vmatprep.subr.mxu0 0.0
        %6124 = vmatpush1.msra.mxu0 0.0
        %6125 = vmatprep.subr.mxu0 0.0
        %6126 = vmatpush1.msra.mxu0 0.0
        %6127 = vmatprep.subr.mxu0 0.0
        %6128 = vmatpush1.msra.mxu0 0.0
        %6129 = vmatprep.subr.mxu0 0.0
        %6130 = vmatpush1.msra.mxu0 0.0
        %6131 = vmatprep.subr.mxu0 0.0
        %6132 = vmatpush1.msra.mxu0 0.0
        %6133 = vmatprep.subr.mxu0 0.0
        %6134 = vmatpush1.msra.mxu0 0.0
        %6135 = vmatprep.mubr.f32.mxu0 0.0
        %6136 = vmatmul.mubr.f32.gmra.mrb[0].mxu0 %v6069
        %v6137 = vpop.f32.mrb[0].mxu0
        %v6138 = vadd.f32 %v6066, %v6137
        %v6139 = vpop.f32.mrb[0].mxu0
        %6140 = vdwg.mxu0
        %v6141 = vmax.f32 %v6138, 0.0
        %v6142 = vadd.f32 %v6056, %v6141
        %v6143 = vld [vmem:[%s83] sm:$0xff]
        %v6144 = vld [vmem:[%s83 + $0x8] sm:$0xff]
        %v6145 = vld [vmem:[%s83 + $0x10] sm:$0xff]
        %v6146 = vld [vmem:[%s83 + $0x18] sm:$0xff]
        %v6147 = vld [vmem:[#allocation2] sm:$0x1]
        %v6149 = vlaneseq
        %v6150 = vshrl.u32 %v6149, 7
        %v6151 = vsub.s32 0, %v6150
        %v6152 = vrot.slane %v6147, %v6151
        %v6155 = vsel %vm1481, %v6142, 0
        %6157 = vmatprep.subr.mxu0 0.0
        %6158 = vmatpush1.msra.mxu0 %v6143
        %6159 = vmatprep.subr.mxu0 0.0
        %6160 = vmatpush1.msra.mxu0 %v6144
        %6161 = vmatprep.subr.mxu0 0.0
        %6162 = vmatpush1.msra.mxu0 %v6145
        %6163 = vmatprep.subr.mxu0 0.0
        %6164 = vmatpush1.msra.mxu0 %v6146
        %6165 = vmatprep.subr.mxu0 0.0
        %6166 = vmatpush1.msra.mxu0 0.0
        %6167 = vmatprep.subr.mxu0 0.0
        %6168 = vmatpush1.msra.mxu0 0.0
        %6169 = vmatprep.subr.mxu0 0.0
        %6170 = vmatpush1.msra.mxu0 0.0
        %6171 = vmatprep.subr.mxu0 0.0
        %6172 = vmatpush1.msra.mxu0 0.0
        %6173 = vmatprep.subr.mxu0 0.0
        %6174 = vmatpush1.msra.mxu0 0.0
        %6175 = vmatprep.subr.mxu0 0.0
        %6176 = vmatpush1.msra.mxu0 0.0
        %6177 = vmatprep.subr.mxu0 0.0
        %6178 = vmatpush1.msra.mxu0 0.0
        %6179 = vmatprep.subr.mxu0 0.0
        %6180 = vmatpush1.msra.mxu0 0.0
        %6181 = vmatprep.subr.mxu0 0.0
        %6182 = vmatpush1.msra.mxu0 0.0
        %6183 = vmatprep.subr.mxu0 0.0
        %6184 = vmatpush1.msra.mxu0 0.0
        %6185 = vmatprep.subr.mxu0 0.0
        %6186 = vmatpush1.msra.mxu0 0.0
        %6187 = vmatprep.subr.mxu0 0.0
        %6188 = vmatpush1.msra.mxu0 0.0
        %6189 = vmatprep.subr.mxu0 0.0
        %6190 = vmatpush1.msra.mxu0 0.0
        %6191 = vmatprep.subr.mxu0 0.0
        %6192 = vmatpush1.msra.mxu0 0.0
        %6193 = vmatprep.subr.mxu0 0.0
        %6194 = vmatpush1.msra.mxu0 0.0
        %6195 = vmatprep.subr.mxu0 0.0
        %6196 = vmatpush1.msra.mxu0 0.0
        %6197 = vmatprep.subr.mxu0 0.0
        %6198 = vmatpush1.msra.mxu0 0.0
        %6199 = vmatprep.subr.mxu0 0.0
        %6200 = vmatpush1.msra.mxu0 0.0
        %6201 = vmatprep.subr.mxu0 0.0
        %6202 = vmatpush1.msra.mxu0 0.0
        %6203 = vmatprep.subr.mxu0 0.0
        %6204 = vmatpush1.msra.mxu0 0.0
        %6205 = vmatprep.subr.mxu0 0.0
        %6206 = vmatpush1.msra.mxu0 0.0
        %6207 = vmatprep.subr.mxu0 0.0
        %6208 = vmatpush1.msra.mxu0 0.0
        %6209 = vmatprep.subr.mxu0 0.0
        %6210 = vmatpush1.msra.mxu0 0.0
        %6211 = vmatprep.subr.mxu0 0.0
        %6212 = vmatpush1.msra.mxu0 0.0
        %6213 = vmatprep.subr.mxu0 0.0
        %6214 = vmatpush1.msra.mxu0 0.0
        %6215 = vmatprep.subr.mxu0 0.0
        %6216 = vmatpush1.msra.mxu0 0.0
        %6217 = vmatprep.subr.mxu0 0.0
        %6218 = vmatpush1.msra.mxu0 0.0
        %6219 = vmatprep.subr.mxu0 0.0
        %6220 = vmatpush1.msra.mxu0 0.0
        %6221 = vmatprep.mubr.f32.mxu0 0.0
        %6222 = vmatmul.mubr.f32.gmra.mrb[0].mxu0 %v6155
        %v6223 = vpop.f32.mrb[0].mxu0
        %v6224 = vadd.f32 %v6152, %v6223
        %v6225 = vpop.f32.mrb[0].mxu0
        %6226 = vdwg.mxu0
        %v6227 = vld [vmem:[%s79] sm:$0xff]
        %v6228 = vld [vmem:[%s79 + $0x8] sm:$0xff]
        %v6229 = vld [vmem:[%s79 + $0x10] sm:$0xff]
        %v6230 = vld [vmem:[%s79 + $0x18] sm:$0xff]
        %v6231 = vld [vmem:[%s73] sm:$0x1]
        %v6233 = vlaneseq
        %v6234 = vshrl.u32 %v6233, 7
        %v6235 = vsub.s32 0, %v6234
        %v6236 = vrot.slane %v6231, %v6235
        %6238 = vmatprep.subr.mxu0 0.0
        %6239 = vmatpush1.msra.mxu0 %v6227
        %6240 = vmatprep.subr.mxu0 0.0
        %6241 = vmatpush1.msra.mxu0 %v6228
        %6242 = vmatprep.subr.mxu0 0.0
        %6243 = vmatpush1.msra.mxu0 %v6229
        %6244 = vmatprep.subr.mxu0 0.0
        %6245 = vmatpush1.msra.mxu0 %v6230
        %6246 = vmatprep.subr.mxu0 0.0
        %6247 = vmatpush1.msra.mxu0 0.0
        %6248 = vmatprep.subr.mxu0 0.0
        %6249 = vmatpush1.msra.mxu0 0.0
        %6250 = vmatprep.subr.mxu0 0.0
        %6251 = vmatpush1.msra.mxu0 0.0
        %6252 = vmatprep.subr.mxu0 0.0
        %6253 = vmatpush1.msra.mxu0 0.0
        %6254 = vmatprep.subr.mxu0 0.0
        %6255 = vmatpush1.msra.mxu0 0.0
        %6256 = vmatprep.subr.mxu0 0.0
        %6257 = vmatpush1.msra.mxu0 0.0
        %6258 = vmatprep.subr.mxu0 0.0
        %6259 = vmatpush1.msra.mxu0 0.0
        %6260 = vmatprep.subr.mxu0 0.0
        %6261 = vmatpush1.msra.mxu0 0.0
        %6262 = vmatprep.subr.mxu0 0.0
        %6263 = vmatpush1.msra.mxu0 0.0
        %6264 = vmatprep.subr.mxu0 0.0
        %6265 = vmatpush1.msra.mxu0 0.0
        %6266 = vmatprep.subr.mxu0 0.0
        %6267 = vmatpush1.msra.mxu0 0.0
        %6268 = vmatprep.subr.mxu0 0.0
        %6269 = vmatpush1.msra.mxu0 0.0
        %6270 = vmatprep.subr.mxu0 0.0
        %6271 = vmatpush1.msra.mxu0 0.0
        %6272 = vmatprep.subr.mxu0 0.0
        %6273 = vmatpush1.msra.mxu0 0.0
        %6274 = vmatprep.subr.mxu0 0.0
        %6275 = vmatpush1.msra.mxu0 0.0
        %6276 = vmatprep.subr.mxu0 0.0
        %6277 = vmatpush1.msra.mxu0 0.0
        %6278 = vmatprep.subr.mxu0 0.0
        %6279 = vmatpush1.msra.mxu0 0.0
        %6280 = vmatprep.subr.mxu0 0.0
        %6281 = vmatpush1.msra.mxu0 0.0
        %6282 = vmatprep.subr.mxu0 0.0
        %6283 = vmatpush1.msra.mxu0 0.0
        %6284 = vmatprep.subr.mxu0 0.0
        %6285 = vmatpush1.msra.mxu0 0.0
        %6286 = vmatprep.subr.mxu0 0.0
        %6287 = vmatpush1.msra.mxu0 0.0
        %6288 = vmatprep.subr.mxu0 0.0
        %6289 = vmatpush1.msra.mxu0 0.0
        %6290 = vmatprep.subr.mxu0 0.0
        %6291 = vmatpush1.msra.mxu0 0.0
        %6292 = vmatprep.subr.mxu0 0.0
        %6293 = vmatpush1.msra.mxu0 0.0
        %6294 = vmatprep.subr.mxu0 0.0
        %6295 = vmatpush1.msra.mxu0 0.0
        %6296 = vmatprep.subr.mxu0 0.0
        %6297 = vmatpush1.msra.mxu0 0.0
        %6298 = vmatprep.subr.mxu0 0.0
        %6299 = vmatpush1.msra.mxu0 0.0
        %6300 = vmatprep.subr.mxu0 0.0
        %6301 = vmatpush1.msra.mxu0 0.0
        %6302 = vmatprep.mubr.f32.mxu0 0.0
        %6303 = vmatmul.mubr.f32.gmra.mrb[0].mxu0 %v6155
        %v6304 = vpop.f32.mrb[0].mxu0
        %v6305 = vadd.f32 %v6236, %v6304
        %v6306 = vpop.f32.mrb[0].mxu0
        %6307 = vdwg.mxu0
        %6309 = vrot.lane.b32.xlu0 %v6224, 120
        %v6310 = vpop.permute.xlu0 %6309
        %6312 = vrot.lane.b32.xlu0 %v6224, 112
        %v6313 = vpop.permute.xlu0 %6312
        %6315 = vrot.lane.b32.xlu0 %v6224, 104
        %v6316 = vpop.permute.xlu0 %6315
        %6319 = vrot.lane.b32.xlu0 %v6305, 120
        %v6320 = vpop.permute.xlu0 %6319
        %6321 = vrot.lane.b32.xlu0 %v6305, 112
        %v6322 = vpop.permute.xlu0 %6321
        %6323 = vrot.lane.b32.xlu0 %v6305, 104
        %v6324 = vpop.permute.xlu0 %6323
        %v6325 = vsel %vm1658, %v6224, 0
        %v6327 = vsel %vm1658, %v6305, 0
        %6329 = vmatprep.subr.mxu0 0.0
        %6330 = vmatpush1.xpose.msra.mxu0 %v6327
        %6331 = vmatprep.subr.mxu0 0.0
        %6332 = vmatpush1.xpose.msra.mxu0 0.0
        %6333 = vmatprep.subr.mxu0 0.0
        %6334 = vmatpush1.xpose.msra.mxu0 0.0
        %6335 = vmatprep.subr.mxu0 0.0
        %6336 = vmatpush1.xpose.msra.mxu0 0.0
        %6337 = vmatprep.subr.mxu0 0.0
        %6338 = vmatpush1.xpose.msra.mxu0 0.0
        %6339 = vmatprep.subr.mxu0 0.0
        %6340 = vmatpush1.xpose.msra.mxu0 0.0
        %6341 = vmatprep.subr.mxu0 0.0
        %6342 = vmatpush1.xpose.msra.mxu0 0.0
        %6343 = vmatprep.subr.mxu0 0.0
        %6344 = vmatpush1.xpose.msra.mxu0 0.0
        %6345 = vmatprep.subr.mxu0 0.0
        %6346 = vmatpush1.xpose.msra.mxu0 0.0
        %6347 = vmatprep.subr.mxu0 0.0
        %6348 = vmatpush1.xpose.msra.mxu0 0.0
        %6349 = vmatprep.subr.mxu0 0.0
        %6350 = vmatpush1.xpose.msra.mxu0 0.0
        %6351 = vmatprep.subr.mxu0 0.0
        %6352 = vmatpush1.xpose.msra.mxu0 0.0
        %6353 = vmatprep.subr.mxu0 0.0
        %6354 = vmatpush1.xpose.msra.mxu0 0.0
        %6355 = vmatprep.subr.mxu0 0.0
        %6356 = vmatpush1.xpose.msra.mxu0 0.0
        %6357 = vmatprep.subr.mxu0 0.0
        %6358 = vmatpush1.xpose.msra.mxu0 0.0
        %6359 = vmatprep.subr.mxu0 0.0
        %6360 = vmatpush1.xpose.msra.mxu0 0.0
        %6361 = vmatprep.subr.mxu0 0.0
        %6362 = vmatpush1.xpose.msra.mxu0 0.0
        %6363 = vmatprep.subr.mxu0 0.0
        %6364 = vmatpush1.xpose.msra.mxu0 0.0
        %6365 = vmatprep.subr.mxu0 0.0
        %6366 = vmatpush1.xpose.msra.mxu0 0.0
        %6367 = vmatprep.subr.mxu0 0.0
        %6368 = vmatpush1.xpose.msra.mxu0 0.0
        %6369 = vmatprep.subr.mxu0 0.0
        %6370 = vmatpush1.xpose.msra.mxu0 0.0
        %6371 = vmatprep.subr.mxu0 0.0
        %6372 = vmatpush1.xpose.msra.mxu0 0.0
        %6373 = vmatprep.subr.mxu0 0.0
        %6374 = vmatpush1.xpose.msra.mxu0 0.0
        %6375 = vmatprep.subr.mxu0 0.0
        %6376 = vmatpush1.xpose.msra.mxu0 0.0
        %6377 = vmatprep.subr.mxu0 0.0
        %6378 = vmatpush1.xpose.msra.mxu0 0.0
        %6379 = vmatprep.subr.mxu0 0.0
        %6380 = vmatpush1.xpose.msra.mxu0 0.0
        %6381 = vmatprep.subr.mxu0 0.0
        %6382 = vmatpush1.xpose.msra.mxu0 0.0
        %6383 = vmatprep.subr.mxu0 0.0
        %6384 = vmatpush1.xpose.msra.mxu0 0.0
        %6385 = vmatprep.subr.mxu0 0.0
        %6386 = vmatpush1.xpose.msra.mxu0 0.0
        %6387 = vmatprep.subr.mxu0 0.0
        %6388 = vmatpush1.xpose.msra.mxu0 0.0
        %6389 = vmatprep.subr.mxu0 0.0
        %6390 = vmatpush1.xpose.msra.mxu0 0.0
        %6391 = vmatprep.subr.mxu0 0.0
        %6392 = vmatpush1.xpose.msra.mxu0 0.0
        %6393 = vmatprep.mubr.f32.mxu0 0.0
        %6394 = vmatmul.mubr.f32.gmra.mrb[0].mxu0 %v6325
        %v6395 = vpop.f32.mrb[0].mxu0
        %v6396 = vadd.f32 0.0, %v6395
        %v6397 = vpop.f32.mrb[0].mxu0
        %6398 = vdwg.mxu0
        %v6399 = vsel %vm1658, %v6310, 0
        %v6401 = vsel %vm1658, %v6320, 0
        %6403 = vmatprep.subr.mxu0 0.0
        %6404 = vmatpush1.xpose.msra.mxu0 %v6401
        %6405 = vmatprep.subr.mxu0 0.0
        %6406 = vmatpush1.xpose.msra.mxu0 0.0
        %6407 = vmatprep.subr.mxu0 0.0
        %6408 = vmatpush1.xpose.msra.mxu0 0.0
        %6409 = vmatprep.subr.mxu0 0.0
        %6410 = vmatpush1.xpose.msra.mxu0 0.0
        %6411 = vmatprep.subr.mxu0 0.0
        %6412 = vmatpush1.xpose.msra.mxu0 0.0
        %6413 = vmatprep.subr.mxu0 0.0
        %6414 = vmatpush1.xpose.msra.mxu0 0.0
        %6415 = vmatprep.subr.mxu0 0.0
        %6416 = vmatpush1.xpose.msra.mxu0 0.0
        %6417 = vmatprep.subr.mxu0 0.0
        %6418 = vmatpush1.xpose.msra.mxu0 0.0
        %6419 = vmatprep.subr.mxu0 0.0
        %6420 = vmatpush1.xpose.msra.mxu0 0.0
        %6421 = vmatprep.subr.mxu0 0.0
        %6422 = vmatpush1.xpose.msra.mxu0 0.0
        %6423 = vmatprep.subr.mxu0 0.0
        %6424 = vmatpush1.xpose.msra.mxu0 0.0
        %6425 = vmatprep.subr.mxu0 0.0
        %6426 = vmatpush1.xpose.msra.mxu0 0.0
        %6427 = vmatprep.subr.mxu0 0.0
        %6428 = vmatpush1.xpose.msra.mxu0 0.0
        %6429 = vmatprep.subr.mxu0 0.0
        %6430 = vmatpush1.xpose.msra.mxu0 0.0
        %6431 = vmatprep.subr.mxu0 0.0
        %6432 = vmatpush1.xpose.msra.mxu0 0.0
        %6433 = vmatprep.subr.mxu0 0.0
        %6434 = vmatpush1.xpose.msra.mxu0 0.0
        %6435 = vmatprep.subr.mxu0 0.0
        %6436 = vmatpush1.xpose.msra.mxu0 0.0
        %6437 = vmatprep.subr.mxu0 0.0
        %6438 = vmatpush1.xpose.msra.mxu0 0.0
        %6439 = vmatprep.subr.mxu0 0.0
        %6440 = vmatpush1.xpose.msra.mxu0 0.0
        %6441 = vmatprep.subr.mxu0 0.0
        %6442 = vmatpush1.xpose.msra.mxu0 0.0
        %6443 = vmatprep.subr.mxu0 0.0
        %6444 = vmatpush1.xpose.msra.mxu0 0.0
        %6445 = vmatprep.subr.mxu0 0.0
        %6446 = vmatpush1.xpose.msra.mxu0 0.0
        %6447 = vmatprep.subr.mxu0 0.0
        %6448 = vmatpush1.xpose.msra.mxu0 0.0
        %6449 = vmatprep.subr.mxu0 0.0
        %6450 = vmatpush1.xpose.msra.mxu0 0.0
        %6451 = vmatprep.subr.mxu0 0.0
        %6452 = vmatpush1.xpose.msra.mxu0 0.0
        %6453 = vmatprep.subr.mxu0 0.0
        %6454 = vmatpush1.xpose.msra.mxu0 0.0
        %6455 = vmatprep.subr.mxu0 0.0
        %6456 = vmatpush1.xpose.msra.mxu0 0.0
        %6457 = vmatprep.subr.mxu0 0.0
        %6458 = vmatpush1.xpose.msra.mxu0 0.0
        %6459 = vmatprep.subr.mxu0 0.0
        %6460 = vmatpush1.xpose.msra.mxu0 0.0
        %6461 = vmatprep.subr.mxu0 0.0
        %6462 = vmatpush1.xpose.msra.mxu0 0.0
        %6463 = vmatprep.subr.mxu0 0.0
        %6464 = vmatpush1.xpose.msra.mxu0 0.0
        %6465 = vmatprep.subr.mxu0 0.0
        %6466 = vmatpush1.xpose.msra.mxu0 0.0
        %6467 = vmatprep.mubr.f32.mxu0 0.0
        %6468 = vmatmul.mubr.f32.gmra.mrb[0].mxu0 %v6399
        %v6469 = vpop.f32.mrb[0].mxu0
        %v6470 = vadd.f32 0.0, %v6469
        %v6471 = vpop.f32.mrb[0].mxu0
        %6472 = vdwg.mxu0
        %v6473 = vsel %vm1658, %v6313, 0
        %v6475 = vsel %vm1658, %v6322, 0
        %6477 = vmatprep.subr.mxu0 0.0
        %6478 = vmatpush1.xpose.msra.mxu0 %v6475
        %6479 = vmatprep.subr.mxu0 0.0
        %6480 = vmatpush1.xpose.msra.mxu0 0.0
        %6481 = vmatprep.subr.mxu0 0.0
        %6482 = vmatpush1.xpose.msra.mxu0 0.0
        %6483 = vmatprep.subr.mxu0 0.0
        %6484 = vmatpush1.xpose.msra.mxu0 0.0
        %6485 = vmatprep.subr.mxu0 0.0
        %6486 = vmatpush1.xpose.msra.mxu0 0.0
        %6487 = vmatprep.subr.mxu0 0.0
        %6488 = vmatpush1.xpose.msra.mxu0 0.0
        %6489 = vmatprep.subr.mxu0 0.0
        %6490 = vmatpush1.xpose.msra.mxu0 0.0
        %6491 = vmatprep.subr.mxu0 0.0
        %6492 = vmatpush1.xpose.msra.mxu0 0.0
        %6493 = vmatprep.subr.mxu0 0.0
        %6494 = vmatpush1.xpose.msra.mxu0 0.0
        %6495 = vmatprep.subr.mxu0 0.0
        %6496 = vmatpush1.xpose.msra.mxu0 0.0
        %6497 = vmatprep.subr.mxu0 0.0
        %6498 = vmatpush1.xpose.msra.mxu0 0.0
        %6499 = vmatprep.subr.mxu0 0.0
        %6500 = vmatpush1.xpose.msra.mxu0 0.0
        %6501 = vmatprep.subr.mxu0 0.0
        %6502 = vmatpush1.xpose.msra.mxu0 0.0
        %6503 = vmatprep.subr.mxu0 0.0
        %6504 = vmatpush1.xpose.msra.mxu0 0.0
        %6505 = vmatprep.subr.mxu0 0.0
        %6506 = vmatpush1.xpose.msra.mxu0 0.0
        %6507 = vmatprep.subr.mxu0 0.0
        %6508 = vmatpush1.xpose.msra.mxu0 0.0
        %6509 = vmatprep.subr.mxu0 0.0
        %6510 = vmatpush1.xpose.msra.mxu0 0.0
        %6511 = vmatprep.subr.mxu0 0.0
        %6512 = vmatpush1.xpose.msra.mxu0 0.0
        %6513 = vmatprep.subr.mxu0 0.0
        %6514 = vmatpush1.xpose.msra.mxu0 0.0
        %6515 = vmatprep.subr.mxu0 0.0
        %6516 = vmatpush1.xpose.msra.mxu0 0.0
        %6517 = vmatprep.subr.mxu0 0.0
        %6518 = vmatpush1.xpose.msra.mxu0 0.0
        %6519 = vmatprep.subr.mxu0 0.0
        %6520 = vmatpush1.xpose.msra.mxu0 0.0
        %6521 = vmatprep.subr.mxu0 0.0
        %6522 = vmatpush1.xpose.msra.mxu0 0.0
        %6523 = vmatprep.subr.mxu0 0.0
        %6524 = vmatpush1.xpose.msra.mxu0 0.0
        %6525 = vmatprep.subr.mxu0 0.0
        %6526 = vmatpush1.xpose.msra.mxu0 0.0
        %6527 = vmatprep.subr.mxu0 0.0
        %6528 = vmatpush1.xpose.msra.mxu0 0.0
        %6529 = vmatprep.subr.mxu0 0.0
        %6530 = vmatpush1.xpose.msra.mxu0 0.0
        %6531 = vmatprep.subr.mxu0 0.0
        %6532 = vmatpush1.xpose.msra.mxu0 0.0
        %6533 = vmatprep.subr.mxu0 0.0
        %6534 = vmatpush1.xpose.msra.mxu0 0.0
        %6535 = vmatprep.subr.mxu0 0.0
        %6536 = vmatpush1.xpose.msra.mxu0 0.0
        %6537 = vmatprep.subr.mxu0 0.0
        %6538 = vmatpush1.xpose.msra.mxu0 0.0
        %6539 = vmatprep.subr.mxu0 0.0
        %6540 = vmatpush1.xpose.msra.mxu0 0.0
        %6541 = vmatprep.mubr.f32.mxu0 0.0
        %6542 = vmatmul.mubr.f32.gmra.mrb[0].mxu0 %v6473
        %v6543 = vpop.f32.mrb[0].mxu0
        %v6544 = vadd.f32 0.0, %v6543
        %v6545 = vpop.f32.mrb[0].mxu0
        %6546 = vdwg.mxu0
        %v6547 = vsel %vm1658, %v6316, 0
        %v6549 = vsel %vm1658, %v6324, 0
        %6551 = vmatprep.subr.mxu0 0.0
        %6552 = vmatpush1.xpose.msra.mxu0 %v6549
        %6553 = vmatprep.subr.mxu0 0.0
        %6554 = vmatpush1.xpose.msra.mxu0 0.0
        %6555 = vmatprep.subr.mxu0 0.0
        %6556 = vmatpush1.xpose.msra.mxu0 0.0
        %6557 = vmatprep.subr.mxu0 0.0
        %6558 = vmatpush1.xpose.msra.mxu0 0.0
        %6559 = vmatprep.subr.mxu0 0.0
        %6560 = vmatpush1.xpose.msra.mxu0 0.0
        %6561 = vmatprep.subr.mxu0 0.0
        %6562 = vmatpush1.xpose.msra.mxu0 0.0
        %6563 = vmatprep.subr.mxu0 0.0
        %6564 = vmatpush1.xpose.msra.mxu0 0.0
        %6565 = vmatprep.subr.mxu0 0.0
        %6566 = vmatpush1.xpose.msra.mxu0 0.0
        %6567 = vmatprep.subr.mxu0 0.0
        %6568 = vmatpush1.xpose.msra.mxu0 0.0
        %6569 = vmatprep.subr.mxu0 0.0
        %6570 = vmatpush1.xpose.msra.mxu0 0.0
        %6571 = vmatprep.subr.mxu0 0.0
        %6572 = vmatpush1.xpose.msra.mxu0 0.0
        %6573 = vmatprep.subr.mxu0 0.0
        %6574 = vmatpush1.xpose.msra.mxu0 0.0
        %6575 = vmatprep.subr.mxu0 0.0
        %6576 = vmatpush1.xpose.msra.mxu0 0.0
        %6577 = vmatprep.subr.mxu0 0.0
        %6578 = vmatpush1.xpose.msra.mxu0 0.0
        %6579 = vmatprep.subr.mxu0 0.0
        %6580 = vmatpush1.xpose.msra.mxu0 0.0
        %6581 = vmatprep.subr.mxu0 0.0
        %6582 = vmatpush1.xpose.msra.mxu0 0.0
        %6583 = vmatprep.subr.mxu0 0.0
        %6584 = vmatpush1.xpose.msra.mxu0 0.0
        %6585 = vmatprep.subr.mxu0 0.0
        %6586 = vmatpush1.xpose.msra.mxu0 0.0
        %6587 = vmatprep.subr.mxu0 0.0
        %6588 = vmatpush1.xpose.msra.mxu0 0.0
        %6589 = vmatprep.subr.mxu0 0.0
        %6590 = vmatpush1.xpose.msra.mxu0 0.0
        %6591 = vmatprep.subr.mxu0 0.0
        %6592 = vmatpush1.xpose.msra.mxu0 0.0
        %6593 = vmatprep.subr.mxu0 0.0
        %6594 = vmatpush1.xpose.msra.mxu0 0.0
        %6595 = vmatprep.subr.mxu0 0.0
        %6596 = vmatpush1.xpose.msra.mxu0 0.0
        %6597 = vmatprep.subr.mxu0 0.0
        %6598 = vmatpush1.xpose.msra.mxu0 0.0
        %6599 = vmatprep.subr.mxu0 0.0
        %6600 = vmatpush1.xpose.msra.mxu0 0.0
        %6601 = vmatprep.subr.mxu0 0.0
        %6602 = vmatpush1.xpose.msra.mxu0 0.0
        %6603 = vmatprep.subr.mxu0 0.0
        %6604 = vmatpush1.xpose.msra.mxu0 0.0
        %6605 = vmatprep.subr.mxu0 0.0
        %6606 = vmatpush1.xpose.msra.mxu0 0.0
        %6607 = vmatprep.subr.mxu0 0.0
        %6608 = vmatpush1.xpose.msra.mxu0 0.0
        %6609 = vmatprep.subr.mxu0 0.0
        %6610 = vmatpush1.xpose.msra.mxu0 0.0
        %6611 = vmatprep.subr.mxu0 0.0
        %6612 = vmatpush1.xpose.msra.mxu0 0.0
        %6613 = vmatprep.subr.mxu0 0.0
        %6614 = vmatpush1.xpose.msra.mxu0 0.0
        %6615 = vmatprep.mubr.f32.mxu0 0.0
        %6616 = vmatmul.mubr.f32.gmra.mrb[0].mxu0 %v6547
        %v6617 = vpop.f32.mrb[0].mxu0
        %v6618 = vadd.f32 0.0, %v6617
        %v6619 = vpop.f32.mrb[0].mxu0
        %6620 = vdwg.mxu0
        %vm6621 = vcmask 27648
        %v6622 = vsel %vm6621, %v6396, -inf
        %6623 = vmax.xlane.f32.xlu0 %v6622
        %v6624 = vpop.xlane.xlu0 %6623
        %v6625 = vsel %vm6621, %v6470, -inf
        %6626 = vmax.xlane.f32.xlu0 %v6625
        %v6627 = vpop.xlane.xlu0 %6626
        %v6628 = vsel %vm6621, %v6544, -inf
        %6629 = vmax.xlane.f32.xlu0 %v6628
        %v6630 = vpop.xlane.xlu0 %6629
        %v6631 = vsel %vm6621, %v6618, -inf
        %6632 = vmax.xlane.f32.xlu0 %v6631
        %v6633 = vpop.xlane.xlu0 %6632
        %v6634 = vsub.f32 %v6396, %v6624
        %v6635 = vsub.f32 %v6470, %v6627
        %v6636 = vsub.f32 %v6544, %v6630
        %v6637 = vsub.f32 %v6618, %v6633
        %v6638 = vmul.f32 %v6634, 1.442695
        %v6639 = vpow.pop %v6638
        %v6640 = vmul.f32 %v6635, 1.442695
        %v6641 = vpow.pop %v6640
        %v6642 = vmul.f32 %v6636, 1.442695
        %v6643 = vpow.pop %v6642
        %v6644 = vmul.f32 %v6637, 1.442695
        %v6645 = vpow.pop %v6644
        %v6646 = vsel %vm6621, %v6639, 0.0
        %6647 = vadd.xlane.f32.xlu0 %v6646
        %v6648 = vpop.xlane.xlu0 %6647
        %v6649 = vsel %vm6621, %v6641, 0.0
        %6650 = vadd.xlane.f32.xlu0 %v6649
        %v6651 = vpop.xlane.xlu0 %6650
        %v6652 = vsel %vm6621, %v6643, 0.0
        %6653 = vadd.xlane.f32.xlu0 %v6652
        %v6654 = vpop.xlane.xlu0 %6653
        %v6655 = vsel %vm6621, %v6645, 0.0
        %6656 = vadd.xlane.f32.xlu0 %v6655
        %v6657 = vpop.xlane.xlu0 %6656
        %v6658 = vrcp.pop %v6648
        %v6659 = vrcp.pop %v6651
        %v6660 = vrcp.pop %v6654
        %v6661 = vrcp.pop %v6657
        %v6662 = vmul.f32 %v6639, %v6658
        %v6663 = vmul.f32 %v6641, %v6659
        %v6664 = vmul.f32 %v6643, %v6660
        %v6665 = vmul.f32 %v6645, %v6661
        %6666 = vrot.lane.b32.xlu0 %v6305, 96
        %v6667 = vpop.permute.xlu0 %6666
        %v6669 = vsel %vm1563, %v6662, 0
        %v6671 = vsel %vm1567, %v6667, 0
        %6673 = vmatprep.subr.mxu0 0.0
        %6674 = vmatpush1.msra.mxu0 %v6671
        %6675 = vmatprep.subr.mxu0 0.0
        %6676 = vmatpush1.msra.mxu0 0.0
        %6677 = vmatprep.subr.mxu0 0.0
        %6678 = vmatpush1.msra.mxu0 0.0
        %6679 = vmatprep.subr.mxu0 0.0
        %6680 = vmatpush1.msra.mxu0 0.0
        %6681 = vmatprep.subr.mxu0 0.0
        %6682 = vmatpush1.msra.mxu0 0.0
        %6683 = vmatprep.subr.mxu0 0.0
        %6684 = vmatpush1.msra.mxu0 0.0
        %6685 = vmatprep.subr.mxu0 0.0
        %6686 = vmatpush1.msra.mxu0 0.0
        %6687 = vmatprep.subr.mxu0 0.0
        %6688 = vmatpush1.msra.mxu0 0.0
        %6689 = vmatprep.subr.mxu0 0.0
        %6690 = vmatpush1.msra.mxu0 0.0
        %6691 = vmatprep.subr.mxu0 0.0
        %6692 = vmatpush1.msra.mxu0 0.0
        %6693 = vmatprep.subr.mxu0 0.0
        %6694 = vmatpush1.msra.mxu0 0.0
        %6695 = vmatprep.subr.mxu0 0.0
        %6696 = vmatpush1.msra.mxu0 0.0
        %6697 = vmatprep.subr.mxu0 0.0
        %6698 = vmatpush1.msra.mxu0 0.0
        %6699 = vmatprep.subr.mxu0 0.0
        %6700 = vmatpush1.msra.mxu0 0.0
        %6701 = vmatprep.subr.mxu0 0.0
        %6702 = vmatpush1.msra.mxu0 0.0
        %6703 = vmatprep.subr.mxu0 0.0
        %6704 = vmatpush1.msra.mxu0 0.0
        %6705 = vmatprep.subr.mxu0 0.0
        %6706 = vmatpush1.msra.mxu0 0.0
        %6707 = vmatprep.subr.mxu0 0.0
        %6708 = vmatpush1.msra.mxu0 0.0
        %6709 = vmatprep.subr.mxu0 0.0
        %6710 = vmatpush1.msra.mxu0 0.0
        %6711 = vmatprep.subr.mxu0 0.0
        %6712 = vmatpush1.msra.mxu0 0.0
        %6713 = vmatprep.subr.mxu0 0.0
        %6714 = vmatpush1.msra.mxu0 0.0
        %6715 = vmatprep.subr.mxu0 0.0
        %6716 = vmatpush1.msra.mxu0 0.0
        %6717 = vmatprep.subr.mxu0 0.0
        %6718 = vmatpush1.msra.mxu0 0.0
        %6719 = vmatprep.subr.mxu0 0.0
        %6720 = vmatpush1.msra.mxu0 0.0
        %6721 = vmatprep.subr.mxu0 0.0
        %6722 = vmatpush1.msra.mxu0 0.0
        %6723 = vmatprep.subr.mxu0 0.0
        %6724 = vmatpush1.msra.mxu0 0.0
        %6725 = vmatprep.subr.mxu0 0.0
        %6726 = vmatpush1.msra.mxu0 0.0
        %6727 = vmatprep.subr.mxu0 0.0
        %6728 = vmatpush1.msra.mxu0 0.0
        %6729 = vmatprep.subr.mxu0 0.0
        %6730 = vmatpush1.msra.mxu0 0.0
        %6731 = vmatprep.subr.mxu0 0.0
        %6732 = vmatpush1.msra.mxu0 0.0
        %6733 = vmatprep.subr.mxu0 0.0
        %6734 = vmatpush1.msra.mxu0 0.0
        %6735 = vmatprep.subr.mxu0 0.0
        %6736 = vmatpush1.msra.mxu0 0.0
        %6737 = vmatprep.mubr.f32.mxu0 0.0
        %6738 = vmatmul.mubr.f32.gmra.mrb[0].mxu0 %v6669
        %v6739 = vpop.f32.mrb[0].mxu0
        %v6740 = vadd.f32 0.0, %v6739
        %v6741 = vpop.f32.mrb[0].mxu0
        %6742 = vdwg.mxu0
        %6743 = vrot.lane.b32.xlu0 %v6320, 96
        %v6744 = vpop.permute.xlu0 %6743
        %v6746 = vsel %vm1563, %v6663, 0
        %v6748 = vsel %vm1567, %v6744, 0
        %6750 = vmatprep.subr.mxu0 0.0
        %6751 = vmatpush1.msra.mxu0 %v6748
        %6752 = vmatprep.subr.mxu0 0.0
        %6753 = vmatpush1.msra.mxu0 0.0
        %6754 = vmatprep.subr.mxu0 0.0
        %6755 = vmatpush1.msra.mxu0 0.0
        %6756 = vmatprep.subr.mxu0 0.0
        %6757 = vmatpush1.msra.mxu0 0.0
        %6758 = vmatprep.subr.mxu0 0.0
        %6759 = vmatpush1.msra.mxu0 0.0
        %6760 = vmatprep.subr.mxu0 0.0
        %6761 = vmatpush1.msra.mxu0 0.0
        %6762 = vmatprep.subr.mxu0 0.0
        %6763 = vmatpush1.msra.mxu0 0.0
        %6764 = vmatprep.subr.mxu0 0.0
        %6765 = vmatpush1.msra.mxu0 0.0
        %6766 = vmatprep.subr.mxu0 0.0
        %6767 = vmatpush1.msra.mxu0 0.0
        %6768 = vmatprep.subr.mxu0 0.0
        %6769 = vmatpush1.msra.mxu0 0.0
        %6770 = vmatprep.subr.mxu0 0.0
        %6771 = vmatpush1.msra.mxu0 0.0
        %6772 = vmatprep.subr.mxu0 0.0
        %6773 = vmatpush1.msra.mxu0 0.0
        %6774 = vmatprep.subr.mxu0 0.0
        %6775 = vmatpush1.msra.mxu0 0.0
        %6776 = vmatprep.subr.mxu0 0.0
        %6777 = vmatpush1.msra.mxu0 0.0
        %6778 = vmatprep.subr.mxu0 0.0
        %6779 = vmatpush1.msra.mxu0 0.0
        %6780 = vmatprep.subr.mxu0 0.0
        %6781 = vmatpush1.msra.mxu0 0.0
        %6782 = vmatprep.subr.mxu0 0.0
        %6783 = vmatpush1.msra.mxu0 0.0
        %6784 = vmatprep.subr.mxu0 0.0
        %6785 = vmatpush1.msra.mxu0 0.0
        %6786 = vmatprep.subr.mxu0 0.0
        %6787 = vmatpush1.msra.mxu0 0.0
        %6788 = vmatprep.subr.mxu0 0.0
        %6789 = vmatpush1.msra.mxu0 0.0
        %6790 = vmatprep.subr.mxu0 0.0
        %6791 = vmatpush1.msra.mxu0 0.0
        %6792 = vmatprep.subr.mxu0 0.0
        %6793 = vmatpush1.msra.mxu0 0.0
        %6794 = vmatprep.subr.mxu0 0.0
        %6795 = vmatpush1.msra.mxu0 0.0
        %6796 = vmatprep.subr.mxu0 0.0
        %6797 = vmatpush1.msra.mxu0 0.0
        %6798 = vmatprep.subr.mxu0 0.0
        %6799 = vmatpush1.msra.mxu0 0.0
        %6800 = vmatprep.subr.mxu0 0.0
        %6801 = vmatpush1.msra.mxu0 0.0
        %6802 = vmatprep.subr.mxu0 0.0
        %6803 = vmatpush1.msra.mxu0 0.0
        %6804 = vmatprep.subr.mxu0 0.0
        %6805 = vmatpush1.msra.mxu0 0.0
        %6806 = vmatprep.subr.mxu0 0.0
        %6807 = vmatpush1.msra.mxu0 0.0
        %6808 = vmatprep.subr.mxu0 0.0
        %6809 = vmatpush1.msra.mxu0 0.0
        %6810 = vmatprep.subr.mxu0 0.0
        %6811 = vmatpush1.msra.mxu0 0.0
        %6812 = vmatprep.subr.mxu0 0.0
        %6813 = vmatpush1.msra.mxu0 0.0
        %6814 = vmatprep.mubr.f32.mxu0 0.0
        %6815 = vmatmul.mubr.f32.gmra.mrb[0].mxu0 %v6746
        %v6816 = vpop.f32.mrb[0].mxu0
        %v6817 = vadd.f32 0.0, %v6816
        %v6818 = vpop.f32.mrb[0].mxu0
        %6819 = vdwg.mxu0
        %6820 = vrot.lane.b32.xlu0 %v6322, 96
        %v6821 = vpop.permute.xlu0 %6820
        %v6823 = vsel %vm1563, %v6664, 0
        %v6825 = vsel %vm1567, %v6821, 0
        %6827 = vmatprep.subr.mxu0 0.0
        %6828 = vmatpush1.msra.mxu0 %v6825
        %6829 = vmatprep.subr.mxu0 0.0
        %6830 = vmatpush1.msra.mxu0 0.0
        %6831 = vmatprep.subr.mxu0 0.0
        %6832 = vmatpush1.msra.mxu0 0.0
        %6833 = vmatprep.subr.mxu0 0.0
        %6834 = vmatpush1.msra.mxu0 0.0
        %6835 = vmatprep.subr.mxu0 0.0
        %6836 = vmatpush1.msra.mxu0 0.0
        %6837 = vmatprep.subr.mxu0 0.0
        %6838 = vmatpush1.msra.mxu0 0.0
        %6839 = vmatprep.subr.mxu0 0.0
        %6840 = vmatpush1.msra.mxu0 0.0
        %6841 = vmatprep.subr.mxu0 0.0
        %6842 = vmatpush1.msra.mxu0 0.0
        %6843 = vmatprep.subr.mxu0 0.0
        %6844 = vmatpush1.msra.mxu0 0.0
        %6845 = vmatprep.subr.mxu0 0.0
        %6846 = vmatpush1.msra.mxu0 0.0
        %6847 = vmatprep.subr.mxu0 0.0
        %6848 = vmatpush1.msra.mxu0 0.0
        %6849 = vmatprep.subr.mxu0 0.0
        %6850 = vmatpush1.msra.mxu0 0.0
        %6851 = vmatprep.subr.mxu0 0.0
        %6852 = vmatpush1.msra.mxu0 0.0
        %6853 = vmatprep.subr.mxu0 0.0
        %6854 = vmatpush1.msra.mxu0 0.0
        %6855 = vmatprep.subr.mxu0 0.0
        %6856 = vmatpush1.msra.mxu0 0.0
        %6857 = vmatprep.subr.mxu0 0.0
        %6858 = vmatpush1.msra.mxu0 0.0
        %6859 = vmatprep.subr.mxu0 0.0
        %6860 = vmatpush1.msra.mxu0 0.0
        %6861 = vmatprep.subr.mxu0 0.0
        %6862 = vmatpush1.msra.mxu0 0.0
        %6863 = vmatprep.subr.mxu0 0.0
        %6864 = vmatpush1.msra.mxu0 0.0
        %6865 = vmatprep.subr.mxu0 0.0
        %6866 = vmatpush1.msra.mxu0 0.0
        %6867 = vmatprep.subr.mxu0 0.0
        %6868 = vmatpush1.msra.mxu0 0.0
        %6869 = vmatprep.subr.mxu0 0.0
        %6870 = vmatpush1.msra.mxu0 0.0
        %6871 = vmatprep.subr.mxu0 0.0
        %6872 = vmatpush1.msra.mxu0 0.0
        %6873 = vmatprep.subr.mxu0 0.0
        %6874 = vmatpush1.msra.mxu0 0.0
        %6875 = vmatprep.subr.mxu0 0.0
        %6876 = vmatpush1.msra.mxu0 0.0
        %6877 = vmatprep.subr.mxu0 0.0
        %6878 = vmatpush1.msra.mxu0 0.0
        %6879 = vmatprep.subr.mxu0 0.0
        %6880 = vmatpush1.msra.mxu0 0.0
        %6881 = vmatprep.subr.mxu0 0.0
        %6882 = vmatpush1.msra.mxu0 0.0
        %6883 = vmatprep.subr.mxu0 0.0
        %6884 = vmatpush1.msra.mxu0 0.0
        %6885 = vmatprep.subr.mxu0 0.0
        %6886 = vmatpush1.msra.mxu0 0.0
        %6887 = vmatprep.subr.mxu0 0.0
        %6888 = vmatpush1.msra.mxu0 0.0
        %6889 = vmatprep.subr.mxu0 0.0
        %6890 = vmatpush1.msra.mxu0 0.0
        %6891 = vmatprep.mubr.f32.mxu0 0.0
        %6892 = vmatmul.mubr.f32.gmra.mrb[0].mxu0 %v6823
        %v6893 = vpop.f32.mrb[0].mxu0
        %v6894 = vadd.f32 0.0, %v6893
        %v6895 = vpop.f32.mrb[0].mxu0
        %6896 = vdwg.mxu0
        %6897 = vrot.lane.b32.xlu0 %v6324, 96
        %v6898 = vpop.permute.xlu0 %6897
        %v6900 = vsel %vm1563, %v6665, 0
        %v6902 = vsel %vm1567, %v6898, 0
        %6904 = vmatprep.subr.mxu0 0.0
        %6905 = vmatpush1.msra.mxu0 %v6902
        %6906 = vmatprep.subr.mxu0 0.0
        %6907 = vmatpush1.msra.mxu0 0.0
        %6908 = vmatprep.subr.mxu0 0.0
        %6909 = vmatpush1.msra.mxu0 0.0
        %6910 = vmatprep.subr.mxu0 0.0
        %6911 = vmatpush1.msra.mxu0 0.0
        %6912 = vmatprep.subr.mxu0 0.0
        %6913 = vmatpush1.msra.mxu0 0.0
        %6914 = vmatprep.subr.mxu0 0.0
        %6915 = vmatpush1.msra.mxu0 0.0
        %6916 = vmatprep.subr.mxu0 0.0
        %6917 = vmatpush1.msra.mxu0 0.0
        %6918 = vmatprep.subr.mxu0 0.0
        %6919 = vmatpush1.msra.mxu0 0.0
        %6920 = vmatprep.subr.mxu0 0.0
        %6921 = vmatpush1.msra.mxu0 0.0
        %6922 = vmatprep.subr.mxu0 0.0
        %6923 = vmatpush1.msra.mxu0 0.0
        %6924 = vmatprep.subr.mxu0 0.0
        %6925 = vmatpush1.msra.mxu0 0.0
        %6926 = vmatprep.subr.mxu0 0.0
        %6927 = vmatpush1.msra.mxu0 0.0
        %6928 = vmatprep.subr.mxu0 0.0
        %6929 = vmatpush1.msra.mxu0 0.0
        %6930 = vmatprep.subr.mxu0 0.0
        %6931 = vmatpush1.msra.mxu0 0.0
        %6932 = vmatprep.subr.mxu0 0.0
        %6933 = vmatpush1.msra.mxu0 0.0
        %6934 = vmatprep.subr.mxu0 0.0
        %6935 = vmatpush1.msra.mxu0 0.0
        %6936 = vmatprep.subr.mxu0 0.0
        %6937 = vmatpush1.msra.mxu0 0.0
        %6938 = vmatprep.subr.mxu0 0.0
        %6939 = vmatpush1.msra.mxu0 0.0
        %6940 = vmatprep.subr.mxu0 0.0
        %6941 = vmatpush1.msra.mxu0 0.0
        %6942 = vmatprep.subr.mxu0 0.0
        %6943 = vmatpush1.msra.mxu0 0.0
        %6944 = vmatprep.subr.mxu0 0.0
        %6945 = vmatpush1.msra.mxu0 0.0
        %6946 = vmatprep.subr.mxu0 0.0
        %6947 = vmatpush1.msra.mxu0 0.0
        %6948 = vmatprep.subr.mxu0 0.0
        %6949 = vmatpush1.msra.mxu0 0.0
        %6950 = vmatprep.subr.mxu0 0.0
        %6951 = vmatpush1.msra.mxu0 0.0
        %6952 = vmatprep.subr.mxu0 0.0
        %6953 = vmatpush1.msra.mxu0 0.0
        %6954 = vmatprep.subr.mxu0 0.0
        %6955 = vmatpush1.msra.mxu0 0.0
        %6956 = vmatprep.subr.mxu0 0.0
        %6957 = vmatpush1.msra.mxu0 0.0
        %6958 = vmatprep.subr.mxu0 0.0
        %6959 = vmatpush1.msra.mxu0 0.0
        %6960 = vmatprep.subr.mxu0 0.0
        %6961 = vmatpush1.msra.mxu0 0.0
        %6962 = vmatprep.subr.mxu0 0.0
        %6963 = vmatpush1.msra.mxu0 0.0
        %6964 = vmatprep.subr.mxu0 0.0
        %6965 = vmatpush1.msra.mxu0 0.0
        %6966 = vmatprep.subr.mxu0 0.0
        %6967 = vmatpush1.msra.mxu0 0.0
        %6968 = vmatprep.mubr.f32.mxu0 0.0
        %6969 = vmatmul.mubr.f32.gmra.mrb[0].mxu0 %v6900
        %v6970 = vpop.f32.mrb[0].mxu0
        %v6971 = vadd.f32 0.0, %v6970
        %v6972 = vpop.f32.mrb[0].mxu0
        %6973 = vdwg.mxu0
        %v6974 = vadd.f32 %v6224, %v6740
        %v6975 = vadd.f32 %v6310, %v6817
        %v6976 = vadd.f32 %v6313, %v6894
        %v6977 = vadd.f32 %v6316, %v6971
        %6979 = vrot.lane.b32.xlu0 %v6975, 8
        %v6980 = vpop.permute.xlu0 %6979
        %6983 = vrot.lane.b32.xlu0 %v6976, 16
        %v6984 = vpop.permute.xlu0 %6983
        %6987 = vrot.lane.b32.xlu0 %v6977, 24
        %v6988 = vpop.permute.xlu0 %6987
        %v6990 = vsel %vm1658, %v6974, %v6980
        %v6991 = vsel %vm2320, %v6990, %v6984
        %v6992 = vsel %vm2322, %v6991, %v6988
        %v6993 = vld [vmem:[%s81] sm:$0xff]
        %v6994 = vld [vmem:[%s81 + $0x8] sm:$0xff]
        %v6995 = vld [vmem:[%s81 + $0x10] sm:$0xff]
        %v6996 = vld [vmem:[%s81 + $0x18] sm:$0xff]
        %v6997 = vld [vmem:[%s75] sm:$0x1]
        %v6999 = vlaneseq
        %v7000 = vshrl.u32 %v6999, 7
        %v7001 = vsub.s32 0, %v7000
        %v7002 = vrot.slane %v6997, %v7001
        %v7005 = vsel %vm1481, %v6992, 0
        %7007 = vmatprep.subr.mxu0 0.0
        %7008 = vmatpush1.msra.mxu0 %v6993
        %7009 = vmatprep.subr.mxu0 0.0
        %7010 = vmatpush1.msra.mxu0 %v6994
        %7011 = vmatprep.subr.mxu0 0.0
        %7012 = vmatpush1.msra.mxu0 %v6995
        %7013 = vmatprep.subr.mxu0 0.0
        %7014 = vmatpush1.msra.mxu0 %v6996
        %7015 = vmatprep.subr.mxu0 0.0
        %7016 = vmatpush1.msra.mxu0 0.0
        %7017 = vmatprep.subr.mxu0 0.0
        %7018 = vmatpush1.msra.mxu0 0.0
        %7019 = vmatprep.subr.mxu0 0.0
        %7020 = vmatpush1.msra.mxu0 0.0
        %7021 = vmatprep.subr.mxu0 0.0
        %7022 = vmatpush1.msra.mxu0 0.0
        %7023 = vmatprep.subr.mxu0 0.0
        %7024 = vmatpush1.msra.mxu0 0.0
        %7025 = vmatprep.subr.mxu0 0.0
        %7026 = vmatpush1.msra.mxu0 0.0
        %7027 = vmatprep.subr.mxu0 0.0
        %7028 = vmatpush1.msra.mxu0 0.0
        %7029 = vmatprep.subr.mxu0 0.0
        %7030 = vmatpush1.msra.mxu0 0.0
        %7031 = vmatprep.subr.mxu0 0.0
        %7032 = vmatpush1.msra.mxu0 0.0
        %7033 = vmatprep.subr.mxu0 0.0
        %7034 = vmatpush1.msra.mxu0 0.0
        %7035 = vmatprep.subr.mxu0 0.0
        %7036 = vmatpush1.msra.mxu0 0.0
        %7037 = vmatprep.subr.mxu0 0.0
        %7038 = vmatpush1.msra.mxu0 0.0
        %7039 = vmatprep.subr.mxu0 0.0
        %7040 = vmatpush1.msra.mxu0 0.0
        %7041 = vmatprep.subr.mxu0 0.0
        %7042 = vmatpush1.msra.mxu0 0.0
        %7043 = vmatprep.subr.mxu0 0.0
        %7044 = vmatpush1.msra.mxu0 0.0
        %7045 = vmatprep.subr.mxu0 0.0
        %7046 = vmatpush1.msra.mxu0 0.0
        %7047 = vmatprep.subr.mxu0 0.0
        %7048 = vmatpush1.msra.mxu0 0.0
        %7049 = vmatprep.subr.mxu0 0.0
        %7050 = vmatpush1.msra.mxu0 0.0
        %7051 = vmatprep.subr.mxu0 0.0
        %7052 = vmatpush1.msra.mxu0 0.0
        %7053 = vmatprep.subr.mxu0 0.0
        %7054 = vmatpush1.msra.mxu0 0.0
        %7055 = vmatprep.subr.mxu0 0.0
        %7056 = vmatpush1.msra.mxu0 0.0
        %7057 = vmatprep.subr.mxu0 0.0
        %7058 = vmatpush1.msra.mxu0 0.0
        %7059 = vmatprep.subr.mxu0 0.0
        %7060 = vmatpush1.msra.mxu0 0.0
        %7061 = vmatprep.subr.mxu0 0.0
        %7062 = vmatpush1.msra.mxu0 0.0
        %7063 = vmatprep.subr.mxu0 0.0
        %7064 = vmatpush1.msra.mxu0 0.0
        %7065 = vmatprep.subr.mxu0 0.0
        %7066 = vmatpush1.msra.mxu0 0.0
        %7067 = vmatprep.subr.mxu0 0.0
        %7068 = vmatpush1.msra.mxu0 0.0
        %7069 = vmatprep.subr.mxu0 0.0
        %7070 = vmatpush1.msra.mxu0 0.0
        %7071 = vmatprep.mubr.f32.mxu0 0.0
        %7072 = vmatmul.mubr.f32.gmra.mrb[0].mxu0 %v7005
        %v7073 = vpop.f32.mrb[0].mxu0
        %v7074 = vadd.f32 %v7002, %v7073
        %v7075 = vpop.f32.mrb[0].mxu0
        %7076 = vdwg.mxu0
        %v7077 = vmax.f32 %v7074, 0.0
        %v7078 = vadd.f32 %v6992, %v7077
        %v7079 = vld [vmem:[%s95] sm:$0xff]
        %v7080 = vld [vmem:[%s95 + $0x8] sm:$0xff]
        %v7081 = vld [vmem:[%s95 + $0x10] sm:$0xff]
        %v7082 = vld [vmem:[%s95 + $0x18] sm:$0xff]
        %v7083 = vld [vmem:[#allocation7] sm:$0x1]
        %v7085 = vlaneseq
        %v7086 = vshrl.u32 %v7085, 7
        %v7087 = vsub.s32 0, %v7086
        %v7088 = vrot.slane %v7083, %v7087
        %v7091 = vsel %vm1481, %v7078, 0
        %7093 = vmatprep.subr.mxu0 0.0
        %7094 = vmatpush1.msra.mxu0 %v7079
        %7095 = vmatprep.subr.mxu0 0.0
        %7096 = vmatpush1.msra.mxu0 %v7080
        %7097 = vmatprep.subr.mxu0 0.0
        %7098 = vmatpush1.msra.mxu0 %v7081
        %7099 = vmatprep.subr.mxu0 0.0
        %7100 = vmatpush1.msra.mxu0 %v7082
        %7101 = vmatprep.subr.mxu0 0.0
        %7102 = vmatpush1.msra.mxu0 0.0
        %7103 = vmatprep.subr.mxu0 0.0
        %7104 = vmatpush1.msra.mxu0 0.0
        %7105 = vmatprep.subr.mxu0 0.0
        %7106 = vmatpush1.msra.mxu0 0.0
        %7107 = vmatprep.subr.mxu0 0.0
        %7108 = vmatpush1.msra.mxu0 0.0
        %7109 = vmatprep.subr.mxu0 0.0
        %7110 = vmatpush1.msra.mxu0 0.0
        %7111 = vmatprep.subr.mxu0 0.0
        %7112 = vmatpush1.msra.mxu0 0.0
        %7113 = vmatprep.subr.mxu0 0.0
        %7114 = vmatpush1.msra.mxu0 0.0
        %7115 = vmatprep.subr.mxu0 0.0
        %7116 = vmatpush1.msra.mxu0 0.0
        %7117 = vmatprep.subr.mxu0 0.0
        %7118 = vmatpush1.msra.mxu0 0.0
        %7119 = vmatprep.subr.mxu0 0.0
        %7120 = vmatpush1.msra.mxu0 0.0
        %7121 = vmatprep.subr.mxu0 0.0
        %7122 = vmatpush1.msra.mxu0 0.0
        %7123 = vmatprep.subr.mxu0 0.0
        %7124 = vmatpush1.msra.mxu0 0.0
        %7125 = vmatprep.subr.mxu0 0.0
        %7126 = vmatpush1.msra.mxu0 0.0
        %7127 = vmatprep.subr.mxu0 0.0
        %7128 = vmatpush1.msra.mxu0 0.0
        %7129 = vmatprep.subr.mxu0 0.0
        %7130 = vmatpush1.msra.mxu0 0.0
        %7131 = vmatprep.subr.mxu0 0.0
        %7132 = vmatpush1.msra.mxu0 0.0
        %7133 = vmatprep.subr.mxu0 0.0
        %7134 = vmatpush1.msra.mxu0 0.0
        %7135 = vmatprep.subr.mxu0 0.0
        %7136 = vmatpush1.msra.mxu0 0.0
        %7137 = vmatprep.subr.mxu0 0.0
        %7138 = vmatpush1.msra.mxu0 0.0
        %7139 = vmatprep.subr.mxu0 0.0
        %7140 = vmatpush1.msra.mxu0 0.0
        %7141 = vmatprep.subr.mxu0 0.0
        %7142 = vmatpush1.msra.mxu0 0.0
        %7143 = vmatprep.subr.mxu0 0.0
        %7144 = vmatpush1.msra.mxu0 0.0
        %7145 = vmatprep.subr.mxu0 0.0
        %7146 = vmatpush1.msra.mxu0 0.0
        %7147 = vmatprep.subr.mxu0 0.0
        %7148 = vmatpush1.msra.mxu0 0.0
        %7149 = vmatprep.subr.mxu0 0.0
        %7150 = vmatpush1.msra.mxu0 0.0
        %7151 = vmatprep.subr.mxu0 0.0
        %7152 = vmatpush1.msra.mxu0 0.0
        %7153 = vmatprep.subr.mxu0 0.0
        %7154 = vmatpush1.msra.mxu0 0.0
        %7155 = vmatprep.subr.mxu0 0.0
        %7156 = vmatpush1.msra.mxu0 0.0
        %7157 = vmatprep.mubr.f32.mxu0 0.0
        %7158 = vmatmul.mubr.f32.gmra.mrb[0].mxu0 %v7091
        %v7159 = vpop.f32.mrb[0].mxu0
        %v7160 = vadd.f32 %v7088, %v7159
        %v7161 = vpop.f32.mrb[0].mxu0
        %7162 = vdwg.mxu0
        %v7163 = vld [vmem:[%s91] sm:$0xff]
        %v7164 = vld [vmem:[%s91 + $0x8] sm:$0xff]
        %v7165 = vld [vmem:[%s91 + $0x10] sm:$0xff]
        %v7166 = vld [vmem:[%s91 + $0x18] sm:$0xff]
        %v7167 = vld [vmem:[%s85] sm:$0x1]
        %v7169 = vlaneseq
        %v7170 = vshrl.u32 %v7169, 7
        %v7171 = vsub.s32 0, %v7170
        %v7172 = vrot.slane %v7167, %v7171
        %7174 = vmatprep.subr.mxu0 0.0
        %7175 = vmatpush1.msra.mxu0 %v7163
        %7176 = vmatprep.subr.mxu0 0.0
        %7177 = vmatpush1.msra.mxu0 %v7164
        %7178 = vmatprep.subr.mxu0 0.0
        %7179 = vmatpush1.msra.mxu0 %v7165
        %7180 = vmatprep.subr.mxu0 0.0
        %7181 = vmatpush1.msra.mxu0 %v7166
        %7182 = vmatprep.subr.mxu0 0.0
        %7183 = vmatpush1.msra.mxu0 0.0
        %7184 = vmatprep.subr.mxu0 0.0
        %7185 = vmatpush1.msra.mxu0 0.0
        %7186 = vmatprep.subr.mxu0 0.0
        %7187 = vmatpush1.msra.mxu0 0.0
        %7188 = vmatprep.subr.mxu0 0.0
        %7189 = vmatpush1.msra.mxu0 0.0
        %7190 = vmatprep.subr.mxu0 0.0
        %7191 = vmatpush1.msra.mxu0 0.0
        %7192 = vmatprep.subr.mxu0 0.0
        %7193 = vmatpush1.msra.mxu0 0.0
        %7194 = vmatprep.subr.mxu0 0.0
        %7195 = vmatpush1.msra.mxu0 0.0
        %7196 = vmatprep.subr.mxu0 0.0
        %7197 = vmatpush1.msra.mxu0 0.0
        %7198 = vmatprep.subr.mxu0 0.0
        %7199 = vmatpush1.msra.mxu0 0.0
        %7200 = vmatprep.subr.mxu0 0.0
        %7201 = vmatpush1.msra.mxu0 0.0
        %7202 = vmatprep.subr.mxu0 0.0
        %7203 = vmatpush1.msra.mxu0 0.0
        %7204 = vmatprep.subr.mxu0 0.0
        %7205 = vmatpush1.msra.mxu0 0.0
        %7206 = vmatprep.subr.mxu0 0.0
        %7207 = vmatpush1.msra.mxu0 0.0
        %7208 = vmatprep.subr.mxu0 0.0
        %7209 = vmatpush1.msra.mxu0 0.0
        %7210 = vmatprep.subr.mxu0 0.0
        %7211 = vmatpush1.msra.mxu0 0.0
        %7212 = vmatprep.subr.mxu0 0.0
        %7213 = vmatpush1.msra.mxu0 0.0
        %7214 = vmatprep.subr.mxu0 0.0
        %7215 = vmatpush1.msra.mxu0 0.0
        %7216 = vmatprep.subr.mxu0 0.0
        %7217 = vmatpush1.msra.mxu0 0.0
        %7218 = vmatprep.subr.mxu0 0.0
        %7219 = vmatpush1.msra.mxu0 0.0
        %7220 = vmatprep.subr.mxu0 0.0
        %7221 = vmatpush1.msra.mxu0 0.0
        %7222 = vmatprep.subr.mxu0 0.0
        %7223 = vmatpush1.msra.mxu0 0.0
        %7224 = vmatprep.subr.mxu0 0.0
        %7225 = vmatpush1.msra.mxu0 0.0
        %7226 = vmatprep.subr.mxu0 0.0
        %7227 = vmatpush1.msra.mxu0 0.0
        %7228 = vmatprep.subr.mxu0 0.0
        %7229 = vmatpush1.msra.mxu0 0.0
        %7230 = vmatprep.subr.mxu0 0.0
        %7231 = vmatpush1.msra.mxu0 0.0
        %7232 = vmatprep.subr.mxu0 0.0
        %7233 = vmatpush1.msra.mxu0 0.0
        %7234 = vmatprep.subr.mxu0 0.0
        %7235 = vmatpush1.msra.mxu0 0.0
        %7236 = vmatprep.subr.mxu0 0.0
        %7237 = vmatpush1.msra.mxu0 0.0
        %7238 = vmatprep.mubr.f32.mxu0 0.0
        %7239 = vmatmul.mubr.f32.gmra.mrb[0].mxu0 %v7091
        %v7240 = vpop.f32.mrb[0].mxu0
        %v7241 = vadd.f32 %v7172, %v7240
        %v7242 = vpop.f32.mrb[0].mxu0
        %7243 = vdwg.mxu0
        %7245 = vrot.lane.b32.xlu0 %v7160, 120
        %v7246 = vpop.permute.xlu0 %7245
        %7248 = vrot.lane.b32.xlu0 %v7160, 112
        %v7249 = vpop.permute.xlu0 %7248
        %7251 = vrot.lane.b32.xlu0 %v7160, 104
        %v7252 = vpop.permute.xlu0 %7251
        %7255 = vrot.lane.b32.xlu0 %v7241, 120
        %v7256 = vpop.permute.xlu0 %7255
        %7257 = vrot.lane.b32.xlu0 %v7241, 112
        %v7258 = vpop.permute.xlu0 %7257
        %7259 = vrot.lane.b32.xlu0 %v7241, 104
        %v7260 = vpop.permute.xlu0 %7259
        %v7261 = vsel %vm1658, %v7160, 0
        %v7263 = vsel %vm1658, %v7241, 0
        %7265 = vmatprep.subr.mxu0 0.0
        %7266 = vmatpush1.xpose.msra.mxu0 %v7263
        %7267 = vmatprep.subr.mxu0 0.0
        %7268 = vmatpush1.xpose.msra.mxu0 0.0
        %7269 = vmatprep.subr.mxu0 0.0
        %7270 = vmatpush1.xpose.msra.mxu0 0.0
        %7271 = vmatprep.subr.mxu0 0.0
        %7272 = vmatpush1.xpose.msra.mxu0 0.0
        %7273 = vmatprep.subr.mxu0 0.0
        %7274 = vmatpush1.xpose.msra.mxu0 0.0
        %7275 = vmatprep.subr.mxu0 0.0
        %7276 = vmatpush1.xpose.msra.mxu0 0.0
        %7277 = vmatprep.subr.mxu0 0.0
        %7278 = vmatpush1.xpose.msra.mxu0 0.0
        %7279 = vmatprep.subr.mxu0 0.0
        %7280 = vmatpush1.xpose.msra.mxu0 0.0
        %7281 = vmatprep.subr.mxu0 0.0
        %7282 = vmatpush1.xpose.msra.mxu0 0.0
        %7283 = vmatprep.subr.mxu0 0.0
        %7284 = vmatpush1.xpose.msra.mxu0 0.0
        %7285 = vmatprep.subr.mxu0 0.0
        %7286 = vmatpush1.xpose.msra.mxu0 0.0
        %7287 = vmatprep.subr.mxu0 0.0
        %7288 = vmatpush1.xpose.msra.mxu0 0.0
        %7289 = vmatprep.subr.mxu0 0.0
        %7290 = vmatpush1.xpose.msra.mxu0 0.0
        %7291 = vmatprep.subr.mxu0 0.0
        %7292 = vmatpush1.xpose.msra.mxu0 0.0
        %7293 = vmatprep.subr.mxu0 0.0
        %7294 = vmatpush1.xpose.msra.mxu0 0.0
        %7295 = vmatprep.subr.mxu0 0.0
        %7296 = vmatpush1.xpose.msra.mxu0 0.0
        %7297 = vmatprep.subr.mxu0 0.0
        %7298 = vmatpush1.xpose.msra.mxu0 0.0
        %7299 = vmatprep.subr.mxu0 0.0
        %7300 = vmatpush1.xpose.msra.mxu0 0.0
        %7301 = vmatprep.subr.mxu0 0.0
        %7302 = vmatpush1.xpose.msra.mxu0 0.0
        %7303 = vmatprep.subr.mxu0 0.0
        %7304 = vmatpush1.xpose.msra.mxu0 0.0
        %7305 = vmatprep.subr.mxu0 0.0
        %7306 = vmatpush1.xpose.msra.mxu0 0.0
        %7307 = vmatprep.subr.mxu0 0.0
        %7308 = vmatpush1.xpose.msra.mxu0 0.0
        %7309 = vmatprep.subr.mxu0 0.0
        %7310 = vmatpush1.xpose.msra.mxu0 0.0
        %7311 = vmatprep.subr.mxu0 0.0
        %7312 = vmatpush1.xpose.msra.mxu0 0.0
        %7313 = vmatprep.subr.mxu0 0.0
        %7314 = vmatpush1.xpose.msra.mxu0 0.0
        %7315 = vmatprep.subr.mxu0 0.0
        %7316 = vmatpush1.xpose.msra.mxu0 0.0
        %7317 = vmatprep.subr.mxu0 0.0
        %7318 = vmatpush1.xpose.msra.mxu0 0.0
        %7319 = vmatprep.subr.mxu0 0.0
        %7320 = vmatpush1.xpose.msra.mxu0 0.0
        %7321 = vmatprep.subr.mxu0 0.0
        %7322 = vmatpush1.xpose.msra.mxu0 0.0
        %7323 = vmatprep.subr.mxu0 0.0
        %7324 = vmatpush1.xpose.msra.mxu0 0.0
        %7325 = vmatprep.subr.mxu0 0.0
        %7326 = vmatpush1.xpose.msra.mxu0 0.0
        %7327 = vmatprep.subr.mxu0 0.0
        %7328 = vmatpush1.xpose.msra.mxu0 0.0
        %7329 = vmatprep.mubr.f32.mxu0 0.0
        %7330 = vmatmul.mubr.f32.gmra.mrb[0].mxu0 %v7261
        %v7331 = vpop.f32.mrb[0].mxu0
        %v7332 = vadd.f32 0.0, %v7331
        %v7333 = vpop.f32.mrb[0].mxu0
        %7334 = vdwg.mxu0
        %v7335 = vsel %vm1658, %v7246, 0
        %v7337 = vsel %vm1658, %v7256, 0
        %7339 = vmatprep.subr.mxu0 0.0
        %7340 = vmatpush1.xpose.msra.mxu0 %v7337
        %7341 = vmatprep.subr.mxu0 0.0
        %7342 = vmatpush1.xpose.msra.mxu0 0.0
        %7343 = vmatprep.subr.mxu0 0.0
        %7344 = vmatpush1.xpose.msra.mxu0 0.0
        %7345 = vmatprep.subr.mxu0 0.0
        %7346 = vmatpush1.xpose.msra.mxu0 0.0
        %7347 = vmatprep.subr.mxu0 0.0
        %7348 = vmatpush1.xpose.msra.mxu0 0.0
        %7349 = vmatprep.subr.mxu0 0.0
        %7350 = vmatpush1.xpose.msra.mxu0 0.0
        %7351 = vmatprep.subr.mxu0 0.0
        %7352 = vmatpush1.xpose.msra.mxu0 0.0
        %7353 = vmatprep.subr.mxu0 0.0
        %7354 = vmatpush1.xpose.msra.mxu0 0.0
        %7355 = vmatprep.subr.mxu0 0.0
        %7356 = vmatpush1.xpose.msra.mxu0 0.0
        %7357 = vmatprep.subr.mxu0 0.0
        %7358 = vmatpush1.xpose.msra.mxu0 0.0
        %7359 = vmatprep.subr.mxu0 0.0
        %7360 = vmatpush1.xpose.msra.mxu0 0.0
        %7361 = vmatprep.subr.mxu0 0.0
        %7362 = vmatpush1.xpose.msra.mxu0 0.0
        %7363 = vmatprep.subr.mxu0 0.0
        %7364 = vmatpush1.xpose.msra.mxu0 0.0
        %7365 = vmatprep.subr.mxu0 0.0
        %7366 = vmatpush1.xpose.msra.mxu0 0.0
        %7367 = vmatprep.subr.mxu0 0.0
        %7368 = vmatpush1.xpose.msra.mxu0 0.0
        %7369 = vmatprep.subr.mxu0 0.0
        %7370 = vmatpush1.xpose.msra.mxu0 0.0
        %7371 = vmatprep.subr.mxu0 0.0
        %7372 = vmatpush1.xpose.msra.mxu0 0.0
        %7373 = vmatprep.subr.mxu0 0.0
        %7374 = vmatpush1.xpose.msra.mxu0 0.0
        %7375 = vmatprep.subr.mxu0 0.0
        %7376 = vmatpush1.xpose.msra.mxu0 0.0
        %7377 = vmatprep.subr.mxu0 0.0
        %7378 = vmatpush1.xpose.msra.mxu0 0.0
        %7379 = vmatprep.subr.mxu0 0.0
        %7380 = vmatpush1.xpose.msra.mxu0 0.0
        %7381 = vmatprep.subr.mxu0 0.0
        %7382 = vmatpush1.xpose.msra.mxu0 0.0
        %7383 = vmatprep.subr.mxu0 0.0
        %7384 = vmatpush1.xpose.msra.mxu0 0.0
        %7385 = vmatprep.subr.mxu0 0.0
        %7386 = vmatpush1.xpose.msra.mxu0 0.0
        %7387 = vmatprep.subr.mxu0 0.0
        %7388 = vmatpush1.xpose.msra.mxu0 0.0
        %7389 = vmatprep.subr.mxu0 0.0
        %7390 = vmatpush1.xpose.msra.mxu0 0.0
        %7391 = vmatprep.subr.mxu0 0.0
        %7392 = vmatpush1.xpose.msra.mxu0 0.0
        %7393 = vmatprep.subr.mxu0 0.0
        %7394 = vmatpush1.xpose.msra.mxu0 0.0
        %7395 = vmatprep.subr.mxu0 0.0
        %7396 = vmatpush1.xpose.msra.mxu0 0.0
        %7397 = vmatprep.subr.mxu0 0.0
        %7398 = vmatpush1.xpose.msra.mxu0 0.0
        %7399 = vmatprep.subr.mxu0 0.0
        %7400 = vmatpush1.xpose.msra.mxu0 0.0
        %7401 = vmatprep.subr.mxu0 0.0
        %7402 = vmatpush1.xpose.msra.mxu0 0.0
        %7403 = vmatprep.mubr.f32.mxu0 0.0
        %7404 = vmatmul.mubr.f32.gmra.mrb[0].mxu0 %v7335
        %v7405 = vpop.f32.mrb[0].mxu0
        %v7406 = vadd.f32 0.0, %v7405
        %v7407 = vpop.f32.mrb[0].mxu0
        %7408 = vdwg.mxu0
        %v7409 = vsel %vm1658, %v7249, 0
        %v7411 = vsel %vm1658, %v7258, 0
        %7413 = vmatprep.subr.mxu0 0.0
        %7414 = vmatpush1.xpose.msra.mxu0 %v7411
        %7415 = vmatprep.subr.mxu0 0.0
        %7416 = vmatpush1.xpose.msra.mxu0 0.0
        %7417 = vmatprep.subr.mxu0 0.0
        %7418 = vmatpush1.xpose.msra.mxu0 0.0
        %7419 = vmatprep.subr.mxu0 0.0
        %7420 = vmatpush1.xpose.msra.mxu0 0.0
        %7421 = vmatprep.subr.mxu0 0.0
        %7422 = vmatpush1.xpose.msra.mxu0 0.0
        %7423 = vmatprep.subr.mxu0 0.0
        %7424 = vmatpush1.xpose.msra.mxu0 0.0
        %7425 = vmatprep.subr.mxu0 0.0
        %7426 = vmatpush1.xpose.msra.mxu0 0.0
        %7427 = vmatprep.subr.mxu0 0.0
        %7428 = vmatpush1.xpose.msra.mxu0 0.0
        %7429 = vmatprep.subr.mxu0 0.0
        %7430 = vmatpush1.xpose.msra.mxu0 0.0
        %7431 = vmatprep.subr.mxu0 0.0
        %7432 = vmatpush1.xpose.msra.mxu0 0.0
        %7433 = vmatprep.subr.mxu0 0.0
        %7434 = vmatpush1.xpose.msra.mxu0 0.0
        %7435 = vmatprep.subr.mxu0 0.0
        %7436 = vmatpush1.xpose.msra.mxu0 0.0
        %7437 = vmatprep.subr.mxu0 0.0
        %7438 = vmatpush1.xpose.msra.mxu0 0.0
        %7439 = vmatprep.subr.mxu0 0.0
        %7440 = vmatpush1.xpose.msra.mxu0 0.0
        %7441 = vmatprep.subr.mxu0 0.0
        %7442 = vmatpush1.xpose.msra.mxu0 0.0
        %7443 = vmatprep.subr.mxu0 0.0
        %7444 = vmatpush1.xpose.msra.mxu0 0.0
        %7445 = vmatprep.subr.mxu0 0.0
        %7446 = vmatpush1.xpose.msra.mxu0 0.0
        %7447 = vmatprep.subr.mxu0 0.0
        %7448 = vmatpush1.xpose.msra.mxu0 0.0
        %7449 = vmatprep.subr.mxu0 0.0
        %7450 = vmatpush1.xpose.msra.mxu0 0.0
        %7451 = vmatprep.subr.mxu0 0.0
        %7452 = vmatpush1.xpose.msra.mxu0 0.0
        %7453 = vmatprep.subr.mxu0 0.0
        %7454 = vmatpush1.xpose.msra.mxu0 0.0
        %7455 = vmatprep.subr.mxu0 0.0
        %7456 = vmatpush1.xpose.msra.mxu0 0.0
        %7457 = vmatprep.subr.mxu0 0.0
        %7458 = vmatpush1.xpose.msra.mxu0 0.0
        %7459 = vmatprep.subr.mxu0 0.0
        %7460 = vmatpush1.xpose.msra.mxu0 0.0
        %7461 = vmatprep.subr.mxu0 0.0
        %7462 = vmatpush1.xpose.msra.mxu0 0.0
        %7463 = vmatprep.subr.mxu0 0.0
        %7464 = vmatpush1.xpose.msra.mxu0 0.0
        %7465 = vmatprep.subr.mxu0 0.0
        %7466 = vmatpush1.xpose.msra.mxu0 0.0
        %7467 = vmatprep.subr.mxu0 0.0
        %7468 = vmatpush1.xpose.msra.mxu0 0.0
        %7469 = vmatprep.subr.mxu0 0.0
        %7470 = vmatpush1.xpose.msra.mxu0 0.0
        %7471 = vmatprep.subr.mxu0 0.0
        %7472 = vmatpush1.xpose.msra.mxu0 0.0
        %7473 = vmatprep.subr.mxu0 0.0
        %7474 = vmatpush1.xpose.msra.mxu0 0.0
        %7475 = vmatprep.subr.mxu0 0.0
        %7476 = vmatpush1.xpose.msra.mxu0 0.0
        %7477 = vmatprep.mubr.f32.mxu0 0.0
        %7478 = vmatmul.mubr.f32.gmra.mrb[0].mxu0 %v7409
        %v7479 = vpop.f32.mrb[0].mxu0
        %v7480 = vadd.f32 0.0, %v7479
        %v7481 = vpop.f32.mrb[0].mxu0
        %7482 = vdwg.mxu0
        %v7483 = vsel %vm1658, %v7252, 0
        %v7485 = vsel %vm1658, %v7260, 0
        %7487 = vmatprep.subr.mxu0 0.0
        %7488 = vmatpush1.xpose.msra.mxu0 %v7485
        %7489 = vmatprep.subr.mxu0 0.0
        %7490 = vmatpush1.xpose.msra.mxu0 0.0
        %7491 = vmatprep.subr.mxu0 0.0
        %7492 = vmatpush1.xpose.msra.mxu0 0.0
        %7493 = vmatprep.subr.mxu0 0.0
        %7494 = vmatpush1.xpose.msra.mxu0 0.0
        %7495 = vmatprep.subr.mxu0 0.0
        %7496 = vmatpush1.xpose.msra.mxu0 0.0
        %7497 = vmatprep.subr.mxu0 0.0
        %7498 = vmatpush1.xpose.msra.mxu0 0.0
        %7499 = vmatprep.subr.mxu0 0.0
        %7500 = vmatpush1.xpose.msra.mxu0 0.0
        %7501 = vmatprep.subr.mxu0 0.0
        %7502 = vmatpush1.xpose.msra.mxu0 0.0
        %7503 = vmatprep.subr.mxu0 0.0
        %7504 = vmatpush1.xpose.msra.mxu0 0.0
        %7505 = vmatprep.subr.mxu0 0.0
        %7506 = vmatpush1.xpose.msra.mxu0 0.0
        %7507 = vmatprep.subr.mxu0 0.0
        %7508 = vmatpush1.xpose.msra.mxu0 0.0
        %7509 = vmatprep.subr.mxu0 0.0
        %7510 = vmatpush1.xpose.msra.mxu0 0.0
        %7511 = vmatprep.subr.mxu0 0.0
        %7512 = vmatpush1.xpose.msra.mxu0 0.0
        %7513 = vmatprep.subr.mxu0 0.0
        %7514 = vmatpush1.xpose.msra.mxu0 0.0
        %7515 = vmatprep.subr.mxu0 0.0
        %7516 = vmatpush1.xpose.msra.mxu0 0.0
        %7517 = vmatprep.subr.mxu0 0.0
        %7518 = vmatpush1.xpose.msra.mxu0 0.0
        %7519 = vmatprep.subr.mxu0 0.0
        %7520 = vmatpush1.xpose.msra.mxu0 0.0
        %7521 = vmatprep.subr.mxu0 0.0
        %7522 = vmatpush1.xpose.msra.mxu0 0.0
        %7523 = vmatprep.subr.mxu0 0.0
        %7524 = vmatpush1.xpose.msra.mxu0 0.0
        %7525 = vmatprep.subr.mxu0 0.0
        %7526 = vmatpush1.xpose.msra.mxu0 0.0
        %7527 = vmatprep.subr.mxu0 0.0
        %7528 = vmatpush1.xpose.msra.mxu0 0.0
        %7529 = vmatprep.subr.mxu0 0.0
        %7530 = vmatpush1.xpose.msra.mxu0 0.0
        %7531 = vmatprep.subr.mxu0 0.0
        %7532 = vmatpush1.xpose.msra.mxu0 0.0
        %7533 = vmatprep.subr.mxu0 0.0
        %7534 = vmatpush1.xpose.msra.mxu0 0.0
        %7535 = vmatprep.subr.mxu0 0.0
        %7536 = vmatpush1.xpose.msra.mxu0 0.0
        %7537 = vmatprep.subr.mxu0 0.0
        %7538 = vmatpush1.xpose.msra.mxu0 0.0
        %7539 = vmatprep.subr.mxu0 0.0
        %7540 = vmatpush1.xpose.msra.mxu0 0.0
        %7541 = vmatprep.subr.mxu0 0.0
        %7542 = vmatpush1.xpose.msra.mxu0 0.0
        %7543 = vmatprep.subr.mxu0 0.0
        %7544 = vmatpush1.xpose.msra.mxu0 0.0
        %7545 = vmatprep.subr.mxu0 0.0
        %7546 = vmatpush1.xpose.msra.mxu0 0.0
        %7547 = vmatprep.subr.mxu0 0.0
        %7548 = vmatpush1.xpose.msra.mxu0 0.0
        %7549 = vmatprep.subr.mxu0 0.0
        %7550 = vmatpush1.xpose.msra.mxu0 0.0
        %7551 = vmatprep.mubr.f32.mxu0 0.0
        %7552 = vmatmul.mubr.f32.gmra.mrb[0].mxu0 %v7483
        %v7553 = vpop.f32.mrb[0].mxu0
        %v7554 = vadd.f32 0.0, %v7553
        %v7555 = vpop.f32.mrb[0].mxu0
        %7556 = vdwg.mxu0
        %v7557 = vsel %vm6621, %v7332, -inf
        %7558 = vmax.xlane.f32.xlu0 %v7557
        %v7559 = vpop.xlane.xlu0 %7558
        %v7560 = vsel %vm6621, %v7406, -inf
        %7561 = vmax.xlane.f32.xlu0 %v7560
        %v7562 = vpop.xlane.xlu0 %7561
        %v7563 = vsel %vm6621, %v7480, -inf
        %7564 = vmax.xlane.f32.xlu0 %v7563
        %v7565 = vpop.xlane.xlu0 %7564
        %v7566 = vsel %vm6621, %v7554, -inf
        %7567 = vmax.xlane.f32.xlu0 %v7566
        %v7568 = vpop.xlane.xlu0 %7567
        %v7569 = vsub.f32 %v7332, %v7559
        %v7570 = vsub.f32 %v7406, %v7562
        %v7571 = vsub.f32 %v7480, %v7565
        %v7572 = vsub.f32 %v7554, %v7568
        %v7573 = vmul.f32 %v7569, 1.442695
        %v7574 = vpow.pop %v7573
        %v7575 = vmul.f32 %v7570, 1.442695
        %v7576 = vpow.pop %v7575
        %v7577 = vmul.f32 %v7571, 1.442695
        %v7578 = vpow.pop %v7577
        %v7579 = vmul.f32 %v7572, 1.442695
        %v7580 = vpow.pop %v7579
        %v7581 = vsel %vm6621, %v7574, 0.0
        %7582 = vadd.xlane.f32.xlu0 %v7581
        %v7583 = vpop.xlane.xlu0 %7582
        %v7584 = vsel %vm6621, %v7576, 0.0
        %7585 = vadd.xlane.f32.xlu0 %v7584
        %v7586 = vpop.xlane.xlu0 %7585
        %v7587 = vsel %vm6621, %v7578, 0.0
        %7588 = vadd.xlane.f32.xlu0 %v7587
        %v7589 = vpop.xlane.xlu0 %7588
        %v7590 = vsel %vm6621, %v7580, 0.0
        %7591 = vadd.xlane.f32.xlu0 %v7590
        %v7592 = vpop.xlane.xlu0 %7591
        %v7593 = vrcp.pop %v7583
        %v7594 = vrcp.pop %v7586
        %v7595 = vrcp.pop %v7589
        %v7596 = vrcp.pop %v7592
        %v7597 = vmul.f32 %v7574, %v7593
        %v7598 = vmul.f32 %v7576, %v7594
        %v7599 = vmul.f32 %v7578, %v7595
        %v7600 = vmul.f32 %v7580, %v7596
        %7601 = vrot.lane.b32.xlu0 %v7241, 96
        %v7602 = vpop.permute.xlu0 %7601
        %v7604 = vsel %vm1563, %v7597, 0
        %v7606 = vsel %vm1567, %v7602, 0
        %7608 = vmatprep.subr.mxu0 0.0
        %7609 = vmatpush1.msra.mxu0 %v7606
        %7610 = vmatprep.subr.mxu0 0.0
        %7611 = vmatpush1.msra.mxu0 0.0
        %7612 = vmatprep.subr.mxu0 0.0
        %7613 = vmatpush1.msra.mxu0 0.0
        %7614 = vmatprep.subr.mxu0 0.0
        %7615 = vmatpush1.msra.mxu0 0.0
        %7616 = vmatprep.subr.mxu0 0.0
        %7617 = vmatpush1.msra.mxu0 0.0
        %7618 = vmatprep.subr.mxu0 0.0
        %7619 = vmatpush1.msra.mxu0 0.0
        %7620 = vmatprep.subr.mxu0 0.0
        %7621 = vmatpush1.msra.mxu0 0.0
        %7622 = vmatprep.subr.mxu0 0.0
        %7623 = vmatpush1.msra.mxu0 0.0
        %7624 = vmatprep.subr.mxu0 0.0
        %7625 = vmatpush1.msra.mxu0 0.0
        %7626 = vmatprep.subr.mxu0 0.0
        %7627 = vmatpush1.msra.mxu0 0.0
        %7628 = vmatprep.subr.mxu0 0.0
        %7629 = vmatpush1.msra.mxu0 0.0
        %7630 = vmatprep.subr.mxu0 0.0
        %7631 = vmatpush1.msra.mxu0 0.0
        %7632 = vmatprep.subr.mxu0 0.0
        %7633 = vmatpush1.msra.mxu0 0.0
        %7634 = vmatprep.subr.mxu0 0.0
        %7635 = vmatpush1.msra.mxu0 0.0
        %7636 = vmatprep.subr.mxu0 0.0
        %7637 = vmatpush1.msra.mxu0 0.0
        %7638 = vmatprep.subr.mxu0 0.0
        %7639 = vmatpush1.msra.mxu0 0.0
        %7640 = vmatprep.subr.mxu0 0.0
        %7641 = vmatpush1.msra.mxu0 0.0
        %7642 = vmatprep.subr.mxu0 0.0
        %7643 = vmatpush1.msra.mxu0 0.0
        %7644 = vmatprep.subr.mxu0 0.0
        %7645 = vmatpush1.msra.mxu0 0.0
        %7646 = vmatprep.subr.mxu0 0.0
        %7647 = vmatpush1.msra.mxu0 0.0
        %7648 = vmatprep.subr.mxu0 0.0
        %7649 = vmatpush1.msra.mxu0 0.0
        %7650 = vmatprep.subr.mxu0 0.0
        %7651 = vmatpush1.msra.mxu0 0.0
        %7652 = vmatprep.subr.mxu0 0.0
        %7653 = vmatpush1.msra.mxu0 0.0
        %7654 = vmatprep.subr.mxu0 0.0
        %7655 = vmatpush1.msra.mxu0 0.0
        %7656 = vmatprep.subr.mxu0 0.0
        %7657 = vmatpush1.msra.mxu0 0.0
        %7658 = vmatprep.subr.mxu0 0.0
        %7659 = vmatpush1.msra.mxu0 0.0
        %7660 = vmatprep.subr.mxu0 0.0
        %7661 = vmatpush1.msra.mxu0 0.0
        %7662 = vmatprep.subr.mxu0 0.0
        %7663 = vmatpush1.msra.mxu0 0.0
        %7664 = vmatprep.subr.mxu0 0.0
        %7665 = vmatpush1.msra.mxu0 0.0
        %7666 = vmatprep.subr.mxu0 0.0
        %7667 = vmatpush1.msra.mxu0 0.0
        %7668 = vmatprep.subr.mxu0 0.0
        %7669 = vmatpush1.msra.mxu0 0.0
        %7670 = vmatprep.subr.mxu0 0.0
        %7671 = vmatpush1.msra.mxu0 0.0
        %7672 = vmatprep.mubr.f32.mxu0 0.0
        %7673 = vmatmul.mubr.f32.gmra.mrb[0].mxu0 %v7604
        %v7674 = vpop.f32.mrb[0].mxu0
        %v7675 = vadd.f32 0.0, %v7674
        %v7676 = vpop.f32.mrb[0].mxu0
        %7677 = vdwg.mxu0
        %7678 = vrot.lane.b32.xlu0 %v7256, 96
        %v7679 = vpop.permute.xlu0 %7678
        %v7681 = vsel %vm1563, %v7598, 0
        %v7683 = vsel %vm1567, %v7679, 0
        %7685 = vmatprep.subr.mxu0 0.0
        %7686 = vmatpush1.msra.mxu0 %v7683
        %7687 = vmatprep.subr.mxu0 0.0
        %7688 = vmatpush1.msra.mxu0 0.0
        %7689 = vmatprep.subr.mxu0 0.0
        %7690 = vmatpush1.msra.mxu0 0.0
        %7691 = vmatprep.subr.mxu0 0.0
        %7692 = vmatpush1.msra.mxu0 0.0
        %7693 = vmatprep.subr.mxu0 0.0
        %7694 = vmatpush1.msra.mxu0 0.0
        %7695 = vmatprep.subr.mxu0 0.0
        %7696 = vmatpush1.msra.mxu0 0.0
        %7697 = vmatprep.subr.mxu0 0.0
        %7698 = vmatpush1.msra.mxu0 0.0
        %7699 = vmatprep.subr.mxu0 0.0
        %7700 = vmatpush1.msra.mxu0 0.0
        %7701 = vmatprep.subr.mxu0 0.0
        %7702 = vmatpush1.msra.mxu0 0.0
        %7703 = vmatprep.subr.mxu0 0.0
        %7704 = vmatpush1.msra.mxu0 0.0
        %7705 = vmatprep.subr.mxu0 0.0
        %7706 = vmatpush1.msra.mxu0 0.0
        %7707 = vmatprep.subr.mxu0 0.0
        %7708 = vmatpush1.msra.mxu0 0.0
        %7709 = vmatprep.subr.mxu0 0.0
        %7710 = vmatpush1.msra.mxu0 0.0
        %7711 = vmatprep.subr.mxu0 0.0
        %7712 = vmatpush1.msra.mxu0 0.0
        %7713 = vmatprep.subr.mxu0 0.0
        %7714 = vmatpush1.msra.mxu0 0.0
        %7715 = vmatprep.subr.mxu0 0.0
        %7716 = vmatpush1.msra.mxu0 0.0
        %7717 = vmatprep.subr.mxu0 0.0
        %7718 = vmatpush1.msra.mxu0 0.0
        %7719 = vmatprep.subr.mxu0 0.0
        %7720 = vmatpush1.msra.mxu0 0.0
        %7721 = vmatprep.subr.mxu0 0.0
        %7722 = vmatpush1.msra.mxu0 0.0
        %7723 = vmatprep.subr.mxu0 0.0
        %7724 = vmatpush1.msra.mxu0 0.0
        %7725 = vmatprep.subr.mxu0 0.0
        %7726 = vmatpush1.msra.mxu0 0.0
        %7727 = vmatprep.subr.mxu0 0.0
        %7728 = vmatpush1.msra.mxu0 0.0
        %7729 = vmatprep.subr.mxu0 0.0
        %7730 = vmatpush1.msra.mxu0 0.0
        %7731 = vmatprep.subr.mxu0 0.0
        %7732 = vmatpush1.msra.mxu0 0.0
        %7733 = vmatprep.subr.mxu0 0.0
        %7734 = vmatpush1.msra.mxu0 0.0
        %7735 = vmatprep.subr.mxu0 0.0
        %7736 = vmatpush1.msra.mxu0 0.0
        %7737 = vmatprep.subr.mxu0 0.0
        %7738 = vmatpush1.msra.mxu0 0.0
        %7739 = vmatprep.subr.mxu0 0.0
        %7740 = vmatpush1.msra.mxu0 0.0
        %7741 = vmatprep.subr.mxu0 0.0
        %7742 = vmatpush1.msra.mxu0 0.0
        %7743 = vmatprep.subr.mxu0 0.0
        %7744 = vmatpush1.msra.mxu0 0.0
        %7745 = vmatprep.subr.mxu0 0.0
        %7746 = vmatpush1.msra.mxu0 0.0
        %7747 = vmatprep.subr.mxu0 0.0
        %7748 = vmatpush1.msra.mxu0 0.0
        %7749 = vmatprep.mubr.f32.mxu0 0.0
        %7750 = vmatmul.mubr.f32.gmra.mrb[0].mxu0 %v7681
        %v7751 = vpop.f32.mrb[0].mxu0
        %v7752 = vadd.f32 0.0, %v7751
        %v7753 = vpop.f32.mrb[0].mxu0
        %7754 = vdwg.mxu0
        %7755 = vrot.lane.b32.xlu0 %v7258, 96
        %v7756 = vpop.permute.xlu0 %7755
        %v7758 = vsel %vm1563, %v7599, 0
        %v7760 = vsel %vm1567, %v7756, 0
        %7762 = vmatprep.subr.mxu0 0.0
        %7763 = vmatpush1.msra.mxu0 %v7760
        %7764 = vmatprep.subr.mxu0 0.0
        %7765 = vmatpush1.msra.mxu0 0.0
        %7766 = vmatprep.subr.mxu0 0.0
        %7767 = vmatpush1.msra.mxu0 0.0
        %7768 = vmatprep.subr.mxu0 0.0
        %7769 = vmatpush1.msra.mxu0 0.0
        %7770 = vmatprep.subr.mxu0 0.0
        %7771 = vmatpush1.msra.mxu0 0.0
        %7772 = vmatprep.subr.mxu0 0.0
        %7773 = vmatpush1.msra.mxu0 0.0
        %7774 = vmatprep.subr.mxu0 0.0
        %7775 = vmatpush1.msra.mxu0 0.0
        %7776 = vmatprep.subr.mxu0 0.0
        %7777 = vmatpush1.msra.mxu0 0.0
        %7778 = vmatprep.subr.mxu0 0.0
        %7779 = vmatpush1.msra.mxu0 0.0
        %7780 = vmatprep.subr.mxu0 0.0
        %7781 = vmatpush1.msra.mxu0 0.0
        %7782 = vmatprep.subr.mxu0 0.0
        %7783 = vmatpush1.msra.mxu0 0.0
        %7784 = vmatprep.subr.mxu0 0.0
        %7785 = vmatpush1.msra.mxu0 0.0
        %7786 = vmatprep.subr.mxu0 0.0
        %7787 = vmatpush1.msra.mxu0 0.0
        %7788 = vmatprep.subr.mxu0 0.0
        %7789 = vmatpush1.msra.mxu0 0.0
        %7790 = vmatprep.subr.mxu0 0.0
        %7791 = vmatpush1.msra.mxu0 0.0
        %7792 = vmatprep.subr.mxu0 0.0
        %7793 = vmatpush1.msra.mxu0 0.0
        %7794 = vmatprep.subr.mxu0 0.0
        %7795 = vmatpush1.msra.mxu0 0.0
        %7796 = vmatprep.subr.mxu0 0.0
        %7797 = vmatpush1.msra.mxu0 0.0
        %7798 = vmatprep.subr.mxu0 0.0
        %7799 = vmatpush1.msra.mxu0 0.0
        %7800 = vmatprep.subr.mxu0 0.0
        %7801 = vmatpush1.msra.mxu0 0.0
        %7802 = vmatprep.subr.mxu0 0.0
        %7803 = vmatpush1.msra.mxu0 0.0
        %7804 = vmatprep.subr.mxu0 0.0
        %7805 = vmatpush1.msra.mxu0 0.0
        %7806 = vmatprep.subr.mxu0 0.0
        %7807 = vmatpush1.msra.mxu0 0.0
        %7808 = vmatprep.subr.mxu0 0.0
        %7809 = vmatpush1.msra.mxu0 0.0
        %7810 = vmatprep.subr.mxu0 0.0
        %7811 = vmatpush1.msra.mxu0 0.0
        %7812 = vmatprep.subr.mxu0 0.0
        %7813 = vmatpush1.msra.mxu0 0.0
        %7814 = vmatprep.subr.mxu0 0.0
        %7815 = vmatpush1.msra.mxu0 0.0
        %7816 = vmatprep.subr.mxu0 0.0
        %7817 = vmatpush1.msra.mxu0 0.0
        %7818 = vmatprep.subr.mxu0 0.0
        %7819 = vmatpush1.msra.mxu0 0.0
        %7820 = vmatprep.subr.mxu0 0.0
        %7821 = vmatpush1.msra.mxu0 0.0
        %7822 = vmatprep.subr.mxu0 0.0
        %7823 = vmatpush1.msra.mxu0 0.0
        %7824 = vmatprep.subr.mxu0 0.0
        %7825 = vmatpush1.msra.mxu0 0.0
        %7826 = vmatprep.mubr.f32.mxu0 0.0
        %7827 = vmatmul.mubr.f32.gmra.mrb[0].mxu0 %v7758
        %v7828 = vpop.f32.mrb[0].mxu0
        %v7829 = vadd.f32 0.0, %v7828
        %v7830 = vpop.f32.mrb[0].mxu0
        %7831 = vdwg.mxu0
        %7832 = vrot.lane.b32.xlu0 %v7260, 96
        %v7833 = vpop.permute.xlu0 %7832
        %v7835 = vsel %vm1563, %v7600, 0
        %v7837 = vsel %vm1567, %v7833, 0
        %7839 = vmatprep.subr.mxu0 0.0
        %7840 = vmatpush1.msra.mxu0 %v7837
        %7841 = vmatprep.subr.mxu0 0.0
        %7842 = vmatpush1.msra.mxu0 0.0
        %7843 = vmatprep.subr.mxu0 0.0
        %7844 = vmatpush1.msra.mxu0 0.0
        %7845 = vmatprep.subr.mxu0 0.0
        %7846 = vmatpush1.msra.mxu0 0.0
        %7847 = vmatprep.subr.mxu0 0.0
        %7848 = vmatpush1.msra.mxu0 0.0
        %7849 = vmatprep.subr.mxu0 0.0
        %7850 = vmatpush1.msra.mxu0 0.0
        %7851 = vmatprep.subr.mxu0 0.0
        %7852 = vmatpush1.msra.mxu0 0.0
        %7853 = vmatprep.subr.mxu0 0.0
        %7854 = vmatpush1.msra.mxu0 0.0
        %7855 = vmatprep.subr.mxu0 0.0
        %7856 = vmatpush1.msra.mxu0 0.0
        %7857 = vmatprep.subr.mxu0 0.0
        %7858 = vmatpush1.msra.mxu0 0.0
        %7859 = vmatprep.subr.mxu0 0.0
        %7860 = vmatpush1.msra.mxu0 0.0
        %7861 = vmatprep.subr.mxu0 0.0
        %7862 = vmatpush1.msra.mxu0 0.0
        %7863 = vmatprep.subr.mxu0 0.0
        %7864 = vmatpush1.msra.mxu0 0.0
        %7865 = vmatprep.subr.mxu0 0.0
        %7866 = vmatpush1.msra.mxu0 0.0
        %7867 = vmatprep.subr.mxu0 0.0
        %7868 = vmatpush1.msra.mxu0 0.0
        %7869 = vmatprep.subr.mxu0 0.0
        %7870 = vmatpush1.msra.mxu0 0.0
        %7871 = vmatprep.subr.mxu0 0.0
        %7872 = vmatpush1.msra.mxu0 0.0
        %7873 = vmatprep.subr.mxu0 0.0
        %7874 = vmatpush1.msra.mxu0 0.0
        %7875 = vmatprep.subr.mxu0 0.0
        %7876 = vmatpush1.msra.mxu0 0.0
        %7877 = vmatprep.subr.mxu0 0.0
        %7878 = vmatpush1.msra.mxu0 0.0
        %7879 = vmatprep.subr.mxu0 0.0
        %7880 = vmatpush1.msra.mxu0 0.0
        %7881 = vmatprep.subr.mxu0 0.0
        %7882 = vmatpush1.msra.mxu0 0.0
        %7883 = vmatprep.subr.mxu0 0.0
        %7884 = vmatpush1.msra.mxu0 0.0
        %7885 = vmatprep.subr.mxu0 0.0
        %7886 = vmatpush1.msra.mxu0 0.0
        %7887 = vmatprep.subr.mxu0 0.0
        %7888 = vmatpush1.msra.mxu0 0.0
        %7889 = vmatprep.subr.mxu0 0.0
        %7890 = vmatpush1.msra.mxu0 0.0
        %7891 = vmatprep.subr.mxu0 0.0
        %7892 = vmatpush1.msra.mxu0 0.0
        %7893 = vmatprep.subr.mxu0 0.0
        %7894 = vmatpush1.msra.mxu0 0.0
        %7895 = vmatprep.subr.mxu0 0.0
        %7896 = vmatpush1.msra.mxu0 0.0
        %7897 = vmatprep.subr.mxu0 0.0
        %7898 = vmatpush1.msra.mxu0 0.0
        %7899 = vmatprep.subr.mxu0 0.0
        %7900 = vmatpush1.msra.mxu0 0.0
        %7901 = vmatprep.subr.mxu0 0.0
        %7902 = vmatpush1.msra.mxu0 0.0
        %7903 = vmatprep.mubr.f32.mxu0 0.0
        %7904 = vmatmul.mubr.f32.gmra.mrb[0].mxu0 %v7835
        %v7905 = vpop.f32.mrb[0].mxu0
        %v7906 = vadd.f32 0.0, %v7905
        %v7907 = vpop.f32.mrb[0].mxu0
        %7908 = vdwg.mxu0
        %v7909 = vadd.f32 %v7160, %v7675
        %v7910 = vadd.f32 %v7246, %v7752
        %v7911 = vadd.f32 %v7249, %v7829
        %v7912 = vadd.f32 %v7252, %v7906
        %7914 = vrot.lane.b32.xlu0 %v7910, 8
        %v7915 = vpop.permute.xlu0 %7914
        %7918 = vrot.lane.b32.xlu0 %v7911, 16
        %v7919 = vpop.permute.xlu0 %7918
        %7922 = vrot.lane.b32.xlu0 %v7912, 24
        %v7923 = vpop.permute.xlu0 %7922
        %v7925 = vsel %vm1658, %v7909, %v7915
        %v7926 = vsel %vm2320, %v7925, %v7919
        %v7927 = vsel %vm2322, %v7926, %v7923
        %v7928 = vld [vmem:[%s93] sm:$0xff]
        %v7929 = vld [vmem:[%s93 + $0x8] sm:$0xff]
        %v7930 = vld [vmem:[%s93 + $0x10] sm:$0xff]
        %v7931 = vld [vmem:[%s93 + $0x18] sm:$0xff]
        %v7932 = vld [vmem:[#allocation5] sm:$0x1]
        %v7934 = vlaneseq
        %v7935 = vshrl.u32 %v7934, 7
        %v7936 = vsub.s32 0, %v7935
        %v7937 = vrot.slane %v7932, %v7936
        %v7940 = vsel %vm1481, %v7927, 0
        %7942 = vmatprep.subr.mxu0 0.0
        %7943 = vmatpush1.msra.mxu0 %v7928
        %7944 = vmatprep.subr.mxu0 0.0
        %7945 = vmatpush1.msra.mxu0 %v7929
        %7946 = vmatprep.subr.mxu0 0.0
        %7947 = vmatpush1.msra.mxu0 %v7930
        %7948 = vmatprep.subr.mxu0 0.0
        %7949 = vmatpush1.msra.mxu0 %v7931
        %7950 = vmatprep.subr.mxu0 0.0
        %7951 = vmatpush1.msra.mxu0 0.0
        %7952 = vmatprep.subr.mxu0 0.0
        %7953 = vmatpush1.msra.mxu0 0.0
        %7954 = vmatprep.subr.mxu0 0.0
        %7955 = vmatpush1.msra.mxu0 0.0
        %7956 = vmatprep.subr.mxu0 0.0
        %7957 = vmatpush1.msra.mxu0 0.0
        %7958 = vmatprep.subr.mxu0 0.0
        %7959 = vmatpush1.msra.mxu0 0.0
        %7960 = vmatprep.subr.mxu0 0.0
        %7961 = vmatpush1.msra.mxu0 0.0
        %7962 = vmatprep.subr.mxu0 0.0
        %7963 = vmatpush1.msra.mxu0 0.0
        %7964 = vmatprep.subr.mxu0 0.0
        %7965 = vmatpush1.msra.mxu0 0.0
        %7966 = vmatprep.subr.mxu0 0.0
        %7967 = vmatpush1.msra.mxu0 0.0
        %7968 = vmatprep.subr.mxu0 0.0
        %7969 = vmatpush1.msra.mxu0 0.0
        %7970 = vmatprep.subr.mxu0 0.0
        %7971 = vmatpush1.msra.mxu0 0.0
        %7972 = vmatprep.subr.mxu0 0.0
        %7973 = vmatpush1.msra.mxu0 0.0
        %7974 = vmatprep.subr.mxu0 0.0
        %7975 = vmatpush1.msra.mxu0 0.0
        %7976 = vmatprep.subr.mxu0 0.0
        %7977 = vmatpush1.msra.mxu0 0.0
        %7978 = vmatprep.subr.mxu0 0.0
        %7979 = vmatpush1.msra.mxu0 0.0
        %7980 = vmatprep.subr.mxu0 0.0
        %7981 = vmatpush1.msra.mxu0 0.0
        %7982 = vmatprep.subr.mxu0 0.0
        %7983 = vmatpush1.msra.mxu0 0.0
        %7984 = vmatprep.subr.mxu0 0.0
        %7985 = vmatpush1.msra.mxu0 0.0
        %7986 = vmatprep.subr.mxu0 0.0
        %7987 = vmatpush1.msra.mxu0 0.0
        %7988 = vmatprep.subr.mxu0 0.0
        %7989 = vmatpush1.msra.mxu0 0.0
        %7990 = vmatprep.subr.mxu0 0.0
        %7991 = vmatpush1.msra.mxu0 0.0
        %7992 = vmatprep.subr.mxu0 0.0
        %7993 = vmatpush1.msra.mxu0 0.0
        %7994 = vmatprep.subr.mxu0 0.0
        %7995 = vmatpush1.msra.mxu0 0.0
        %7996 = vmatprep.subr.mxu0 0.0
        %7997 = vmatpush1.msra.mxu0 0.0
        %7998 = vmatprep.subr.mxu0 0.0
        %7999 = vmatpush1.msra.mxu0 0.0
        %8000 = vmatprep.subr.mxu0 0.0
        %8001 = vmatpush1.msra.mxu0 0.0
        %8002 = vmatprep.subr.mxu0 0.0
        %8003 = vmatpush1.msra.mxu0 0.0
        %8004 = vmatprep.subr.mxu0 0.0
        %8005 = vmatpush1.msra.mxu0 0.0
        %8006 = vmatprep.mubr.f32.mxu0 0.0
        %8007 = vmatmul.mubr.f32.gmra.mrb[0].mxu0 %v7940
        %v8008 = vpop.f32.mrb[0].mxu0
        %v8009 = vadd.f32 %v7937, %v8008
        %v8010 = vpop.f32.mrb[0].mxu0
        %8011 = vdwg.mxu0
        %v8012 = vmax.f32 %v8009, 0.0
        %v8013 = vadd.f32 %v7927, %v8012
        %v8014 = vld [vmem:[%s5] sm:$0xff]
        %v8015 = vld [vmem:[%s5 + $0x8] sm:$0xff]
        %v8016 = vld [vmem:[%s5 + $0x10] sm:$0xff]
        %v8017 = vld [vmem:[%s5 + $0x18] sm:$0xff]
        %v8018 = vld [vmem:[%s3] sm:$0x1]
        %v8020 = vlaneseq
        %v8021 = vshrl.u32 %v8020, 7
        %v8022 = vsub.s32 0, %v8021
        %v8023 = vrot.slane %v8018, %v8022
        %v8026 = vsel %vm1481, %v8013, 0
        %8028 = vmatprep.subr.mxu0 0.0
        %8029 = vmatpush1.msra.mxu0 %v8014
        %8030 = vmatprep.subr.mxu0 0.0
        %8031 = vmatpush1.msra.mxu0 %v8015
        %8032 = vmatprep.subr.mxu0 0.0
        %8033 = vmatpush1.msra.mxu0 %v8016
        %8034 = vmatprep.subr.mxu0 0.0
        %8035 = vmatpush1.msra.mxu0 %v8017
        %8036 = vmatprep.subr.mxu0 0.0
        %8037 = vmatpush1.msra.mxu0 0.0
        %8038 = vmatprep.subr.mxu0 0.0
        %8039 = vmatpush1.msra.mxu0 0.0
        %8040 = vmatprep.subr.mxu0 0.0
        %8041 = vmatpush1.msra.mxu0 0.0
        %8042 = vmatprep.subr.mxu0 0.0
        %8043 = vmatpush1.msra.mxu0 0.0
        %8044 = vmatprep.subr.mxu0 0.0
        %8045 = vmatpush1.msra.mxu0 0.0
        %8046 = vmatprep.subr.mxu0 0.0
        %8047 = vmatpush1.msra.mxu0 0.0
        %8048 = vmatprep.subr.mxu0 0.0
        %8049 = vmatpush1.msra.mxu0 0.0
        %8050 = vmatprep.subr.mxu0 0.0
        %8051 = vmatpush1.msra.mxu0 0.0
        %8052 = vmatprep.subr.mxu0 0.0
        %8053 = vmatpush1.msra.mxu0 0.0
        %8054 = vmatprep.subr.mxu0 0.0
        %8055 = vmatpush1.msra.mxu0 0.0
        %8056 = vmatprep.subr.mxu0 0.0
        %8057 = vmatpush1.msra.mxu0 0.0
        %8058 = vmatprep.subr.mxu0 0.0
        %8059 = vmatpush1.msra.mxu0 0.0
        %8060 = vmatprep.subr.mxu0 0.0
        %8061 = vmatpush1.msra.mxu0 0.0
        %8062 = vmatprep.subr.mxu0 0.0
        %8063 = vmatpush1.msra.mxu0 0.0
        %8064 = vmatprep.subr.mxu0 0.0
        %8065 = vmatpush1.msra.mxu0 0.0
        %8066 = vmatprep.subr.mxu0 0.0
        %8067 = vmatpush1.msra.mxu0 0.0
        %8068 = vmatprep.subr.mxu0 0.0
        %8069 = vmatpush1.msra.mxu0 0.0
        %8070 = vmatprep.subr.mxu0 0.0
        %8071 = vmatpush1.msra.mxu0 0.0
        %8072 = vmatprep.subr.mxu0 0.0
        %8073 = vmatpush1.msra.mxu0 0.0
        %8074 = vmatprep.subr.mxu0 0.0
        %8075 = vmatpush1.msra.mxu0 0.0
        %8076 = vmatprep.subr.mxu0 0.0
        %8077 = vmatpush1.msra.mxu0 0.0
        %8078 = vmatprep.subr.mxu0 0.0
        %8079 = vmatpush1.msra.mxu0 0.0
        %8080 = vmatprep.subr.mxu0 0.0
        %8081 = vmatpush1.msra.mxu0 0.0
        %8082 = vmatprep.subr.mxu0 0.0
        %8083 = vmatpush1.msra.mxu0 0.0
        %8084 = vmatprep.subr.mxu0 0.0
        %8085 = vmatpush1.msra.mxu0 0.0
        %8086 = vmatprep.subr.mxu0 0.0
        %8087 = vmatpush1.msra.mxu0 0.0
        %8088 = vmatprep.subr.mxu0 0.0
        %8089 = vmatpush1.msra.mxu0 0.0
        %8090 = vmatprep.subr.mxu0 0.0
        %8091 = vmatpush1.msra.mxu0 0.0
        %8092 = vmatprep.mubr.f32.mxu0 0.0
        %8093 = vmatmul.mubr.f32.gmra.mrb[0].mxu0 %v8026
        %v8094 = vpop.f32.mrb[0].mxu0
        %v8095 = vadd.f32 %v8023, %v8094
        %v8096 = vpop.f32.mrb[0].mxu0
        %8097 = vdwg.mxu0
        %vm8098 = vcmask 125952
        %8099 = vst.msk [vmem:[%s1463] sm:$0xf] %vm8098, %v8095
        %s8100 = sand.u32 %s1134, 1
        %s8101 = scalar_lea.sflag [#allocation4], %s8100
        %s8102 = sand.u32 %s1134, 1
        %s8103 = smul.addr %s8102, 4
        %s8104 = scalar_lea.vmem [#allocation8], %s8103
        // Predicated region
        $region225: #{set_transformer_forward.1} parent=211 // pred_check
          %p8105 = pneg %p1144
        $region226: #{set_transformer_forward.1} parent=211 // pred_check_branch
          %8107 = sbr.rel (%p8105) target = $region228
        $region227: #{set_transformer_forward.1} parent=211 // pred_region
          %s8109 = ssub.s32 64, 64
          %8110 = vsyncadd %s8101, %s8109
          %s8111 = smul.addr %s113, 64
          %s8112 = scalar_lea.hbm %s97, %s8111
          %s8114 = sshll.u32 %s8104, 4
          %s8115 = int_to_ptr.vmem [resolvable:$true] %s8114
          %8117 = dma.vmem_to_hbm [thread:$0]  %s8115, 64, %s8112, %s8101
        $region228: #{set_transformer_forward.1} parent=211 // pred_fallthru
          _
      $region212: #{set_transformer_forward.1} parent=5 // pred_fallthru
        _
      %p8118 = scmp.le.s32.totalorder 2, %s108
      // Predicated region
      $region229: #{set_transformer_forward.1} parent=5 // pred_check
        %p8119 = pneg %p8118
      $region230: #{set_transformer_forward.1} parent=5 // pred_check_branch
        %8121 = sbr.rel (%p8119) target = $region232
      $region231: #{set_transformer_forward.1} parent=5 // pred_region
        %s8122 = ssub.s32 %s108, 2
        // Predicated region
        $region233: #{set_transformer_forward.1} parent=231 // pred_check
          %p8123 = pneg %p1150
        $region234: #{set_transformer_forward.1} parent=231 // pred_check_branch
          %8125 = sbr.rel (%p8123) target = $region236
        $region235: #{set_transformer_forward.1} parent=231 // pred_region
          %s8126 = sand.u32 %s1135, 1
          %s8127 = scalar_lea.sflag [#allocation4], %s8126
          %s8128 = sand.u32 %s1135, 1
          %s8129 = smul.addr %s8128, 4
          %s8130 = scalar_lea.vmem [#allocation8], %s8129
          %8131 = dma.done %s8127, 64
        $region236: #{set_transformer_forward.1} parent=231 // pred_fallthru
          _
      $region232: #{set_transformer_forward.1} parent=5 // pred_fallthru
        _
    $region6: #{set_transformer_forward.1} parent=1 // loop_footer
      %s112 = sadd.s32 1, %s108
    $region7: #{set_transformer_forward.1} parent=1 // loop_footer_branch
      %107 = sbr.rel target = $region3
    $region8: #{set_transformer_forward.1} parent=1 // loop_exit
      _
    %8132 = vsyncpa [#allocation3], 1
    %s8133 = scalar_lea.sflag [#allocation3], 1
    %8134 = vsyncpa %s8133, 1
    %8135 = vsyncpa [#allocation6], 1
    %8136 = vsyncpa [#allocation4], 1
    %s8137 = scalar_lea.sflag [#allocation4], 1
    %8138 = vsyncpa %s8137, 1

</llo_original>
